<compile_context>
chip_gen: v7x
topology: tpu7x:2x2x1
jax: 0.10.0
libtpu: 0.0.40
codegen_flags: <defaults>
</compile_context>

<pallas_src>
import functools

import jax
import jax.numpy as jnp
from jax import lax
from jax.experimental import pallas as pl
from jax.experimental.pallas import tpu as pltpu


def _round_up(x, m):
    return (x + m - 1) // m * m


def _pick_batch_tile(batch):
    tb = batch
    for cand in (256, 128, 64, 32, 16, 8):
        if batch % cand == 0:
            tb = cand
            break
    # Prefer >=2 batch tiles (megacore sharding on v7x) when each tile still
    # fills the 128/256-wide MXU M dimension.
    if tb == batch and batch % 2 == 0 and batch // 2 >= 128:
        tb = batch // 2
    return tb


def _pick_time_chunk(seq_len, tb, in_sz, *, max_chunk=64, budget_bytes=4 << 20):
    """Time-chunk length: divides seq_len; block (tb, Tc, in_sz) stays legal."""
    if seq_len <= max_chunk:
        return seq_len                      # whole sequence, one chunk
    best = None
    c = 8
    while c <= max_chunk:                   # multiples of 8 keep the sublane rule
        if seq_len % c == 0 and tb * c * in_sz * 2 <= budget_bytes:
            best = c
        c += 8
    if best is not None:
        return best
    return seq_len                          # fallback: full-dim block (always legal)


def _vmem_limit_bytes(tb, t_chunk, in_sz, hp, outp):
    bf2, f4 = 2, 4
    w = (in_sz * 4 * hp + hp * 4 * hp + hp * outp) * bf2 + (4 * hp + outp) * f4
    x = 2 * tb * t_chunk * in_sz * bf2          # double-buffered x chunk
    o = 2 * tb * outp * f4                      # double-buffered output block
    state = 2 * tb * hp * f4                    # h / c scratch
    gates = 3 * tb * 4 * hp * f4                # gates value + matmul staging
    need = 2 * w + x + o + state + gates        # weights counted 2x (buffer-agnostic)
    need = int(need * 1.25) + (4 << 20)         # Mosaic internal scratch margin
    cap = 64 << 20
    try:
        cap = int(pltpu.get_tpu_info().vmem_capacity_bytes)
    except Exception:
        pass
    return max(16 << 20, min(need, cap - (8 << 20)))


def _lstm_decoder_kernel(x_ref, wx_ref, wh_ref, b_ref, wfc_ref, bfc_ref,
                         out_ref, h_scr, c_scr, *, t_chunk, hid_p, max_unroll=32):
    tc = pl.program_id(1)

    @pl.when(tc == 0)
    def _init():
        h_scr[...] = jnp.zeros_like(h_scr)
        c_scr[...] = jnp.zeros_like(c_scr)

    # Hoisted once per chunk: weight / bias loads (weights stay VMEM-resident).
    wx = wx_ref[...]                      # (IN, 4*Hp) bf16
    wh = wh_ref[...]                      # (Hp, 4*Hp) bf16
    b = b_ref[...]                        # (1, 4*Hp) f32 (b_ih + b_hh fused)

    h = h_scr[...]                        # (TB, Hp) f32
    c = c_scr[...]

    def _sig(v):                          # 1 EUP op instead of exp + recip
        return 0.5 * jnp.tanh(0.5 * v) + 0.5

    def _step(t, carry):
        h, c = carry
        x_t = x_ref[:, t, :]              # (TB, IN) bf16
        gates = (jnp.dot(x_t, wx, preferred_element_type=jnp.float32)
                 + jnp.dot(h.astype(wh.dtype), wh,
                           preferred_element_type=jnp.float32)
                 + b)
        # PyTorch gate order i, f, g, o; slices are 128-lane aligned.
        i_g = _sig(gates[:, 0 * hid_p:1 * hid_p])
        f_g = _sig(gates[:, 1 * hid_p:2 * hid_p])
        g_g = jnp.tanh(gates[:, 2 * hid_p:3 * hid_p])
        o_g = _sig(gates[:, 3 * hid_p:4 * hid_p])
        c = f_g * c + i_g * g_g
        h = o_g * jnp.tanh(c)
        return h, c

    if t_chunk <= max_unroll:
        for t in range(t_chunk):          # static full unroll (LLO visibility)
            h, c = _step(t, (h, c))
    else:
        h, c = lax.fori_loop(0, t_chunk, _step, (h, c), unroll=8)

    h_scr[...] = h
    c_scr[...] = c

    # Last time chunk: final hidden state through the FC head (lane-dense out).
    @pl.when(tc == pl.num_programs(1) - 1)
    def _final():
        out_ref[...] = (jnp.dot(h.astype(wfc_ref.dtype), wfc_ref[...],
                                preferred_element_type=jnp.float32)
                        + bfc_ref[...]).astype(out_ref.dtype)


def _pack_gate_weight(w, rows, rows_pad, hid, hid_p, dtype):
    """(4*hid, rows) PyTorch layout -> (rows_pad, 4*hid_p), gate-blocked cols."""
    wt = w.T.astype(jnp.float32)                            # (rows, 4*hid)
    out = jnp.zeros((rows_pad, 4 * hid_p), jnp.float32)
    for k in range(4):
        out = out.at[:rows, k * hid_p:k * hid_p + hid].set(
            wt[:, k * hid:(k + 1) * hid])
    return out.astype(dtype)


def lstm_decoder(x, w_ih, b_ih, w_hh, b_hh, w_fc, b_fc, *, lane=128):
    """Forward of LSTMDecoder.

    x: (B, T, input_size)
    w_ih: (4H, input_size), w_hh: (4H, H), b_ih/b_hh: (4H,)  [PyTorch layout]
    w_fc: (output_size, H), b_fc: (output_size,)
    Returns (B, output_size) in float32.
    """
    batch, seq_len, in_sz = x.shape
    hid = w_hh.shape[1]
    out_sz = w_fc.shape[0]
    assert w_ih.shape == (4 * hid, in_sz)

    hp = _round_up(hid, lane)
    outp = _round_up(out_sz, lane)
    tb = _pick_batch_tile(batch)
    nb = batch // tb
    t_chunk = _pick_time_chunk(seq_len, tb, in_sz)
    n_chunks = seq_len // t_chunk
    f32, bf16 = jnp.float32, jnp.bfloat16

    # ---- Pack / pad parameters (once per call, outside the kernel) ----------
    wx = _pack_gate_weight(w_ih, in_sz, in_sz, hid, hp, bf16)   # (IN, 4*Hp)
    wh = _pack_gate_weight(w_hh, hid, hp, hid, hp, bf16)        # (Hp, 4*Hp)

    b_fused = (b_ih + b_hh).astype(f32)                         # (4H,)
    b = jnp.zeros((1, 4 * hp), f32)
    for k in range(4):
        b = b.at[0, k * hp:k * hp + hid].set(b_fused[k * hid:(k + 1) * hid])

    wfc = jnp.zeros((hp, outp), f32).at[:hid, :out_sz].set(
        w_fc.T.astype(f32)).astype(bf16)                        # (Hp, OUTp)
    bfc = jnp.zeros((1, outp), f32).at[0, :out_sz].set(b_fc.astype(f32))

    x_bf = x.astype(bf16)                                       # (B, T, IN), batch-first

    vmem_limit = _vmem_limit_bytes(tb, t_chunk, in_sz, hp, outp)

    kern = functools.partial(_lstm_decoder_kernel, t_chunk=t_chunk, hid_p=hp)

    def _call(weight_buffering):
        def wspec(shape):
            kw = {}
            if weight_buffering is not None:
                kw["pipeline_mode"] = pl.Buffered(weight_buffering)
            return pl.BlockSpec(shape, lambda bi, ci: (0, 0), **kw)

        return pl.pallas_call(
            kern,
            out_shape=jax.ShapeDtypeStruct((batch, outp), f32),
            grid=(nb, n_chunks),
            in_specs=[
                pl.BlockSpec((tb, t_chunk, in_sz),
                             lambda bi, ci: (bi, ci, 0)),        # x chunk
                wspec((in_sz, 4 * hp)),                          # Wx (resident)
                wspec((hp, 4 * hp)),                             # Wh (resident)
                wspec((1, 4 * hp)),                              # fused bias
                wspec((hp, outp)),                               # W_fc
                wspec((1, outp)),                                # b_fc
            ],
            out_specs=pl.BlockSpec((tb, outp), lambda bi, ci: (bi, 0)),
            scratch_shapes=[
                pltpu.VMEM((tb, hp), f32),                       # h state
                pltpu.VMEM((tb, hp), f32),                       # c state
            ],
            compiler_params=pltpu.CompilerParams(
                dimension_semantics=("parallel", "arbitrary"),
                vmem_limit_bytes=vmem_limit),
        )(x_bf, wx, wh, b, wfc, bfc)

    try:
        out_padded = _call(weight_buffering=1)    # single-buffer resident weights
    except Exception:
        out_padded = _call(weight_buffering=None)  # fallback: default buffering

    return out_padded[:, :out_sz]


def lstm_decoder_ref(x, w_ih, b_ih, w_hh, b_hh, w_fc, b_fc):
    batch, seq_len, _ = x.shape
    hid = w_hh.shape[1]
    h = jnp.zeros((batch, hid), jnp.float32)
    c = jnp.zeros((batch, hid), jnp.float32)
    for t in range(seq_len):
        gates = x[:, t, :] @ w_ih.T + b_ih + h @ w_hh.T + b_hh
        i_g, f_g, g_g, o_g = jnp.split(gates, 4, axis=-1)
        i_g = jax.nn.sigmoid(i_g)
        f_g = jax.nn.sigmoid(f_g)
        g_g = jnp.tanh(g_g)
        o_g = jax.nn.sigmoid(o_g)
        c = f_g * c + i_g * g_g
        h = o_g * jnp.tanh(c)
    return h @ w_fc.T + b_fc


if __name__ == "__main__":
    B, T, IN, H, OUT = 8, 12, 16, 32, 10
    key = jax.random.PRNGKey(0)
    ks = jax.random.split(key, 7)

    # PyTorch nn.LSTM / nn.Linear-style uniform init, deterministic.
    def init(k, shape, fan_in):
        bound = fan_in ** -0.5
        return jax.random.uniform(k, shape, jnp.float32, -bound, bound)

    x = jax.random.normal(ks[0], (B, T, IN), jnp.float32)
    w_ih = init(ks[1], (4 * H, IN), H)
    w_hh = init(ks[2], (4 * H, H), H)
    b_ih = init(ks[3], (4 * H,), H)
    b_hh = init(ks[4], (4 * H,), H)
    w_fc = init(ks[5], (OUT, H), H)
    b_fc = init(ks[6], (OUT,), H)

    out = lstm_decoder(x, w_ih, b_ih, w_hh, b_hh, w_fc, b_fc)
    jax.block_until_ready(out)

    ref = lstm_decoder_ref(x, w_ih, b_ih, w_hh, b_hh, w_fc, b_fc)
    assert out.shape == (B, OUT), out.shape
    err = float(jnp.max(jnp.abs(out - ref)))
    # bf16 MXU inputs (f32 accumulation / cell state) => loosened tolerance.
    assert err < 5e-2, f"max abs error {err}"
    print("KERNEL_OK")
</pallas_src>

<mosaic_0001>
module attributes {stable_mosaic.version = 11 : i64} {
  func.func @_lstm_decoder_kernel(%arg0: i32, %arg1: i32, %arg2: memref<8x12x16xbf16, #tpu.memory_space<vmem>>, %arg3: memref<16x512xbf16, #tpu.memory_space<vmem>>, %arg4: memref<128x512xbf16, #tpu.memory_space<vmem>>, %arg5: memref<1x512xf32, #tpu.memory_space<vmem>>, %arg6: memref<128x128xbf16, #tpu.memory_space<vmem>>, %arg7: memref<1x128xf32, #tpu.memory_space<vmem>>, %arg8: memref<8x128xf32, #tpu.memory_space<vmem>>, %arg9: memref<8x128xf32, #tpu.memory_space<vmem>>, %arg10: memref<8x128xf32, #tpu.memory_space<vmem>>) attributes {dimension_semantics = [#tpu.dimension_semantics<parallel>, #tpu.dimension_semantics<arbitrary>], iteration_bounds = array<i64: 1, 1>, scalar_prefetch = 0 : i64, scratch_operands = 2 : i64, tpu.core_type = #tpu.core_type<tc>, window_params = [{transform_indices = @transform_0, window_bounds = array<i64: 8, 12, 16>}, {pipeline_mode = #tpu.pipeline_mode<synchronous>, transform_indices = @transform_1, window_bounds = array<i64: 16, 512>}, {pipeline_mode = #tpu.pipeline_mode<synchronous>, transform_indices = @transform_2, window_bounds = array<i64: 128, 512>}, {pipeline_mode = #tpu.pipeline_mode<synchronous>, transform_indices = @transform_3, window_bounds = array<i64: 1, 512>}, {pipeline_mode = #tpu.pipeline_mode<synchronous>, transform_indices = @transform_4, window_bounds = array<i64: 128, 128>}, {pipeline_mode = #tpu.pipeline_mode<synchronous>, transform_indices = @transform_5, window_bounds = array<i64: 1, 128>}, {transform_indices = @transform_6, window_bounds = array<i64: 8, 128>}]} {
    %c0_i32 = arith.constant 0 : i32
    %0 = arith.cmpi eq, %arg1, %c0_i32 : i32
    %1 = arith.extui %0 : i1 to i32
    %c0_i32_0 = arith.constant 0 : i32
    %2 = arith.cmpi ne, %1, %c0_i32_0 : i32
    scf.if %2 {
      %cst_172 = arith.constant 0.000000e+00 : f32
      %481 = vector.broadcast %cst_172 : f32 to vector<8x128xf32>
      %c0_173 = arith.constant 0 : index
      %c0_174 = arith.constant 0 : index
      %482 = vector.load %arg9[%c0_173, %c0_174] : memref<8x128xf32, #tpu.memory_space<vmem>>, vector<8x128xf32>
      tpu.vector_store %arg9[%c0_173, %c0_174], %481 {strides = array<i32>} : memref<8x128xf32, #tpu.memory_space<vmem>>, vector<8x128xf32>,
      %cst_175 = arith.constant 0.000000e+00 : f32
      %483 = vector.broadcast %cst_175 : f32 to vector<8x128xf32>
      %c0_176 = arith.constant 0 : index
      %c0_177 = arith.constant 0 : index
      %484 = vector.load %arg10[%c0_176, %c0_177] : memref<8x128xf32, #tpu.memory_space<vmem>>, vector<8x128xf32>
      tpu.vector_store %arg10[%c0_176, %c0_177], %483 {strides = array<i32>} : memref<8x128xf32, #tpu.memory_space<vmem>>, vector<8x128xf32>,
    } else {
    }
    %c0 = arith.constant 0 : index
    %c0_1 = arith.constant 0 : index
    %3 = vector.load %arg3[%c0, %c0_1] : memref<16x512xbf16, #tpu.memory_space<vmem>>, vector<16x512xbf16>
    %c0_2 = arith.constant 0 : index
    %c0_3 = arith.constant 0 : index
    %4 = vector.load %arg4[%c0_2, %c0_3] : memref<128x512xbf16, #tpu.memory_space<vmem>>, vector<128x512xbf16>
    %c0_4 = arith.constant 0 : index
    %c0_5 = arith.constant 0 : index
    %5 = vector.load %arg5[%c0_4, %c0_5] : memref<1x512xf32, #tpu.memory_space<vmem>>, vector<1x512xf32>
    %c0_6 = arith.constant 0 : index
    %c0_7 = arith.constant 0 : index
    %6 = vector.load %arg9[%c0_6, %c0_7] : memref<8x128xf32, #tpu.memory_space<vmem>>, vector<8x128xf32>
    %c0_8 = arith.constant 0 : index
    %c0_9 = arith.constant 0 : index
    %7 = vector.load %arg10[%c0_8, %c0_9] : memref<8x128xf32, #tpu.memory_space<vmem>>, vector<8x128xf32>
    %c0_10 = arith.constant 0 : index
    %c0_11 = arith.constant 0 : index
    %c0_12 = arith.constant 0 : index
    %8 = vector.load %arg2[%c0_10, %c0_11, %c0_12] : memref<8x12x16xbf16, #tpu.memory_space<vmem>>, vector<8x1x16xbf16>
    %9 = vector.shape_cast %8 : vector<8x1x16xbf16> to vector<8x16xbf16>
    %cst = arith.constant dense<0.000000e+00> : vector<8x512xf32>
    %10 = tpu.matmul %9, %3, %cst {dimension_numbers = #tpu.dot_dimension_numbers<[1], [0], [0], [1], [0, 0, 1, 1], [], []>} : vector<8x16xbf16>, vector<16x512xbf16>, vector<8x512xf32> -> vector<8x512xf32>
    %11 = arith.truncf %6 : vector<8x128xf32> to vector<8x128xbf16>
    %cst_13 = arith.constant dense<0.000000e+00> : vector<8x512xf32>
    %12 = tpu.matmul %11, %4, %cst_13 {dimension_numbers = #tpu.dot_dimension_numbers<[1], [0], [0], [1], [0, 0, 1, 1], [], []>} : vector<8x128xbf16>, vector<128x512xbf16>, vector<8x512xf32> -> vector<8x512xf32>
    %13 = arith.addf %10, %12 : vector<8x512xf32>
    %14 = vector.broadcast %5 : vector<1x512xf32> to vector<8x512xf32>
    %15 = arith.addf %13, %14 : vector<8x512xf32>
    %16 = vector.extract_strided_slice %15 {offsets = [0, 0], sizes = [8, 128], strides = [1, 1]} : vector<8x512xf32> to vector<8x128xf32>
    %cst_14 = arith.constant 5.000000e-01 : f32
    %17 = vector.broadcast %cst_14 : f32 to vector<8x128xf32>
    %18 = arith.mulf %17, %16 : vector<8x128xf32>
    %19 = math.tanh %18 : vector<8x128xf32>
    %cst_15 = arith.constant 5.000000e-01 : f32
    %20 = vector.broadcast %cst_15 : f32 to vector<8x128xf32>
    %21 = arith.mulf %20, %19 : vector<8x128xf32>
    %cst_16 = arith.constant 5.000000e-01 : f32
    %22 = vector.broadcast %cst_16 : f32 to vector<8x128xf32>
    %23 = arith.addf %21, %22 : vector<8x128xf32>
    %24 = vector.extract_strided_slice %15 {offsets = [0, 128], sizes = [8, 128], strides = [1, 1]} : vector<8x512xf32> to vector<8x128xf32>
    %cst_17 = arith.constant 5.000000e-01 : f32
    %25 = vector.broadcast %cst_17 : f32 to vector<8x128xf32>
    %26 = arith.mulf %25, %24 : vector<8x128xf32>
    %27 = math.tanh %26 : vector<8x128xf32>
    %cst_18 = arith.constant 5.000000e-01 : f32
    %28 = vector.broadcast %cst_18 : f32 to vector<8x128xf32>
    %29 = arith.mulf %28, %27 : vector<8x128xf32>
    %cst_19 = arith.constant 5.000000e-01 : f32
    %30 = vector.broadcast %cst_19 : f32 to vector<8x128xf32>
    %31 = arith.addf %29, %30 : vector<8x128xf32>
    %32 = vector.extract_strided_slice %15 {offsets = [0, 256], sizes = [8, 128], strides = [1, 1]} : vector<8x512xf32> to vector<8x128xf32>
    %33 = math.tanh %32 : vector<8x128xf32>
    %34 = vector.extract_strided_slice %15 {offsets = [0, 384], sizes = [8, 128], strides = [1, 1]} : vector<8x512xf32> to vector<8x128xf32>
    %cst_20 = arith.constant 5.000000e-01 : f32
    %35 = vector.broadcast %cst_20 : f32 to vector<8x128xf32>
    %36 = arith.mulf %35, %34 : vector<8x128xf32>
    %37 = math.tanh %36 : vector<8x128xf32>
    %cst_21 = arith.constant 5.000000e-01 : f32
    %38 = vector.broadcast %cst_21 : f32 to vector<8x128xf32>
    %39 = arith.mulf %38, %37 : vector<8x128xf32>
    %cst_22 = arith.constant 5.000000e-01 : f32
    %40 = vector.broadcast %cst_22 : f32 to vector<8x128xf32>
    %41 = arith.addf %39, %40 : vector<8x128xf32>
    %42 = arith.mulf %31, %7 : vector<8x128xf32>
    %43 = arith.mulf %23, %33 : vector<8x128xf32>
    %44 = arith.addf %42, %43 : vector<8x128xf32>
    %45 = math.tanh %44 : vector<8x128xf32>
    %46 = arith.mulf %41, %45 : vector<8x128xf32>
    %c0_23 = arith.constant 0 : index
    %c1 = arith.constant 1 : index
    %c0_24 = arith.constant 0 : index
    %47 = vector.load %arg2[%c0_23, %c1, %c0_24] : memref<8x12x16xbf16, #tpu.memory_space<vmem>>, vector<8x1x16xbf16>
    %48 = vector.shape_cast %47 : vector<8x1x16xbf16> to vector<8x16xbf16>
    %cst_25 = arith.constant dense<0.000000e+00> : vector<8x512xf32>
    %49 = tpu.matmul %48, %3, %cst_25 {dimension_numbers = #tpu.dot_dimension_numbers<[1], [0], [0], [1], [0, 0, 1, 1], [], []>} : vector<8x16xbf16>, vector<16x512xbf16>, vector<8x512xf32> -> vector<8x512xf32>
    %50 = arith.truncf %46 : vector<8x128xf32> to vector<8x128xbf16>
    %cst_26 = arith.constant dense<0.000000e+00> : vector<8x512xf32>
    %51 = tpu.matmul %50, %4, %cst_26 {dimension_numbers = #tpu.dot_dimension_numbers<[1], [0], [0], [1], [0, 0, 1, 1], [], []>} : vector<8x128xbf16>, vector<128x512xbf16>, vector<8x512xf32> -> vector<8x512xf32>
    %52 = arith.addf %49, %51 : vector<8x512xf32>
    %53 = vector.broadcast %5 : vector<1x512xf32> to vector<8x512xf32>
    %54 = arith.addf %52, %53 : vector<8x512xf32>
    %55 = vector.extract_strided_slice %54 {offsets = [0, 0], sizes = [8, 128], strides = [1, 1]} : vector<8x512xf32> to vector<8x128xf32>
    %cst_27 = arith.constant 5.000000e-01 : f32
    %56 = vector.broadcast %cst_27 : f32 to vector<8x128xf32>
    %57 = arith.mulf %56, %55 : vector<8x128xf32>
    %58 = math.tanh %57 : vector<8x128xf32>
    %cst_28 = arith.constant 5.000000e-01 : f32
    %59 = vector.broadcast %cst_28 : f32 to vector<8x128xf32>
    %60 = arith.mulf %59, %58 : vector<8x128xf32>
    %cst_29 = arith.constant 5.000000e-01 : f32
    %61 = vector.broadcast %cst_29 : f32 to vector<8x128xf32>
    %62 = arith.addf %60, %61 : vector<8x128xf32>
    %63 = vector.extract_strided_slice %54 {offsets = [0, 128], sizes = [8, 128], strides = [1, 1]} : vector<8x512xf32> to vector<8x128xf32>
    %cst_30 = arith.constant 5.000000e-01 : f32
    %64 = vector.broadcast %cst_30 : f32 to vector<8x128xf32>
    %65 = arith.mulf %64, %63 : vector<8x128xf32>
    %66 = math.tanh %65 : vector<8x128xf32>
    %cst_31 = arith.constant 5.000000e-01 : f32
    %67 = vector.broadcast %cst_31 : f32 to vector<8x128xf32>
    %68 = arith.mulf %67, %66 : vector<8x128xf32>
    %cst_32 = arith.constant 5.000000e-01 : f32
    %69 = vector.broadcast %cst_32 : f32 to vector<8x128xf32>
    %70 = arith.addf %68, %69 : vector<8x128xf32>
    %71 = vector.extract_strided_slice %54 {offsets = [0, 256], sizes = [8, 128], strides = [1, 1]} : vector<8x512xf32> to vector<8x128xf32>
    %72 = math.tanh %71 : vector<8x128xf32>
    %73 = vector.extract_strided_slice %54 {offsets = [0, 384], sizes = [8, 128], strides = [1, 1]} : vector<8x512xf32> to vector<8x128xf32>
    %cst_33 = arith.constant 5.000000e-01 : f32
    %74 = vector.broadcast %cst_33 : f32 to vector<8x128xf32>
    %75 = arith.mulf %74, %73 : vector<8x128xf32>
    %76 = math.tanh %75 : vector<8x128xf32>
    %cst_34 = arith.constant 5.000000e-01 : f32
    %77 = vector.broadcast %cst_34 : f32 to vector<8x128xf32>
    %78 = arith.mulf %77, %76 : vector<8x128xf32>
    %cst_35 = arith.constant 5.000000e-01 : f32
    %79 = vector.broadcast %cst_35 : f32 to vector<8x128xf32>
    %80 = arith.addf %78, %79 : vector<8x128xf32>
    %81 = arith.mulf %70, %44 : vector<8x128xf32>
    %82 = arith.mulf %62, %72 : vector<8x128xf32>
    %83 = arith.addf %81, %82 : vector<8x128xf32>
    %84 = math.tanh %83 : vector<8x128xf32>
    %85 = arith.mulf %80, %84 : vector<8x128xf32>
    %c0_36 = arith.constant 0 : index
    %c2 = arith.constant 2 : index
    %c0_37 = arith.constant 0 : index
    %86 = vector.load %arg2[%c0_36, %c2, %c0_37] : memref<8x12x16xbf16, #tpu.memory_space<vmem>>, vector<8x1x16xbf16>
    %87 = vector.shape_cast %86 : vector<8x1x16xbf16> to vector<8x16xbf16>
    %cst_38 = arith.constant dense<0.000000e+00> : vector<8x512xf32>
    %88 = tpu.matmul %87, %3, %cst_38 {dimension_numbers = #tpu.dot_dimension_numbers<[1], [0], [0], [1], [0, 0, 1, 1], [], []>} : vector<8x16xbf16>, vector<16x512xbf16>, vector<8x512xf32> -> vector<8x512xf32>
    %89 = arith.truncf %85 : vector<8x128xf32> to vector<8x128xbf16>
    %cst_39 = arith.constant dense<0.000000e+00> : vector<8x512xf32>
    %90 = tpu.matmul %89, %4, %cst_39 {dimension_numbers = #tpu.dot_dimension_numbers<[1], [0], [0], [1], [0, 0, 1, 1], [], []>} : vector<8x128xbf16>, vector<128x512xbf16>, vector<8x512xf32> -> vector<8x512xf32>
    %91 = arith.addf %88, %90 : vector<8x512xf32>
    %92 = vector.broadcast %5 : vector<1x512xf32> to vector<8x512xf32>
    %93 = arith.addf %91, %92 : vector<8x512xf32>
    %94 = vector.extract_strided_slice %93 {offsets = [0, 0], sizes = [8, 128], strides = [1, 1]} : vector<8x512xf32> to vector<8x128xf32>
    %cst_40 = arith.constant 5.000000e-01 : f32
    %95 = vector.broadcast %cst_40 : f32 to vector<8x128xf32>
    %96 = arith.mulf %95, %94 : vector<8x128xf32>
    %97 = math.tanh %96 : vector<8x128xf32>
    %cst_41 = arith.constant 5.000000e-01 : f32
    %98 = vector.broadcast %cst_41 : f32 to vector<8x128xf32>
    %99 = arith.mulf %98, %97 : vector<8x128xf32>
    %cst_42 = arith.constant 5.000000e-01 : f32
    %100 = vector.broadcast %cst_42 : f32 to vector<8x128xf32>
    %101 = arith.addf %99, %100 : vector<8x128xf32>
    %102 = vector.extract_strided_slice %93 {offsets = [0, 128], sizes = [8, 128], strides = [1, 1]} : vector<8x512xf32> to vector<8x128xf32>
    %cst_43 = arith.constant 5.000000e-01 : f32
    %103 = vector.broadcast %cst_43 : f32 to vector<8x128xf32>
    %104 = arith.mulf %103, %102 : vector<8x128xf32>
    %105 = math.tanh %104 : vector<8x128xf32>
    %cst_44 = arith.constant 5.000000e-01 : f32
    %106 = vector.broadcast %cst_44 : f32 to vector<8x128xf32>
    %107 = arith.mulf %106, %105 : vector<8x128xf32>
    %cst_45 = arith.constant 5.000000e-01 : f32
    %108 = vector.broadcast %cst_45 : f32 to vector<8x128xf32>
    %109 = arith.addf %107, %108 : vector<8x128xf32>
    %110 = vector.extract_strided_slice %93 {offsets = [0, 256], sizes = [8, 128], strides = [1, 1]} : vector<8x512xf32> to vector<8x128xf32>
    %111 = math.tanh %110 : vector<8x128xf32>
    %112 = vector.extract_strided_slice %93 {offsets = [0, 384], sizes = [8, 128], strides = [1, 1]} : vector<8x512xf32> to vector<8x128xf32>
    %cst_46 = arith.constant 5.000000e-01 : f32
    %113 = vector.broadcast %cst_46 : f32 to vector<8x128xf32>
    %114 = arith.mulf %113, %112 : vector<8x128xf32>
    %115 = math.tanh %114 : vector<8x128xf32>
    %cst_47 = arith.constant 5.000000e-01 : f32
    %116 = vector.broadcast %cst_47 : f32 to vector<8x128xf32>
    %117 = arith.mulf %116, %115 : vector<8x128xf32>
    %cst_48 = arith.constant 5.000000e-01 : f32
    %118 = vector.broadcast %cst_48 : f32 to vector<8x128xf32>
    %119 = arith.addf %117, %118 : vector<8x128xf32>
    %120 = arith.mulf %109, %83 : vector<8x128xf32>
    %121 = arith.mulf %101, %111 : vector<8x128xf32>
    %122 = arith.addf %120, %121 : vector<8x128xf32>
    %123 = math.tanh %122 : vector<8x128xf32>
    %124 = arith.mulf %119, %123 : vector<8x128xf32>
    %c0_49 = arith.constant 0 : index
    %c3 = arith.constant 3 : index
    %c0_50 = arith.constant 0 : index
    %125 = vector.load %arg2[%c0_49, %c3, %c0_50] : memref<8x12x16xbf16, #tpu.memory_space<vmem>>, vector<8x1x16xbf16>
    %126 = vector.shape_cast %125 : vector<8x1x16xbf16> to vector<8x16xbf16>
    %cst_51 = arith.constant dense<0.000000e+00> : vector<8x512xf32>
    %127 = tpu.matmul %126, %3, %cst_51 {dimension_numbers = #tpu.dot_dimension_numbers<[1], [0], [0], [1], [0, 0, 1, 1], [], []>} : vector<8x16xbf16>, vector<16x512xbf16>, vector<8x512xf32> -> vector<8x512xf32>
    %128 = arith.truncf %124 : vector<8x128xf32> to vector<8x128xbf16>
    %cst_52 = arith.constant dense<0.000000e+00> : vector<8x512xf32>
    %129 = tpu.matmul %128, %4, %cst_52 {dimension_numbers = #tpu.dot_dimension_numbers<[1], [0], [0], [1], [0, 0, 1, 1], [], []>} : vector<8x128xbf16>, vector<128x512xbf16>, vector<8x512xf32> -> vector<8x512xf32>
    %130 = arith.addf %127, %129 : vector<8x512xf32>
    %131 = vector.broadcast %5 : vector<1x512xf32> to vector<8x512xf32>
    %132 = arith.addf %130, %131 : vector<8x512xf32>
    %133 = vector.extract_strided_slice %132 {offsets = [0, 0], sizes = [8, 128], strides = [1, 1]} : vector<8x512xf32> to vector<8x128xf32>
    %cst_53 = arith.constant 5.000000e-01 : f32
    %134 = vector.broadcast %cst_53 : f32 to vector<8x128xf32>
    %135 = arith.mulf %134, %133 : vector<8x128xf32>
    %136 = math.tanh %135 : vector<8x128xf32>
    %cst_54 = arith.constant 5.000000e-01 : f32
    %137 = vector.broadcast %cst_54 : f32 to vector<8x128xf32>
    %138 = arith.mulf %137, %136 : vector<8x128xf32>
    %cst_55 = arith.constant 5.000000e-01 : f32
    %139 = vector.broadcast %cst_55 : f32 to vector<8x128xf32>
    %140 = arith.addf %138, %139 : vector<8x128xf32>
    %141 = vector.extract_strided_slice %132 {offsets = [0, 128], sizes = [8, 128], strides = [1, 1]} : vector<8x512xf32> to vector<8x128xf32>
    %cst_56 = arith.constant 5.000000e-01 : f32
    %142 = vector.broadcast %cst_56 : f32 to vector<8x128xf32>
    %143 = arith.mulf %142, %141 : vector<8x128xf32>
    %144 = math.tanh %143 : vector<8x128xf32>
    %cst_57 = arith.constant 5.000000e-01 : f32
    %145 = vector.broadcast %cst_57 : f32 to vector<8x128xf32>
    %146 = arith.mulf %145, %144 : vector<8x128xf32>
    %cst_58 = arith.constant 5.000000e-01 : f32
    %147 = vector.broadcast %cst_58 : f32 to vector<8x128xf32>
    %148 = arith.addf %146, %147 : vector<8x128xf32>
    %149 = vector.extract_strided_slice %132 {offsets = [0, 256], sizes = [8, 128], strides = [1, 1]} : vector<8x512xf32> to vector<8x128xf32>
    %150 = math.tanh %149 : vector<8x128xf32>
    %151 = vector.extract_strided_slice %132 {offsets = [0, 384], sizes = [8, 128], strides = [1, 1]} : vector<8x512xf32> to vector<8x128xf32>
    %cst_59 = arith.constant 5.000000e-01 : f32
    %152 = vector.broadcast %cst_59 : f32 to vector<8x128xf32>
    %153 = arith.mulf %152, %151 : vector<8x128xf32>
    %154 = math.tanh %153 : vector<8x128xf32>
    %cst_60 = arith.constant 5.000000e-01 : f32
    %155 = vector.broadcast %cst_60 : f32 to vector<8x128xf32>
    %156 = arith.mulf %155, %154 : vector<8x128xf32>
    %cst_61 = arith.constant 5.000000e-01 : f32
    %157 = vector.broadcast %cst_61 : f32 to vector<8x128xf32>
    %158 = arith.addf %156, %157 : vector<8x128xf32>
    %159 = arith.mulf %148, %122 : vector<8x128xf32>
    %160 = arith.mulf %140, %150 : vector<8x128xf32>
    %161 = arith.addf %159, %160 : vector<8x128xf32>
    %162 = math.tanh %161 : vector<8x128xf32>
    %163 = arith.mulf %158, %162 : vector<8x128xf32>
    %c0_62 = arith.constant 0 : index
    %c4 = arith.constant 4 : index
    %c0_63 = arith.constant 0 : index
    %164 = vector.load %arg2[%c0_62, %c4, %c0_63] : memref<8x12x16xbf16, #tpu.memory_space<vmem>>, vector<8x1x16xbf16>
    %165 = vector.shape_cast %164 : vector<8x1x16xbf16> to vector<8x16xbf16>
    %cst_64 = arith.constant dense<0.000000e+00> : vector<8x512xf32>
    %166 = tpu.matmul %165, %3, %cst_64 {dimension_numbers = #tpu.dot_dimension_numbers<[1], [0], [0], [1], [0, 0, 1, 1], [], []>} : vector<8x16xbf16>, vector<16x512xbf16>, vector<8x512xf32> -> vector<8x512xf32>
    %167 = arith.truncf %163 : vector<8x128xf32> to vector<8x128xbf16>
    %cst_65 = arith.constant dense<0.000000e+00> : vector<8x512xf32>
    %168 = tpu.matmul %167, %4, %cst_65 {dimension_numbers = #tpu.dot_dimension_numbers<[1], [0], [0], [1], [0, 0, 1, 1], [], []>} : vector<8x128xbf16>, vector<128x512xbf16>, vector<8x512xf32> -> vector<8x512xf32>
    %169 = arith.addf %166, %168 : vector<8x512xf32>
    %170 = vector.broadcast %5 : vector<1x512xf32> to vector<8x512xf32>
    %171 = arith.addf %169, %170 : vector<8x512xf32>
    %172 = vector.extract_strided_slice %171 {offsets = [0, 0], sizes = [8, 128], strides = [1, 1]} : vector<8x512xf32> to vector<8x128xf32>
    %cst_66 = arith.constant 5.000000e-01 : f32
    %173 = vector.broadcast %cst_66 : f32 to vector<8x128xf32>
    %174 = arith.mulf %173, %172 : vector<8x128xf32>
    %175 = math.tanh %174 : vector<8x128xf32>
    %cst_67 = arith.constant 5.000000e-01 : f32
    %176 = vector.broadcast %cst_67 : f32 to vector<8x128xf32>
    %177 = arith.mulf %176, %175 : vector<8x128xf32>
    %cst_68 = arith.constant 5.000000e-01 : f32
    %178 = vector.broadcast %cst_68 : f32 to vector<8x128xf32>
    %179 = arith.addf %177, %178 : vector<8x128xf32>
    %180 = vector.extract_strided_slice %171 {offsets = [0, 128], sizes = [8, 128], strides = [1, 1]} : vector<8x512xf32> to vector<8x128xf32>
    %cst_69 = arith.constant 5.000000e-01 : f32
    %181 = vector.broadcast %cst_69 : f32 to vector<8x128xf32>
    %182 = arith.mulf %181, %180 : vector<8x128xf32>
    %183 = math.tanh %182 : vector<8x128xf32>
    %cst_70 = arith.constant 5.000000e-01 : f32
    %184 = vector.broadcast %cst_70 : f32 to vector<8x128xf32>
    %185 = arith.mulf %184, %183 : vector<8x128xf32>
    %cst_71 = arith.constant 5.000000e-01 : f32
    %186 = vector.broadcast %cst_71 : f32 to vector<8x128xf32>
    %187 = arith.addf %185, %186 : vector<8x128xf32>
    %188 = vector.extract_strided_slice %171 {offsets = [0, 256], sizes = [8, 128], strides = [1, 1]} : vector<8x512xf32> to vector<8x128xf32>
    %189 = math.tanh %188 : vector<8x128xf32>
    %190 = vector.extract_strided_slice %171 {offsets = [0, 384], sizes = [8, 128], strides = [1, 1]} : vector<8x512xf32> to vector<8x128xf32>
    %cst_72 = arith.constant 5.000000e-01 : f32
    %191 = vector.broadcast %cst_72 : f32 to vector<8x128xf32>
    %192 = arith.mulf %191, %190 : vector<8x128xf32>
    %193 = math.tanh %192 : vector<8x128xf32>
    %cst_73 = arith.constant 5.000000e-01 : f32
    %194 = vector.broadcast %cst_73 : f32 to vector<8x128xf32>
    %195 = arith.mulf %194, %193 : vector<8x128xf32>
    %cst_74 = arith.constant 5.000000e-01 : f32
    %196 = vector.broadcast %cst_74 : f32 to vector<8x128xf32>
    %197 = arith.addf %195, %196 : vector<8x128xf32>
    %198 = arith.mulf %187, %161 : vector<8x128xf32>
    %199 = arith.mulf %179, %189 : vector<8x128xf32>
    %200 = arith.addf %198, %199 : vector<8x128xf32>
    %201 = math.tanh %200 : vector<8x128xf32>
    %202 = arith.mulf %197, %201 : vector<8x128xf32>
    %c0_75 = arith.constant 0 : index
    %c5 = arith.constant 5 : index
    %c0_76 = arith.constant 0 : index
    %203 = vector.load %arg2[%c0_75, %c5, %c0_76] : memref<8x12x16xbf16, #tpu.memory_space<vmem>>, vector<8x1x16xbf16>
    %204 = vector.shape_cast %203 : vector<8x1x16xbf16> to vector<8x16xbf16>
    %cst_77 = arith.constant dense<0.000000e+00> : vector<8x512xf32>
    %205 = tpu.matmul %204, %3, %cst_77 {dimension_numbers = #tpu.dot_dimension_numbers<[1], [0], [0], [1], [0, 0, 1, 1], [], []>} : vector<8x16xbf16>, vector<16x512xbf16>, vector<8x512xf32> -> vector<8x512xf32>
    %206 = arith.truncf %202 : vector<8x128xf32> to vector<8x128xbf16>
    %cst_78 = arith.constant dense<0.000000e+00> : vector<8x512xf32>
    %207 = tpu.matmul %206, %4, %cst_78 {dimension_numbers = #tpu.dot_dimension_numbers<[1], [0], [0], [1], [0, 0, 1, 1], [], []>} : vector<8x128xbf16>, vector<128x512xbf16>, vector<8x512xf32> -> vector<8x512xf32>
    %208 = arith.addf %205, %207 : vector<8x512xf32>
    %209 = vector.broadcast %5 : vector<1x512xf32> to vector<8x512xf32>
    %210 = arith.addf %208, %209 : vector<8x512xf32>
    %211 = vector.extract_strided_slice %210 {offsets = [0, 0], sizes = [8, 128], strides = [1, 1]} : vector<8x512xf32> to vector<8x128xf32>
    %cst_79 = arith.constant 5.000000e-01 : f32
    %212 = vector.broadcast %cst_79 : f32 to vector<8x128xf32>
    %213 = arith.mulf %212, %211 : vector<8x128xf32>
    %214 = math.tanh %213 : vector<8x128xf32>
    %cst_80 = arith.constant 5.000000e-01 : f32
    %215 = vector.broadcast %cst_80 : f32 to vector<8x128xf32>
    %216 = arith.mulf %215, %214 : vector<8x128xf32>
    %cst_81 = arith.constant 5.000000e-01 : f32
    %217 = vector.broadcast %cst_81 : f32 to vector<8x128xf32>
    %218 = arith.addf %216, %217 : vector<8x128xf32>
    %219 = vector.extract_strided_slice %210 {offsets = [0, 128], sizes = [8, 128], strides = [1, 1]} : vector<8x512xf32> to vector<8x128xf32>
    %cst_82 = arith.constant 5.000000e-01 : f32
    %220 = vector.broadcast %cst_82 : f32 to vector<8x128xf32>
    %221 = arith.mulf %220, %219 : vector<8x128xf32>
    %222 = math.tanh %221 : vector<8x128xf32>
    %cst_83 = arith.constant 5.000000e-01 : f32
    %223 = vector.broadcast %cst_83 : f32 to vector<8x128xf32>
    %224 = arith.mulf %223, %222 : vector<8x128xf32>
    %cst_84 = arith.constant 5.000000e-01 : f32
    %225 = vector.broadcast %cst_84 : f32 to vector<8x128xf32>
    %226 = arith.addf %224, %225 : vector<8x128xf32>
    %227 = vector.extract_strided_slice %210 {offsets = [0, 256], sizes = [8, 128], strides = [1, 1]} : vector<8x512xf32> to vector<8x128xf32>
    %228 = math.tanh %227 : vector<8x128xf32>
    %229 = vector.extract_strided_slice %210 {offsets = [0, 384], sizes = [8, 128], strides = [1, 1]} : vector<8x512xf32> to vector<8x128xf32>
    %cst_85 = arith.constant 5.000000e-01 : f32
    %230 = vector.broadcast %cst_85 : f32 to vector<8x128xf32>
    %231 = arith.mulf %230, %229 : vector<8x128xf32>
    %232 = math.tanh %231 : vector<8x128xf32>
    %cst_86 = arith.constant 5.000000e-01 : f32
    %233 = vector.broadcast %cst_86 : f32 to vector<8x128xf32>
    %234 = arith.mulf %233, %232 : vector<8x128xf32>
    %cst_87 = arith.constant 5.000000e-01 : f32
    %235 = vector.broadcast %cst_87 : f32 to vector<8x128xf32>
    %236 = arith.addf %234, %235 : vector<8x128xf32>
    %237 = arith.mulf %226, %200 : vector<8x128xf32>
    %238 = arith.mulf %218, %228 : vector<8x128xf32>
    %239 = arith.addf %237, %238 : vector<8x128xf32>
    %240 = math.tanh %239 : vector<8x128xf32>
    %241 = arith.mulf %236, %240 : vector<8x128xf32>
    %c0_88 = arith.constant 0 : index
    %c6 = arith.constant 6 : index
    %c0_89 = arith.constant 0 : index
    %242 = vector.load %arg2[%c0_88, %c6, %c0_89] : memref<8x12x16xbf16, #tpu.memory_space<vmem>>, vector<8x1x16xbf16>
    %243 = vector.shape_cast %242 : vector<8x1x16xbf16> to vector<8x16xbf16>
    %cst_90 = arith.constant dense<0.000000e+00> : vector<8x512xf32>
    %244 = tpu.matmul %243, %3, %cst_90 {dimension_numbers = #tpu.dot_dimension_numbers<[1], [0], [0], [1], [0, 0, 1, 1], [], []>} : vector<8x16xbf16>, vector<16x512xbf16>, vector<8x512xf32> -> vector<8x512xf32>
    %245 = arith.truncf %241 : vector<8x128xf32> to vector<8x128xbf16>
    %cst_91 = arith.constant dense<0.000000e+00> : vector<8x512xf32>
    %246 = tpu.matmul %245, %4, %cst_91 {dimension_numbers = #tpu.dot_dimension_numbers<[1], [0], [0], [1], [0, 0, 1, 1], [], []>} : vector<8x128xbf16>, vector<128x512xbf16>, vector<8x512xf32> -> vector<8x512xf32>
    %247 = arith.addf %244, %246 : vector<8x512xf32>
    %248 = vector.broadcast %5 : vector<1x512xf32> to vector<8x512xf32>
    %249 = arith.addf %247, %248 : vector<8x512xf32>
    %250 = vector.extract_strided_slice %249 {offsets = [0, 0], sizes = [8, 128], strides = [1, 1]} : vector<8x512xf32> to vector<8x128xf32>
    %cst_92 = arith.constant 5.000000e-01 : f32
    %251 = vector.broadcast %cst_92 : f32 to vector<8x128xf32>
    %252 = arith.mulf %251, %250 : vector<8x128xf32>
    %253 = math.tanh %252 : vector<8x128xf32>
    %cst_93 = arith.constant 5.000000e-01 : f32
    %254 = vector.broadcast %cst_93 : f32 to vector<8x128xf32>
    %255 = arith.mulf %254, %253 : vector<8x128xf32>
    %cst_94 = arith.constant 5.000000e-01 : f32
    %256 = vector.broadcast %cst_94 : f32 to vector<8x128xf32>
    %257 = arith.addf %255, %256 : vector<8x128xf32>
    %258 = vector.extract_strided_slice %249 {offsets = [0, 128], sizes = [8, 128], strides = [1, 1]} : vector<8x512xf32> to vector<8x128xf32>
    %cst_95 = arith.constant 5.000000e-01 : f32
    %259 = vector.broadcast %cst_95 : f32 to vector<8x128xf32>
    %260 = arith.mulf %259, %258 : vector<8x128xf32>
    %261 = math.tanh %260 : vector<8x128xf32>
    %cst_96 = arith.constant 5.000000e-01 : f32
    %262 = vector.broadcast %cst_96 : f32 to vector<8x128xf32>
    %263 = arith.mulf %262, %261 : vector<8x128xf32>
    %cst_97 = arith.constant 5.000000e-01 : f32
    %264 = vector.broadcast %cst_97 : f32 to vector<8x128xf32>
    %265 = arith.addf %263, %264 : vector<8x128xf32>
    %266 = vector.extract_strided_slice %249 {offsets = [0, 256], sizes = [8, 128], strides = [1, 1]} : vector<8x512xf32> to vector<8x128xf32>
    %267 = math.tanh %266 : vector<8x128xf32>
    %268 = vector.extract_strided_slice %249 {offsets = [0, 384], sizes = [8, 128], strides = [1, 1]} : vector<8x512xf32> to vector<8x128xf32>
    %cst_98 = arith.constant 5.000000e-01 : f32
    %269 = vector.broadcast %cst_98 : f32 to vector<8x128xf32>
    %270 = arith.mulf %269, %268 : vector<8x128xf32>
    %271 = math.tanh %270 : vector<8x128xf32>
    %cst_99 = arith.constant 5.000000e-01 : f32
    %272 = vector.broadcast %cst_99 : f32 to vector<8x128xf32>
    %273 = arith.mulf %272, %271 : vector<8x128xf32>
    %cst_100 = arith.constant 5.000000e-01 : f32
    %274 = vector.broadcast %cst_100 : f32 to vector<8x128xf32>
    %275 = arith.addf %273, %274 : vector<8x128xf32>
    %276 = arith.mulf %265, %239 : vector<8x128xf32>
    %277 = arith.mulf %257, %267 : vector<8x128xf32>
    %278 = arith.addf %276, %277 : vector<8x128xf32>
    %279 = math.tanh %278 : vector<8x128xf32>
    %280 = arith.mulf %275, %279 : vector<8x128xf32>
    %c0_101 = arith.constant 0 : index
    %c7 = arith.constant 7 : index
    %c0_102 = arith.constant 0 : index
    %281 = vector.load %arg2[%c0_101, %c7, %c0_102] : memref<8x12x16xbf16, #tpu.memory_space<vmem>>, vector<8x1x16xbf16>
    %282 = vector.shape_cast %281 : vector<8x1x16xbf16> to vector<8x16xbf16>
    %cst_103 = arith.constant dense<0.000000e+00> : vector<8x512xf32>
    %283 = tpu.matmul %282, %3, %cst_103 {dimension_numbers = #tpu.dot_dimension_numbers<[1], [0], [0], [1], [0, 0, 1, 1], [], []>} : vector<8x16xbf16>, vector<16x512xbf16>, vector<8x512xf32> -> vector<8x512xf32>
    %284 = arith.truncf %280 : vector<8x128xf32> to vector<8x128xbf16>
    %cst_104 = arith.constant dense<0.000000e+00> : vector<8x512xf32>
    %285 = tpu.matmul %284, %4, %cst_104 {dimension_numbers = #tpu.dot_dimension_numbers<[1], [0], [0], [1], [0, 0, 1, 1], [], []>} : vector<8x128xbf16>, vector<128x512xbf16>, vector<8x512xf32> -> vector<8x512xf32>
    %286 = arith.addf %283, %285 : vector<8x512xf32>
    %287 = vector.broadcast %5 : vector<1x512xf32> to vector<8x512xf32>
    %288 = arith.addf %286, %287 : vector<8x512xf32>
    %289 = vector.extract_strided_slice %288 {offsets = [0, 0], sizes = [8, 128], strides = [1, 1]} : vector<8x512xf32> to vector<8x128xf32>
    %cst_105 = arith.constant 5.000000e-01 : f32
    %290 = vector.broadcast %cst_105 : f32 to vector<8x128xf32>
    %291 = arith.mulf %290, %289 : vector<8x128xf32>
    %292 = math.tanh %291 : vector<8x128xf32>
    %cst_106 = arith.constant 5.000000e-01 : f32
    %293 = vector.broadcast %cst_106 : f32 to vector<8x128xf32>
    %294 = arith.mulf %293, %292 : vector<8x128xf32>
    %cst_107 = arith.constant 5.000000e-01 : f32
    %295 = vector.broadcast %cst_107 : f32 to vector<8x128xf32>
    %296 = arith.addf %294, %295 : vector<8x128xf32>
    %297 = vector.extract_strided_slice %288 {offsets = [0, 128], sizes = [8, 128], strides = [1, 1]} : vector<8x512xf32> to vector<8x128xf32>
    %cst_108 = arith.constant 5.000000e-01 : f32
    %298 = vector.broadcast %cst_108 : f32 to vector<8x128xf32>
    %299 = arith.mulf %298, %297 : vector<8x128xf32>
    %300 = math.tanh %299 : vector<8x128xf32>
    %cst_109 = arith.constant 5.000000e-01 : f32
    %301 = vector.broadcast %cst_109 : f32 to vector<8x128xf32>
    %302 = arith.mulf %301, %300 : vector<8x128xf32>
    %cst_110 = arith.constant 5.000000e-01 : f32
    %303 = vector.broadcast %cst_110 : f32 to vector<8x128xf32>
    %304 = arith.addf %302, %303 : vector<8x128xf32>
    %305 = vector.extract_strided_slice %288 {offsets = [0, 256], sizes = [8, 128], strides = [1, 1]} : vector<8x512xf32> to vector<8x128xf32>
    %306 = math.tanh %305 : vector<8x128xf32>
    %307 = vector.extract_strided_slice %288 {offsets = [0, 384], sizes = [8, 128], strides = [1, 1]} : vector<8x512xf32> to vector<8x128xf32>
    %cst_111 = arith.constant 5.000000e-01 : f32
    %308 = vector.broadcast %cst_111 : f32 to vector<8x128xf32>
    %309 = arith.mulf %308, %307 : vector<8x128xf32>
    %310 = math.tanh %309 : vector<8x128xf32>
    %cst_112 = arith.constant 5.000000e-01 : f32
    %311 = vector.broadcast %cst_112 : f32 to vector<8x128xf32>
    %312 = arith.mulf %311, %310 : vector<8x128xf32>
    %cst_113 = arith.constant 5.000000e-01 : f32
    %313 = vector.broadcast %cst_113 : f32 to vector<8x128xf32>
    %314 = arith.addf %312, %313 : vector<8x128xf32>
    %315 = arith.mulf %304, %278 : vector<8x128xf32>
    %316 = arith.mulf %296, %306 : vector<8x128xf32>
    %317 = arith.addf %315, %316 : vector<8x128xf32>
    %318 = math.tanh %317 : vector<8x128xf32>
    %319 = arith.mulf %314, %318 : vector<8x128xf32>
    %c0_114 = arith.constant 0 : index
    %c8 = arith.constant 8 : index
    %c0_115 = arith.constant 0 : index
    %320 = vector.load %arg2[%c0_114, %c8, %c0_115] : memref<8x12x16xbf16, #tpu.memory_space<vmem>>, vector<8x1x16xbf16>
    %321 = vector.shape_cast %320 : vector<8x1x16xbf16> to vector<8x16xbf16>
    %cst_116 = arith.constant dense<0.000000e+00> : vector<8x512xf32>
    %322 = tpu.matmul %321, %3, %cst_116 {dimension_numbers = #tpu.dot_dimension_numbers<[1], [0], [0], [1], [0, 0, 1, 1], [], []>} : vector<8x16xbf16>, vector<16x512xbf16>, vector<8x512xf32> -> vector<8x512xf32>
    %323 = arith.truncf %319 : vector<8x128xf32> to vector<8x128xbf16>
    %cst_117 = arith.constant dense<0.000000e+00> : vector<8x512xf32>
    %324 = tpu.matmul %323, %4, %cst_117 {dimension_numbers = #tpu.dot_dimension_numbers<[1], [0], [0], [1], [0, 0, 1, 1], [], []>} : vector<8x128xbf16>, vector<128x512xbf16>, vector<8x512xf32> -> vector<8x512xf32>
    %325 = arith.addf %322, %324 : vector<8x512xf32>
    %326 = vector.broadcast %5 : vector<1x512xf32> to vector<8x512xf32>
    %327 = arith.addf %325, %326 : vector<8x512xf32>
    %328 = vector.extract_strided_slice %327 {offsets = [0, 0], sizes = [8, 128], strides = [1, 1]} : vector<8x512xf32> to vector<8x128xf32>
    %cst_118 = arith.constant 5.000000e-01 : f32
    %329 = vector.broadcast %cst_118 : f32 to vector<8x128xf32>
    %330 = arith.mulf %329, %328 : vector<8x128xf32>
    %331 = math.tanh %330 : vector<8x128xf32>
    %cst_119 = arith.constant 5.000000e-01 : f32
    %332 = vector.broadcast %cst_119 : f32 to vector<8x128xf32>
    %333 = arith.mulf %332, %331 : vector<8x128xf32>
    %cst_120 = arith.constant 5.000000e-01 : f32
    %334 = vector.broadcast %cst_120 : f32 to vector<8x128xf32>
    %335 = arith.addf %333, %334 : vector<8x128xf32>
    %336 = vector.extract_strided_slice %327 {offsets = [0, 128], sizes = [8, 128], strides = [1, 1]} : vector<8x512xf32> to vector<8x128xf32>
    %cst_121 = arith.constant 5.000000e-01 : f32
    %337 = vector.broadcast %cst_121 : f32 to vector<8x128xf32>
    %338 = arith.mulf %337, %336 : vector<8x128xf32>
    %339 = math.tanh %338 : vector<8x128xf32>
    %cst_122 = arith.constant 5.000000e-01 : f32
    %340 = vector.broadcast %cst_122 : f32 to vector<8x128xf32>
    %341 = arith.mulf %340, %339 : vector<8x128xf32>
    %cst_123 = arith.constant 5.000000e-01 : f32
    %342 = vector.broadcast %cst_123 : f32 to vector<8x128xf32>
    %343 = arith.addf %341, %342 : vector<8x128xf32>
    %344 = vector.extract_strided_slice %327 {offsets = [0, 256], sizes = [8, 128], strides = [1, 1]} : vector<8x512xf32> to vector<8x128xf32>
    %345 = math.tanh %344 : vector<8x128xf32>
    %346 = vector.extract_strided_slice %327 {offsets = [0, 384], sizes = [8, 128], strides = [1, 1]} : vector<8x512xf32> to vector<8x128xf32>
    %cst_124 = arith.constant 5.000000e-01 : f32
    %347 = vector.broadcast %cst_124 : f32 to vector<8x128xf32>
    %348 = arith.mulf %347, %346 : vector<8x128xf32>
    %349 = math.tanh %348 : vector<8x128xf32>
    %cst_125 = arith.constant 5.000000e-01 : f32
    %350 = vector.broadcast %cst_125 : f32 to vector<8x128xf32>
    %351 = arith.mulf %350, %349 : vector<8x128xf32>
    %cst_126 = arith.constant 5.000000e-01 : f32
    %352 = vector.broadcast %cst_126 : f32 to vector<8x128xf32>
    %353 = arith.addf %351, %352 : vector<8x128xf32>
    %354 = arith.mulf %343, %317 : vector<8x128xf32>
    %355 = arith.mulf %335, %345 : vector<8x128xf32>
    %356 = arith.addf %354, %355 : vector<8x128xf32>
    %357 = math.tanh %356 : vector<8x128xf32>
    %358 = arith.mulf %353, %357 : vector<8x128xf32>
    %c0_127 = arith.constant 0 : index
    %c9 = arith.constant 9 : index
    %c0_128 = arith.constant 0 : index
    %359 = vector.load %arg2[%c0_127, %c9, %c0_128] : memref<8x12x16xbf16, #tpu.memory_space<vmem>>, vector<8x1x16xbf16>
    %360 = vector.shape_cast %359 : vector<8x1x16xbf16> to vector<8x16xbf16>
    %cst_129 = arith.constant dense<0.000000e+00> : vector<8x512xf32>
    %361 = tpu.matmul %360, %3, %cst_129 {dimension_numbers = #tpu.dot_dimension_numbers<[1], [0], [0], [1], [0, 0, 1, 1], [], []>} : vector<8x16xbf16>, vector<16x512xbf16>, vector<8x512xf32> -> vector<8x512xf32>
    %362 = arith.truncf %358 : vector<8x128xf32> to vector<8x128xbf16>
    %cst_130 = arith.constant dense<0.000000e+00> : vector<8x512xf32>
    %363 = tpu.matmul %362, %4, %cst_130 {dimension_numbers = #tpu.dot_dimension_numbers<[1], [0], [0], [1], [0, 0, 1, 1], [], []>} : vector<8x128xbf16>, vector<128x512xbf16>, vector<8x512xf32> -> vector<8x512xf32>
    %364 = arith.addf %361, %363 : vector<8x512xf32>
    %365 = vector.broadcast %5 : vector<1x512xf32> to vector<8x512xf32>
    %366 = arith.addf %364, %365 : vector<8x512xf32>
    %367 = vector.extract_strided_slice %366 {offsets = [0, 0], sizes = [8, 128], strides = [1, 1]} : vector<8x512xf32> to vector<8x128xf32>
    %cst_131 = arith.constant 5.000000e-01 : f32
    %368 = vector.broadcast %cst_131 : f32 to vector<8x128xf32>
    %369 = arith.mulf %368, %367 : vector<8x128xf32>
    %370 = math.tanh %369 : vector<8x128xf32>
    %cst_132 = arith.constant 5.000000e-01 : f32
    %371 = vector.broadcast %cst_132 : f32 to vector<8x128xf32>
    %372 = arith.mulf %371, %370 : vector<8x128xf32>
    %cst_133 = arith.constant 5.000000e-01 : f32
    %373 = vector.broadcast %cst_133 : f32 to vector<8x128xf32>
    %374 = arith.addf %372, %373 : vector<8x128xf32>
    %375 = vector.extract_strided_slice %366 {offsets = [0, 128], sizes = [8, 128], strides = [1, 1]} : vector<8x512xf32> to vector<8x128xf32>
    %cst_134 = arith.constant 5.000000e-01 : f32
    %376 = vector.broadcast %cst_134 : f32 to vector<8x128xf32>
    %377 = arith.mulf %376, %375 : vector<8x128xf32>
    %378 = math.tanh %377 : vector<8x128xf32>
    %cst_135 = arith.constant 5.000000e-01 : f32
    %379 = vector.broadcast %cst_135 : f32 to vector<8x128xf32>
    %380 = arith.mulf %379, %378 : vector<8x128xf32>
    %cst_136 = arith.constant 5.000000e-01 : f32
    %381 = vector.broadcast %cst_136 : f32 to vector<8x128xf32>
    %382 = arith.addf %380, %381 : vector<8x128xf32>
    %383 = vector.extract_strided_slice %366 {offsets = [0, 256], sizes = [8, 128], strides = [1, 1]} : vector<8x512xf32> to vector<8x128xf32>
    %384 = math.tanh %383 : vector<8x128xf32>
    %385 = vector.extract_strided_slice %366 {offsets = [0, 384], sizes = [8, 128], strides = [1, 1]} : vector<8x512xf32> to vector<8x128xf32>
    %cst_137 = arith.constant 5.000000e-01 : f32
    %386 = vector.broadcast %cst_137 : f32 to vector<8x128xf32>
    %387 = arith.mulf %386, %385 : vector<8x128xf32>
    %388 = math.tanh %387 : vector<8x128xf32>
    %cst_138 = arith.constant 5.000000e-01 : f32
    %389 = vector.broadcast %cst_138 : f32 to vector<8x128xf32>
    %390 = arith.mulf %389, %388 : vector<8x128xf32>
    %cst_139 = arith.constant 5.000000e-01 : f32
    %391 = vector.broadcast %cst_139 : f32 to vector<8x128xf32>
    %392 = arith.addf %390, %391 : vector<8x128xf32>
    %393 = arith.mulf %382, %356 : vector<8x128xf32>
    %394 = arith.mulf %374, %384 : vector<8x128xf32>
    %395 = arith.addf %393, %394 : vector<8x128xf32>
    %396 = math.tanh %395 : vector<8x128xf32>
    %397 = arith.mulf %392, %396 : vector<8x128xf32>
    %c0_140 = arith.constant 0 : index
    %c10 = arith.constant 10 : index
    %c0_141 = arith.constant 0 : index
    %398 = vector.load %arg2[%c0_140, %c10, %c0_141] : memref<8x12x16xbf16, #tpu.memory_space<vmem>>, vector<8x1x16xbf16>
    %399 = vector.shape_cast %398 : vector<8x1x16xbf16> to vector<8x16xbf16>
    %cst_142 = arith.constant dense<0.000000e+00> : vector<8x512xf32>
    %400 = tpu.matmul %399, %3, %cst_142 {dimension_numbers = #tpu.dot_dimension_numbers<[1], [0], [0], [1], [0, 0, 1, 1], [], []>} : vector<8x16xbf16>, vector<16x512xbf16>, vector<8x512xf32> -> vector<8x512xf32>
    %401 = arith.truncf %397 : vector<8x128xf32> to vector<8x128xbf16>
    %cst_143 = arith.constant dense<0.000000e+00> : vector<8x512xf32>
    %402 = tpu.matmul %401, %4, %cst_143 {dimension_numbers = #tpu.dot_dimension_numbers<[1], [0], [0], [1], [0, 0, 1, 1], [], []>} : vector<8x128xbf16>, vector<128x512xbf16>, vector<8x512xf32> -> vector<8x512xf32>
    %403 = arith.addf %400, %402 : vector<8x512xf32>
    %404 = vector.broadcast %5 : vector<1x512xf32> to vector<8x512xf32>
    %405 = arith.addf %403, %404 : vector<8x512xf32>
    %406 = vector.extract_strided_slice %405 {offsets = [0, 0], sizes = [8, 128], strides = [1, 1]} : vector<8x512xf32> to vector<8x128xf32>
    %cst_144 = arith.constant 5.000000e-01 : f32
    %407 = vector.broadcast %cst_144 : f32 to vector<8x128xf32>
    %408 = arith.mulf %407, %406 : vector<8x128xf32>
    %409 = math.tanh %408 : vector<8x128xf32>
    %cst_145 = arith.constant 5.000000e-01 : f32
    %410 = vector.broadcast %cst_145 : f32 to vector<8x128xf32>
    %411 = arith.mulf %410, %409 : vector<8x128xf32>
    %cst_146 = arith.constant 5.000000e-01 : f32
    %412 = vector.broadcast %cst_146 : f32 to vector<8x128xf32>
    %413 = arith.addf %411, %412 : vector<8x128xf32>
    %414 = vector.extract_strided_slice %405 {offsets = [0, 128], sizes = [8, 128], strides = [1, 1]} : vector<8x512xf32> to vector<8x128xf32>
    %cst_147 = arith.constant 5.000000e-01 : f32
    %415 = vector.broadcast %cst_147 : f32 to vector<8x128xf32>
    %416 = arith.mulf %415, %414 : vector<8x128xf32>
    %417 = math.tanh %416 : vector<8x128xf32>
    %cst_148 = arith.constant 5.000000e-01 : f32
    %418 = vector.broadcast %cst_148 : f32 to vector<8x128xf32>
    %419 = arith.mulf %418, %417 : vector<8x128xf32>
    %cst_149 = arith.constant 5.000000e-01 : f32
    %420 = vector.broadcast %cst_149 : f32 to vector<8x128xf32>
    %421 = arith.addf %419, %420 : vector<8x128xf32>
    %422 = vector.extract_strided_slice %405 {offsets = [0, 256], sizes = [8, 128], strides = [1, 1]} : vector<8x512xf32> to vector<8x128xf32>
    %423 = math.tanh %422 : vector<8x128xf32>
    %424 = vector.extract_strided_slice %405 {offsets = [0, 384], sizes = [8, 128], strides = [1, 1]} : vector<8x512xf32> to vector<8x128xf32>
    %cst_150 = arith.constant 5.000000e-01 : f32
    %425 = vector.broadcast %cst_150 : f32 to vector<8x128xf32>
    %426 = arith.mulf %425, %424 : vector<8x128xf32>
    %427 = math.tanh %426 : vector<8x128xf32>
    %cst_151 = arith.constant 5.000000e-01 : f32
    %428 = vector.broadcast %cst_151 : f32 to vector<8x128xf32>
    %429 = arith.mulf %428, %427 : vector<8x128xf32>
    %cst_152 = arith.constant 5.000000e-01 : f32
    %430 = vector.broadcast %cst_152 : f32 to vector<8x128xf32>
    %431 = arith.addf %429, %430 : vector<8x128xf32>
    %432 = arith.mulf %421, %395 : vector<8x128xf32>
    %433 = arith.mulf %413, %423 : vector<8x128xf32>
    %434 = arith.addf %432, %433 : vector<8x128xf32>
    %435 = math.tanh %434 : vector<8x128xf32>
    %436 = arith.mulf %431, %435 : vector<8x128xf32>
    %c0_153 = arith.constant 0 : index
    %c11 = arith.constant 11 : index
    %c0_154 = arith.constant 0 : index
    %437 = vector.load %arg2[%c0_153, %c11, %c0_154] : memref<8x12x16xbf16, #tpu.memory_space<vmem>>, vector<8x1x16xbf16>
    %438 = vector.shape_cast %437 : vector<8x1x16xbf16> to vector<8x16xbf16>
    %cst_155 = arith.constant dense<0.000000e+00> : vector<8x512xf32>
    %439 = tpu.matmul %438, %3, %cst_155 {dimension_numbers = #tpu.dot_dimension_numbers<[1], [0], [0], [1], [0, 0, 1, 1], [], []>} : vector<8x16xbf16>, vector<16x512xbf16>, vector<8x512xf32> -> vector<8x512xf32>
    %440 = arith.truncf %436 : vector<8x128xf32> to vector<8x128xbf16>
    %cst_156 = arith.constant dense<0.000000e+00> : vector<8x512xf32>
    %441 = tpu.matmul %440, %4, %cst_156 {dimension_numbers = #tpu.dot_dimension_numbers<[1], [0], [0], [1], [0, 0, 1, 1], [], []>} : vector<8x128xbf16>, vector<128x512xbf16>, vector<8x512xf32> -> vector<8x512xf32>
    %442 = arith.addf %439, %441 : vector<8x512xf32>
    %443 = vector.broadcast %5 : vector<1x512xf32> to vector<8x512xf32>
    %444 = arith.addf %442, %443 : vector<8x512xf32>
    %445 = vector.extract_strided_slice %444 {offsets = [0, 0], sizes = [8, 128], strides = [1, 1]} : vector<8x512xf32> to vector<8x128xf32>
    %cst_157 = arith.constant 5.000000e-01 : f32
    %446 = vector.broadcast %cst_157 : f32 to vector<8x128xf32>
    %447 = arith.mulf %446, %445 : vector<8x128xf32>
    %448 = math.tanh %447 : vector<8x128xf32>
    %cst_158 = arith.constant 5.000000e-01 : f32
    %449 = vector.broadcast %cst_158 : f32 to vector<8x128xf32>
    %450 = arith.mulf %449, %448 : vector<8x128xf32>
    %cst_159 = arith.constant 5.000000e-01 : f32
    %451 = vector.broadcast %cst_159 : f32 to vector<8x128xf32>
    %452 = arith.addf %450, %451 : vector<8x128xf32>
    %453 = vector.extract_strided_slice %444 {offsets = [0, 128], sizes = [8, 128], strides = [1, 1]} : vector<8x512xf32> to vector<8x128xf32>
    %cst_160 = arith.constant 5.000000e-01 : f32
    %454 = vector.broadcast %cst_160 : f32 to vector<8x128xf32>
    %455 = arith.mulf %454, %453 : vector<8x128xf32>
    %456 = math.tanh %455 : vector<8x128xf32>
    %cst_161 = arith.constant 5.000000e-01 : f32
    %457 = vector.broadcast %cst_161 : f32 to vector<8x128xf32>
    %458 = arith.mulf %457, %456 : vector<8x128xf32>
    %cst_162 = arith.constant 5.000000e-01 : f32
    %459 = vector.broadcast %cst_162 : f32 to vector<8x128xf32>
    %460 = arith.addf %458, %459 : vector<8x128xf32>
    %461 = vector.extract_strided_slice %444 {offsets = [0, 256], sizes = [8, 128], strides = [1, 1]} : vector<8x512xf32> to vector<8x128xf32>
    %462 = math.tanh %461 : vector<8x128xf32>
    %463 = vector.extract_strided_slice %444 {offsets = [0, 384], sizes = [8, 128], strides = [1, 1]} : vector<8x512xf32> to vector<8x128xf32>
    %cst_163 = arith.constant 5.000000e-01 : f32
    %464 = vector.broadcast %cst_163 : f32 to vector<8x128xf32>
    %465 = arith.mulf %464, %463 : vector<8x128xf32>
    %466 = math.tanh %465 : vector<8x128xf32>
    %cst_164 = arith.constant 5.000000e-01 : f32
    %467 = vector.broadcast %cst_164 : f32 to vector<8x128xf32>
    %468 = arith.mulf %467, %466 : vector<8x128xf32>
    %cst_165 = arith.constant 5.000000e-01 : f32
    %469 = vector.broadcast %cst_165 : f32 to vector<8x128xf32>
    %470 = arith.addf %468, %469 : vector<8x128xf32>
    %471 = arith.mulf %460, %434 : vector<8x128xf32>
    %472 = arith.mulf %452, %462 : vector<8x128xf32>
    %473 = arith.addf %471, %472 : vector<8x128xf32>
    %474 = math.tanh %473 : vector<8x128xf32>
    %475 = arith.mulf %470, %474 : vector<8x128xf32>
    %c0_166 = arith.constant 0 : index
    %c0_167 = arith.constant 0 : index
    %476 = vector.load %arg9[%c0_166, %c0_167] : memref<8x128xf32, #tpu.memory_space<vmem>>, vector<8x128xf32>
    tpu.vector_store %arg9[%c0_166, %c0_167], %475 {strides = array<i32>} : memref<8x128xf32, #tpu.memory_space<vmem>>, vector<8x128xf32>,
    %c0_168 = arith.constant 0 : index
    %c0_169 = arith.constant 0 : index
    %477 = vector.load %arg10[%c0_168, %c0_169] : memref<8x128xf32, #tpu.memory_space<vmem>>, vector<8x128xf32>
    tpu.vector_store %arg10[%c0_168, %c0_169], %473 {strides = array<i32>} : memref<8x128xf32, #tpu.memory_space<vmem>>, vector<8x128xf32>,
    %c0_i32_170 = arith.constant 0 : i32
    %478 = arith.cmpi eq, %arg1, %c0_i32_170 : i32
    %479 = arith.extui %478 : i1 to i32
    %c0_i32_171 = arith.constant 0 : i32
    %480 = arith.cmpi ne, %479, %c0_i32_171 : i32
    scf.if %480 {
      %481 = arith.truncf %475 : vector<8x128xf32> to vector<8x128xbf16>
      %c0_172 = arith.constant 0 : index
      %c0_173 = arith.constant 0 : index
      %482 = vector.load %arg6[%c0_172, %c0_173] : memref<128x128xbf16, #tpu.memory_space<vmem>>, vector<128x128xbf16>
      %cst_174 = arith.constant dense<0.000000e+00> : vector<8x128xf32>
      %483 = tpu.matmul %481, %482, %cst_174 {dimension_numbers = #tpu.dot_dimension_numbers<[1], [0], [0], [1], [0, 0, 1, 1], [], []>} : vector<8x128xbf16>, vector<128x128xbf16>, vector<8x128xf32> -> vector<8x128xf32>
      %c0_175 = arith.constant 0 : index
      %c0_176 = arith.constant 0 : index
      %484 = vector.load %arg7[%c0_175, %c0_176] : memref<1x128xf32, #tpu.memory_space<vmem>>, vector<1x128xf32>
      %485 = vector.broadcast %484 : vector<1x128xf32> to vector<8x128xf32>
      %486 = arith.addf %483, %485 : vector<8x128xf32>
      %c0_177 = arith.constant 0 : index
      %c0_178 = arith.constant 0 : index
      %487 = vector.load %arg8[%c0_177, %c0_178] : memref<8x128xf32, #tpu.memory_space<vmem>>, vector<8x128xf32>
      tpu.vector_store %arg8[%c0_177, %c0_178], %486 {strides = array<i32>} : memref<8x128xf32, #tpu.memory_space<vmem>>, vector<8x128xf32>,
    } else {
    }
    return
  }
  func.func @transform_0(%arg0: i32, %arg1: i32) -> (i32, i32, i32) {
    %c0_i32 = arith.constant 0 : i32
    %c0_i32_0 = arith.constant 0 : i32
    return %arg0, %arg1, %c0_i32 : i32, i32, i32
  }
  func.func @transform_1(%arg0: i32, %arg1: i32) -> (i32, i32) {
    %c0_i32 = arith.constant 0 : i32
    %c0_i32_0 = arith.constant 0 : i32
    %c0_i32_1 = arith.constant 0 : i32
    return %c0_i32, %c0_i32_0 : i32, i32
  }
  func.func @transform_2(%arg0: i32, %arg1: i32) -> (i32, i32) {
    %c0_i32 = arith.constant 0 : i32
    %c0_i32_0 = arith.constant 0 : i32
    %c0_i32_1 = arith.constant 0 : i32
    return %c0_i32, %c0_i32_0 : i32, i32
  }
  func.func @transform_3(%arg0: i32, %arg1: i32) -> (i32, i32) {
    %c0_i32 = arith.constant 0 : i32
    %c0_i32_0 = arith.constant 0 : i32
    %c0_i32_1 = arith.constant 0 : i32
    return %c0_i32, %c0_i32_0 : i32, i32
  }
  func.func @transform_4(%arg0: i32, %arg1: i32) -> (i32, i32) {
    %c0_i32 = arith.constant 0 : i32
    %c0_i32_0 = arith.constant 0 : i32
    %c0_i32_1 = arith.constant 0 : i32
    return %c0_i32, %c0_i32_0 : i32, i32
  }
  func.func @transform_5(%arg0: i32, %arg1: i32) -> (i32, i32) {
    %c0_i32 = arith.constant 0 : i32
    %c0_i32_0 = arith.constant 0 : i32
    %c0_i32_1 = arith.constant 0 : i32
    return %c0_i32, %c0_i32_0 : i32, i32
  }
  func.func @transform_6(%arg0: i32, %arg1: i32) -> (i32, i32) {
    %c0_i32 = arith.constant 0 : i32
    %c0_i32_0 = arith.constant 0 : i32
    return %arg0, %c0_i32 : i32, i32
  }
}

module attributes {stable_mosaic.version = 11 : i64} {
  func.func @_lstm_decoder_kernel(%arg0: i32, %arg1: i32, %arg2: memref<8x12x16xbf16, #tpu.memory_space<vmem>>, %arg3: memref<16x512xbf16, #tpu.memory_space<vmem>>, %arg4: memref<128x512xbf16, #tpu.memory_space<vmem>>, %arg5: memref<1x512xf32, #tpu.memory_space<vmem>>, %arg6: memref<128x128xbf16, #tpu.memory_space<vmem>>, %arg7: memref<1x128xf32, #tpu.memory_space<vmem>>, %arg8: memref<8x128xf32, #tpu.memory_space<vmem>>, %arg9: memref<8x128xf32, #tpu.memory_space<vmem>>, %arg10: memref<8x128xf32, #tpu.memory_space<vmem>>) attributes {dimension_semantics = [#tpu.dimension_semantics<parallel>, #tpu.dimension_semantics<arbitrary>], iteration_bounds = array<i64: 1, 1>, scalar_prefetch = 0 : i64, scratch_operands = 2 : i64, tpu.core_type = #tpu.core_type<tc>, window_params = [{transform_indices = @transform_0, window_bounds = array<i64: 8, 12, 16>}, {pipeline_mode = #tpu.pipeline_mode<synchronous>, transform_indices = @transform_1, window_bounds = array<i64: 16, 512>}, {pipeline_mode = #tpu.pipeline_mode<synchronous>, transform_indices = @transform_2, window_bounds = array<i64: 128, 512>}, {pipeline_mode = #tpu.pipeline_mode<synchronous>, transform_indices = @transform_3, window_bounds = array<i64: 1, 512>}, {pipeline_mode = #tpu.pipeline_mode<synchronous>, transform_indices = @transform_4, window_bounds = array<i64: 128, 128>}, {pipeline_mode = #tpu.pipeline_mode<synchronous>, transform_indices = @transform_5, window_bounds = array<i64: 1, 128>}, {transform_indices = @transform_6, window_bounds = array<i64: 8, 128>}]} {
    %c0_i32 = arith.constant 0 : i32
    %0 = arith.cmpi eq, %arg1, %c0_i32 : i32
    %1 = arith.extui %0 : i1 to i32
    %c0_i32_0 = arith.constant 0 : i32
    %2 = arith.cmpi ne, %1, %c0_i32_0 : i32
    scf.if %2 {
      %cst_172 = arith.constant 0.000000e+00 : f32
      %481 = vector.broadcast %cst_172 : f32 to vector<8x128xf32>
      %c0_173 = arith.constant 0 : index
      %c0_174 = arith.constant 0 : index
      %482 = vector.load %arg9[%c0_173, %c0_174] : memref<8x128xf32, #tpu.memory_space<vmem>>, vector<8x128xf32>
      tpu.vector_store %arg9[%c0_173, %c0_174], %481 {strides = array<i32>} : memref<8x128xf32, #tpu.memory_space<vmem>>, vector<8x128xf32>,
      %cst_175 = arith.constant 0.000000e+00 : f32
      %483 = vector.broadcast %cst_175 : f32 to vector<8x128xf32>
      %c0_176 = arith.constant 0 : index
      %c0_177 = arith.constant 0 : index
      %484 = vector.load %arg10[%c0_176, %c0_177] : memref<8x128xf32, #tpu.memory_space<vmem>>, vector<8x128xf32>
      tpu.vector_store %arg10[%c0_176, %c0_177], %483 {strides = array<i32>} : memref<8x128xf32, #tpu.memory_space<vmem>>, vector<8x128xf32>,
    } else {
    }
    %c0 = arith.constant 0 : index
    %c0_1 = arith.constant 0 : index
    %3 = vector.load %arg3[%c0, %c0_1] : memref<16x512xbf16, #tpu.memory_space<vmem>>, vector<16x512xbf16>
    %c0_2 = arith.constant 0 : index
    %c0_3 = arith.constant 0 : index
    %4 = vector.load %arg4[%c0_2, %c0_3] : memref<128x512xbf16, #tpu.memory_space<vmem>>, vector<128x512xbf16>
    %c0_4 = arith.constant 0 : index
    %c0_5 = arith.constant 0 : index
    %5 = vector.load %arg5[%c0_4, %c0_5] : memref<1x512xf32, #tpu.memory_space<vmem>>, vector<1x512xf32>
    %c0_6 = arith.constant 0 : index
    %c0_7 = arith.constant 0 : index
    %6 = vector.load %arg9[%c0_6, %c0_7] : memref<8x128xf32, #tpu.memory_space<vmem>>, vector<8x128xf32>
    %c0_8 = arith.constant 0 : index
    %c0_9 = arith.constant 0 : index
    %7 = vector.load %arg10[%c0_8, %c0_9] : memref<8x128xf32, #tpu.memory_space<vmem>>, vector<8x128xf32>
    %c0_10 = arith.constant 0 : index
    %c0_11 = arith.constant 0 : index
    %c0_12 = arith.constant 0 : index
    %8 = vector.load %arg2[%c0_10, %c0_11, %c0_12] : memref<8x12x16xbf16, #tpu.memory_space<vmem>>, vector<8x1x16xbf16>
    %9 = vector.shape_cast %8 : vector<8x1x16xbf16> to vector<8x16xbf16>
    %cst = arith.constant dense<0.000000e+00> : vector<8x512xf32>
    %10 = tpu.matmul %9, %3, %cst {dimension_numbers = #tpu.dot_dimension_numbers<[1], [0], [0], [1], [0, 0, 1, 1], [], []>} : vector<8x16xbf16>, vector<16x512xbf16>, vector<8x512xf32> -> vector<8x512xf32>
    %11 = arith.truncf %6 : vector<8x128xf32> to vector<8x128xbf16>
    %cst_13 = arith.constant dense<0.000000e+00> : vector<8x512xf32>
    %12 = tpu.matmul %11, %4, %cst_13 {dimension_numbers = #tpu.dot_dimension_numbers<[1], [0], [0], [1], [0, 0, 1, 1], [], []>} : vector<8x128xbf16>, vector<128x512xbf16>, vector<8x512xf32> -> vector<8x512xf32>
    %13 = arith.addf %10, %12 : vector<8x512xf32>
    %14 = vector.broadcast %5 : vector<1x512xf32> to vector<8x512xf32>
    %15 = arith.addf %13, %14 : vector<8x512xf32>
    %16 = vector.extract_strided_slice %15 {offsets = [0, 0], sizes = [8, 128], strides = [1, 1]} : vector<8x512xf32> to vector<8x128xf32>
    %cst_14 = arith.constant 5.000000e-01 : f32
    %17 = vector.broadcast %cst_14 : f32 to vector<8x128xf32>
    %18 = arith.mulf %17, %16 : vector<8x128xf32>
    %19 = math.tanh %18 : vector<8x128xf32>
    %cst_15 = arith.constant 5.000000e-01 : f32
    %20 = vector.broadcast %cst_15 : f32 to vector<8x128xf32>
    %21 = arith.mulf %20, %19 : vector<8x128xf32>
    %cst_16 = arith.constant 5.000000e-01 : f32
    %22 = vector.broadcast %cst_16 : f32 to vector<8x128xf32>
    %23 = arith.addf %21, %22 : vector<8x128xf32>
    %24 = vector.extract_strided_slice %15 {offsets = [0, 128], sizes = [8, 128], strides = [1, 1]} : vector<8x512xf32> to vector<8x128xf32>
    %cst_17 = arith.constant 5.000000e-01 : f32
    %25 = vector.broadcast %cst_17 : f32 to vector<8x128xf32>
    %26 = arith.mulf %25, %24 : vector<8x128xf32>
    %27 = math.tanh %26 : vector<8x128xf32>
    %cst_18 = arith.constant 5.000000e-01 : f32
    %28 = vector.broadcast %cst_18 : f32 to vector<8x128xf32>
    %29 = arith.mulf %28, %27 : vector<8x128xf32>
    %cst_19 = arith.constant 5.000000e-01 : f32
    %30 = vector.broadcast %cst_19 : f32 to vector<8x128xf32>
    %31 = arith.addf %29, %30 : vector<8x128xf32>
    %32 = vector.extract_strided_slice %15 {offsets = [0, 256], sizes = [8, 128], strides = [1, 1]} : vector<8x512xf32> to vector<8x128xf32>
    %33 = math.tanh %32 : vector<8x128xf32>
    %34 = vector.extract_strided_slice %15 {offsets = [0, 384], sizes = [8, 128], strides = [1, 1]} : vector<8x512xf32> to vector<8x128xf32>
    %cst_20 = arith.constant 5.000000e-01 : f32
    %35 = vector.broadcast %cst_20 : f32 to vector<8x128xf32>
    %36 = arith.mulf %35, %34 : vector<8x128xf32>
    %37 = math.tanh %36 : vector<8x128xf32>
    %cst_21 = arith.constant 5.000000e-01 : f32
    %38 = vector.broadcast %cst_21 : f32 to vector<8x128xf32>
    %39 = arith.mulf %38, %37 : vector<8x128xf32>
    %cst_22 = arith.constant 5.000000e-01 : f32
    %40 = vector.broadcast %cst_22 : f32 to vector<8x128xf32>
    %41 = arith.addf %39, %40 : vector<8x128xf32>
    %42 = arith.mulf %31, %7 : vector<8x128xf32>
    %43 = arith.mulf %23, %33 : vector<8x128xf32>
    %44 = arith.addf %42, %43 : vector<8x128xf32>
    %45 = math.tanh %44 : vector<8x128xf32>
    %46 = arith.mulf %41, %45 : vector<8x128xf32>
    %c0_23 = arith.constant 0 : index
    %c1 = arith.constant 1 : index
    %c0_24 = arith.constant 0 : index
    %47 = vector.load %arg2[%c0_23, %c1, %c0_24] : memref<8x12x16xbf16, #tpu.memory_space<vmem>>, vector<8x1x16xbf16>
    %48 = vector.shape_cast %47 : vector<8x1x16xbf16> to vector<8x16xbf16>
    %cst_25 = arith.constant dense<0.000000e+00> : vector<8x512xf32>
    %49 = tpu.matmul %48, %3, %cst_25 {dimension_numbers = #tpu.dot_dimension_numbers<[1], [0], [0], [1], [0, 0, 1, 1], [], []>} : vector<8x16xbf16>, vector<16x512xbf16>, vector<8x512xf32> -> vector<8x512xf32>
    %50 = arith.truncf %46 : vector<8x128xf32> to vector<8x128xbf16>
    %cst_26 = arith.constant dense<0.000000e+00> : vector<8x512xf32>
    %51 = tpu.matmul %50, %4, %cst_26 {dimension_numbers = #tpu.dot_dimension_numbers<[1], [0], [0], [1], [0, 0, 1, 1], [], []>} : vector<8x128xbf16>, vector<128x512xbf16>, vector<8x512xf32> -> vector<8x512xf32>
    %52 = arith.addf %49, %51 : vector<8x512xf32>
    %53 = vector.broadcast %5 : vector<1x512xf32> to vector<8x512xf32>
    %54 = arith.addf %52, %53 : vector<8x512xf32>
    %55 = vector.extract_strided_slice %54 {offsets = [0, 0], sizes = [8, 128], strides = [1, 1]} : vector<8x512xf32> to vector<8x128xf32>
    %cst_27 = arith.constant 5.000000e-01 : f32
    %56 = vector.broadcast %cst_27 : f32 to vector<8x128xf32>
    %57 = arith.mulf %56, %55 : vector<8x128xf32>
    %58 = math.tanh %57 : vector<8x128xf32>
    %cst_28 = arith.constant 5.000000e-01 : f32
    %59 = vector.broadcast %cst_28 : f32 to vector<8x128xf32>
    %60 = arith.mulf %59, %58 : vector<8x128xf32>
    %cst_29 = arith.constant 5.000000e-01 : f32
    %61 = vector.broadcast %cst_29 : f32 to vector<8x128xf32>
    %62 = arith.addf %60, %61 : vector<8x128xf32>
    %63 = vector.extract_strided_slice %54 {offsets = [0, 128], sizes = [8, 128], strides = [1, 1]} : vector<8x512xf32> to vector<8x128xf32>
    %cst_30 = arith.constant 5.000000e-01 : f32
    %64 = vector.broadcast %cst_30 : f32 to vector<8x128xf32>
    %65 = arith.mulf %64, %63 : vector<8x128xf32>
    %66 = math.tanh %65 : vector<8x128xf32>
    %cst_31 = arith.constant 5.000000e-01 : f32
    %67 = vector.broadcast %cst_31 : f32 to vector<8x128xf32>
    %68 = arith.mulf %67, %66 : vector<8x128xf32>
    %cst_32 = arith.constant 5.000000e-01 : f32
    %69 = vector.broadcast %cst_32 : f32 to vector<8x128xf32>
    %70 = arith.addf %68, %69 : vector<8x128xf32>
    %71 = vector.extract_strided_slice %54 {offsets = [0, 256], sizes = [8, 128], strides = [1, 1]} : vector<8x512xf32> to vector<8x128xf32>
    %72 = math.tanh %71 : vector<8x128xf32>
    %73 = vector.extract_strided_slice %54 {offsets = [0, 384], sizes = [8, 128], strides = [1, 1]} : vector<8x512xf32> to vector<8x128xf32>
    %cst_33 = arith.constant 5.000000e-01 : f32
    %74 = vector.broadcast %cst_33 : f32 to vector<8x128xf32>
    %75 = arith.mulf %74, %73 : vector<8x128xf32>
    %76 = math.tanh %75 : vector<8x128xf32>
    %cst_34 = arith.constant 5.000000e-01 : f32
    %77 = vector.broadcast %cst_34 : f32 to vector<8x128xf32>
    %78 = arith.mulf %77, %76 : vector<8x128xf32>
    %cst_35 = arith.constant 5.000000e-01 : f32
    %79 = vector.broadcast %cst_35 : f32 to vector<8x128xf32>
    %80 = arith.addf %78, %79 : vector<8x128xf32>
    %81 = arith.mulf %70, %44 : vector<8x128xf32>
    %82 = arith.mulf %62, %72 : vector<8x128xf32>
    %83 = arith.addf %81, %82 : vector<8x128xf32>
    %84 = math.tanh %83 : vector<8x128xf32>
    %85 = arith.mulf %80, %84 : vector<8x128xf32>
    %c0_36 = arith.constant 0 : index
    %c2 = arith.constant 2 : index
    %c0_37 = arith.constant 0 : index
    %86 = vector.load %arg2[%c0_36, %c2, %c0_37] : memref<8x12x16xbf16, #tpu.memory_space<vmem>>, vector<8x1x16xbf16>
    %87 = vector.shape_cast %86 : vector<8x1x16xbf16> to vector<8x16xbf16>
    %cst_38 = arith.constant dense<0.000000e+00> : vector<8x512xf32>
    %88 = tpu.matmul %87, %3, %cst_38 {dimension_numbers = #tpu.dot_dimension_numbers<[1], [0], [0], [1], [0, 0, 1, 1], [], []>} : vector<8x16xbf16>, vector<16x512xbf16>, vector<8x512xf32> -> vector<8x512xf32>
    %89 = arith.truncf %85 : vector<8x128xf32> to vector<8x128xbf16>
    %cst_39 = arith.constant dense<0.000000e+00> : vector<8x512xf32>
    %90 = tpu.matmul %89, %4, %cst_39 {dimension_numbers = #tpu.dot_dimension_numbers<[1], [0], [0], [1], [0, 0, 1, 1], [], []>} : vector<8x128xbf16>, vector<128x512xbf16>, vector<8x512xf32> -> vector<8x512xf32>
    %91 = arith.addf %88, %90 : vector<8x512xf32>
    %92 = vector.broadcast %5 : vector<1x512xf32> to vector<8x512xf32>
    %93 = arith.addf %91, %92 : vector<8x512xf32>
    %94 = vector.extract_strided_slice %93 {offsets = [0, 0], sizes = [8, 128], strides = [1, 1]} : vector<8x512xf32> to vector<8x128xf32>
    %cst_40 = arith.constant 5.000000e-01 : f32
    %95 = vector.broadcast %cst_40 : f32 to vector<8x128xf32>
    %96 = arith.mulf %95, %94 : vector<8x128xf32>
    %97 = math.tanh %96 : vector<8x128xf32>
    %cst_41 = arith.constant 5.000000e-01 : f32
    %98 = vector.broadcast %cst_41 : f32 to vector<8x128xf32>
    %99 = arith.mulf %98, %97 : vector<8x128xf32>
    %cst_42 = arith.constant 5.000000e-01 : f32
    %100 = vector.broadcast %cst_42 : f32 to vector<8x128xf32>
    %101 = arith.addf %99, %100 : vector<8x128xf32>
    %102 = vector.extract_strided_slice %93 {offsets = [0, 128], sizes = [8, 128], strides = [1, 1]} : vector<8x512xf32> to vector<8x128xf32>
    %cst_43 = arith.constant 5.000000e-01 : f32
    %103 = vector.broadcast %cst_43 : f32 to vector<8x128xf32>
    %104 = arith.mulf %103, %102 : vector<8x128xf32>
    %105 = math.tanh %104 : vector<8x128xf32>
    %cst_44 = arith.constant 5.000000e-01 : f32
    %106 = vector.broadcast %cst_44 : f32 to vector<8x128xf32>
    %107 = arith.mulf %106, %105 : vector<8x128xf32>
    %cst_45 = arith.constant 5.000000e-01 : f32
    %108 = vector.broadcast %cst_45 : f32 to vector<8x128xf32>
    %109 = arith.addf %107, %108 : vector<8x128xf32>
    %110 = vector.extract_strided_slice %93 {offsets = [0, 256], sizes = [8, 128], strides = [1, 1]} : vector<8x512xf32> to vector<8x128xf32>
    %111 = math.tanh %110 : vector<8x128xf32>
    %112 = vector.extract_strided_slice %93 {offsets = [0, 384], sizes = [8, 128], strides = [1, 1]} : vector<8x512xf32> to vector<8x128xf32>
    %cst_46 = arith.constant 5.000000e-01 : f32
    %113 = vector.broadcast %cst_46 : f32 to vector<8x128xf32>
    %114 = arith.mulf %113, %112 : vector<8x128xf32>
    %115 = math.tanh %114 : vector<8x128xf32>
    %cst_47 = arith.constant 5.000000e-01 : f32
    %116 = vector.broadcast %cst_47 : f32 to vector<8x128xf32>
    %117 = arith.mulf %116, %115 : vector<8x128xf32>
    %cst_48 = arith.constant 5.000000e-01 : f32
    %118 = vector.broadcast %cst_48 : f32 to vector<8x128xf32>
    %119 = arith.addf %117, %118 : vector<8x128xf32>
    %120 = arith.mulf %109, %83 : vector<8x128xf32>
    %121 = arith.mulf %101, %111 : vector<8x128xf32>
    %122 = arith.addf %120, %121 : vector<8x128xf32>
    %123 = math.tanh %122 : vector<8x128xf32>
    %124 = arith.mulf %119, %123 : vector<8x128xf32>
    %c0_49 = arith.constant 0 : index
    %c3 = arith.constant 3 : index
    %c0_50 = arith.constant 0 : index
    %125 = vector.load %arg2[%c0_49, %c3, %c0_50] : memref<8x12x16xbf16, #tpu.memory_space<vmem>>, vector<8x1x16xbf16>
    %126 = vector.shape_cast %125 : vector<8x1x16xbf16> to vector<8x16xbf16>
    %cst_51 = arith.constant dense<0.000000e+00> : vector<8x512xf32>
    %127 = tpu.matmul %126, %3, %cst_51 {dimension_numbers = #tpu.dot_dimension_numbers<[1], [0], [0], [1], [0, 0, 1, 1], [], []>} : vector<8x16xbf16>, vector<16x512xbf16>, vector<8x512xf32> -> vector<8x512xf32>
    %128 = arith.truncf %124 : vector<8x128xf32> to vector<8x128xbf16>
    %cst_52 = arith.constant dense<0.000000e+00> : vector<8x512xf32>
    %129 = tpu.matmul %128, %4, %cst_52 {dimension_numbers = #tpu.dot_dimension_numbers<[1], [0], [0], [1], [0, 0, 1, 1], [], []>} : vector<8x128xbf16>, vector<128x512xbf16>, vector<8x512xf32> -> vector<8x512xf32>
    %130 = arith.addf %127, %129 : vector<8x512xf32>
    %131 = vector.broadcast %5 : vector<1x512xf32> to vector<8x512xf32>
    %132 = arith.addf %130, %131 : vector<8x512xf32>
    %133 = vector.extract_strided_slice %132 {offsets = [0, 0], sizes = [8, 128], strides = [1, 1]} : vector<8x512xf32> to vector<8x128xf32>
    %cst_53 = arith.constant 5.000000e-01 : f32
    %134 = vector.broadcast %cst_53 : f32 to vector<8x128xf32>
    %135 = arith.mulf %134, %133 : vector<8x128xf32>
    %136 = math.tanh %135 : vector<8x128xf32>
    %cst_54 = arith.constant 5.000000e-01 : f32
    %137 = vector.broadcast %cst_54 : f32 to vector<8x128xf32>
    %138 = arith.mulf %137, %136 : vector<8x128xf32>
    %cst_55 = arith.constant 5.000000e-01 : f32
    %139 = vector.broadcast %cst_55 : f32 to vector<8x128xf32>
    %140 = arith.addf %138, %139 : vector<8x128xf32>
    %141 = vector.extract_strided_slice %132 {offsets = [0, 128], sizes = [8, 128], strides = [1, 1]} : vector<8x512xf32> to vector<8x128xf32>
    %cst_56 = arith.constant 5.000000e-01 : f32
    %142 = vector.broadcast %cst_56 : f32 to vector<8x128xf32>
    %143 = arith.mulf %142, %141 : vector<8x128xf32>
    %144 = math.tanh %143 : vector<8x128xf32>
    %cst_57 = arith.constant 5.000000e-01 : f32
    %145 = vector.broadcast %cst_57 : f32 to vector<8x128xf32>
    %146 = arith.mulf %145, %144 : vector<8x128xf32>
    %cst_58 = arith.constant 5.000000e-01 : f32
    %147 = vector.broadcast %cst_58 : f32 to vector<8x128xf32>
    %148 = arith.addf %146, %147 : vector<8x128xf32>
    %149 = vector.extract_strided_slice %132 {offsets = [0, 256], sizes = [8, 128], strides = [1, 1]} : vector<8x512xf32> to vector<8x128xf32>
    %150 = math.tanh %149 : vector<8x128xf32>
    %151 = vector.extract_strided_slice %132 {offsets = [0, 384], sizes = [8, 128], strides = [1, 1]} : vector<8x512xf32> to vector<8x128xf32>
    %cst_59 = arith.constant 5.000000e-01 : f32
    %152 = vector.broadcast %cst_59 : f32 to vector<8x128xf32>
    %153 = arith.mulf %152, %151 : vector<8x128xf32>
    %154 = math.tanh %153 : vector<8x128xf32>
    %cst_60 = arith.constant 5.000000e-01 : f32
    %155 = vector.broadcast %cst_60 : f32 to vector<8x128xf32>
    %156 = arith.mulf %155, %154 : vector<8x128xf32>
    %cst_61 = arith.constant 5.000000e-01 : f32
    %157 = vector.broadcast %cst_61 : f32 to vector<8x128xf32>
    %158 = arith.addf %156, %157 : vector<8x128xf32>
    %159 = arith.mulf %148, %122 : vector<8x128xf32>
    %160 = arith.mulf %140, %150 : vector<8x128xf32>
    %161 = arith.addf %159, %160 : vector<8x128xf32>
    %162 = math.tanh %161 : vector<8x128xf32>
    %163 = arith.mulf %158, %162 : vector<8x128xf32>
    %c0_62 = arith.constant 0 : index
    %c4 = arith.constant 4 : index
    %c0_63 = arith.constant 0 : index
    %164 = vector.load %arg2[%c0_62, %c4, %c0_63] : memref<8x12x16xbf16, #tpu.memory_space<vmem>>, vector<8x1x16xbf16>
    %165 = vector.shape_cast %164 : vector<8x1x16xbf16> to vector<8x16xbf16>
    %cst_64 = arith.constant dense<0.000000e+00> : vector<8x512xf32>
    %166 = tpu.matmul %165, %3, %cst_64 {dimension_numbers = #tpu.dot_dimension_numbers<[1], [0], [0], [1], [0, 0, 1, 1], [], []>} : vector<8x16xbf16>, vector<16x512xbf16>, vector<8x512xf32> -> vector<8x512xf32>
    %167 = arith.truncf %163 : vector<8x128xf32> to vector<8x128xbf16>
    %cst_65 = arith.constant dense<0.000000e+00> : vector<8x512xf32>
    %168 = tpu.matmul %167, %4, %cst_65 {dimension_numbers = #tpu.dot_dimension_numbers<[1], [0], [0], [1], [0, 0, 1, 1], [], []>} : vector<8x128xbf16>, vector<128x512xbf16>, vector<8x512xf32> -> vector<8x512xf32>
    %169 = arith.addf %166, %168 : vector<8x512xf32>
    %170 = vector.broadcast %5 : vector<1x512xf32> to vector<8x512xf32>
    %171 = arith.addf %169, %170 : vector<8x512xf32>
    %172 = vector.extract_strided_slice %171 {offsets = [0, 0], sizes = [8, 128], strides = [1, 1]} : vector<8x512xf32> to vector<8x128xf32>
    %cst_66 = arith.constant 5.000000e-01 : f32
    %173 = vector.broadcast %cst_66 : f32 to vector<8x128xf32>
    %174 = arith.mulf %173, %172 : vector<8x128xf32>
    %175 = math.tanh %174 : vector<8x128xf32>
    %cst_67 = arith.constant 5.000000e-01 : f32
    %176 = vector.broadcast %cst_67 : f32 to vector<8x128xf32>
    %177 = arith.mulf %176, %175 : vector<8x128xf32>
    %cst_68 = arith.constant 5.000000e-01 : f32
    %178 = vector.broadcast %cst_68 : f32 to vector<8x128xf32>
    %179 = arith.addf %177, %178 : vector<8x128xf32>
    %180 = vector.extract_strided_slice %171 {offsets = [0, 128], sizes = [8, 128], strides = [1, 1]} : vector<8x512xf32> to vector<8x128xf32>
    %cst_69 = arith.constant 5.000000e-01 : f32
    %181 = vector.broadcast %cst_69 : f32 to vector<8x128xf32>
    %182 = arith.mulf %181, %180 : vector<8x128xf32>
    %183 = math.tanh %182 : vector<8x128xf32>
    %cst_70 = arith.constant 5.000000e-01 : f32
    %184 = vector.broadcast %cst_70 : f32 to vector<8x128xf32>
    %185 = arith.mulf %184, %183 : vector<8x128xf32>
    %cst_71 = arith.constant 5.000000e-01 : f32
    %186 = vector.broadcast %cst_71 : f32 to vector<8x128xf32>
    %187 = arith.addf %185, %186 : vector<8x128xf32>
    %188 = vector.extract_strided_slice %171 {offsets = [0, 256], sizes = [8, 128], strides = [1, 1]} : vector<8x512xf32> to vector<8x128xf32>
    %189 = math.tanh %188 : vector<8x128xf32>
    %190 = vector.extract_strided_slice %171 {offsets = [0, 384], sizes = [8, 128], strides = [1, 1]} : vector<8x512xf32> to vector<8x128xf32>
    %cst_72 = arith.constant 5.000000e-01 : f32
    %191 = vector.broadcast %cst_72 : f32 to vector<8x128xf32>
    %192 = arith.mulf %191, %190 : vector<8x128xf32>
    %193 = math.tanh %192 : vector<8x128xf32>
    %cst_73 = arith.constant 5.000000e-01 : f32
    %194 = vector.broadcast %cst_73 : f32 to vector<8x128xf32>
    %195 = arith.mulf %194, %193 : vector<8x128xf32>
    %cst_74 = arith.constant 5.000000e-01 : f32
    %196 = vector.broadcast %cst_74 : f32 to vector<8x128xf32>
    %197 = arith.addf %195, %196 : vector<8x128xf32>
    %198 = arith.mulf %187, %161 : vector<8x128xf32>
    %199 = arith.mulf %179, %189 : vector<8x128xf32>
    %200 = arith.addf %198, %199 : vector<8x128xf32>
    %201 = math.tanh %200 : vector<8x128xf32>
    %202 = arith.mulf %197, %201 : vector<8x128xf32>
    %c0_75 = arith.constant 0 : index
    %c5 = arith.constant 5 : index
    %c0_76 = arith.constant 0 : index
    %203 = vector.load %arg2[%c0_75, %c5, %c0_76] : memref<8x12x16xbf16, #tpu.memory_space<vmem>>, vector<8x1x16xbf16>
    %204 = vector.shape_cast %203 : vector<8x1x16xbf16> to vector<8x16xbf16>
    %cst_77 = arith.constant dense<0.000000e+00> : vector<8x512xf32>
    %205 = tpu.matmul %204, %3, %cst_77 {dimension_numbers = #tpu.dot_dimension_numbers<[1], [0], [0], [1], [0, 0, 1, 1], [], []>} : vector<8x16xbf16>, vector<16x512xbf16>, vector<8x512xf32> -> vector<8x512xf32>
    %206 = arith.truncf %202 : vector<8x128xf32> to vector<8x128xbf16>
    %cst_78 = arith.constant dense<0.000000e+00> : vector<8x512xf32>
    %207 = tpu.matmul %206, %4, %cst_78 {dimension_numbers = #tpu.dot_dimension_numbers<[1], [0], [0], [1], [0, 0, 1, 1], [], []>} : vector<8x128xbf16>, vector<128x512xbf16>, vector<8x512xf32> -> vector<8x512xf32>
    %208 = arith.addf %205, %207 : vector<8x512xf32>
    %209 = vector.broadcast %5 : vector<1x512xf32> to vector<8x512xf32>
    %210 = arith.addf %208, %209 : vector<8x512xf32>
    %211 = vector.extract_strided_slice %210 {offsets = [0, 0], sizes = [8, 128], strides = [1, 1]} : vector<8x512xf32> to vector<8x128xf32>
    %cst_79 = arith.constant 5.000000e-01 : f32
    %212 = vector.broadcast %cst_79 : f32 to vector<8x128xf32>
    %213 = arith.mulf %212, %211 : vector<8x128xf32>
    %214 = math.tanh %213 : vector<8x128xf32>
    %cst_80 = arith.constant 5.000000e-01 : f32
    %215 = vector.broadcast %cst_80 : f32 to vector<8x128xf32>
    %216 = arith.mulf %215, %214 : vector<8x128xf32>
    %cst_81 = arith.constant 5.000000e-01 : f32
    %217 = vector.broadcast %cst_81 : f32 to vector<8x128xf32>
    %218 = arith.addf %216, %217 : vector<8x128xf32>
    %219 = vector.extract_strided_slice %210 {offsets = [0, 128], sizes = [8, 128], strides = [1, 1]} : vector<8x512xf32> to vector<8x128xf32>
    %cst_82 = arith.constant 5.000000e-01 : f32
    %220 = vector.broadcast %cst_82 : f32 to vector<8x128xf32>
    %221 = arith.mulf %220, %219 : vector<8x128xf32>
    %222 = math.tanh %221 : vector<8x128xf32>
    %cst_83 = arith.constant 5.000000e-01 : f32
    %223 = vector.broadcast %cst_83 : f32 to vector<8x128xf32>
    %224 = arith.mulf %223, %222 : vector<8x128xf32>
    %cst_84 = arith.constant 5.000000e-01 : f32
    %225 = vector.broadcast %cst_84 : f32 to vector<8x128xf32>
    %226 = arith.addf %224, %225 : vector<8x128xf32>
    %227 = vector.extract_strided_slice %210 {offsets = [0, 256], sizes = [8, 128], strides = [1, 1]} : vector<8x512xf32> to vector<8x128xf32>
    %228 = math.tanh %227 : vector<8x128xf32>
    %229 = vector.extract_strided_slice %210 {offsets = [0, 384], sizes = [8, 128], strides = [1, 1]} : vector<8x512xf32> to vector<8x128xf32>
    %cst_85 = arith.constant 5.000000e-01 : f32
    %230 = vector.broadcast %cst_85 : f32 to vector<8x128xf32>
    %231 = arith.mulf %230, %229 : vector<8x128xf32>
    %232 = math.tanh %231 : vector<8x128xf32>
    %cst_86 = arith.constant 5.000000e-01 : f32
    %233 = vector.broadcast %cst_86 : f32 to vector<8x128xf32>
    %234 = arith.mulf %233, %232 : vector<8x128xf32>
    %cst_87 = arith.constant 5.000000e-01 : f32
    %235 = vector.broadcast %cst_87 : f32 to vector<8x128xf32>
    %236 = arith.addf %234, %235 : vector<8x128xf32>
    %237 = arith.mulf %226, %200 : vector<8x128xf32>
    %238 = arith.mulf %218, %228 : vector<8x128xf32>
    %239 = arith.addf %237, %238 : vector<8x128xf32>
    %240 = math.tanh %239 : vector<8x128xf32>
    %241 = arith.mulf %236, %240 : vector<8x128xf32>
    %c0_88 = arith.constant 0 : index
    %c6 = arith.constant 6 : index
    %c0_89 = arith.constant 0 : index
    %242 = vector.load %arg2[%c0_88, %c6, %c0_89] : memref<8x12x16xbf16, #tpu.memory_space<vmem>>, vector<8x1x16xbf16>
    %243 = vector.shape_cast %242 : vector<8x1x16xbf16> to vector<8x16xbf16>
    %cst_90 = arith.constant dense<0.000000e+00> : vector<8x512xf32>
    %244 = tpu.matmul %243, %3, %cst_90 {dimension_numbers = #tpu.dot_dimension_numbers<[1], [0], [0], [1], [0, 0, 1, 1], [], []>} : vector<8x16xbf16>, vector<16x512xbf16>, vector<8x512xf32> -> vector<8x512xf32>
    %245 = arith.truncf %241 : vector<8x128xf32> to vector<8x128xbf16>
    %cst_91 = arith.constant dense<0.000000e+00> : vector<8x512xf32>
    %246 = tpu.matmul %245, %4, %cst_91 {dimension_numbers = #tpu.dot_dimension_numbers<[1], [0], [0], [1], [0, 0, 1, 1], [], []>} : vector<8x128xbf16>, vector<128x512xbf16>, vector<8x512xf32> -> vector<8x512xf32>
    %247 = arith.addf %244, %246 : vector<8x512xf32>
    %248 = vector.broadcast %5 : vector<1x512xf32> to vector<8x512xf32>
    %249 = arith.addf %247, %248 : vector<8x512xf32>
    %250 = vector.extract_strided_slice %249 {offsets = [0, 0], sizes = [8, 128], strides = [1, 1]} : vector<8x512xf32> to vector<8x128xf32>
    %cst_92 = arith.constant 5.000000e-01 : f32
    %251 = vector.broadcast %cst_92 : f32 to vector<8x128xf32>
    %252 = arith.mulf %251, %250 : vector<8x128xf32>
    %253 = math.tanh %252 : vector<8x128xf32>
    %cst_93 = arith.constant 5.000000e-01 : f32
    %254 = vector.broadcast %cst_93 : f32 to vector<8x128xf32>
    %255 = arith.mulf %254, %253 : vector<8x128xf32>
    %cst_94 = arith.constant 5.000000e-01 : f32
    %256 = vector.broadcast %cst_94 : f32 to vector<8x128xf32>
    %257 = arith.addf %255, %256 : vector<8x128xf32>
    %258 = vector.extract_strided_slice %249 {offsets = [0, 128], sizes = [8, 128], strides = [1, 1]} : vector<8x512xf32> to vector<8x128xf32>
    %cst_95 = arith.constant 5.000000e-01 : f32
    %259 = vector.broadcast %cst_95 : f32 to vector<8x128xf32>
    %260 = arith.mulf %259, %258 : vector<8x128xf32>
    %261 = math.tanh %260 : vector<8x128xf32>
    %cst_96 = arith.constant 5.000000e-01 : f32
    %262 = vector.broadcast %cst_96 : f32 to vector<8x128xf32>
    %263 = arith.mulf %262, %261 : vector<8x128xf32>
    %cst_97 = arith.constant 5.000000e-01 : f32
    %264 = vector.broadcast %cst_97 : f32 to vector<8x128xf32>
    %265 = arith.addf %263, %264 : vector<8x128xf32>
    %266 = vector.extract_strided_slice %249 {offsets = [0, 256], sizes = [8, 128], strides = [1, 1]} : vector<8x512xf32> to vector<8x128xf32>
    %267 = math.tanh %266 : vector<8x128xf32>
    %268 = vector.extract_strided_slice %249 {offsets = [0, 384], sizes = [8, 128], strides = [1, 1]} : vector<8x512xf32> to vector<8x128xf32>
    %cst_98 = arith.constant 5.000000e-01 : f32
    %269 = vector.broadcast %cst_98 : f32 to vector<8x128xf32>
    %270 = arith.mulf %269, %268 : vector<8x128xf32>
    %271 = math.tanh %270 : vector<8x128xf32>
    %cst_99 = arith.constant 5.000000e-01 : f32
    %272 = vector.broadcast %cst_99 : f32 to vector<8x128xf32>
    %273 = arith.mulf %272, %271 : vector<8x128xf32>
    %cst_100 = arith.constant 5.000000e-01 : f32
    %274 = vector.broadcast %cst_100 : f32 to vector<8x128xf32>
    %275 = arith.addf %273, %274 : vector<8x128xf32>
    %276 = arith.mulf %265, %239 : vector<8x128xf32>
    %277 = arith.mulf %257, %267 : vector<8x128xf32>
    %278 = arith.addf %276, %277 : vector<8x128xf32>
    %279 = math.tanh %278 : vector<8x128xf32>
    %280 = arith.mulf %275, %279 : vector<8x128xf32>
    %c0_101 = arith.constant 0 : index
    %c7 = arith.constant 7 : index
    %c0_102 = arith.constant 0 : index
    %281 = vector.load %arg2[%c0_101, %c7, %c0_102] : memref<8x12x16xbf16, #tpu.memory_space<vmem>>, vector<8x1x16xbf16>
    %282 = vector.shape_cast %281 : vector<8x1x16xbf16> to vector<8x16xbf16>
    %cst_103 = arith.constant dense<0.000000e+00> : vector<8x512xf32>
    %283 = tpu.matmul %282, %3, %cst_103 {dimension_numbers = #tpu.dot_dimension_numbers<[1], [0], [0], [1], [0, 0, 1, 1], [], []>} : vector<8x16xbf16>, vector<16x512xbf16>, vector<8x512xf32> -> vector<8x512xf32>
    %284 = arith.truncf %280 : vector<8x128xf32> to vector<8x128xbf16>
    %cst_104 = arith.constant dense<0.000000e+00> : vector<8x512xf32>
    %285 = tpu.matmul %284, %4, %cst_104 {dimension_numbers = #tpu.dot_dimension_numbers<[1], [0], [0], [1], [0, 0, 1, 1], [], []>} : vector<8x128xbf16>, vector<128x512xbf16>, vector<8x512xf32> -> vector<8x512xf32>
    %286 = arith.addf %283, %285 : vector<8x512xf32>
    %287 = vector.broadcast %5 : vector<1x512xf32> to vector<8x512xf32>
    %288 = arith.addf %286, %287 : vector<8x512xf32>
    %289 = vector.extract_strided_slice %288 {offsets = [0, 0], sizes = [8, 128], strides = [1, 1]} : vector<8x512xf32> to vector<8x128xf32>
    %cst_105 = arith.constant 5.000000e-01 : f32
    %290 = vector.broadcast %cst_105 : f32 to vector<8x128xf32>
    %291 = arith.mulf %290, %289 : vector<8x128xf32>
    %292 = math.tanh %291 : vector<8x128xf32>
    %cst_106 = arith.constant 5.000000e-01 : f32
    %293 = vector.broadcast %cst_106 : f32 to vector<8x128xf32>
    %294 = arith.mulf %293, %292 : vector<8x128xf32>
    %cst_107 = arith.constant 5.000000e-01 : f32
    %295 = vector.broadcast %cst_107 : f32 to vector<8x128xf32>
    %296 = arith.addf %294, %295 : vector<8x128xf32>
    %297 = vector.extract_strided_slice %288 {offsets = [0, 128], sizes = [8, 128], strides = [1, 1]} : vector<8x512xf32> to vector<8x128xf32>
    %cst_108 = arith.constant 5.000000e-01 : f32
    %298 = vector.broadcast %cst_108 : f32 to vector<8x128xf32>
    %299 = arith.mulf %298, %297 : vector<8x128xf32>
    %300 = math.tanh %299 : vector<8x128xf32>
    %cst_109 = arith.constant 5.000000e-01 : f32
    %301 = vector.broadcast %cst_109 : f32 to vector<8x128xf32>
    %302 = arith.mulf %301, %300 : vector<8x128xf32>
    %cst_110 = arith.constant 5.000000e-01 : f32
    %303 = vector.broadcast %cst_110 : f32 to vector<8x128xf32>
    %304 = arith.addf %302, %303 : vector<8x128xf32>
    %305 = vector.extract_strided_slice %288 {offsets = [0, 256], sizes = [8, 128], strides = [1, 1]} : vector<8x512xf32> to vector<8x128xf32>
    %306 = math.tanh %305 : vector<8x128xf32>
    %307 = vector.extract_strided_slice %288 {offsets = [0, 384], sizes = [8, 128], strides = [1, 1]} : vector<8x512xf32> to vector<8x128xf32>
    %cst_111 = arith.constant 5.000000e-01 : f32
    %308 = vector.broadcast %cst_111 : f32 to vector<8x128xf32>
    %309 = arith.mulf %308, %307 : vector<8x128xf32>
    %310 = math.tanh %309 : vector<8x128xf32>
    %cst_112 = arith.constant 5.000000e-01 : f32
    %311 = vector.broadcast %cst_112 : f32 to vector<8x128xf32>
    %312 = arith.mulf %311, %310 : vector<8x128xf32>
    %cst_113 = arith.constant 5.000000e-01 : f32
    %313 = vector.broadcast %cst_113 : f32 to vector<8x128xf32>
    %314 = arith.addf %312, %313 : vector<8x128xf32>
    %315 = arith.mulf %304, %278 : vector<8x128xf32>
    %316 = arith.mulf %296, %306 : vector<8x128xf32>
    %317 = arith.addf %315, %316 : vector<8x128xf32>
    %318 = math.tanh %317 : vector<8x128xf32>
    %319 = arith.mulf %314, %318 : vector<8x128xf32>
    %c0_114 = arith.constant 0 : index
    %c8 = arith.constant 8 : index
    %c0_115 = arith.constant 0 : index
    %320 = vector.load %arg2[%c0_114, %c8, %c0_115] : memref<8x12x16xbf16, #tpu.memory_space<vmem>>, vector<8x1x16xbf16>
    %321 = vector.shape_cast %320 : vector<8x1x16xbf16> to vector<8x16xbf16>
    %cst_116 = arith.constant dense<0.000000e+00> : vector<8x512xf32>
    %322 = tpu.matmul %321, %3, %cst_116 {dimension_numbers = #tpu.dot_dimension_numbers<[1], [0], [0], [1], [0, 0, 1, 1], [], []>} : vector<8x16xbf16>, vector<16x512xbf16>, vector<8x512xf32> -> vector<8x512xf32>
    %323 = arith.truncf %319 : vector<8x128xf32> to vector<8x128xbf16>
    %cst_117 = arith.constant dense<0.000000e+00> : vector<8x512xf32>
    %324 = tpu.matmul %323, %4, %cst_117 {dimension_numbers = #tpu.dot_dimension_numbers<[1], [0], [0], [1], [0, 0, 1, 1], [], []>} : vector<8x128xbf16>, vector<128x512xbf16>, vector<8x512xf32> -> vector<8x512xf32>
    %325 = arith.addf %322, %324 : vector<8x512xf32>
    %326 = vector.broadcast %5 : vector<1x512xf32> to vector<8x512xf32>
    %327 = arith.addf %325, %326 : vector<8x512xf32>
    %328 = vector.extract_strided_slice %327 {offsets = [0, 0], sizes = [8, 128], strides = [1, 1]} : vector<8x512xf32> to vector<8x128xf32>
    %cst_118 = arith.constant 5.000000e-01 : f32
    %329 = vector.broadcast %cst_118 : f32 to vector<8x128xf32>
    %330 = arith.mulf %329, %328 : vector<8x128xf32>
    %331 = math.tanh %330 : vector<8x128xf32>
    %cst_119 = arith.constant 5.000000e-01 : f32
    %332 = vector.broadcast %cst_119 : f32 to vector<8x128xf32>
    %333 = arith.mulf %332, %331 : vector<8x128xf32>
    %cst_120 = arith.constant 5.000000e-01 : f32
    %334 = vector.broadcast %cst_120 : f32 to vector<8x128xf32>
    %335 = arith.addf %333, %334 : vector<8x128xf32>
    %336 = vector.extract_strided_slice %327 {offsets = [0, 128], sizes = [8, 128], strides = [1, 1]} : vector<8x512xf32> to vector<8x128xf32>
    %cst_121 = arith.constant 5.000000e-01 : f32
    %337 = vector.broadcast %cst_121 : f32 to vector<8x128xf32>
    %338 = arith.mulf %337, %336 : vector<8x128xf32>
    %339 = math.tanh %338 : vector<8x128xf32>
    %cst_122 = arith.constant 5.000000e-01 : f32
    %340 = vector.broadcast %cst_122 : f32 to vector<8x128xf32>
    %341 = arith.mulf %340, %339 : vector<8x128xf32>
    %cst_123 = arith.constant 5.000000e-01 : f32
    %342 = vector.broadcast %cst_123 : f32 to vector<8x128xf32>
    %343 = arith.addf %341, %342 : vector<8x128xf32>
    %344 = vector.extract_strided_slice %327 {offsets = [0, 256], sizes = [8, 128], strides = [1, 1]} : vector<8x512xf32> to vector<8x128xf32>
    %345 = math.tanh %344 : vector<8x128xf32>
    %346 = vector.extract_strided_slice %327 {offsets = [0, 384], sizes = [8, 128], strides = [1, 1]} : vector<8x512xf32> to vector<8x128xf32>
    %cst_124 = arith.constant 5.000000e-01 : f32
    %347 = vector.broadcast %cst_124 : f32 to vector<8x128xf32>
    %348 = arith.mulf %347, %346 : vector<8x128xf32>
    %349 = math.tanh %348 : vector<8x128xf32>
    %cst_125 = arith.constant 5.000000e-01 : f32
    %350 = vector.broadcast %cst_125 : f32 to vector<8x128xf32>
    %351 = arith.mulf %350, %349 : vector<8x128xf32>
    %cst_126 = arith.constant 5.000000e-01 : f32
    %352 = vector.broadcast %cst_126 : f32 to vector<8x128xf32>
    %353 = arith.addf %351, %352 : vector<8x128xf32>
    %354 = arith.mulf %343, %317 : vector<8x128xf32>
    %355 = arith.mulf %335, %345 : vector<8x128xf32>
    %356 = arith.addf %354, %355 : vector<8x128xf32>
    %357 = math.tanh %356 : vector<8x128xf32>
    %358 = arith.mulf %353, %357 : vector<8x128xf32>
    %c0_127 = arith.constant 0 : index
    %c9 = arith.constant 9 : index
    %c0_128 = arith.constant 0 : index
    %359 = vector.load %arg2[%c0_127, %c9, %c0_128] : memref<8x12x16xbf16, #tpu.memory_space<vmem>>, vector<8x1x16xbf16>
    %360 = vector.shape_cast %359 : vector<8x1x16xbf16> to vector<8x16xbf16>
    %cst_129 = arith.constant dense<0.000000e+00> : vector<8x512xf32>
    %361 = tpu.matmul %360, %3, %cst_129 {dimension_numbers = #tpu.dot_dimension_numbers<[1], [0], [0], [1], [0, 0, 1, 1], [], []>} : vector<8x16xbf16>, vector<16x512xbf16>, vector<8x512xf32> -> vector<8x512xf32>
    %362 = arith.truncf %358 : vector<8x128xf32> to vector<8x128xbf16>
    %cst_130 = arith.constant dense<0.000000e+00> : vector<8x512xf32>
    %363 = tpu.matmul %362, %4, %cst_130 {dimension_numbers = #tpu.dot_dimension_numbers<[1], [0], [0], [1], [0, 0, 1, 1], [], []>} : vector<8x128xbf16>, vector<128x512xbf16>, vector<8x512xf32> -> vector<8x512xf32>
    %364 = arith.addf %361, %363 : vector<8x512xf32>
    %365 = vector.broadcast %5 : vector<1x512xf32> to vector<8x512xf32>
    %366 = arith.addf %364, %365 : vector<8x512xf32>
    %367 = vector.extract_strided_slice %366 {offsets = [0, 0], sizes = [8, 128], strides = [1, 1]} : vector<8x512xf32> to vector<8x128xf32>
    %cst_131 = arith.constant 5.000000e-01 : f32
    %368 = vector.broadcast %cst_131 : f32 to vector<8x128xf32>
    %369 = arith.mulf %368, %367 : vector<8x128xf32>
    %370 = math.tanh %369 : vector<8x128xf32>
    %cst_132 = arith.constant 5.000000e-01 : f32
    %371 = vector.broadcast %cst_132 : f32 to vector<8x128xf32>
    %372 = arith.mulf %371, %370 : vector<8x128xf32>
    %cst_133 = arith.constant 5.000000e-01 : f32
    %373 = vector.broadcast %cst_133 : f32 to vector<8x128xf32>
    %374 = arith.addf %372, %373 : vector<8x128xf32>
    %375 = vector.extract_strided_slice %366 {offsets = [0, 128], sizes = [8, 128], strides = [1, 1]} : vector<8x512xf32> to vector<8x128xf32>
    %cst_134 = arith.constant 5.000000e-01 : f32
    %376 = vector.broadcast %cst_134 : f32 to vector<8x128xf32>
    %377 = arith.mulf %376, %375 : vector<8x128xf32>
    %378 = math.tanh %377 : vector<8x128xf32>
    %cst_135 = arith.constant 5.000000e-01 : f32
    %379 = vector.broadcast %cst_135 : f32 to vector<8x128xf32>
    %380 = arith.mulf %379, %378 : vector<8x128xf32>
    %cst_136 = arith.constant 5.000000e-01 : f32
    %381 = vector.broadcast %cst_136 : f32 to vector<8x128xf32>
    %382 = arith.addf %380, %381 : vector<8x128xf32>
    %383 = vector.extract_strided_slice %366 {offsets = [0, 256], sizes = [8, 128], strides = [1, 1]} : vector<8x512xf32> to vector<8x128xf32>
    %384 = math.tanh %383 : vector<8x128xf32>
    %385 = vector.extract_strided_slice %366 {offsets = [0, 384], sizes = [8, 128], strides = [1, 1]} : vector<8x512xf32> to vector<8x128xf32>
    %cst_137 = arith.constant 5.000000e-01 : f32
    %386 = vector.broadcast %cst_137 : f32 to vector<8x128xf32>
    %387 = arith.mulf %386, %385 : vector<8x128xf32>
    %388 = math.tanh %387 : vector<8x128xf32>
    %cst_138 = arith.constant 5.000000e-01 : f32
    %389 = vector.broadcast %cst_138 : f32 to vector<8x128xf32>
    %390 = arith.mulf %389, %388 : vector<8x128xf32>
    %cst_139 = arith.constant 5.000000e-01 : f32
    %391 = vector.broadcast %cst_139 : f32 to vector<8x128xf32>
    %392 = arith.addf %390, %391 : vector<8x128xf32>
    %393 = arith.mulf %382, %356 : vector<8x128xf32>
    %394 = arith.mulf %374, %384 : vector<8x128xf32>
    %395 = arith.addf %393, %394 : vector<8x128xf32>
    %396 = math.tanh %395 : vector<8x128xf32>
    %397 = arith.mulf %392, %396 : vector<8x128xf32>
    %c0_140 = arith.constant 0 : index
    %c10 = arith.constant 10 : index
    %c0_141 = arith.constant 0 : index
    %398 = vector.load %arg2[%c0_140, %c10, %c0_141] : memref<8x12x16xbf16, #tpu.memory_space<vmem>>, vector<8x1x16xbf16>
    %399 = vector.shape_cast %398 : vector<8x1x16xbf16> to vector<8x16xbf16>
    %cst_142 = arith.constant dense<0.000000e+00> : vector<8x512xf32>
    %400 = tpu.matmul %399, %3, %cst_142 {dimension_numbers = #tpu.dot_dimension_numbers<[1], [0], [0], [1], [0, 0, 1, 1], [], []>} : vector<8x16xbf16>, vector<16x512xbf16>, vector<8x512xf32> -> vector<8x512xf32>
    %401 = arith.truncf %397 : vector<8x128xf32> to vector<8x128xbf16>
    %cst_143 = arith.constant dense<0.000000e+00> : vector<8x512xf32>
    %402 = tpu.matmul %401, %4, %cst_143 {dimension_numbers = #tpu.dot_dimension_numbers<[1], [0], [0], [1], [0, 0, 1, 1], [], []>} : vector<8x128xbf16>, vector<128x512xbf16>, vector<8x512xf32> -> vector<8x512xf32>
    %403 = arith.addf %400, %402 : vector<8x512xf32>
    %404 = vector.broadcast %5 : vector<1x512xf32> to vector<8x512xf32>
    %405 = arith.addf %403, %404 : vector<8x512xf32>
    %406 = vector.extract_strided_slice %405 {offsets = [0, 0], sizes = [8, 128], strides = [1, 1]} : vector<8x512xf32> to vector<8x128xf32>
    %cst_144 = arith.constant 5.000000e-01 : f32
    %407 = vector.broadcast %cst_144 : f32 to vector<8x128xf32>
    %408 = arith.mulf %407, %406 : vector<8x128xf32>
    %409 = math.tanh %408 : vector<8x128xf32>
    %cst_145 = arith.constant 5.000000e-01 : f32
    %410 = vector.broadcast %cst_145 : f32 to vector<8x128xf32>
    %411 = arith.mulf %410, %409 : vector<8x128xf32>
    %cst_146 = arith.constant 5.000000e-01 : f32
    %412 = vector.broadcast %cst_146 : f32 to vector<8x128xf32>
    %413 = arith.addf %411, %412 : vector<8x128xf32>
    %414 = vector.extract_strided_slice %405 {offsets = [0, 128], sizes = [8, 128], strides = [1, 1]} : vector<8x512xf32> to vector<8x128xf32>
    %cst_147 = arith.constant 5.000000e-01 : f32
    %415 = vector.broadcast %cst_147 : f32 to vector<8x128xf32>
    %416 = arith.mulf %415, %414 : vector<8x128xf32>
    %417 = math.tanh %416 : vector<8x128xf32>
    %cst_148 = arith.constant 5.000000e-01 : f32
    %418 = vector.broadcast %cst_148 : f32 to vector<8x128xf32>
    %419 = arith.mulf %418, %417 : vector<8x128xf32>
    %cst_149 = arith.constant 5.000000e-01 : f32
    %420 = vector.broadcast %cst_149 : f32 to vector<8x128xf32>
    %421 = arith.addf %419, %420 : vector<8x128xf32>
    %422 = vector.extract_strided_slice %405 {offsets = [0, 256], sizes = [8, 128], strides = [1, 1]} : vector<8x512xf32> to vector<8x128xf32>
    %423 = math.tanh %422 : vector<8x128xf32>
    %424 = vector.extract_strided_slice %405 {offsets = [0, 384], sizes = [8, 128], strides = [1, 1]} : vector<8x512xf32> to vector<8x128xf32>
    %cst_150 = arith.constant 5.000000e-01 : f32
    %425 = vector.broadcast %cst_150 : f32 to vector<8x128xf32>
    %426 = arith.mulf %425, %424 : vector<8x128xf32>
    %427 = math.tanh %426 : vector<8x128xf32>
    %cst_151 = arith.constant 5.000000e-01 : f32
    %428 = vector.broadcast %cst_151 : f32 to vector<8x128xf32>
    %429 = arith.mulf %428, %427 : vector<8x128xf32>
    %cst_152 = arith.constant 5.000000e-01 : f32
    %430 = vector.broadcast %cst_152 : f32 to vector<8x128xf32>
    %431 = arith.addf %429, %430 : vector<8x128xf32>
    %432 = arith.mulf %421, %395 : vector<8x128xf32>
    %433 = arith.mulf %413, %423 : vector<8x128xf32>
    %434 = arith.addf %432, %433 : vector<8x128xf32>
    %435 = math.tanh %434 : vector<8x128xf32>
    %436 = arith.mulf %431, %435 : vector<8x128xf32>
    %c0_153 = arith.constant 0 : index
    %c11 = arith.constant 11 : index
    %c0_154 = arith.constant 0 : index
    %437 = vector.load %arg2[%c0_153, %c11, %c0_154] : memref<8x12x16xbf16, #tpu.memory_space<vmem>>, vector<8x1x16xbf16>
    %438 = vector.shape_cast %437 : vector<8x1x16xbf16> to vector<8x16xbf16>
    %cst_155 = arith.constant dense<0.000000e+00> : vector<8x512xf32>
    %439 = tpu.matmul %438, %3, %cst_155 {dimension_numbers = #tpu.dot_dimension_numbers<[1], [0], [0], [1], [0, 0, 1, 1], [], []>} : vector<8x16xbf16>, vector<16x512xbf16>, vector<8x512xf32> -> vector<8x512xf32>
    %440 = arith.truncf %436 : vector<8x128xf32> to vector<8x128xbf16>
    %cst_156 = arith.constant dense<0.000000e+00> : vector<8x512xf32>
    %441 = tpu.matmul %440, %4, %cst_156 {dimension_numbers = #tpu.dot_dimension_numbers<[1], [0], [0], [1], [0, 0, 1, 1], [], []>} : vector<8x128xbf16>, vector<128x512xbf16>, vector<8x512xf32> -> vector<8x512xf32>
    %442 = arith.addf %439, %441 : vector<8x512xf32>
    %443 = vector.broadcast %5 : vector<1x512xf32> to vector<8x512xf32>
    %444 = arith.addf %442, %443 : vector<8x512xf32>
    %445 = vector.extract_strided_slice %444 {offsets = [0, 0], sizes = [8, 128], strides = [1, 1]} : vector<8x512xf32> to vector<8x128xf32>
    %cst_157 = arith.constant 5.000000e-01 : f32
    %446 = vector.broadcast %cst_157 : f32 to vector<8x128xf32>
    %447 = arith.mulf %446, %445 : vector<8x128xf32>
    %448 = math.tanh %447 : vector<8x128xf32>
    %cst_158 = arith.constant 5.000000e-01 : f32
    %449 = vector.broadcast %cst_158 : f32 to vector<8x128xf32>
    %450 = arith.mulf %449, %448 : vector<8x128xf32>
    %cst_159 = arith.constant 5.000000e-01 : f32
    %451 = vector.broadcast %cst_159 : f32 to vector<8x128xf32>
    %452 = arith.addf %450, %451 : vector<8x128xf32>
    %453 = vector.extract_strided_slice %444 {offsets = [0, 128], sizes = [8, 128], strides = [1, 1]} : vector<8x512xf32> to vector<8x128xf32>
    %cst_160 = arith.constant 5.000000e-01 : f32
    %454 = vector.broadcast %cst_160 : f32 to vector<8x128xf32>
    %455 = arith.mulf %454, %453 : vector<8x128xf32>
    %456 = math.tanh %455 : vector<8x128xf32>
    %cst_161 = arith.constant 5.000000e-01 : f32
    %457 = vector.broadcast %cst_161 : f32 to vector<8x128xf32>
    %458 = arith.mulf %457, %456 : vector<8x128xf32>
    %cst_162 = arith.constant 5.000000e-01 : f32
    %459 = vector.broadcast %cst_162 : f32 to vector<8x128xf32>
    %460 = arith.addf %458, %459 : vector<8x128xf32>
    %461 = vector.extract_strided_slice %444 {offsets = [0, 256], sizes = [8, 128], strides = [1, 1]} : vector<8x512xf32> to vector<8x128xf32>
    %462 = math.tanh %461 : vector<8x128xf32>
    %463 = vector.extract_strided_slice %444 {offsets = [0, 384], sizes = [8, 128], strides = [1, 1]} : vector<8x512xf32> to vector<8x128xf32>
    %cst_163 = arith.constant 5.000000e-01 : f32
    %464 = vector.broadcast %cst_163 : f32 to vector<8x128xf32>
    %465 = arith.mulf %464, %463 : vector<8x128xf32>
    %466 = math.tanh %465 : vector<8x128xf32>
    %cst_164 = arith.constant 5.000000e-01 : f32
    %467 = vector.broadcast %cst_164 : f32 to vector<8x128xf32>
    %468 = arith.mulf %467, %466 : vector<8x128xf32>
    %cst_165 = arith.constant 5.000000e-01 : f32
    %469 = vector.broadcast %cst_165 : f32 to vector<8x128xf32>
    %470 = arith.addf %468, %469 : vector<8x128xf32>
    %471 = arith.mulf %460, %434 : vector<8x128xf32>
    %472 = arith.mulf %452, %462 : vector<8x128xf32>
    %473 = arith.addf %471, %472 : vector<8x128xf32>
    %474 = math.tanh %473 : vector<8x128xf32>
    %475 = arith.mulf %470, %474 : vector<8x128xf32>
    %c0_166 = arith.constant 0 : index
    %c0_167 = arith.constant 0 : index
    %476 = vector.load %arg9[%c0_166, %c0_167] : memref<8x128xf32, #tpu.memory_space<vmem>>, vector<8x128xf32>
    tpu.vector_store %arg9[%c0_166, %c0_167], %475 {strides = array<i32>} : memref<8x128xf32, #tpu.memory_space<vmem>>, vector<8x128xf32>,
    %c0_168 = arith.constant 0 : index
    %c0_169 = arith.constant 0 : index
    %477 = vector.load %arg10[%c0_168, %c0_169] : memref<8x128xf32, #tpu.memory_space<vmem>>, vector<8x128xf32>
    tpu.vector_store %arg10[%c0_168, %c0_169], %473 {strides = array<i32>} : memref<8x128xf32, #tpu.memory_space<vmem>>, vector<8x128xf32>,
    %c0_i32_170 = arith.constant 0 : i32
    %478 = arith.cmpi eq, %arg1, %c0_i32_170 : i32
    %479 = arith.extui %478 : i1 to i32
    %c0_i32_171 = arith.constant 0 : i32
    %480 = arith.cmpi ne, %479, %c0_i32_171 : i32
    scf.if %480 {
      %481 = arith.truncf %475 : vector<8x128xf32> to vector<8x128xbf16>
      %c0_172 = arith.constant 0 : index
      %c0_173 = arith.constant 0 : index
      %482 = vector.load %arg6[%c0_172, %c0_173] : memref<128x128xbf16, #tpu.memory_space<vmem>>, vector<128x128xbf16>
      %cst_174 = arith.constant dense<0.000000e+00> : vector<8x128xf32>
      %483 = tpu.matmul %481, %482, %cst_174 {dimension_numbers = #tpu.dot_dimension_numbers<[1], [0], [0], [1], [0, 0, 1, 1], [], []>} : vector<8x128xbf16>, vector<128x128xbf16>, vector<8x128xf32> -> vector<8x128xf32>
      %c0_175 = arith.constant 0 : index
      %c0_176 = arith.constant 0 : index
      %484 = vector.load %arg7[%c0_175, %c0_176] : memref<1x128xf32, #tpu.memory_space<vmem>>, vector<1x128xf32>
      %485 = vector.broadcast %484 : vector<1x128xf32> to vector<8x128xf32>
      %486 = arith.addf %483, %485 : vector<8x128xf32>
      %c0_177 = arith.constant 0 : index
      %c0_178 = arith.constant 0 : index
      %487 = vector.load %arg8[%c0_177, %c0_178] : memref<8x128xf32, #tpu.memory_space<vmem>>, vector<8x128xf32>
      tpu.vector_store %arg8[%c0_177, %c0_178], %486 {strides = array<i32>} : memref<8x128xf32, #tpu.memory_space<vmem>>, vector<8x128xf32>,
    } else {
    }
    return
  }
  func.func @transform_0(%arg0: i32, %arg1: i32) -> (i32, i32, i32) {
    %c0_i32 = arith.constant 0 : i32
    %c0_i32_0 = arith.constant 0 : i32
    return %arg0, %arg1, %c0_i32 : i32, i32, i32
  }
  func.func @transform_1(%arg0: i32, %arg1: i32) -> (i32, i32) {
    %c0_i32 = arith.constant 0 : i32
    %c0_i32_0 = arith.constant 0 : i32
    %c0_i32_1 = arith.constant 0 : i32
    return %c0_i32, %c0_i32_0 : i32, i32
  }
  func.func @transform_2(%arg0: i32, %arg1: i32) -> (i32, i32) {
    %c0_i32 = arith.constant 0 : i32
    %c0_i32_0 = arith.constant 0 : i32
    %c0_i32_1 = arith.constant 0 : i32
    return %c0_i32, %c0_i32_0 : i32, i32
  }
  func.func @transform_3(%arg0: i32, %arg1: i32) -> (i32, i32) {
    %c0_i32 = arith.constant 0 : i32
    %c0_i32_0 = arith.constant 0 : i32
    %c0_i32_1 = arith.constant 0 : i32
    return %c0_i32, %c0_i32_0 : i32, i32
  }
  func.func @transform_4(%arg0: i32, %arg1: i32) -> (i32, i32) {
    %c0_i32 = arith.constant 0 : i32
    %c0_i32_0 = arith.constant 0 : i32
    %c0_i32_1 = arith.constant 0 : i32
    return %c0_i32, %c0_i32_0 : i32, i32
  }
  func.func @transform_5(%arg0: i32, %arg1: i32) -> (i32, i32) {
    %c0_i32 = arith.constant 0 : i32
    %c0_i32_0 = arith.constant 0 : i32
    %c0_i32_1 = arith.constant 0 : i32
    return %c0_i32, %c0_i32_0 : i32, i32
  }
  func.func @transform_6(%arg0: i32, %arg1: i32) -> (i32, i32) {
    %c0_i32 = arith.constant 0 : i32
    %c0_i32_0 = arith.constant 0 : i32
    return %arg0, %c0_i32 : i32, i32
  }
}

</mosaic_0001>

<llo_original>
// kernel: tpu_custom_call.1
$region0: #{tpu_custom_call.1}
  #allocation0 [shape = 'u32[]', space=smem, size = 0x4, offset = 0x4, fixed_abs, tag = 'smem constant byte address 0x4 - core index']
  #allocation1 [shape = 'u32[144,128]{1,0:T(1,128)}', space=vmem, size = 0x12000, scoped, tag = 'internal scratch']
  #allocation2 [shape = 'f32[8,128]{1,0:T(8,128)}', space=vmem, size = 0x1000, scoped, tag = 'scratch operand']
  #allocation3 [shape = 'f32[8,128]{1,0:T(8,128)}', space=vmem, size = 0x1000, scoped, tag = 'scratch operand']
  %s0 = inlined_call_operand.vmem [shape: bf16[8,12,16], index: 0, kind: input, shape index: {}]
  %s1 = inlined_call_operand.vmem [shape: bf16[16,512], index: 1, kind: input, shape index: {}]
  %s2 = inlined_call_operand.hbm [shape: bf16[128,512], index: 2, kind: input, shape index: {}]
  %s3 = inlined_call_operand.vmem [shape: f32[1,512], index: 3, kind: input, shape index: {}]
  %s4 = inlined_call_operand.vmem [shape: bf16[128,128], index: 4, kind: input, shape index: {}]
  %s5 = inlined_call_operand.vmem [shape: f32[1,128], index: 5, kind: input, shape index: {}]
  %s6 = inlined_call_operand.hbm [shape: f32[8,128], index: 6, kind: output, shape index: {}]
  %s7 = sld [smem:[#allocation0]]
  $region46: #{tpu_custom_call.1} parent=0
    _
  %s9 = ssub.s32 1, %s7
  %s10 = scalar_select 0, %s9, %s7
  $region1: #{tpu_custom_call.1} parent=0
    #allocation4 [shape = 'u8[131072]{0}', space=vmem, size = 0x20000, scoped, tag = 'input window, operand 2, single buffered']
    #allocation5 [shape = 's32[1]{0}', space=sflag, size = 0x4, scoped, tag = 'scoped memory for tpu_custom_call.1']
    #allocation6 [shape = 's32[1]{0}', space=sflag, size = 0x4, scoped, tag = 'scoped memory for tpu_custom_call.1']
    #allocation7 [shape = 'u8[4096]{0}', space=vmem, size = 0x1000, scoped, tag = 'output window, operand 0, single buffered']
    %11 = vsyncpa [#allocation5], 0
    %12 = vsyncpa [#allocation6], 0
    // Predicated region
    $region2: #{tpu_custom_call.1} parent=1 // pred_check
      _
    $region3: #{tpu_custom_call.1} parent=1 // pred_check_branch
      %14 = sbr.rel (0) target = $region5
    $region4: #{tpu_custom_call.1} parent=1 // pred_region
      _
    $region5: #{tpu_custom_call.1} parent=1 // pred_fallthru
      _
    // Predicated region
    $region6: #{tpu_custom_call.1} parent=1 // pred_check
      _
    $region7: #{tpu_custom_call.1} parent=1 // pred_check_branch
      %16 = sbr.rel (0) target = $region9
    $region8: #{tpu_custom_call.1} parent=1 // pred_region
      _
    $region9: #{tpu_custom_call.1} parent=1 // pred_fallthru
      _
    // Predicated region
    $region10: #{tpu_custom_call.1} parent=1 // pred_check
      _
    $region11: #{tpu_custom_call.1} parent=1 // pred_check_branch
      %18 = sbr.rel (0) target = $region13
    $region12: #{tpu_custom_call.1} parent=1 // pred_region
      %s20 = ssub.s32 4096, 4096
      %21 = vsyncadd [#allocation5], %s20
      %s22 = sshll.u32 [#allocation4], 4
      %s23 = int_to_ptr.vmem [resolvable:$true] %s22
      %28 = dma.hbm_to_vmem [thread:$0]  %s2, 4096, %s23, [#allocation5], 256, 256, 16
    $region13: #{tpu_custom_call.1} parent=1 // pred_fallthru
      _
    // Predicated region
    $region14: #{tpu_custom_call.1} parent=1 // pred_check
      _
    $region15: #{tpu_custom_call.1} parent=1 // pred_check_branch
      %30 = sbr.rel (0) target = $region17
    $region16: #{tpu_custom_call.1} parent=1 // pred_region
      _
    $region17: #{tpu_custom_call.1} parent=1 // pred_fallthru
      _
    // Predicated region
    $region18: #{tpu_custom_call.1} parent=1 // pred_check
      _
    $region19: #{tpu_custom_call.1} parent=1 // pred_check_branch
      %32 = sbr.rel (0) target = $region21
    $region20: #{tpu_custom_call.1} parent=1 // pred_region
      _
    $region21: #{tpu_custom_call.1} parent=1 // pred_fallthru
      _
    // Predicated region
    $region22: #{tpu_custom_call.1} parent=1 // pred_check
      _
    $region23: #{tpu_custom_call.1} parent=1 // pred_check_branch
      %34 = sbr.rel (0) target = $region25
    $region24: #{tpu_custom_call.1} parent=1 // pred_region
      _
    $region25: #{tpu_custom_call.1} parent=1 // pred_fallthru
      _
    // Predicated region
    $region26: #{tpu_custom_call.1} parent=1 // pred_check
      _
    $region27: #{tpu_custom_call.1} parent=1 // pred_check_branch
      %36 = sbr.rel (0) target = $region29
    $region28: #{tpu_custom_call.1} parent=1 // pred_region
      %37 = dma.done [#allocation5], 4096
    $region29: #{tpu_custom_call.1} parent=1 // pred_fallthru
      _
    %p39 = scmp.eq.s32.totalorder 0, 0
    // Predicated region
    $region30: #{tpu_custom_call.1} parent=1 // pred_check
      %p40 = pneg %p39
    $region31: #{tpu_custom_call.1} parent=1 // pred_check_branch
      %42 = sbr.rel (%p40) target = $region33
    $region32: #{tpu_custom_call.1} parent=1 // pred_region
      %43 = vst [vmem:[#allocation2] sm:$0xff] 0.0
      %44 = vst [vmem:[#allocation3] sm:$0xff] 0.0
    $region33: #{tpu_custom_call.1} parent=1 // pred_fallthru
      _
    %v45 = vld [vmem:[%s1] sm:$0xff]
    %v46 = vld [vmem:[%s1 + $0x8] sm:$0xff]
    %v47 = vld [vmem:[%s1 + $0x10] sm:$0xff]
    %v48 = vld [vmem:[%s1 + $0x18] sm:$0xff]
    %v49 = vld [vmem:[#allocation4] sm:$0xff]
    %v50 = vld [vmem:[#allocation4 + $0x8] sm:$0xff]
    %v51 = vld [vmem:[#allocation4 + $0x10] sm:$0xff]
    %v52 = vld [vmem:[#allocation4 + $0x18] sm:$0xff]
    %v53 = vld [vmem:[#allocation4 + $0x20] sm:$0xff]
    %v54 = vld [vmem:[#allocation4 + $0x28] sm:$0xff]
    %v55 = vld [vmem:[#allocation4 + $0x30] sm:$0xff]
    %v56 = vld [vmem:[#allocation4 + $0x38] sm:$0xff]
    %v57 = vld [vmem:[#allocation4 + $0x40] sm:$0xff]
    %v58 = vld [vmem:[#allocation4 + $0x48] sm:$0xff]
    %v59 = vld [vmem:[#allocation4 + $0x50] sm:$0xff]
    %v60 = vld [vmem:[#allocation4 + $0x58] sm:$0xff]
    %v61 = vld [vmem:[#allocation4 + $0x60] sm:$0xff]
    %v62 = vld [vmem:[#allocation4 + $0x68] sm:$0xff]
    %v63 = vld [vmem:[#allocation4 + $0x70] sm:$0xff]
    %v64 = vld [vmem:[#allocation4 + $0x78] sm:$0xff]
    %v65 = vld [vmem:[#allocation4 + $0x80] sm:$0xff]
    %v66 = vld [vmem:[#allocation4 + $0x88] sm:$0xff]
    %v67 = vld [vmem:[#allocation4 + $0x90] sm:$0xff]
    %v68 = vld [vmem:[#allocation4 + $0x98] sm:$0xff]
    %v69 = vld [vmem:[#allocation4 + $0xa0] sm:$0xff]
    %v70 = vld [vmem:[#allocation4 + $0xa8] sm:$0xff]
    %v71 = vld [vmem:[#allocation4 + $0xb0] sm:$0xff]
    %v72 = vld [vmem:[#allocation4 + $0xb8] sm:$0xff]
    %v73 = vld [vmem:[#allocation4 + $0xc0] sm:$0xff]
    %v74 = vld [vmem:[#allocation4 + $0xc8] sm:$0xff]
    %v75 = vld [vmem:[#allocation4 + $0xd0] sm:$0xff]
    %v76 = vld [vmem:[#allocation4 + $0xd8] sm:$0xff]
    %v77 = vld [vmem:[#allocation4 + $0xe0] sm:$0xff]
    %v78 = vld [vmem:[#allocation4 + $0xe8] sm:$0xff]
    %v79 = vld [vmem:[#allocation4 + $0xf0] sm:$0xff]
    %v80 = vld [vmem:[#allocation4 + $0xf8] sm:$0xff]
    %v81 = vld [vmem:[%s3] sm:$0xf]
    %v82 = vld [vmem:[#allocation2] sm:$0xff]
    %v83 = vld [vmem:[#allocation3] sm:$0xff]
    %v84 = vld [vmem:[%s0] sm:$0x1]
    %v85 = vld [vmem:[%s0 + $0x8] sm:$0x1]
    %v86 = vld [vmem:[%s0 + $0x10] sm:$0x1]
    %v87 = vld [vmem:[%s0 + $0x18] sm:$0x1]
    %v88 = vld [vmem:[%s0 + $0x20] sm:$0x1]
    %v89 = vld [vmem:[%s0 + $0x28] sm:$0x1]
    %v90 = vld [vmem:[%s0 + $0x30] sm:$0x1]
    %v91 = vld [vmem:[%s0 + $0x38] sm:$0x1]
    %v92 = vpack.c.bf16 %v82, %v82
    %v125 = vunpack.c.l.b16 %v49
    %v126 = vunpack.c.h.b16 %v49
    %v127 = vunpack.c.l.b16 %v50
    %v128 = vunpack.c.h.b16 %v50
    %v129 = vunpack.c.l.b16 %v51
    %v130 = vunpack.c.h.b16 %v51
    %v131 = vunpack.c.l.b16 %v52
    %v132 = vunpack.c.h.b16 %v52
    %v133 = vunpack.c.l.b16 %v53
    %v134 = vunpack.c.h.b16 %v53
    %v135 = vunpack.c.l.b16 %v54
    %v136 = vunpack.c.h.b16 %v54
    %v137 = vunpack.c.l.b16 %v55
    %v138 = vunpack.c.h.b16 %v55
    %v139 = vunpack.c.l.b16 %v56
    %v140 = vunpack.c.h.b16 %v56
    %v141 = vunpack.c.l.b16 %v57
    %v142 = vunpack.c.h.b16 %v57
    %v143 = vunpack.c.l.b16 %v58
    %v144 = vunpack.c.h.b16 %v58
    %v145 = vunpack.c.l.b16 %v59
    %v146 = vunpack.c.h.b16 %v59
    %v147 = vunpack.c.l.b16 %v60
    %v148 = vunpack.c.h.b16 %v60
    %v149 = vunpack.c.l.b16 %v61
    %v150 = vunpack.c.h.b16 %v61
    %v151 = vunpack.c.l.b16 %v62
    %v152 = vunpack.c.h.b16 %v62
    %v153 = vunpack.c.l.b16 %v63
    %v154 = vunpack.c.h.b16 %v63
    %v155 = vunpack.c.l.b16 %v64
    %v156 = vunpack.c.h.b16 %v64
    %v157 = vunpack.c.l.b16 %v65
    %v158 = vunpack.c.h.b16 %v65
    %v159 = vunpack.c.l.b16 %v66
    %v160 = vunpack.c.h.b16 %v66
    %v161 = vunpack.c.l.b16 %v67
    %v162 = vunpack.c.h.b16 %v67
    %v163 = vunpack.c.l.b16 %v68
    %v164 = vunpack.c.h.b16 %v68
    %v165 = vunpack.c.l.b16 %v69
    %v166 = vunpack.c.h.b16 %v69
    %v167 = vunpack.c.l.b16 %v70
    %v168 = vunpack.c.h.b16 %v70
    %v169 = vunpack.c.l.b16 %v71
    %v170 = vunpack.c.h.b16 %v71
    %v171 = vunpack.c.l.b16 %v72
    %v172 = vunpack.c.h.b16 %v72
    %v173 = vunpack.c.l.b16 %v73
    %v174 = vunpack.c.h.b16 %v73
    %v175 = vunpack.c.l.b16 %v74
    %v176 = vunpack.c.h.b16 %v74
    %v177 = vunpack.c.l.b16 %v75
    %v178 = vunpack.c.h.b16 %v75
    %v179 = vunpack.c.l.b16 %v76
    %v180 = vunpack.c.h.b16 %v76
    %v181 = vunpack.c.l.b16 %v77
    %v182 = vunpack.c.h.b16 %v77
    %v183 = vunpack.c.l.b16 %v78
    %v184 = vunpack.c.h.b16 %v78
    %v185 = vunpack.c.l.b16 %v79
    %v186 = vunpack.c.h.b16 %v79
    %v187 = vunpack.c.l.b16 %v80
    %v188 = vunpack.c.h.b16 %v80
    %v189 = vpack.c.b16 %v129, %v125
    %v190 = vpack.c.b16 %v130, %v126
    %v191 = vpack.c.b16 %v131, %v127
    %v192 = vpack.c.b16 %v132, %v128
    %v193 = vpack.c.b16 %v137, %v133
    %v194 = vpack.c.b16 %v138, %v134
    %v195 = vpack.c.b16 %v139, %v135
    %v196 = vpack.c.b16 %v140, %v136
    %v197 = vpack.c.b16 %v145, %v141
    %v198 = vpack.c.b16 %v146, %v142
    %v199 = vpack.c.b16 %v147, %v143
    %v200 = vpack.c.b16 %v148, %v144
    %v201 = vpack.c.b16 %v153, %v149
    %v202 = vpack.c.b16 %v154, %v150
    %v203 = vpack.c.b16 %v155, %v151
    %v204 = vpack.c.b16 %v156, %v152
    %v205 = vpack.c.b16 %v161, %v157
    %v206 = vpack.c.b16 %v162, %v158
    %v207 = vpack.c.b16 %v163, %v159
    %v208 = vpack.c.b16 %v164, %v160
    %v209 = vpack.c.b16 %v169, %v165
    %v210 = vpack.c.b16 %v170, %v166
    %v211 = vpack.c.b16 %v171, %v167
    %v212 = vpack.c.b16 %v172, %v168
    %v213 = vpack.c.b16 %v177, %v173
    %v214 = vpack.c.b16 %v178, %v174
    %v215 = vpack.c.b16 %v179, %v175
    %v216 = vpack.c.b16 %v180, %v176
    %v217 = vpack.c.b16 %v185, %v181
    %v218 = vpack.c.b16 %v186, %v182
    %v219 = vpack.c.b16 %v187, %v183
    %v220 = vpack.c.b16 %v188, %v184
    %253 = vmatprep.subr.bf16.mxu0 %v190
    %254 = vmatpush1.bf16.msra.mxu0 %v189
    %255 = vmatprep.subr.bf16.mxu0 %v194
    %256 = vmatpush1.bf16.msra.mxu0 %v193
    %257 = vmatprep.subr.bf16.mxu0 %v198
    %258 = vmatpush1.bf16.msra.mxu0 %v197
    %259 = vmatprep.subr.bf16.mxu0 %v202
    %260 = vmatpush1.bf16.msra.mxu0 %v201
    %261 = vmatprep.subr.bf16.mxu0 %v206
    %262 = vmatpush1.bf16.msra.mxu0 %v205
    %263 = vmatprep.subr.bf16.mxu0 %v210
    %264 = vmatpush1.bf16.msra.mxu0 %v209
    %265 = vmatprep.subr.bf16.mxu0 %v214
    %266 = vmatpush1.bf16.msra.mxu0 %v213
    %267 = vmatprep.subr.bf16.mxu0 %v218
    %268 = vmatpush1.bf16.msra.mxu0 %v217
    %269 = vmatprep.subr.bf16.mxu0 0
    %270 = vmatpush1.bf16.msra.mxu0 0
    %271 = vmatprep.subr.bf16.mxu0 0
    %272 = vmatpush1.bf16.msra.mxu0 0
    %273 = vmatprep.subr.bf16.mxu0 0
    %274 = vmatpush1.bf16.msra.mxu0 0
    %275 = vmatprep.subr.bf16.mxu0 0
    %276 = vmatpush1.bf16.msra.mxu0 0
    %277 = vmatprep.subr.bf16.mxu0 0
    %278 = vmatpush1.bf16.msra.mxu0 0
    %279 = vmatprep.subr.bf16.mxu0 0
    %280 = vmatpush1.bf16.msra.mxu0 0
    %281 = vmatprep.subr.bf16.mxu0 0
    %282 = vmatpush1.bf16.msra.mxu0 0
    %283 = vmatprep.subr.bf16.mxu0 0
    %284 = vmatpush1.bf16.msra.mxu0 0
    %285 = vmatprep.mubr.bf16.mxu0 0
    %286 = vmatmul.mubr.bf16.gmra.mrb[0].mxu0 %v92
    %v287 = vpop.f32.mrb[0].mxu0
    %v288 = vadd.f32 0.0, %v287
    %v289 = vpop.f32.mrb[0].mxu0
    %v290 = vadd.f32 0.0, %v289
    %v291 = vpop.f32.mrb[0].mxu0
    %v292 = vpop.f32.mrb[0].mxu0
    %293 = vdwg.mxu0
    %294 = vmatprep.subr.bf16.mxu0 %v192
    %295 = vmatpush1.bf16.msra.mxu0 %v191
    %296 = vmatprep.subr.bf16.mxu0 %v196
    %297 = vmatpush1.bf16.msra.mxu0 %v195
    %298 = vmatprep.subr.bf16.mxu0 %v200
    %299 = vmatpush1.bf16.msra.mxu0 %v199
    %300 = vmatprep.subr.bf16.mxu0 %v204
    %301 = vmatpush1.bf16.msra.mxu0 %v203
    %302 = vmatprep.subr.bf16.mxu0 %v208
    %303 = vmatpush1.bf16.msra.mxu0 %v207
    %304 = vmatprep.subr.bf16.mxu0 %v212
    %305 = vmatpush1.bf16.msra.mxu0 %v211
    %306 = vmatprep.subr.bf16.mxu0 %v216
    %307 = vmatpush1.bf16.msra.mxu0 %v215
    %308 = vmatprep.subr.bf16.mxu0 %v220
    %309 = vmatpush1.bf16.msra.mxu0 %v219
    %310 = vmatprep.subr.bf16.mxu0 0
    %311 = vmatpush1.bf16.msra.mxu0 0
    %312 = vmatprep.subr.bf16.mxu0 0
    %313 = vmatpush1.bf16.msra.mxu0 0
    %314 = vmatprep.subr.bf16.mxu0 0
    %315 = vmatpush1.bf16.msra.mxu0 0
    %316 = vmatprep.subr.bf16.mxu0 0
    %317 = vmatpush1.bf16.msra.mxu0 0
    %318 = vmatprep.subr.bf16.mxu0 0
    %319 = vmatpush1.bf16.msra.mxu0 0
    %320 = vmatprep.subr.bf16.mxu0 0
    %321 = vmatpush1.bf16.msra.mxu0 0
    %322 = vmatprep.subr.bf16.mxu0 0
    %323 = vmatpush1.bf16.msra.mxu0 0
    %324 = vmatprep.subr.bf16.mxu0 0
    %325 = vmatpush1.bf16.msra.mxu0 0
    %326 = vmatprep.mubr.bf16.mxu0 0
    %327 = vmatmul.mubr.bf16.gmra.mrb[0].mxu0 %v92
    %v328 = vpop.f32.mrb[0].mxu0
    %v329 = vadd.f32 0.0, %v328
    %v330 = vpop.f32.mrb[0].mxu0
    %v331 = vadd.f32 0.0, %v330
    %v332 = vpop.f32.mrb[0].mxu0
    %v333 = vpop.f32.mrb[0].mxu0
    %334 = vdwg.mxu0
    %v343 = vunpack.c.l.b16 %v84
    %v344 = vunpack.c.l.b16 %v85
    %v345 = vunpack.c.l.b16 %v86
    %v346 = vunpack.c.l.b16 %v87
    %v347 = vunpack.c.l.b16 %v88
    %v348 = vunpack.c.l.b16 %v89
    %v349 = vunpack.c.l.b16 %v90
    %v350 = vunpack.c.l.b16 %v91
    %v351 = vpack.c.b16 %v343, %v343
    %v352 = vpack.c.b16 %v344, %v344
    %v353 = vpack.c.b16 %v345, %v345
    %v354 = vpack.c.b16 %v346, %v346
    %v355 = vpack.c.b16 %v347, %v347
    %v356 = vpack.c.b16 %v348, %v348
    %v357 = vpack.c.b16 %v349, %v349
    %v358 = vpack.c.b16 %v350, %v350
    %v359 = vunpack.c.l.b16 %v351
    %v360 = vunpack.c.l.b16 %v352
    %v361 = vunpack.c.l.b16 %v353
    %v362 = vunpack.c.l.b16 %v354
    %v363 = vunpack.c.l.b16 %v355
    %v364 = vunpack.c.l.b16 %v356
    %v365 = vunpack.c.l.b16 %v357
    %v366 = vunpack.c.l.b16 %v358
    %v367 = vrot.slane %v360, 7
    %vm368 = vcmask 1041409
    %v369 = vsel %vm368, %v367, %v359
    %v370 = vrot.slane %v361, 6
    %vm371 = vcmask 1042434
    %v372 = vsel %vm371, %v370, %v369
    %v373 = vrot.slane %v362, 5
    %vm374 = vcmask 1043459
    %v375 = vsel %vm374, %v373, %v372
    %v376 = vrot.slane %v363, 4
    %vm377 = vcmask 1044484
    %v378 = vsel %vm377, %v376, %v375
    %v379 = vrot.slane %v364, 3
    %vm380 = vcmask 1045509
    %v381 = vsel %vm380, %v379, %v378
    %v382 = vrot.slane %v365, 2
    %vm383 = vcmask 1046534
    %v384 = vsel %vm383, %v382, %v381
    %v385 = vrot.slane %v366, 1
    %vm386 = vcmask 1047559
    %v387 = vsel %vm386, %v385, %v384
    %v388 = vpack.c.b16 %v387, %v387
    %v393 = vunpack.c.l.b16 %v45
    %v394 = vunpack.c.h.b16 %v45
    %v395 = vunpack.c.l.b16 %v46
    %v396 = vunpack.c.h.b16 %v46
    %v397 = vunpack.c.l.b16 %v47
    %v398 = vunpack.c.h.b16 %v47
    %v399 = vunpack.c.l.b16 %v48
    %v400 = vunpack.c.h.b16 %v48
    %v401 = vpack.c.b16 %v397, %v393
    %v402 = vpack.c.b16 %v398, %v394
    %v403 = vpack.c.b16 %v399, %v395
    %v404 = vpack.c.b16 %v400, %v396
    %vm409 = vcmask 130048
    %v411 = vsel %vm409, %v388, 0
    %413 = vmatprep.subr.bf16.mxu0 %v402
    %414 = vmatpush1.bf16.msra.mxu0 %v401
    %415 = vmatprep.subr.bf16.mxu0 0
    %416 = vmatpush1.bf16.msra.mxu0 0
    %417 = vmatprep.subr.bf16.mxu0 0
    %418 = vmatpush1.bf16.msra.mxu0 0
    %419 = vmatprep.subr.bf16.mxu0 0
    %420 = vmatpush1.bf16.msra.mxu0 0
    %421 = vmatprep.subr.bf16.mxu0 0
    %422 = vmatpush1.bf16.msra.mxu0 0
    %423 = vmatprep.subr.bf16.mxu0 0
    %424 = vmatpush1.bf16.msra.mxu0 0
    %425 = vmatprep.subr.bf16.mxu0 0
    %426 = vmatpush1.bf16.msra.mxu0 0
    %427 = vmatprep.subr.bf16.mxu0 0
    %428 = vmatpush1.bf16.msra.mxu0 0
    %429 = vmatprep.subr.bf16.mxu0 0
    %430 = vmatpush1.bf16.msra.mxu0 0
    %431 = vmatprep.subr.bf16.mxu0 0
    %432 = vmatpush1.bf16.msra.mxu0 0
    %433 = vmatprep.subr.bf16.mxu0 0
    %434 = vmatpush1.bf16.msra.mxu0 0
    %435 = vmatprep.subr.bf16.mxu0 0
    %436 = vmatpush1.bf16.msra.mxu0 0
    %437 = vmatprep.subr.bf16.mxu0 0
    %438 = vmatpush1.bf16.msra.mxu0 0
    %439 = vmatprep.subr.bf16.mxu0 0
    %440 = vmatpush1.bf16.msra.mxu0 0
    %441 = vmatprep.subr.bf16.mxu0 0
    %442 = vmatpush1.bf16.msra.mxu0 0
    %443 = vmatprep.subr.bf16.mxu0 0
    %444 = vmatpush1.bf16.msra.mxu0 0
    %445 = vmatprep.mubr.bf16.mxu0 0
    %446 = vmatmul.mubr.bf16.gmra.mrb[0].mxu0 %v411
    %v447 = vpop.f32.mrb[0].mxu0
    %v448 = vadd.f32 %v288, %v447
    %v449 = vpop.f32.mrb[0].mxu0
    %v450 = vadd.f32 %v290, %v449
    %v451 = vpop.f32.mrb[0].mxu0
    %v452 = vpop.f32.mrb[0].mxu0
    %453 = vdwg.mxu0
    %454 = vmatprep.subr.bf16.mxu0 %v404
    %455 = vmatpush1.bf16.msra.mxu0 %v403
    %456 = vmatprep.subr.bf16.mxu0 0
    %457 = vmatpush1.bf16.msra.mxu0 0
    %458 = vmatprep.subr.bf16.mxu0 0
    %459 = vmatpush1.bf16.msra.mxu0 0
    %460 = vmatprep.subr.bf16.mxu0 0
    %461 = vmatpush1.bf16.msra.mxu0 0
    %462 = vmatprep.subr.bf16.mxu0 0
    %463 = vmatpush1.bf16.msra.mxu0 0
    %464 = vmatprep.subr.bf16.mxu0 0
    %465 = vmatpush1.bf16.msra.mxu0 0
    %466 = vmatprep.subr.bf16.mxu0 0
    %467 = vmatpush1.bf16.msra.mxu0 0
    %468 = vmatprep.subr.bf16.mxu0 0
    %469 = vmatpush1.bf16.msra.mxu0 0
    %470 = vmatprep.subr.bf16.mxu0 0
    %471 = vmatpush1.bf16.msra.mxu0 0
    %472 = vmatprep.subr.bf16.mxu0 0
    %473 = vmatpush1.bf16.msra.mxu0 0
    %474 = vmatprep.subr.bf16.mxu0 0
    %475 = vmatpush1.bf16.msra.mxu0 0
    %476 = vmatprep.subr.bf16.mxu0 0
    %477 = vmatpush1.bf16.msra.mxu0 0
    %478 = vmatprep.subr.bf16.mxu0 0
    %479 = vmatpush1.bf16.msra.mxu0 0
    %480 = vmatprep.subr.bf16.mxu0 0
    %481 = vmatpush1.bf16.msra.mxu0 0
    %482 = vmatprep.subr.bf16.mxu0 0
    %483 = vmatpush1.bf16.msra.mxu0 0
    %484 = vmatprep.subr.bf16.mxu0 0
    %485 = vmatpush1.bf16.msra.mxu0 0
    %486 = vmatprep.mubr.bf16.mxu0 0
    %487 = vmatmul.mubr.bf16.gmra.mrb[0].mxu0 %v411
    %v488 = vpop.f32.mrb[0].mxu0
    %v489 = vadd.f32 %v329, %v488
    %v490 = vpop.f32.mrb[0].mxu0
    %v491 = vadd.f32 %v331, %v490
    %v492 = vpop.f32.mrb[0].mxu0
    %v493 = vpop.f32.mrb[0].mxu0
    %494 = vdwg.mxu0
    %v496 = vlaneseq
    %v497 = vshrl.u32 %v496, 7
    %v498 = vsub.s32 0, %v497
    %v499 = vrot.slane %v81, %v498
    %v500 = vlaneseq
    %v501 = vshrl.u32 %v500, 7
    %v502 = vsub.s32 1, %v501
    %v503 = vrot.slane %v81, %v502
    %v504 = vlaneseq
    %v505 = vshrl.u32 %v504, 7
    %v506 = vsub.s32 2, %v505
    %v507 = vrot.slane %v81, %v506
    %v508 = vlaneseq
    %v509 = vshrl.u32 %v508, 7
    %v510 = vsub.s32 3, %v509
    %v511 = vrot.slane %v81, %v510
    %v516 = vadd.f32 %v448, %v499
    %v517 = vadd.f32 %v450, %v503
    %v518 = vadd.f32 %v489, %v507
    %v519 = vadd.f32 %v491, %v511
    %v520 = vmul.f32 %v516, 0.5
    %v521 = vtanh.pop %v520
    %v522 = vmul.f32 %v521, 0.5
    %v523 = vadd.f32 %v522, 0.5
    %v524 = vmul.f32 %v517, 0.5
    %v525 = vtanh.pop %v524
    %v526 = vmul.f32 %v525, 0.5
    %v527 = vadd.f32 %v526, 0.5
    %v528 = vtanh.pop %v518
    %v529 = vmul.f32 %v519, 0.5
    %v530 = vtanh.pop %v529
    %v531 = vmul.f32 %v530, 0.5
    %v532 = vadd.f32 %v531, 0.5
    %v533 = vmul.f32 %v527, %v83
    %v534 = vmul.f32 %v523, %v528
    %v535 = vadd.f32 %v533, %v534
    %v536 = vtanh.pop %v535
    %v537 = vmul.f32 %v532, %v536
    %v538 = vpack.c.bf16 %v537, %v537
    %539 = vmatprep.subr.bf16.mxu0 %v190
    %540 = vmatpush1.bf16.msra.mxu0 %v189
    %541 = vmatprep.subr.bf16.mxu0 %v194
    %542 = vmatpush1.bf16.msra.mxu0 %v193
    %543 = vmatprep.subr.bf16.mxu0 %v198
    %544 = vmatpush1.bf16.msra.mxu0 %v197
    %545 = vmatprep.subr.bf16.mxu0 %v202
    %546 = vmatpush1.bf16.msra.mxu0 %v201
    %547 = vmatprep.subr.bf16.mxu0 %v206
    %548 = vmatpush1.bf16.msra.mxu0 %v205
    %549 = vmatprep.subr.bf16.mxu0 %v210
    %550 = vmatpush1.bf16.msra.mxu0 %v209
    %551 = vmatprep.subr.bf16.mxu0 %v214
    %552 = vmatpush1.bf16.msra.mxu0 %v213
    %553 = vmatprep.subr.bf16.mxu0 %v218
    %554 = vmatpush1.bf16.msra.mxu0 %v217
    %555 = vmatprep.subr.bf16.mxu0 0
    %556 = vmatpush1.bf16.msra.mxu0 0
    %557 = vmatprep.subr.bf16.mxu0 0
    %558 = vmatpush1.bf16.msra.mxu0 0
    %559 = vmatprep.subr.bf16.mxu0 0
    %560 = vmatpush1.bf16.msra.mxu0 0
    %561 = vmatprep.subr.bf16.mxu0 0
    %562 = vmatpush1.bf16.msra.mxu0 0
    %563 = vmatprep.subr.bf16.mxu0 0
    %564 = vmatpush1.bf16.msra.mxu0 0
    %565 = vmatprep.subr.bf16.mxu0 0
    %566 = vmatpush1.bf16.msra.mxu0 0
    %567 = vmatprep.subr.bf16.mxu0 0
    %568 = vmatpush1.bf16.msra.mxu0 0
    %569 = vmatprep.subr.bf16.mxu0 0
    %570 = vmatpush1.bf16.msra.mxu0 0
    %571 = vmatprep.mubr.bf16.mxu0 0
    %572 = vmatmul.mubr.bf16.gmra.mrb[0].mxu0 %v538
    %v573 = vpop.f32.mrb[0].mxu0
    %v574 = vadd.f32 0.0, %v573
    %v575 = vpop.f32.mrb[0].mxu0
    %v576 = vadd.f32 0.0, %v575
    %v577 = vpop.f32.mrb[0].mxu0
    %v578 = vpop.f32.mrb[0].mxu0
    %579 = vdwg.mxu0
    %580 = vmatprep.subr.bf16.mxu0 %v192
    %581 = vmatpush1.bf16.msra.mxu0 %v191
    %582 = vmatprep.subr.bf16.mxu0 %v196
    %583 = vmatpush1.bf16.msra.mxu0 %v195
    %584 = vmatprep.subr.bf16.mxu0 %v200
    %585 = vmatpush1.bf16.msra.mxu0 %v199
    %586 = vmatprep.subr.bf16.mxu0 %v204
    %587 = vmatpush1.bf16.msra.mxu0 %v203
    %588 = vmatprep.subr.bf16.mxu0 %v208
    %589 = vmatpush1.bf16.msra.mxu0 %v207
    %590 = vmatprep.subr.bf16.mxu0 %v212
    %591 = vmatpush1.bf16.msra.mxu0 %v211
    %592 = vmatprep.subr.bf16.mxu0 %v216
    %593 = vmatpush1.bf16.msra.mxu0 %v215
    %594 = vmatprep.subr.bf16.mxu0 %v220
    %595 = vmatpush1.bf16.msra.mxu0 %v219
    %596 = vmatprep.subr.bf16.mxu0 0
    %597 = vmatpush1.bf16.msra.mxu0 0
    %598 = vmatprep.subr.bf16.mxu0 0
    %599 = vmatpush1.bf16.msra.mxu0 0
    %600 = vmatprep.subr.bf16.mxu0 0
    %601 = vmatpush1.bf16.msra.mxu0 0
    %602 = vmatprep.subr.bf16.mxu0 0
    %603 = vmatpush1.bf16.msra.mxu0 0
    %604 = vmatprep.subr.bf16.mxu0 0
    %605 = vmatpush1.bf16.msra.mxu0 0
    %606 = vmatprep.subr.bf16.mxu0 0
    %607 = vmatpush1.bf16.msra.mxu0 0
    %608 = vmatprep.subr.bf16.mxu0 0
    %609 = vmatpush1.bf16.msra.mxu0 0
    %610 = vmatprep.subr.bf16.mxu0 0
    %611 = vmatpush1.bf16.msra.mxu0 0
    %612 = vmatprep.mubr.bf16.mxu0 0
    %613 = vmatmul.mubr.bf16.gmra.mrb[0].mxu0 %v538
    %v614 = vpop.f32.mrb[0].mxu0
    %v615 = vadd.f32 0.0, %v614
    %v616 = vpop.f32.mrb[0].mxu0
    %v617 = vadd.f32 0.0, %v616
    %v618 = vpop.f32.mrb[0].mxu0
    %v619 = vpop.f32.mrb[0].mxu0
    %620 = vdwg.mxu0
    %v621 = vrot.slane %v359, 1
    %v622 = vsel %vm368, %v360, %v621
    %v623 = vrot.slane %v361, 7
    %v624 = vsel %vm371, %v623, %v622
    %v625 = vrot.slane %v362, 6
    %v626 = vsel %vm374, %v625, %v624
    %v627 = vrot.slane %v363, 5
    %v628 = vsel %vm377, %v627, %v626
    %v629 = vrot.slane %v364, 4
    %v630 = vsel %vm380, %v629, %v628
    %v631 = vrot.slane %v365, 3
    %v632 = vsel %vm383, %v631, %v630
    %v633 = vrot.slane %v366, 2
    %v634 = vsel %vm386, %v633, %v632
    %v635 = vpack.c.b16 %v634, %v634
    %v637 = vsel %vm409, %v635, 0
    %639 = vmatprep.subr.bf16.mxu0 %v402
    %640 = vmatpush1.bf16.msra.mxu0 %v401
    %641 = vmatprep.subr.bf16.mxu0 0
    %642 = vmatpush1.bf16.msra.mxu0 0
    %643 = vmatprep.subr.bf16.mxu0 0
    %644 = vmatpush1.bf16.msra.mxu0 0
    %645 = vmatprep.subr.bf16.mxu0 0
    %646 = vmatpush1.bf16.msra.mxu0 0
    %647 = vmatprep.subr.bf16.mxu0 0
    %648 = vmatpush1.bf16.msra.mxu0 0
    %649 = vmatprep.subr.bf16.mxu0 0
    %650 = vmatpush1.bf16.msra.mxu0 0
    %651 = vmatprep.subr.bf16.mxu0 0
    %652 = vmatpush1.bf16.msra.mxu0 0
    %653 = vmatprep.subr.bf16.mxu0 0
    %654 = vmatpush1.bf16.msra.mxu0 0
    %655 = vmatprep.subr.bf16.mxu0 0
    %656 = vmatpush1.bf16.msra.mxu0 0
    %657 = vmatprep.subr.bf16.mxu0 0
    %658 = vmatpush1.bf16.msra.mxu0 0
    %659 = vmatprep.subr.bf16.mxu0 0
    %660 = vmatpush1.bf16.msra.mxu0 0
    %661 = vmatprep.subr.bf16.mxu0 0
    %662 = vmatpush1.bf16.msra.mxu0 0
    %663 = vmatprep.subr.bf16.mxu0 0
    %664 = vmatpush1.bf16.msra.mxu0 0
    %665 = vmatprep.subr.bf16.mxu0 0
    %666 = vmatpush1.bf16.msra.mxu0 0
    %667 = vmatprep.subr.bf16.mxu0 0
    %668 = vmatpush1.bf16.msra.mxu0 0
    %669 = vmatprep.subr.bf16.mxu0 0
    %670 = vmatpush1.bf16.msra.mxu0 0
    %671 = vmatprep.mubr.bf16.mxu0 0
    %672 = vmatmul.mubr.bf16.gmra.mrb[0].mxu0 %v637
    %v673 = vpop.f32.mrb[0].mxu0
    %v674 = vadd.f32 %v574, %v673
    %v675 = vpop.f32.mrb[0].mxu0
    %v676 = vadd.f32 %v576, %v675
    %v677 = vpop.f32.mrb[0].mxu0
    %v678 = vpop.f32.mrb[0].mxu0
    %679 = vdwg.mxu0
    %680 = vmatprep.subr.bf16.mxu0 %v404
    %681 = vmatpush1.bf16.msra.mxu0 %v403
    %682 = vmatprep.subr.bf16.mxu0 0
    %683 = vmatpush1.bf16.msra.mxu0 0
    %684 = vmatprep.subr.bf16.mxu0 0
    %685 = vmatpush1.bf16.msra.mxu0 0
    %686 = vmatprep.subr.bf16.mxu0 0
    %687 = vmatpush1.bf16.msra.mxu0 0
    %688 = vmatprep.subr.bf16.mxu0 0
    %689 = vmatpush1.bf16.msra.mxu0 0
    %690 = vmatprep.subr.bf16.mxu0 0
    %691 = vmatpush1.bf16.msra.mxu0 0
    %692 = vmatprep.subr.bf16.mxu0 0
    %693 = vmatpush1.bf16.msra.mxu0 0
    %694 = vmatprep.subr.bf16.mxu0 0
    %695 = vmatpush1.bf16.msra.mxu0 0
    %696 = vmatprep.subr.bf16.mxu0 0
    %697 = vmatpush1.bf16.msra.mxu0 0
    %698 = vmatprep.subr.bf16.mxu0 0
    %699 = vmatpush1.bf16.msra.mxu0 0
    %700 = vmatprep.subr.bf16.mxu0 0
    %701 = vmatpush1.bf16.msra.mxu0 0
    %702 = vmatprep.subr.bf16.mxu0 0
    %703 = vmatpush1.bf16.msra.mxu0 0
    %704 = vmatprep.subr.bf16.mxu0 0
    %705 = vmatpush1.bf16.msra.mxu0 0
    %706 = vmatprep.subr.bf16.mxu0 0
    %707 = vmatpush1.bf16.msra.mxu0 0
    %708 = vmatprep.subr.bf16.mxu0 0
    %709 = vmatpush1.bf16.msra.mxu0 0
    %710 = vmatprep.subr.bf16.mxu0 0
    %711 = vmatpush1.bf16.msra.mxu0 0
    %712 = vmatprep.mubr.bf16.mxu0 0
    %713 = vmatmul.mubr.bf16.gmra.mrb[0].mxu0 %v637
    %v714 = vpop.f32.mrb[0].mxu0
    %v715 = vadd.f32 %v615, %v714
    %v716 = vpop.f32.mrb[0].mxu0
    %v717 = vadd.f32 %v617, %v716
    %v718 = vpop.f32.mrb[0].mxu0
    %v719 = vpop.f32.mrb[0].mxu0
    %720 = vdwg.mxu0
    %v721 = vadd.f32 %v674, %v499
    %v722 = vadd.f32 %v676, %v503
    %v723 = vadd.f32 %v715, %v507
    %v724 = vadd.f32 %v717, %v511
    %v725 = vmul.f32 %v721, 0.5
    %v726 = vtanh.pop %v725
    %v727 = vmul.f32 %v726, 0.5
    %v728 = vadd.f32 %v727, 0.5
    %v729 = vmul.f32 %v722, 0.5
    %v730 = vtanh.pop %v729
    %v731 = vmul.f32 %v730, 0.5
    %v732 = vadd.f32 %v731, 0.5
    %v733 = vtanh.pop %v723
    %v734 = vmul.f32 %v724, 0.5
    %v735 = vtanh.pop %v734
    %v736 = vmul.f32 %v735, 0.5
    %v737 = vadd.f32 %v736, 0.5
    %v738 = vmul.f32 %v732, %v535
    %v739 = vmul.f32 %v728, %v733
    %v740 = vadd.f32 %v738, %v739
    %v741 = vtanh.pop %v740
    %v742 = vmul.f32 %v737, %v741
    %v743 = vld [vmem:[%s0] sm:$0x2]
    %v744 = vld [vmem:[%s0 + $0x8] sm:$0x2]
    %v745 = vld [vmem:[%s0 + $0x10] sm:$0x2]
    %v746 = vld [vmem:[%s0 + $0x18] sm:$0x2]
    %v747 = vld [vmem:[%s0 + $0x20] sm:$0x2]
    %v748 = vld [vmem:[%s0 + $0x28] sm:$0x2]
    %v749 = vld [vmem:[%s0 + $0x30] sm:$0x2]
    %v750 = vld [vmem:[%s0 + $0x38] sm:$0x2]
    %v751 = vpack.c.bf16 %v742, %v742
    %752 = vmatprep.subr.bf16.mxu0 %v190
    %753 = vmatpush1.bf16.msra.mxu0 %v189
    %754 = vmatprep.subr.bf16.mxu0 %v194
    %755 = vmatpush1.bf16.msra.mxu0 %v193
    %756 = vmatprep.subr.bf16.mxu0 %v198
    %757 = vmatpush1.bf16.msra.mxu0 %v197
    %758 = vmatprep.subr.bf16.mxu0 %v202
    %759 = vmatpush1.bf16.msra.mxu0 %v201
    %760 = vmatprep.subr.bf16.mxu0 %v206
    %761 = vmatpush1.bf16.msra.mxu0 %v205
    %762 = vmatprep.subr.bf16.mxu0 %v210
    %763 = vmatpush1.bf16.msra.mxu0 %v209
    %764 = vmatprep.subr.bf16.mxu0 %v214
    %765 = vmatpush1.bf16.msra.mxu0 %v213
    %766 = vmatprep.subr.bf16.mxu0 %v218
    %767 = vmatpush1.bf16.msra.mxu0 %v217
    %768 = vmatprep.subr.bf16.mxu0 0
    %769 = vmatpush1.bf16.msra.mxu0 0
    %770 = vmatprep.subr.bf16.mxu0 0
    %771 = vmatpush1.bf16.msra.mxu0 0
    %772 = vmatprep.subr.bf16.mxu0 0
    %773 = vmatpush1.bf16.msra.mxu0 0
    %774 = vmatprep.subr.bf16.mxu0 0
    %775 = vmatpush1.bf16.msra.mxu0 0
    %776 = vmatprep.subr.bf16.mxu0 0
    %777 = vmatpush1.bf16.msra.mxu0 0
    %778 = vmatprep.subr.bf16.mxu0 0
    %779 = vmatpush1.bf16.msra.mxu0 0
    %780 = vmatprep.subr.bf16.mxu0 0
    %781 = vmatpush1.bf16.msra.mxu0 0
    %782 = vmatprep.subr.bf16.mxu0 0
    %783 = vmatpush1.bf16.msra.mxu0 0
    %784 = vmatprep.mubr.bf16.mxu0 0
    %785 = vmatmul.mubr.bf16.gmra.mrb[0].mxu0 %v751
    %v786 = vpop.f32.mrb[0].mxu0
    %v787 = vadd.f32 0.0, %v786
    %v788 = vpop.f32.mrb[0].mxu0
    %v789 = vadd.f32 0.0, %v788
    %v790 = vpop.f32.mrb[0].mxu0
    %v791 = vpop.f32.mrb[0].mxu0
    %792 = vdwg.mxu0
    %793 = vmatprep.subr.bf16.mxu0 %v192
    %794 = vmatpush1.bf16.msra.mxu0 %v191
    %795 = vmatprep.subr.bf16.mxu0 %v196
    %796 = vmatpush1.bf16.msra.mxu0 %v195
    %797 = vmatprep.subr.bf16.mxu0 %v200
    %798 = vmatpush1.bf16.msra.mxu0 %v199
    %799 = vmatprep.subr.bf16.mxu0 %v204
    %800 = vmatpush1.bf16.msra.mxu0 %v203
    %801 = vmatprep.subr.bf16.mxu0 %v208
    %802 = vmatpush1.bf16.msra.mxu0 %v207
    %803 = vmatprep.subr.bf16.mxu0 %v212
    %804 = vmatpush1.bf16.msra.mxu0 %v211
    %805 = vmatprep.subr.bf16.mxu0 %v216
    %806 = vmatpush1.bf16.msra.mxu0 %v215
    %807 = vmatprep.subr.bf16.mxu0 %v220
    %808 = vmatpush1.bf16.msra.mxu0 %v219
    %809 = vmatprep.subr.bf16.mxu0 0
    %810 = vmatpush1.bf16.msra.mxu0 0
    %811 = vmatprep.subr.bf16.mxu0 0
    %812 = vmatpush1.bf16.msra.mxu0 0
    %813 = vmatprep.subr.bf16.mxu0 0
    %814 = vmatpush1.bf16.msra.mxu0 0
    %815 = vmatprep.subr.bf16.mxu0 0
    %816 = vmatpush1.bf16.msra.mxu0 0
    %817 = vmatprep.subr.bf16.mxu0 0
    %818 = vmatpush1.bf16.msra.mxu0 0
    %819 = vmatprep.subr.bf16.mxu0 0
    %820 = vmatpush1.bf16.msra.mxu0 0
    %821 = vmatprep.subr.bf16.mxu0 0
    %822 = vmatpush1.bf16.msra.mxu0 0
    %823 = vmatprep.subr.bf16.mxu0 0
    %824 = vmatpush1.bf16.msra.mxu0 0
    %825 = vmatprep.mubr.bf16.mxu0 0
    %826 = vmatmul.mubr.bf16.gmra.mrb[0].mxu0 %v751
    %v827 = vpop.f32.mrb[0].mxu0
    %v828 = vadd.f32 0.0, %v827
    %v829 = vpop.f32.mrb[0].mxu0
    %v830 = vadd.f32 0.0, %v829
    %v831 = vpop.f32.mrb[0].mxu0
    %v832 = vpop.f32.mrb[0].mxu0
    %833 = vdwg.mxu0
    %v842 = vunpack.c.l.b16 %v743
    %v843 = vunpack.c.l.b16 %v744
    %v844 = vunpack.c.l.b16 %v745
    %v845 = vunpack.c.l.b16 %v746
    %v846 = vunpack.c.l.b16 %v747
    %v847 = vunpack.c.l.b16 %v748
    %v848 = vunpack.c.l.b16 %v749
    %v849 = vunpack.c.l.b16 %v750
    %v850 = vpack.c.b16 %v842, %v842
    %v851 = vpack.c.b16 %v843, %v843
    %v852 = vpack.c.b16 %v844, %v844
    %v853 = vpack.c.b16 %v845, %v845
    %v854 = vpack.c.b16 %v846, %v846
    %v855 = vpack.c.b16 %v847, %v847
    %v856 = vpack.c.b16 %v848, %v848
    %v857 = vpack.c.b16 %v849, %v849
    %v858 = vunpack.c.l.b16 %v850
    %v859 = vunpack.c.l.b16 %v851
    %v860 = vunpack.c.l.b16 %v852
    %v861 = vunpack.c.l.b16 %v853
    %v862 = vunpack.c.l.b16 %v854
    %v863 = vunpack.c.l.b16 %v855
    %v864 = vunpack.c.l.b16 %v856
    %v865 = vunpack.c.l.b16 %v857
    %v866 = vrot.slane %v858, 2
    %v867 = vrot.slane %v859, 1
    %v868 = vsel %vm368, %v867, %v866
    %v869 = vsel %vm371, %v860, %v868
    %v870 = vrot.slane %v861, 7
    %v871 = vsel %vm374, %v870, %v869
    %v872 = vrot.slane %v862, 6
    %v873 = vsel %vm377, %v872, %v871
    %v874 = vrot.slane %v863, 5
    %v875 = vsel %vm380, %v874, %v873
    %v876 = vrot.slane %v864, 4
    %v877 = vsel %vm383, %v876, %v875
    %v878 = vrot.slane %v865, 3
    %v879 = vsel %vm386, %v878, %v877
    %v880 = vpack.c.b16 %v879, %v879
    %v882 = vsel %vm409, %v880, 0
    %884 = vmatprep.subr.bf16.mxu0 %v402
    %885 = vmatpush1.bf16.msra.mxu0 %v401
    %886 = vmatprep.subr.bf16.mxu0 0
    %887 = vmatpush1.bf16.msra.mxu0 0
    %888 = vmatprep.subr.bf16.mxu0 0
    %889 = vmatpush1.bf16.msra.mxu0 0
    %890 = vmatprep.subr.bf16.mxu0 0
    %891 = vmatpush1.bf16.msra.mxu0 0
    %892 = vmatprep.subr.bf16.mxu0 0
    %893 = vmatpush1.bf16.msra.mxu0 0
    %894 = vmatprep.subr.bf16.mxu0 0
    %895 = vmatpush1.bf16.msra.mxu0 0
    %896 = vmatprep.subr.bf16.mxu0 0
    %897 = vmatpush1.bf16.msra.mxu0 0
    %898 = vmatprep.subr.bf16.mxu0 0
    %899 = vmatpush1.bf16.msra.mxu0 0
    %900 = vmatprep.subr.bf16.mxu0 0
    %901 = vmatpush1.bf16.msra.mxu0 0
    %902 = vmatprep.subr.bf16.mxu0 0
    %903 = vmatpush1.bf16.msra.mxu0 0
    %904 = vmatprep.subr.bf16.mxu0 0
    %905 = vmatpush1.bf16.msra.mxu0 0
    %906 = vmatprep.subr.bf16.mxu0 0
    %907 = vmatpush1.bf16.msra.mxu0 0
    %908 = vmatprep.subr.bf16.mxu0 0
    %909 = vmatpush1.bf16.msra.mxu0 0
    %910 = vmatprep.subr.bf16.mxu0 0
    %911 = vmatpush1.bf16.msra.mxu0 0
    %912 = vmatprep.subr.bf16.mxu0 0
    %913 = vmatpush1.bf16.msra.mxu0 0
    %914 = vmatprep.subr.bf16.mxu0 0
    %915 = vmatpush1.bf16.msra.mxu0 0
    %916 = vmatprep.mubr.bf16.mxu0 0
    %917 = vmatmul.mubr.bf16.gmra.mrb[0].mxu0 %v882
    %v918 = vpop.f32.mrb[0].mxu0
    %v919 = vadd.f32 %v787, %v918
    %v920 = vpop.f32.mrb[0].mxu0
    %v921 = vadd.f32 %v789, %v920
    %v922 = vpop.f32.mrb[0].mxu0
    %v923 = vpop.f32.mrb[0].mxu0
    %924 = vdwg.mxu0
    %925 = vmatprep.subr.bf16.mxu0 %v404
    %926 = vmatpush1.bf16.msra.mxu0 %v403
    %927 = vmatprep.subr.bf16.mxu0 0
    %928 = vmatpush1.bf16.msra.mxu0 0
    %929 = vmatprep.subr.bf16.mxu0 0
    %930 = vmatpush1.bf16.msra.mxu0 0
    %931 = vmatprep.subr.bf16.mxu0 0
    %932 = vmatpush1.bf16.msra.mxu0 0
    %933 = vmatprep.subr.bf16.mxu0 0
    %934 = vmatpush1.bf16.msra.mxu0 0
    %935 = vmatprep.subr.bf16.mxu0 0
    %936 = vmatpush1.bf16.msra.mxu0 0
    %937 = vmatprep.subr.bf16.mxu0 0
    %938 = vmatpush1.bf16.msra.mxu0 0
    %939 = vmatprep.subr.bf16.mxu0 0
    %940 = vmatpush1.bf16.msra.mxu0 0
    %941 = vmatprep.subr.bf16.mxu0 0
    %942 = vmatpush1.bf16.msra.mxu0 0
    %943 = vmatprep.subr.bf16.mxu0 0
    %944 = vmatpush1.bf16.msra.mxu0 0
    %945 = vmatprep.subr.bf16.mxu0 0
    %946 = vmatpush1.bf16.msra.mxu0 0
    %947 = vmatprep.subr.bf16.mxu0 0
    %948 = vmatpush1.bf16.msra.mxu0 0
    %949 = vmatprep.subr.bf16.mxu0 0
    %950 = vmatpush1.bf16.msra.mxu0 0
    %951 = vmatprep.subr.bf16.mxu0 0
    %952 = vmatpush1.bf16.msra.mxu0 0
    %953 = vmatprep.subr.bf16.mxu0 0
    %954 = vmatpush1.bf16.msra.mxu0 0
    %955 = vmatprep.subr.bf16.mxu0 0
    %956 = vmatpush1.bf16.msra.mxu0 0
    %957 = vmatprep.mubr.bf16.mxu0 0
    %958 = vmatmul.mubr.bf16.gmra.mrb[0].mxu0 %v882
    %v959 = vpop.f32.mrb[0].mxu0
    %v960 = vadd.f32 %v828, %v959
    %v961 = vpop.f32.mrb[0].mxu0
    %v962 = vadd.f32 %v830, %v961
    %v963 = vpop.f32.mrb[0].mxu0
    %v964 = vpop.f32.mrb[0].mxu0
    %965 = vdwg.mxu0
    %v966 = vadd.f32 %v919, %v499
    %v967 = vadd.f32 %v921, %v503
    %v968 = vadd.f32 %v960, %v507
    %v969 = vadd.f32 %v962, %v511
    %v970 = vmul.f32 %v966, 0.5
    %v971 = vtanh.pop %v970
    %v972 = vmul.f32 %v971, 0.5
    %v973 = vadd.f32 %v972, 0.5
    %v974 = vmul.f32 %v967, 0.5
    %v975 = vtanh.pop %v974
    %v976 = vmul.f32 %v975, 0.5
    %v977 = vadd.f32 %v976, 0.5
    %v978 = vtanh.pop %v968
    %v979 = vmul.f32 %v969, 0.5
    %v980 = vtanh.pop %v979
    %v981 = vmul.f32 %v980, 0.5
    %v982 = vadd.f32 %v981, 0.5
    %v983 = vmul.f32 %v977, %v740
    %v984 = vmul.f32 %v973, %v978
    %v985 = vadd.f32 %v983, %v984
    %v986 = vtanh.pop %v985
    %v987 = vmul.f32 %v982, %v986
    %v988 = vpack.c.bf16 %v987, %v987
    %989 = vmatprep.subr.bf16.mxu0 %v190
    %990 = vmatpush1.bf16.msra.mxu0 %v189
    %991 = vmatprep.subr.bf16.mxu0 %v194
    %992 = vmatpush1.bf16.msra.mxu0 %v193
    %993 = vmatprep.subr.bf16.mxu0 %v198
    %994 = vmatpush1.bf16.msra.mxu0 %v197
    %995 = vmatprep.subr.bf16.mxu0 %v202
    %996 = vmatpush1.bf16.msra.mxu0 %v201
    %997 = vmatprep.subr.bf16.mxu0 %v206
    %998 = vmatpush1.bf16.msra.mxu0 %v205
    %999 = vmatprep.subr.bf16.mxu0 %v210
    %1000 = vmatpush1.bf16.msra.mxu0 %v209
    %1001 = vmatprep.subr.bf16.mxu0 %v214
    %1002 = vmatpush1.bf16.msra.mxu0 %v213
    %1003 = vmatprep.subr.bf16.mxu0 %v218
    %1004 = vmatpush1.bf16.msra.mxu0 %v217
    %1005 = vmatprep.subr.bf16.mxu0 0
    %1006 = vmatpush1.bf16.msra.mxu0 0
    %1007 = vmatprep.subr.bf16.mxu0 0
    %1008 = vmatpush1.bf16.msra.mxu0 0
    %1009 = vmatprep.subr.bf16.mxu0 0
    %1010 = vmatpush1.bf16.msra.mxu0 0
    %1011 = vmatprep.subr.bf16.mxu0 0
    %1012 = vmatpush1.bf16.msra.mxu0 0
    %1013 = vmatprep.subr.bf16.mxu0 0
    %1014 = vmatpush1.bf16.msra.mxu0 0
    %1015 = vmatprep.subr.bf16.mxu0 0
    %1016 = vmatpush1.bf16.msra.mxu0 0
    %1017 = vmatprep.subr.bf16.mxu0 0
    %1018 = vmatpush1.bf16.msra.mxu0 0
    %1019 = vmatprep.subr.bf16.mxu0 0
    %1020 = vmatpush1.bf16.msra.mxu0 0
    %1021 = vmatprep.mubr.bf16.mxu0 0
    %1022 = vmatmul.mubr.bf16.gmra.mrb[0].mxu0 %v988
    %v1023 = vpop.f32.mrb[0].mxu0
    %v1024 = vadd.f32 0.0, %v1023
    %v1025 = vpop.f32.mrb[0].mxu0
    %v1026 = vadd.f32 0.0, %v1025
    %v1027 = vpop.f32.mrb[0].mxu0
    %v1028 = vpop.f32.mrb[0].mxu0
    %1029 = vdwg.mxu0
    %1030 = vmatprep.subr.bf16.mxu0 %v192
    %1031 = vmatpush1.bf16.msra.mxu0 %v191
    %1032 = vmatprep.subr.bf16.mxu0 %v196
    %1033 = vmatpush1.bf16.msra.mxu0 %v195
    %1034 = vmatprep.subr.bf16.mxu0 %v200
    %1035 = vmatpush1.bf16.msra.mxu0 %v199
    %1036 = vmatprep.subr.bf16.mxu0 %v204
    %1037 = vmatpush1.bf16.msra.mxu0 %v203
    %1038 = vmatprep.subr.bf16.mxu0 %v208
    %1039 = vmatpush1.bf16.msra.mxu0 %v207
    %1040 = vmatprep.subr.bf16.mxu0 %v212
    %1041 = vmatpush1.bf16.msra.mxu0 %v211
    %1042 = vmatprep.subr.bf16.mxu0 %v216
    %1043 = vmatpush1.bf16.msra.mxu0 %v215
    %1044 = vmatprep.subr.bf16.mxu0 %v220
    %1045 = vmatpush1.bf16.msra.mxu0 %v219
    %1046 = vmatprep.subr.bf16.mxu0 0
    %1047 = vmatpush1.bf16.msra.mxu0 0
    %1048 = vmatprep.subr.bf16.mxu0 0
    %1049 = vmatpush1.bf16.msra.mxu0 0
    %1050 = vmatprep.subr.bf16.mxu0 0
    %1051 = vmatpush1.bf16.msra.mxu0 0
    %1052 = vmatprep.subr.bf16.mxu0 0
    %1053 = vmatpush1.bf16.msra.mxu0 0
    %1054 = vmatprep.subr.bf16.mxu0 0
    %1055 = vmatpush1.bf16.msra.mxu0 0
    %1056 = vmatprep.subr.bf16.mxu0 0
    %1057 = vmatpush1.bf16.msra.mxu0 0
    %1058 = vmatprep.subr.bf16.mxu0 0
    %1059 = vmatpush1.bf16.msra.mxu0 0
    %1060 = vmatprep.subr.bf16.mxu0 0
    %1061 = vmatpush1.bf16.msra.mxu0 0
    %1062 = vmatprep.mubr.bf16.mxu0 0
    %1063 = vmatmul.mubr.bf16.gmra.mrb[0].mxu0 %v988
    %v1064 = vpop.f32.mrb[0].mxu0
    %v1065 = vadd.f32 0.0, %v1064
    %v1066 = vpop.f32.mrb[0].mxu0
    %v1067 = vadd.f32 0.0, %v1066
    %v1068 = vpop.f32.mrb[0].mxu0
    %v1069 = vpop.f32.mrb[0].mxu0
    %1070 = vdwg.mxu0
    %v1071 = vrot.slane %v858, 3
    %v1072 = vrot.slane %v859, 2
    %v1073 = vsel %vm368, %v1072, %v1071
    %v1074 = vrot.slane %v860, 1
    %v1075 = vsel %vm371, %v1074, %v1073
    %v1076 = vsel %vm374, %v861, %v1075
    %v1077 = vrot.slane %v862, 7
    %v1078 = vsel %vm377, %v1077, %v1076
    %v1079 = vrot.slane %v863, 6
    %v1080 = vsel %vm380, %v1079, %v1078
    %v1081 = vrot.slane %v864, 5
    %v1082 = vsel %vm383, %v1081, %v1080
    %v1083 = vrot.slane %v865, 4
    %v1084 = vsel %vm386, %v1083, %v1082
    %v1085 = vpack.c.b16 %v1084, %v1084
    %v1087 = vsel %vm409, %v1085, 0
    %1089 = vmatprep.subr.bf16.mxu0 %v402
    %1090 = vmatpush1.bf16.msra.mxu0 %v401
    %1091 = vmatprep.subr.bf16.mxu0 0
    %1092 = vmatpush1.bf16.msra.mxu0 0
    %1093 = vmatprep.subr.bf16.mxu0 0
    %1094 = vmatpush1.bf16.msra.mxu0 0
    %1095 = vmatprep.subr.bf16.mxu0 0
    %1096 = vmatpush1.bf16.msra.mxu0 0
    %1097 = vmatprep.subr.bf16.mxu0 0
    %1098 = vmatpush1.bf16.msra.mxu0 0
    %1099 = vmatprep.subr.bf16.mxu0 0
    %1100 = vmatpush1.bf16.msra.mxu0 0
    %1101 = vmatprep.subr.bf16.mxu0 0
    %1102 = vmatpush1.bf16.msra.mxu0 0
    %1103 = vmatprep.subr.bf16.mxu0 0
    %1104 = vmatpush1.bf16.msra.mxu0 0
    %1105 = vmatprep.subr.bf16.mxu0 0
    %1106 = vmatpush1.bf16.msra.mxu0 0
    %1107 = vmatprep.subr.bf16.mxu0 0
    %1108 = vmatpush1.bf16.msra.mxu0 0
    %1109 = vmatprep.subr.bf16.mxu0 0
    %1110 = vmatpush1.bf16.msra.mxu0 0
    %1111 = vmatprep.subr.bf16.mxu0 0
    %1112 = vmatpush1.bf16.msra.mxu0 0
    %1113 = vmatprep.subr.bf16.mxu0 0
    %1114 = vmatpush1.bf16.msra.mxu0 0
    %1115 = vmatprep.subr.bf16.mxu0 0
    %1116 = vmatpush1.bf16.msra.mxu0 0
    %1117 = vmatprep.subr.bf16.mxu0 0
    %1118 = vmatpush1.bf16.msra.mxu0 0
    %1119 = vmatprep.subr.bf16.mxu0 0
    %1120 = vmatpush1.bf16.msra.mxu0 0
    %1121 = vmatprep.mubr.bf16.mxu0 0
    %1122 = vmatmul.mubr.bf16.gmra.mrb[0].mxu0 %v1087
    %v1123 = vpop.f32.mrb[0].mxu0
    %v1124 = vadd.f32 %v1024, %v1123
    %v1125 = vpop.f32.mrb[0].mxu0
    %v1126 = vadd.f32 %v1026, %v1125
    %v1127 = vpop.f32.mrb[0].mxu0
    %v1128 = vpop.f32.mrb[0].mxu0
    %1129 = vdwg.mxu0
    %1130 = vmatprep.subr.bf16.mxu0 %v404
    %1131 = vmatpush1.bf16.msra.mxu0 %v403
    %1132 = vmatprep.subr.bf16.mxu0 0
    %1133 = vmatpush1.bf16.msra.mxu0 0
    %1134 = vmatprep.subr.bf16.mxu0 0
    %1135 = vmatpush1.bf16.msra.mxu0 0
    %1136 = vmatprep.subr.bf16.mxu0 0
    %1137 = vmatpush1.bf16.msra.mxu0 0
    %1138 = vmatprep.subr.bf16.mxu0 0
    %1139 = vmatpush1.bf16.msra.mxu0 0
    %1140 = vmatprep.subr.bf16.mxu0 0
    %1141 = vmatpush1.bf16.msra.mxu0 0
    %1142 = vmatprep.subr.bf16.mxu0 0
    %1143 = vmatpush1.bf16.msra.mxu0 0
    %1144 = vmatprep.subr.bf16.mxu0 0
    %1145 = vmatpush1.bf16.msra.mxu0 0
    %1146 = vmatprep.subr.bf16.mxu0 0
    %1147 = vmatpush1.bf16.msra.mxu0 0
    %1148 = vmatprep.subr.bf16.mxu0 0
    %1149 = vmatpush1.bf16.msra.mxu0 0
    %1150 = vmatprep.subr.bf16.mxu0 0
    %1151 = vmatpush1.bf16.msra.mxu0 0
    %1152 = vmatprep.subr.bf16.mxu0 0
    %1153 = vmatpush1.bf16.msra.mxu0 0
    %1154 = vmatprep.subr.bf16.mxu0 0
    %1155 = vmatpush1.bf16.msra.mxu0 0
    %1156 = vmatprep.subr.bf16.mxu0 0
    %1157 = vmatpush1.bf16.msra.mxu0 0
    %1158 = vmatprep.subr.bf16.mxu0 0
    %1159 = vmatpush1.bf16.msra.mxu0 0
    %1160 = vmatprep.subr.bf16.mxu0 0
    %1161 = vmatpush1.bf16.msra.mxu0 0
    %1162 = vmatprep.mubr.bf16.mxu0 0
    %1163 = vmatmul.mubr.bf16.gmra.mrb[0].mxu0 %v1087
    %v1164 = vpop.f32.mrb[0].mxu0
    %v1165 = vadd.f32 %v1065, %v1164
    %v1166 = vpop.f32.mrb[0].mxu0
    %v1167 = vadd.f32 %v1067, %v1166
    %v1168 = vpop.f32.mrb[0].mxu0
    %v1169 = vpop.f32.mrb[0].mxu0
    %1170 = vdwg.mxu0
    %v1171 = vadd.f32 %v1124, %v499
    %v1172 = vadd.f32 %v1126, %v503
    %v1173 = vadd.f32 %v1165, %v507
    %v1174 = vadd.f32 %v1167, %v511
    %v1175 = vmul.f32 %v1171, 0.5
    %v1176 = vtanh.pop %v1175
    %v1177 = vmul.f32 %v1176, 0.5
    %v1178 = vadd.f32 %v1177, 0.5
    %v1179 = vmul.f32 %v1172, 0.5
    %v1180 = vtanh.pop %v1179
    %v1181 = vmul.f32 %v1180, 0.5
    %v1182 = vadd.f32 %v1181, 0.5
    %v1183 = vtanh.pop %v1173
    %v1184 = vmul.f32 %v1174, 0.5
    %v1185 = vtanh.pop %v1184
    %v1186 = vmul.f32 %v1185, 0.5
    %v1187 = vadd.f32 %v1186, 0.5
    %v1188 = vmul.f32 %v1182, %v985
    %v1189 = vmul.f32 %v1178, %v1183
    %v1190 = vadd.f32 %v1188, %v1189
    %v1191 = vtanh.pop %v1190
    %v1192 = vmul.f32 %v1187, %v1191
    %v1193 = vld [vmem:[%s0] sm:$0x4]
    %v1194 = vld [vmem:[%s0 + $0x8] sm:$0x4]
    %v1195 = vld [vmem:[%s0 + $0x10] sm:$0x4]
    %v1196 = vld [vmem:[%s0 + $0x18] sm:$0x4]
    %v1197 = vld [vmem:[%s0 + $0x20] sm:$0x4]
    %v1198 = vld [vmem:[%s0 + $0x28] sm:$0x4]
    %v1199 = vld [vmem:[%s0 + $0x30] sm:$0x4]
    %v1200 = vld [vmem:[%s0 + $0x38] sm:$0x4]
    %v1201 = vpack.c.bf16 %v1192, %v1192
    %1202 = vmatprep.subr.bf16.mxu0 %v190
    %1203 = vmatpush1.bf16.msra.mxu0 %v189
    %1204 = vmatprep.subr.bf16.mxu0 %v194
    %1205 = vmatpush1.bf16.msra.mxu0 %v193
    %1206 = vmatprep.subr.bf16.mxu0 %v198
    %1207 = vmatpush1.bf16.msra.mxu0 %v197
    %1208 = vmatprep.subr.bf16.mxu0 %v202
    %1209 = vmatpush1.bf16.msra.mxu0 %v201
    %1210 = vmatprep.subr.bf16.mxu0 %v206
    %1211 = vmatpush1.bf16.msra.mxu0 %v205
    %1212 = vmatprep.subr.bf16.mxu0 %v210
    %1213 = vmatpush1.bf16.msra.mxu0 %v209
    %1214 = vmatprep.subr.bf16.mxu0 %v214
    %1215 = vmatpush1.bf16.msra.mxu0 %v213
    %1216 = vmatprep.subr.bf16.mxu0 %v218
    %1217 = vmatpush1.bf16.msra.mxu0 %v217
    %1218 = vmatprep.subr.bf16.mxu0 0
    %1219 = vmatpush1.bf16.msra.mxu0 0
    %1220 = vmatprep.subr.bf16.mxu0 0
    %1221 = vmatpush1.bf16.msra.mxu0 0
    %1222 = vmatprep.subr.bf16.mxu0 0
    %1223 = vmatpush1.bf16.msra.mxu0 0
    %1224 = vmatprep.subr.bf16.mxu0 0
    %1225 = vmatpush1.bf16.msra.mxu0 0
    %1226 = vmatprep.subr.bf16.mxu0 0
    %1227 = vmatpush1.bf16.msra.mxu0 0
    %1228 = vmatprep.subr.bf16.mxu0 0
    %1229 = vmatpush1.bf16.msra.mxu0 0
    %1230 = vmatprep.subr.bf16.mxu0 0
    %1231 = vmatpush1.bf16.msra.mxu0 0
    %1232 = vmatprep.subr.bf16.mxu0 0
    %1233 = vmatpush1.bf16.msra.mxu0 0
    %1234 = vmatprep.mubr.bf16.mxu0 0
    %1235 = vmatmul.mubr.bf16.gmra.mrb[0].mxu0 %v1201
    %v1236 = vpop.f32.mrb[0].mxu0
    %v1237 = vadd.f32 0.0, %v1236
    %v1238 = vpop.f32.mrb[0].mxu0
    %v1239 = vadd.f32 0.0, %v1238
    %v1240 = vpop.f32.mrb[0].mxu0
    %v1241 = vpop.f32.mrb[0].mxu0
    %1242 = vdwg.mxu0
    %1243 = vmatprep.subr.bf16.mxu0 %v192
    %1244 = vmatpush1.bf16.msra.mxu0 %v191
    %1245 = vmatprep.subr.bf16.mxu0 %v196
    %1246 = vmatpush1.bf16.msra.mxu0 %v195
    %1247 = vmatprep.subr.bf16.mxu0 %v200
    %1248 = vmatpush1.bf16.msra.mxu0 %v199
    %1249 = vmatprep.subr.bf16.mxu0 %v204
    %1250 = vmatpush1.bf16.msra.mxu0 %v203
    %1251 = vmatprep.subr.bf16.mxu0 %v208
    %1252 = vmatpush1.bf16.msra.mxu0 %v207
    %1253 = vmatprep.subr.bf16.mxu0 %v212
    %1254 = vmatpush1.bf16.msra.mxu0 %v211
    %1255 = vmatprep.subr.bf16.mxu0 %v216
    %1256 = vmatpush1.bf16.msra.mxu0 %v215
    %1257 = vmatprep.subr.bf16.mxu0 %v220
    %1258 = vmatpush1.bf16.msra.mxu0 %v219
    %1259 = vmatprep.subr.bf16.mxu0 0
    %1260 = vmatpush1.bf16.msra.mxu0 0
    %1261 = vmatprep.subr.bf16.mxu0 0
    %1262 = vmatpush1.bf16.msra.mxu0 0
    %1263 = vmatprep.subr.bf16.mxu0 0
    %1264 = vmatpush1.bf16.msra.mxu0 0
    %1265 = vmatprep.subr.bf16.mxu0 0
    %1266 = vmatpush1.bf16.msra.mxu0 0
    %1267 = vmatprep.subr.bf16.mxu0 0
    %1268 = vmatpush1.bf16.msra.mxu0 0
    %1269 = vmatprep.subr.bf16.mxu0 0
    %1270 = vmatpush1.bf16.msra.mxu0 0
    %1271 = vmatprep.subr.bf16.mxu0 0
    %1272 = vmatpush1.bf16.msra.mxu0 0
    %1273 = vmatprep.subr.bf16.mxu0 0
    %1274 = vmatpush1.bf16.msra.mxu0 0
    %1275 = vmatprep.mubr.bf16.mxu0 0
    %1276 = vmatmul.mubr.bf16.gmra.mrb[0].mxu0 %v1201
    %v1277 = vpop.f32.mrb[0].mxu0
    %v1278 = vadd.f32 0.0, %v1277
    %v1279 = vpop.f32.mrb[0].mxu0
    %v1280 = vadd.f32 0.0, %v1279
    %v1281 = vpop.f32.mrb[0].mxu0
    %v1282 = vpop.f32.mrb[0].mxu0
    %1283 = vdwg.mxu0
    %v1292 = vunpack.c.l.b16 %v1193
    %v1293 = vunpack.c.l.b16 %v1194
    %v1294 = vunpack.c.l.b16 %v1195
    %v1295 = vunpack.c.l.b16 %v1196
    %v1296 = vunpack.c.l.b16 %v1197
    %v1297 = vunpack.c.l.b16 %v1198
    %v1298 = vunpack.c.l.b16 %v1199
    %v1299 = vunpack.c.l.b16 %v1200
    %v1300 = vpack.c.b16 %v1292, %v1292
    %v1301 = vpack.c.b16 %v1293, %v1293
    %v1302 = vpack.c.b16 %v1294, %v1294
    %v1303 = vpack.c.b16 %v1295, %v1295
    %v1304 = vpack.c.b16 %v1296, %v1296
    %v1305 = vpack.c.b16 %v1297, %v1297
    %v1306 = vpack.c.b16 %v1298, %v1298
    %v1307 = vpack.c.b16 %v1299, %v1299
    %v1308 = vunpack.c.l.b16 %v1300
    %v1309 = vunpack.c.l.b16 %v1301
    %v1310 = vunpack.c.l.b16 %v1302
    %v1311 = vunpack.c.l.b16 %v1303
    %v1312 = vunpack.c.l.b16 %v1304
    %v1313 = vunpack.c.l.b16 %v1305
    %v1314 = vunpack.c.l.b16 %v1306
    %v1315 = vunpack.c.l.b16 %v1307
    %v1316 = vrot.slane %v1308, 4
    %v1317 = vrot.slane %v1309, 3
    %v1318 = vsel %vm368, %v1317, %v1316
    %v1319 = vrot.slane %v1310, 2
    %v1320 = vsel %vm371, %v1319, %v1318
    %v1321 = vrot.slane %v1311, 1
    %v1322 = vsel %vm374, %v1321, %v1320
    %v1323 = vsel %vm377, %v1312, %v1322
    %v1324 = vrot.slane %v1313, 7
    %v1325 = vsel %vm380, %v1324, %v1323
    %v1326 = vrot.slane %v1314, 6
    %v1327 = vsel %vm383, %v1326, %v1325
    %v1328 = vrot.slane %v1315, 5
    %v1329 = vsel %vm386, %v1328, %v1327
    %v1330 = vpack.c.b16 %v1329, %v1329
    %v1332 = vsel %vm409, %v1330, 0
    %1334 = vmatprep.subr.bf16.mxu0 %v402
    %1335 = vmatpush1.bf16.msra.mxu0 %v401
    %1336 = vmatprep.subr.bf16.mxu0 0
    %1337 = vmatpush1.bf16.msra.mxu0 0
    %1338 = vmatprep.subr.bf16.mxu0 0
    %1339 = vmatpush1.bf16.msra.mxu0 0
    %1340 = vmatprep.subr.bf16.mxu0 0
    %1341 = vmatpush1.bf16.msra.mxu0 0
    %1342 = vmatprep.subr.bf16.mxu0 0
    %1343 = vmatpush1.bf16.msra.mxu0 0
    %1344 = vmatprep.subr.bf16.mxu0 0
    %1345 = vmatpush1.bf16.msra.mxu0 0
    %1346 = vmatprep.subr.bf16.mxu0 0
    %1347 = vmatpush1.bf16.msra.mxu0 0
    %1348 = vmatprep.subr.bf16.mxu0 0
    %1349 = vmatpush1.bf16.msra.mxu0 0
    %1350 = vmatprep.subr.bf16.mxu0 0
    %1351 = vmatpush1.bf16.msra.mxu0 0
    %1352 = vmatprep.subr.bf16.mxu0 0
    %1353 = vmatpush1.bf16.msra.mxu0 0
    %1354 = vmatprep.subr.bf16.mxu0 0
    %1355 = vmatpush1.bf16.msra.mxu0 0
    %1356 = vmatprep.subr.bf16.mxu0 0
    %1357 = vmatpush1.bf16.msra.mxu0 0
    %1358 = vmatprep.subr.bf16.mxu0 0
    %1359 = vmatpush1.bf16.msra.mxu0 0
    %1360 = vmatprep.subr.bf16.mxu0 0
    %1361 = vmatpush1.bf16.msra.mxu0 0
    %1362 = vmatprep.subr.bf16.mxu0 0
    %1363 = vmatpush1.bf16.msra.mxu0 0
    %1364 = vmatprep.subr.bf16.mxu0 0
    %1365 = vmatpush1.bf16.msra.mxu0 0
    %1366 = vmatprep.mubr.bf16.mxu0 0
    %1367 = vmatmul.mubr.bf16.gmra.mrb[0].mxu0 %v1332
    %v1368 = vpop.f32.mrb[0].mxu0
    %v1369 = vadd.f32 %v1237, %v1368
    %v1370 = vpop.f32.mrb[0].mxu0
    %v1371 = vadd.f32 %v1239, %v1370
    %v1372 = vpop.f32.mrb[0].mxu0
    %v1373 = vpop.f32.mrb[0].mxu0
    %1374 = vdwg.mxu0
    %1375 = vmatprep.subr.bf16.mxu0 %v404
    %1376 = vmatpush1.bf16.msra.mxu0 %v403
    %1377 = vmatprep.subr.bf16.mxu0 0
    %1378 = vmatpush1.bf16.msra.mxu0 0
    %1379 = vmatprep.subr.bf16.mxu0 0
    %1380 = vmatpush1.bf16.msra.mxu0 0
    %1381 = vmatprep.subr.bf16.mxu0 0
    %1382 = vmatpush1.bf16.msra.mxu0 0
    %1383 = vmatprep.subr.bf16.mxu0 0
    %1384 = vmatpush1.bf16.msra.mxu0 0
    %1385 = vmatprep.subr.bf16.mxu0 0
    %1386 = vmatpush1.bf16.msra.mxu0 0
    %1387 = vmatprep.subr.bf16.mxu0 0
    %1388 = vmatpush1.bf16.msra.mxu0 0
    %1389 = vmatprep.subr.bf16.mxu0 0
    %1390 = vmatpush1.bf16.msra.mxu0 0
    %1391 = vmatprep.subr.bf16.mxu0 0
    %1392 = vmatpush1.bf16.msra.mxu0 0
    %1393 = vmatprep.subr.bf16.mxu0 0
    %1394 = vmatpush1.bf16.msra.mxu0 0
    %1395 = vmatprep.subr.bf16.mxu0 0
    %1396 = vmatpush1.bf16.msra.mxu0 0
    %1397 = vmatprep.subr.bf16.mxu0 0
    %1398 = vmatpush1.bf16.msra.mxu0 0
    %1399 = vmatprep.subr.bf16.mxu0 0
    %1400 = vmatpush1.bf16.msra.mxu0 0
    %1401 = vmatprep.subr.bf16.mxu0 0
    %1402 = vmatpush1.bf16.msra.mxu0 0
    %1403 = vmatprep.subr.bf16.mxu0 0
    %1404 = vmatpush1.bf16.msra.mxu0 0
    %1405 = vmatprep.subr.bf16.mxu0 0
    %1406 = vmatpush1.bf16.msra.mxu0 0
    %1407 = vmatprep.mubr.bf16.mxu0 0
    %1408 = vmatmul.mubr.bf16.gmra.mrb[0].mxu0 %v1332
    %v1409 = vpop.f32.mrb[0].mxu0
    %v1410 = vadd.f32 %v1278, %v1409
    %v1411 = vpop.f32.mrb[0].mxu0
    %v1412 = vadd.f32 %v1280, %v1411
    %v1413 = vpop.f32.mrb[0].mxu0
    %v1414 = vpop.f32.mrb[0].mxu0
    %1415 = vdwg.mxu0
    %v1416 = vadd.f32 %v1369, %v499
    %v1417 = vadd.f32 %v1371, %v503
    %v1418 = vadd.f32 %v1410, %v507
    %v1419 = vadd.f32 %v1412, %v511
    %v1420 = vmul.f32 %v1416, 0.5
    %v1421 = vtanh.pop %v1420
    %v1422 = vmul.f32 %v1421, 0.5
    %v1423 = vadd.f32 %v1422, 0.5
    %v1424 = vmul.f32 %v1417, 0.5
    %v1425 = vtanh.pop %v1424
    %v1426 = vmul.f32 %v1425, 0.5
    %v1427 = vadd.f32 %v1426, 0.5
    %v1428 = vtanh.pop %v1418
    %v1429 = vmul.f32 %v1419, 0.5
    %v1430 = vtanh.pop %v1429
    %v1431 = vmul.f32 %v1430, 0.5
    %v1432 = vadd.f32 %v1431, 0.5
    %v1433 = vmul.f32 %v1427, %v1190
    %v1434 = vmul.f32 %v1423, %v1428
    %v1435 = vadd.f32 %v1433, %v1434
    %v1436 = vtanh.pop %v1435
    %v1437 = vmul.f32 %v1432, %v1436
    %v1438 = vpack.c.bf16 %v1437, %v1437
    %1439 = vmatprep.subr.bf16.mxu0 %v190
    %1440 = vmatpush1.bf16.msra.mxu0 %v189
    %1441 = vmatprep.subr.bf16.mxu0 %v194
    %1442 = vmatpush1.bf16.msra.mxu0 %v193
    %1443 = vmatprep.subr.bf16.mxu0 %v198
    %1444 = vmatpush1.bf16.msra.mxu0 %v197
    %1445 = vmatprep.subr.bf16.mxu0 %v202
    %1446 = vmatpush1.bf16.msra.mxu0 %v201
    %1447 = vmatprep.subr.bf16.mxu0 %v206
    %1448 = vmatpush1.bf16.msra.mxu0 %v205
    %1449 = vmatprep.subr.bf16.mxu0 %v210
    %1450 = vmatpush1.bf16.msra.mxu0 %v209
    %1451 = vmatprep.subr.bf16.mxu0 %v214
    %1452 = vmatpush1.bf16.msra.mxu0 %v213
    %1453 = vmatprep.subr.bf16.mxu0 %v218
    %1454 = vmatpush1.bf16.msra.mxu0 %v217
    %1455 = vmatprep.subr.bf16.mxu0 0
    %1456 = vmatpush1.bf16.msra.mxu0 0
    %1457 = vmatprep.subr.bf16.mxu0 0
    %1458 = vmatpush1.bf16.msra.mxu0 0
    %1459 = vmatprep.subr.bf16.mxu0 0
    %1460 = vmatpush1.bf16.msra.mxu0 0
    %1461 = vmatprep.subr.bf16.mxu0 0
    %1462 = vmatpush1.bf16.msra.mxu0 0
    %1463 = vmatprep.subr.bf16.mxu0 0
    %1464 = vmatpush1.bf16.msra.mxu0 0
    %1465 = vmatprep.subr.bf16.mxu0 0
    %1466 = vmatpush1.bf16.msra.mxu0 0
    %1467 = vmatprep.subr.bf16.mxu0 0
    %1468 = vmatpush1.bf16.msra.mxu0 0
    %1469 = vmatprep.subr.bf16.mxu0 0
    %1470 = vmatpush1.bf16.msra.mxu0 0
    %1471 = vmatprep.mubr.bf16.mxu0 0
    %1472 = vmatmul.mubr.bf16.gmra.mrb[0].mxu0 %v1438
    %v1473 = vpop.f32.mrb[0].mxu0
    %v1474 = vadd.f32 0.0, %v1473
    %v1475 = vpop.f32.mrb[0].mxu0
    %v1476 = vadd.f32 0.0, %v1475
    %v1477 = vpop.f32.mrb[0].mxu0
    %v1478 = vpop.f32.mrb[0].mxu0
    %1479 = vdwg.mxu0
    %1480 = vmatprep.subr.bf16.mxu0 %v192
    %1481 = vmatpush1.bf16.msra.mxu0 %v191
    %1482 = vmatprep.subr.bf16.mxu0 %v196
    %1483 = vmatpush1.bf16.msra.mxu0 %v195
    %1484 = vmatprep.subr.bf16.mxu0 %v200
    %1485 = vmatpush1.bf16.msra.mxu0 %v199
    %1486 = vmatprep.subr.bf16.mxu0 %v204
    %1487 = vmatpush1.bf16.msra.mxu0 %v203
    %1488 = vmatprep.subr.bf16.mxu0 %v208
    %1489 = vmatpush1.bf16.msra.mxu0 %v207
    %1490 = vmatprep.subr.bf16.mxu0 %v212
    %1491 = vmatpush1.bf16.msra.mxu0 %v211
    %1492 = vmatprep.subr.bf16.mxu0 %v216
    %1493 = vmatpush1.bf16.msra.mxu0 %v215
    %1494 = vmatprep.subr.bf16.mxu0 %v220
    %1495 = vmatpush1.bf16.msra.mxu0 %v219
    %1496 = vmatprep.subr.bf16.mxu0 0
    %1497 = vmatpush1.bf16.msra.mxu0 0
    %1498 = vmatprep.subr.bf16.mxu0 0
    %1499 = vmatpush1.bf16.msra.mxu0 0
    %1500 = vmatprep.subr.bf16.mxu0 0
    %1501 = vmatpush1.bf16.msra.mxu0 0
    %1502 = vmatprep.subr.bf16.mxu0 0
    %1503 = vmatpush1.bf16.msra.mxu0 0
    %1504 = vmatprep.subr.bf16.mxu0 0
    %1505 = vmatpush1.bf16.msra.mxu0 0
    %1506 = vmatprep.subr.bf16.mxu0 0
    %1507 = vmatpush1.bf16.msra.mxu0 0
    %1508 = vmatprep.subr.bf16.mxu0 0
    %1509 = vmatpush1.bf16.msra.mxu0 0
    %1510 = vmatprep.subr.bf16.mxu0 0
    %1511 = vmatpush1.bf16.msra.mxu0 0
    %1512 = vmatprep.mubr.bf16.mxu0 0
    %1513 = vmatmul.mubr.bf16.gmra.mrb[0].mxu0 %v1438
    %v1514 = vpop.f32.mrb[0].mxu0
    %v1515 = vadd.f32 0.0, %v1514
    %v1516 = vpop.f32.mrb[0].mxu0
    %v1517 = vadd.f32 0.0, %v1516
    %v1518 = vpop.f32.mrb[0].mxu0
    %v1519 = vpop.f32.mrb[0].mxu0
    %1520 = vdwg.mxu0
    %v1521 = vrot.slane %v1308, 5
    %v1522 = vrot.slane %v1309, 4
    %v1523 = vsel %vm368, %v1522, %v1521
    %v1524 = vrot.slane %v1310, 3
    %v1525 = vsel %vm371, %v1524, %v1523
    %v1526 = vrot.slane %v1311, 2
    %v1527 = vsel %vm374, %v1526, %v1525
    %v1528 = vrot.slane %v1312, 1
    %v1529 = vsel %vm377, %v1528, %v1527
    %v1530 = vsel %vm380, %v1313, %v1529
    %v1531 = vrot.slane %v1314, 7
    %v1532 = vsel %vm383, %v1531, %v1530
    %v1533 = vrot.slane %v1315, 6
    %v1534 = vsel %vm386, %v1533, %v1532
    %v1535 = vpack.c.b16 %v1534, %v1534
    %v1537 = vsel %vm409, %v1535, 0
    %1539 = vmatprep.subr.bf16.mxu0 %v402
    %1540 = vmatpush1.bf16.msra.mxu0 %v401
    %1541 = vmatprep.subr.bf16.mxu0 0
    %1542 = vmatpush1.bf16.msra.mxu0 0
    %1543 = vmatprep.subr.bf16.mxu0 0
    %1544 = vmatpush1.bf16.msra.mxu0 0
    %1545 = vmatprep.subr.bf16.mxu0 0
    %1546 = vmatpush1.bf16.msra.mxu0 0
    %1547 = vmatprep.subr.bf16.mxu0 0
    %1548 = vmatpush1.bf16.msra.mxu0 0
    %1549 = vmatprep.subr.bf16.mxu0 0
    %1550 = vmatpush1.bf16.msra.mxu0 0
    %1551 = vmatprep.subr.bf16.mxu0 0
    %1552 = vmatpush1.bf16.msra.mxu0 0
    %1553 = vmatprep.subr.bf16.mxu0 0
    %1554 = vmatpush1.bf16.msra.mxu0 0
    %1555 = vmatprep.subr.bf16.mxu0 0
    %1556 = vmatpush1.bf16.msra.mxu0 0
    %1557 = vmatprep.subr.bf16.mxu0 0
    %1558 = vmatpush1.bf16.msra.mxu0 0
    %1559 = vmatprep.subr.bf16.mxu0 0
    %1560 = vmatpush1.bf16.msra.mxu0 0
    %1561 = vmatprep.subr.bf16.mxu0 0
    %1562 = vmatpush1.bf16.msra.mxu0 0
    %1563 = vmatprep.subr.bf16.mxu0 0
    %1564 = vmatpush1.bf16.msra.mxu0 0
    %1565 = vmatprep.subr.bf16.mxu0 0
    %1566 = vmatpush1.bf16.msra.mxu0 0
    %1567 = vmatprep.subr.bf16.mxu0 0
    %1568 = vmatpush1.bf16.msra.mxu0 0
    %1569 = vmatprep.subr.bf16.mxu0 0
    %1570 = vmatpush1.bf16.msra.mxu0 0
    %1571 = vmatprep.mubr.bf16.mxu0 0
    %1572 = vmatmul.mubr.bf16.gmra.mrb[0].mxu0 %v1537
    %v1573 = vpop.f32.mrb[0].mxu0
    %v1574 = vadd.f32 %v1474, %v1573
    %v1575 = vpop.f32.mrb[0].mxu0
    %v1576 = vadd.f32 %v1476, %v1575
    %v1577 = vpop.f32.mrb[0].mxu0
    %v1578 = vpop.f32.mrb[0].mxu0
    %1579 = vdwg.mxu0
    %1580 = vmatprep.subr.bf16.mxu0 %v404
    %1581 = vmatpush1.bf16.msra.mxu0 %v403
    %1582 = vmatprep.subr.bf16.mxu0 0
    %1583 = vmatpush1.bf16.msra.mxu0 0
    %1584 = vmatprep.subr.bf16.mxu0 0
    %1585 = vmatpush1.bf16.msra.mxu0 0
    %1586 = vmatprep.subr.bf16.mxu0 0
    %1587 = vmatpush1.bf16.msra.mxu0 0
    %1588 = vmatprep.subr.bf16.mxu0 0
    %1589 = vmatpush1.bf16.msra.mxu0 0
    %1590 = vmatprep.subr.bf16.mxu0 0
    %1591 = vmatpush1.bf16.msra.mxu0 0
    %1592 = vmatprep.subr.bf16.mxu0 0
    %1593 = vmatpush1.bf16.msra.mxu0 0
    %1594 = vmatprep.subr.bf16.mxu0 0
    %1595 = vmatpush1.bf16.msra.mxu0 0
    %1596 = vmatprep.subr.bf16.mxu0 0
    %1597 = vmatpush1.bf16.msra.mxu0 0
    %1598 = vmatprep.subr.bf16.mxu0 0
    %1599 = vmatpush1.bf16.msra.mxu0 0
    %1600 = vmatprep.subr.bf16.mxu0 0
    %1601 = vmatpush1.bf16.msra.mxu0 0
    %1602 = vmatprep.subr.bf16.mxu0 0
    %1603 = vmatpush1.bf16.msra.mxu0 0
    %1604 = vmatprep.subr.bf16.mxu0 0
    %1605 = vmatpush1.bf16.msra.mxu0 0
    %1606 = vmatprep.subr.bf16.mxu0 0
    %1607 = vmatpush1.bf16.msra.mxu0 0
    %1608 = vmatprep.subr.bf16.mxu0 0
    %1609 = vmatpush1.bf16.msra.mxu0 0
    %1610 = vmatprep.subr.bf16.mxu0 0
    %1611 = vmatpush1.bf16.msra.mxu0 0
    %1612 = vmatprep.mubr.bf16.mxu0 0
    %1613 = vmatmul.mubr.bf16.gmra.mrb[0].mxu0 %v1537
    %v1614 = vpop.f32.mrb[0].mxu0
    %v1615 = vadd.f32 %v1515, %v1614
    %v1616 = vpop.f32.mrb[0].mxu0
    %v1617 = vadd.f32 %v1517, %v1616
    %v1618 = vpop.f32.mrb[0].mxu0
    %v1619 = vpop.f32.mrb[0].mxu0
    %1620 = vdwg.mxu0
    %v1621 = vadd.f32 %v1574, %v499
    %v1622 = vadd.f32 %v1576, %v503
    %v1623 = vadd.f32 %v1615, %v507
    %v1624 = vadd.f32 %v1617, %v511
    %v1625 = vmul.f32 %v1621, 0.5
    %v1626 = vtanh.pop %v1625
    %v1627 = vmul.f32 %v1626, 0.5
    %v1628 = vadd.f32 %v1627, 0.5
    %v1629 = vmul.f32 %v1622, 0.5
    %v1630 = vtanh.pop %v1629
    %v1631 = vmul.f32 %v1630, 0.5
    %v1632 = vadd.f32 %v1631, 0.5
    %v1633 = vtanh.pop %v1623
    %v1634 = vmul.f32 %v1624, 0.5
    %v1635 = vtanh.pop %v1634
    %v1636 = vmul.f32 %v1635, 0.5
    %v1637 = vadd.f32 %v1636, 0.5
    %v1638 = vmul.f32 %v1632, %v1435
    %v1639 = vmul.f32 %v1628, %v1633
    %v1640 = vadd.f32 %v1638, %v1639
    %v1641 = vtanh.pop %v1640
    %v1642 = vmul.f32 %v1637, %v1641
    %v1643 = vld [vmem:[%s0] sm:$0x8]
    %v1644 = vld [vmem:[%s0 + $0x8] sm:$0x8]
    %v1645 = vld [vmem:[%s0 + $0x10] sm:$0x8]
    %v1646 = vld [vmem:[%s0 + $0x18] sm:$0x8]
    %v1647 = vld [vmem:[%s0 + $0x20] sm:$0x8]
    %v1648 = vld [vmem:[%s0 + $0x28] sm:$0x8]
    %v1649 = vld [vmem:[%s0 + $0x30] sm:$0x8]
    %v1650 = vld [vmem:[%s0 + $0x38] sm:$0x8]
    %v1651 = vpack.c.bf16 %v1642, %v1642
    %1652 = vmatprep.subr.bf16.mxu0 %v190
    %1653 = vmatpush1.bf16.msra.mxu0 %v189
    %1654 = vmatprep.subr.bf16.mxu0 %v194
    %1655 = vmatpush1.bf16.msra.mxu0 %v193
    %1656 = vmatprep.subr.bf16.mxu0 %v198
    %1657 = vmatpush1.bf16.msra.mxu0 %v197
    %1658 = vmatprep.subr.bf16.mxu0 %v202
    %1659 = vmatpush1.bf16.msra.mxu0 %v201
    %1660 = vmatprep.subr.bf16.mxu0 %v206
    %1661 = vmatpush1.bf16.msra.mxu0 %v205
    %1662 = vmatprep.subr.bf16.mxu0 %v210
    %1663 = vmatpush1.bf16.msra.mxu0 %v209
    %1664 = vmatprep.subr.bf16.mxu0 %v214
    %1665 = vmatpush1.bf16.msra.mxu0 %v213
    %1666 = vmatprep.subr.bf16.mxu0 %v218
    %1667 = vmatpush1.bf16.msra.mxu0 %v217
    %1668 = vmatprep.subr.bf16.mxu0 0
    %1669 = vmatpush1.bf16.msra.mxu0 0
    %1670 = vmatprep.subr.bf16.mxu0 0
    %1671 = vmatpush1.bf16.msra.mxu0 0
    %1672 = vmatprep.subr.bf16.mxu0 0
    %1673 = vmatpush1.bf16.msra.mxu0 0
    %1674 = vmatprep.subr.bf16.mxu0 0
    %1675 = vmatpush1.bf16.msra.mxu0 0
    %1676 = vmatprep.subr.bf16.mxu0 0
    %1677 = vmatpush1.bf16.msra.mxu0 0
    %1678 = vmatprep.subr.bf16.mxu0 0
    %1679 = vmatpush1.bf16.msra.mxu0 0
    %1680 = vmatprep.subr.bf16.mxu0 0
    %1681 = vmatpush1.bf16.msra.mxu0 0
    %1682 = vmatprep.subr.bf16.mxu0 0
    %1683 = vmatpush1.bf16.msra.mxu0 0
    %1684 = vmatprep.mubr.bf16.mxu0 0
    %1685 = vmatmul.mubr.bf16.gmra.mrb[0].mxu0 %v1651
    %v1686 = vpop.f32.mrb[0].mxu0
    %v1687 = vadd.f32 0.0, %v1686
    %v1688 = vpop.f32.mrb[0].mxu0
    %v1689 = vadd.f32 0.0, %v1688
    %v1690 = vpop.f32.mrb[0].mxu0
    %v1691 = vpop.f32.mrb[0].mxu0
    %1692 = vdwg.mxu0
    %1693 = vmatprep.subr.bf16.mxu0 %v192
    %1694 = vmatpush1.bf16.msra.mxu0 %v191
    %1695 = vmatprep.subr.bf16.mxu0 %v196
    %1696 = vmatpush1.bf16.msra.mxu0 %v195
    %1697 = vmatprep.subr.bf16.mxu0 %v200
    %1698 = vmatpush1.bf16.msra.mxu0 %v199
    %1699 = vmatprep.subr.bf16.mxu0 %v204
    %1700 = vmatpush1.bf16.msra.mxu0 %v203
    %1701 = vmatprep.subr.bf16.mxu0 %v208
    %1702 = vmatpush1.bf16.msra.mxu0 %v207
    %1703 = vmatprep.subr.bf16.mxu0 %v212
    %1704 = vmatpush1.bf16.msra.mxu0 %v211
    %1705 = vmatprep.subr.bf16.mxu0 %v216
    %1706 = vmatpush1.bf16.msra.mxu0 %v215
    %1707 = vmatprep.subr.bf16.mxu0 %v220
    %1708 = vmatpush1.bf16.msra.mxu0 %v219
    %1709 = vmatprep.subr.bf16.mxu0 0
    %1710 = vmatpush1.bf16.msra.mxu0 0
    %1711 = vmatprep.subr.bf16.mxu0 0
    %1712 = vmatpush1.bf16.msra.mxu0 0
    %1713 = vmatprep.subr.bf16.mxu0 0
    %1714 = vmatpush1.bf16.msra.mxu0 0
    %1715 = vmatprep.subr.bf16.mxu0 0
    %1716 = vmatpush1.bf16.msra.mxu0 0
    %1717 = vmatprep.subr.bf16.mxu0 0
    %1718 = vmatpush1.bf16.msra.mxu0 0
    %1719 = vmatprep.subr.bf16.mxu0 0
    %1720 = vmatpush1.bf16.msra.mxu0 0
    %1721 = vmatprep.subr.bf16.mxu0 0
    %1722 = vmatpush1.bf16.msra.mxu0 0
    %1723 = vmatprep.subr.bf16.mxu0 0
    %1724 = vmatpush1.bf16.msra.mxu0 0
    %1725 = vmatprep.mubr.bf16.mxu0 0
    %1726 = vmatmul.mubr.bf16.gmra.mrb[0].mxu0 %v1651
    %v1727 = vpop.f32.mrb[0].mxu0
    %v1728 = vadd.f32 0.0, %v1727
    %v1729 = vpop.f32.mrb[0].mxu0
    %v1730 = vadd.f32 0.0, %v1729
    %v1731 = vpop.f32.mrb[0].mxu0
    %v1732 = vpop.f32.mrb[0].mxu0
    %1733 = vdwg.mxu0
    %v1742 = vunpack.c.l.b16 %v1643
    %v1743 = vunpack.c.l.b16 %v1644
    %v1744 = vunpack.c.l.b16 %v1645
    %v1745 = vunpack.c.l.b16 %v1646
    %v1746 = vunpack.c.l.b16 %v1647
    %v1747 = vunpack.c.l.b16 %v1648
    %v1748 = vunpack.c.l.b16 %v1649
    %v1749 = vunpack.c.l.b16 %v1650
    %v1750 = vpack.c.b16 %v1742, %v1742
    %v1751 = vpack.c.b16 %v1743, %v1743
    %v1752 = vpack.c.b16 %v1744, %v1744
    %v1753 = vpack.c.b16 %v1745, %v1745
    %v1754 = vpack.c.b16 %v1746, %v1746
    %v1755 = vpack.c.b16 %v1747, %v1747
    %v1756 = vpack.c.b16 %v1748, %v1748
    %v1757 = vpack.c.b16 %v1749, %v1749
    %v1758 = vunpack.c.l.b16 %v1750
    %v1759 = vunpack.c.l.b16 %v1751
    %v1760 = vunpack.c.l.b16 %v1752
    %v1761 = vunpack.c.l.b16 %v1753
    %v1762 = vunpack.c.l.b16 %v1754
    %v1763 = vunpack.c.l.b16 %v1755
    %v1764 = vunpack.c.l.b16 %v1756
    %v1765 = vunpack.c.l.b16 %v1757
    %v1766 = vrot.slane %v1758, 6
    %v1767 = vrot.slane %v1759, 5
    %v1768 = vsel %vm368, %v1767, %v1766
    %v1769 = vrot.slane %v1760, 4
    %v1770 = vsel %vm371, %v1769, %v1768
    %v1771 = vrot.slane %v1761, 3
    %v1772 = vsel %vm374, %v1771, %v1770
    %v1773 = vrot.slane %v1762, 2
    %v1774 = vsel %vm377, %v1773, %v1772
    %v1775 = vrot.slane %v1763, 1
    %v1776 = vsel %vm380, %v1775, %v1774
    %v1777 = vsel %vm383, %v1764, %v1776
    %v1778 = vrot.slane %v1765, 7
    %v1779 = vsel %vm386, %v1778, %v1777
    %v1780 = vpack.c.b16 %v1779, %v1779
    %v1782 = vsel %vm409, %v1780, 0
    %1784 = vmatprep.subr.bf16.mxu0 %v402
    %1785 = vmatpush1.bf16.msra.mxu0 %v401
    %1786 = vmatprep.subr.bf16.mxu0 0
    %1787 = vmatpush1.bf16.msra.mxu0 0
    %1788 = vmatprep.subr.bf16.mxu0 0
    %1789 = vmatpush1.bf16.msra.mxu0 0
    %1790 = vmatprep.subr.bf16.mxu0 0
    %1791 = vmatpush1.bf16.msra.mxu0 0
    %1792 = vmatprep.subr.bf16.mxu0 0
    %1793 = vmatpush1.bf16.msra.mxu0 0
    %1794 = vmatprep.subr.bf16.mxu0 0
    %1795 = vmatpush1.bf16.msra.mxu0 0
    %1796 = vmatprep.subr.bf16.mxu0 0
    %1797 = vmatpush1.bf16.msra.mxu0 0
    %1798 = vmatprep.subr.bf16.mxu0 0
    %1799 = vmatpush1.bf16.msra.mxu0 0
    %1800 = vmatprep.subr.bf16.mxu0 0
    %1801 = vmatpush1.bf16.msra.mxu0 0
    %1802 = vmatprep.subr.bf16.mxu0 0
    %1803 = vmatpush1.bf16.msra.mxu0 0
    %1804 = vmatprep.subr.bf16.mxu0 0
    %1805 = vmatpush1.bf16.msra.mxu0 0
    %1806 = vmatprep.subr.bf16.mxu0 0
    %1807 = vmatpush1.bf16.msra.mxu0 0
    %1808 = vmatprep.subr.bf16.mxu0 0
    %1809 = vmatpush1.bf16.msra.mxu0 0
    %1810 = vmatprep.subr.bf16.mxu0 0
    %1811 = vmatpush1.bf16.msra.mxu0 0
    %1812 = vmatprep.subr.bf16.mxu0 0
    %1813 = vmatpush1.bf16.msra.mxu0 0
    %1814 = vmatprep.subr.bf16.mxu0 0
    %1815 = vmatpush1.bf16.msra.mxu0 0
    %1816 = vmatprep.mubr.bf16.mxu0 0
    %1817 = vmatmul.mubr.bf16.gmra.mrb[0].mxu0 %v1782
    %v1818 = vpop.f32.mrb[0].mxu0
    %v1819 = vadd.f32 %v1687, %v1818
    %v1820 = vpop.f32.mrb[0].mxu0
    %v1821 = vadd.f32 %v1689, %v1820
    %v1822 = vpop.f32.mrb[0].mxu0
    %v1823 = vpop.f32.mrb[0].mxu0
    %1824 = vdwg.mxu0
    %1825 = vmatprep.subr.bf16.mxu0 %v404
    %1826 = vmatpush1.bf16.msra.mxu0 %v403
    %1827 = vmatprep.subr.bf16.mxu0 0
    %1828 = vmatpush1.bf16.msra.mxu0 0
    %1829 = vmatprep.subr.bf16.mxu0 0
    %1830 = vmatpush1.bf16.msra.mxu0 0
    %1831 = vmatprep.subr.bf16.mxu0 0
    %1832 = vmatpush1.bf16.msra.mxu0 0
    %1833 = vmatprep.subr.bf16.mxu0 0
    %1834 = vmatpush1.bf16.msra.mxu0 0
    %1835 = vmatprep.subr.bf16.mxu0 0
    %1836 = vmatpush1.bf16.msra.mxu0 0
    %1837 = vmatprep.subr.bf16.mxu0 0
    %1838 = vmatpush1.bf16.msra.mxu0 0
    %1839 = vmatprep.subr.bf16.mxu0 0
    %1840 = vmatpush1.bf16.msra.mxu0 0
    %1841 = vmatprep.subr.bf16.mxu0 0
    %1842 = vmatpush1.bf16.msra.mxu0 0
    %1843 = vmatprep.subr.bf16.mxu0 0
    %1844 = vmatpush1.bf16.msra.mxu0 0
    %1845 = vmatprep.subr.bf16.mxu0 0
    %1846 = vmatpush1.bf16.msra.mxu0 0
    %1847 = vmatprep.subr.bf16.mxu0 0
    %1848 = vmatpush1.bf16.msra.mxu0 0
    %1849 = vmatprep.subr.bf16.mxu0 0
    %1850 = vmatpush1.bf16.msra.mxu0 0
    %1851 = vmatprep.subr.bf16.mxu0 0
    %1852 = vmatpush1.bf16.msra.mxu0 0
    %1853 = vmatprep.subr.bf16.mxu0 0
    %1854 = vmatpush1.bf16.msra.mxu0 0
    %1855 = vmatprep.subr.bf16.mxu0 0
    %1856 = vmatpush1.bf16.msra.mxu0 0
    %1857 = vmatprep.mubr.bf16.mxu0 0
    %1858 = vmatmul.mubr.bf16.gmra.mrb[0].mxu0 %v1782
    %v1859 = vpop.f32.mrb[0].mxu0
    %v1860 = vadd.f32 %v1728, %v1859
    %v1861 = vpop.f32.mrb[0].mxu0
    %v1862 = vadd.f32 %v1730, %v1861
    %v1863 = vpop.f32.mrb[0].mxu0
    %v1864 = vpop.f32.mrb[0].mxu0
    %1865 = vdwg.mxu0
    %v1866 = vadd.f32 %v1819, %v499
    %v1867 = vadd.f32 %v1821, %v503
    %v1868 = vadd.f32 %v1860, %v507
    %v1869 = vadd.f32 %v1862, %v511
    %v1870 = vmul.f32 %v1866, 0.5
    %v1871 = vtanh.pop %v1870
    %v1872 = vmul.f32 %v1871, 0.5
    %v1873 = vadd.f32 %v1872, 0.5
    %v1874 = vmul.f32 %v1867, 0.5
    %v1875 = vtanh.pop %v1874
    %v1876 = vmul.f32 %v1875, 0.5
    %v1877 = vadd.f32 %v1876, 0.5
    %v1878 = vtanh.pop %v1868
    %v1879 = vmul.f32 %v1869, 0.5
    %v1880 = vtanh.pop %v1879
    %v1881 = vmul.f32 %v1880, 0.5
    %v1882 = vadd.f32 %v1881, 0.5
    %v1883 = vmul.f32 %v1877, %v1640
    %v1884 = vmul.f32 %v1873, %v1878
    %v1885 = vadd.f32 %v1883, %v1884
    %v1886 = vtanh.pop %v1885
    %v1887 = vmul.f32 %v1882, %v1886
    %v1888 = vpack.c.bf16 %v1887, %v1887
    %1889 = vmatprep.subr.bf16.mxu0 %v190
    %1890 = vmatpush1.bf16.msra.mxu0 %v189
    %1891 = vmatprep.subr.bf16.mxu0 %v194
    %1892 = vmatpush1.bf16.msra.mxu0 %v193
    %1893 = vmatprep.subr.bf16.mxu0 %v198
    %1894 = vmatpush1.bf16.msra.mxu0 %v197
    %1895 = vmatprep.subr.bf16.mxu0 %v202
    %1896 = vmatpush1.bf16.msra.mxu0 %v201
    %1897 = vmatprep.subr.bf16.mxu0 %v206
    %1898 = vmatpush1.bf16.msra.mxu0 %v205
    %1899 = vmatprep.subr.bf16.mxu0 %v210
    %1900 = vmatpush1.bf16.msra.mxu0 %v209
    %1901 = vmatprep.subr.bf16.mxu0 %v214
    %1902 = vmatpush1.bf16.msra.mxu0 %v213
    %1903 = vmatprep.subr.bf16.mxu0 %v218
    %1904 = vmatpush1.bf16.msra.mxu0 %v217
    %1905 = vmatprep.subr.bf16.mxu0 0
    %1906 = vmatpush1.bf16.msra.mxu0 0
    %1907 = vmatprep.subr.bf16.mxu0 0
    %1908 = vmatpush1.bf16.msra.mxu0 0
    %1909 = vmatprep.subr.bf16.mxu0 0
    %1910 = vmatpush1.bf16.msra.mxu0 0
    %1911 = vmatprep.subr.bf16.mxu0 0
    %1912 = vmatpush1.bf16.msra.mxu0 0
    %1913 = vmatprep.subr.bf16.mxu0 0
    %1914 = vmatpush1.bf16.msra.mxu0 0
    %1915 = vmatprep.subr.bf16.mxu0 0
    %1916 = vmatpush1.bf16.msra.mxu0 0
    %1917 = vmatprep.subr.bf16.mxu0 0
    %1918 = vmatpush1.bf16.msra.mxu0 0
    %1919 = vmatprep.subr.bf16.mxu0 0
    %1920 = vmatpush1.bf16.msra.mxu0 0
    %1921 = vmatprep.mubr.bf16.mxu0 0
    %1922 = vmatmul.mubr.bf16.gmra.mrb[0].mxu0 %v1888
    %v1923 = vpop.f32.mrb[0].mxu0
    %v1924 = vadd.f32 0.0, %v1923
    %v1925 = vpop.f32.mrb[0].mxu0
    %v1926 = vadd.f32 0.0, %v1925
    %v1927 = vpop.f32.mrb[0].mxu0
    %v1928 = vpop.f32.mrb[0].mxu0
    %1929 = vdwg.mxu0
    %1930 = vmatprep.subr.bf16.mxu0 %v192
    %1931 = vmatpush1.bf16.msra.mxu0 %v191
    %1932 = vmatprep.subr.bf16.mxu0 %v196
    %1933 = vmatpush1.bf16.msra.mxu0 %v195
    %1934 = vmatprep.subr.bf16.mxu0 %v200
    %1935 = vmatpush1.bf16.msra.mxu0 %v199
    %1936 = vmatprep.subr.bf16.mxu0 %v204
    %1937 = vmatpush1.bf16.msra.mxu0 %v203
    %1938 = vmatprep.subr.bf16.mxu0 %v208
    %1939 = vmatpush1.bf16.msra.mxu0 %v207
    %1940 = vmatprep.subr.bf16.mxu0 %v212
    %1941 = vmatpush1.bf16.msra.mxu0 %v211
    %1942 = vmatprep.subr.bf16.mxu0 %v216
    %1943 = vmatpush1.bf16.msra.mxu0 %v215
    %1944 = vmatprep.subr.bf16.mxu0 %v220
    %1945 = vmatpush1.bf16.msra.mxu0 %v219
    %1946 = vmatprep.subr.bf16.mxu0 0
    %1947 = vmatpush1.bf16.msra.mxu0 0
    %1948 = vmatprep.subr.bf16.mxu0 0
    %1949 = vmatpush1.bf16.msra.mxu0 0
    %1950 = vmatprep.subr.bf16.mxu0 0
    %1951 = vmatpush1.bf16.msra.mxu0 0
    %1952 = vmatprep.subr.bf16.mxu0 0
    %1953 = vmatpush1.bf16.msra.mxu0 0
    %1954 = vmatprep.subr.bf16.mxu0 0
    %1955 = vmatpush1.bf16.msra.mxu0 0
    %1956 = vmatprep.subr.bf16.mxu0 0
    %1957 = vmatpush1.bf16.msra.mxu0 0
    %1958 = vmatprep.subr.bf16.mxu0 0
    %1959 = vmatpush1.bf16.msra.mxu0 0
    %1960 = vmatprep.subr.bf16.mxu0 0
    %1961 = vmatpush1.bf16.msra.mxu0 0
    %1962 = vmatprep.mubr.bf16.mxu0 0
    %1963 = vmatmul.mubr.bf16.gmra.mrb[0].mxu0 %v1888
    %v1964 = vpop.f32.mrb[0].mxu0
    %v1965 = vadd.f32 0.0, %v1964
    %v1966 = vpop.f32.mrb[0].mxu0
    %v1967 = vadd.f32 0.0, %v1966
    %v1968 = vpop.f32.mrb[0].mxu0
    %v1969 = vpop.f32.mrb[0].mxu0
    %1970 = vdwg.mxu0
    %v1971 = vrot.slane %v1758, 7
    %v1972 = vrot.slane %v1759, 6
    %v1973 = vsel %vm368, %v1972, %v1971
    %v1974 = vrot.slane %v1760, 5
    %v1975 = vsel %vm371, %v1974, %v1973
    %v1976 = vrot.slane %v1761, 4
    %v1977 = vsel %vm374, %v1976, %v1975
    %v1978 = vrot.slane %v1762, 3
    %v1979 = vsel %vm377, %v1978, %v1977
    %v1980 = vrot.slane %v1763, 2
    %v1981 = vsel %vm380, %v1980, %v1979
    %v1982 = vrot.slane %v1764, 1
    %v1983 = vsel %vm383, %v1982, %v1981
    %v1984 = vsel %vm386, %v1765, %v1983
    %v1985 = vpack.c.b16 %v1984, %v1984
    %v1987 = vsel %vm409, %v1985, 0
    %1989 = vmatprep.subr.bf16.mxu0 %v402
    %1990 = vmatpush1.bf16.msra.mxu0 %v401
    %1991 = vmatprep.subr.bf16.mxu0 0
    %1992 = vmatpush1.bf16.msra.mxu0 0
    %1993 = vmatprep.subr.bf16.mxu0 0
    %1994 = vmatpush1.bf16.msra.mxu0 0
    %1995 = vmatprep.subr.bf16.mxu0 0
    %1996 = vmatpush1.bf16.msra.mxu0 0
    %1997 = vmatprep.subr.bf16.mxu0 0
    %1998 = vmatpush1.bf16.msra.mxu0 0
    %1999 = vmatprep.subr.bf16.mxu0 0
    %2000 = vmatpush1.bf16.msra.mxu0 0
    %2001 = vmatprep.subr.bf16.mxu0 0
    %2002 = vmatpush1.bf16.msra.mxu0 0
    %2003 = vmatprep.subr.bf16.mxu0 0
    %2004 = vmatpush1.bf16.msra.mxu0 0
    %2005 = vmatprep.subr.bf16.mxu0 0
    %2006 = vmatpush1.bf16.msra.mxu0 0
    %2007 = vmatprep.subr.bf16.mxu0 0
    %2008 = vmatpush1.bf16.msra.mxu0 0
    %2009 = vmatprep.subr.bf16.mxu0 0
    %2010 = vmatpush1.bf16.msra.mxu0 0
    %2011 = vmatprep.subr.bf16.mxu0 0
    %2012 = vmatpush1.bf16.msra.mxu0 0
    %2013 = vmatprep.subr.bf16.mxu0 0
    %2014 = vmatpush1.bf16.msra.mxu0 0
    %2015 = vmatprep.subr.bf16.mxu0 0
    %2016 = vmatpush1.bf16.msra.mxu0 0
    %2017 = vmatprep.subr.bf16.mxu0 0
    %2018 = vmatpush1.bf16.msra.mxu0 0
    %2019 = vmatprep.subr.bf16.mxu0 0
    %2020 = vmatpush1.bf16.msra.mxu0 0
    %2021 = vmatprep.mubr.bf16.mxu0 0
    %2022 = vmatmul.mubr.bf16.gmra.mrb[0].mxu0 %v1987
    %v2023 = vpop.f32.mrb[0].mxu0
    %v2024 = vadd.f32 %v1924, %v2023
    %v2025 = vpop.f32.mrb[0].mxu0
    %v2026 = vadd.f32 %v1926, %v2025
    %v2027 = vpop.f32.mrb[0].mxu0
    %v2028 = vpop.f32.mrb[0].mxu0
    %2029 = vdwg.mxu0
    %2030 = vmatprep.subr.bf16.mxu0 %v404
    %2031 = vmatpush1.bf16.msra.mxu0 %v403
    %2032 = vmatprep.subr.bf16.mxu0 0
    %2033 = vmatpush1.bf16.msra.mxu0 0
    %2034 = vmatprep.subr.bf16.mxu0 0
    %2035 = vmatpush1.bf16.msra.mxu0 0
    %2036 = vmatprep.subr.bf16.mxu0 0
    %2037 = vmatpush1.bf16.msra.mxu0 0
    %2038 = vmatprep.subr.bf16.mxu0 0
    %2039 = vmatpush1.bf16.msra.mxu0 0
    %2040 = vmatprep.subr.bf16.mxu0 0
    %2041 = vmatpush1.bf16.msra.mxu0 0
    %2042 = vmatprep.subr.bf16.mxu0 0
    %2043 = vmatpush1.bf16.msra.mxu0 0
    %2044 = vmatprep.subr.bf16.mxu0 0
    %2045 = vmatpush1.bf16.msra.mxu0 0
    %2046 = vmatprep.subr.bf16.mxu0 0
    %2047 = vmatpush1.bf16.msra.mxu0 0
    %2048 = vmatprep.subr.bf16.mxu0 0
    %2049 = vmatpush1.bf16.msra.mxu0 0
    %2050 = vmatprep.subr.bf16.mxu0 0
    %2051 = vmatpush1.bf16.msra.mxu0 0
    %2052 = vmatprep.subr.bf16.mxu0 0
    %2053 = vmatpush1.bf16.msra.mxu0 0
    %2054 = vmatprep.subr.bf16.mxu0 0
    %2055 = vmatpush1.bf16.msra.mxu0 0
    %2056 = vmatprep.subr.bf16.mxu0 0
    %2057 = vmatpush1.bf16.msra.mxu0 0
    %2058 = vmatprep.subr.bf16.mxu0 0
    %2059 = vmatpush1.bf16.msra.mxu0 0
    %2060 = vmatprep.subr.bf16.mxu0 0
    %2061 = vmatpush1.bf16.msra.mxu0 0
    %2062 = vmatprep.mubr.bf16.mxu0 0
    %2063 = vmatmul.mubr.bf16.gmra.mrb[0].mxu0 %v1987
    %v2064 = vpop.f32.mrb[0].mxu0
    %v2065 = vadd.f32 %v1965, %v2064
    %v2066 = vpop.f32.mrb[0].mxu0
    %v2067 = vadd.f32 %v1967, %v2066
    %v2068 = vpop.f32.mrb[0].mxu0
    %v2069 = vpop.f32.mrb[0].mxu0
    %2070 = vdwg.mxu0
    %v2071 = vadd.f32 %v2024, %v499
    %v2072 = vadd.f32 %v2026, %v503
    %v2073 = vadd.f32 %v2065, %v507
    %v2074 = vadd.f32 %v2067, %v511
    %v2075 = vmul.f32 %v2071, 0.5
    %v2076 = vtanh.pop %v2075
    %v2077 = vmul.f32 %v2076, 0.5
    %v2078 = vadd.f32 %v2077, 0.5
    %v2079 = vmul.f32 %v2072, 0.5
    %v2080 = vtanh.pop %v2079
    %v2081 = vmul.f32 %v2080, 0.5
    %v2082 = vadd.f32 %v2081, 0.5
    %v2083 = vtanh.pop %v2073
    %v2084 = vmul.f32 %v2074, 0.5
    %v2085 = vtanh.pop %v2084
    %v2086 = vmul.f32 %v2085, 0.5
    %v2087 = vadd.f32 %v2086, 0.5
    %v2088 = vmul.f32 %v2082, %v1885
    %v2089 = vmul.f32 %v2078, %v2083
    %v2090 = vadd.f32 %v2088, %v2089
    %v2091 = vtanh.pop %v2090
    %v2092 = vmul.f32 %v2087, %v2091
    %v2093 = vld [vmem:[%s0 + $0x4] sm:$0x1]
    %v2094 = vld [vmem:[%s0 + $0xc] sm:$0x1]
    %v2095 = vld [vmem:[%s0 + $0x14] sm:$0x1]
    %v2096 = vld [vmem:[%s0 + $0x1c] sm:$0x1]
    %v2097 = vld [vmem:[%s0 + $0x24] sm:$0x1]
    %v2098 = vld [vmem:[%s0 + $0x2c] sm:$0x1]
    %v2099 = vld [vmem:[%s0 + $0x34] sm:$0x1]
    %v2100 = vld [vmem:[%s0 + $0x3c] sm:$0x1]
    %v2101 = vpack.c.bf16 %v2092, %v2092
    %2102 = vmatprep.subr.bf16.mxu0 %v190
    %2103 = vmatpush1.bf16.msra.mxu0 %v189
    %2104 = vmatprep.subr.bf16.mxu0 %v194
    %2105 = vmatpush1.bf16.msra.mxu0 %v193
    %2106 = vmatprep.subr.bf16.mxu0 %v198
    %2107 = vmatpush1.bf16.msra.mxu0 %v197
    %2108 = vmatprep.subr.bf16.mxu0 %v202
    %2109 = vmatpush1.bf16.msra.mxu0 %v201
    %2110 = vmatprep.subr.bf16.mxu0 %v206
    %2111 = vmatpush1.bf16.msra.mxu0 %v205
    %2112 = vmatprep.subr.bf16.mxu0 %v210
    %2113 = vmatpush1.bf16.msra.mxu0 %v209
    %2114 = vmatprep.subr.bf16.mxu0 %v214
    %2115 = vmatpush1.bf16.msra.mxu0 %v213
    %2116 = vmatprep.subr.bf16.mxu0 %v218
    %2117 = vmatpush1.bf16.msra.mxu0 %v217
    %2118 = vmatprep.subr.bf16.mxu0 0
    %2119 = vmatpush1.bf16.msra.mxu0 0
    %2120 = vmatprep.subr.bf16.mxu0 0
    %2121 = vmatpush1.bf16.msra.mxu0 0
    %2122 = vmatprep.subr.bf16.mxu0 0
    %2123 = vmatpush1.bf16.msra.mxu0 0
    %2124 = vmatprep.subr.bf16.mxu0 0
    %2125 = vmatpush1.bf16.msra.mxu0 0
    %2126 = vmatprep.subr.bf16.mxu0 0
    %2127 = vmatpush1.bf16.msra.mxu0 0
    %2128 = vmatprep.subr.bf16.mxu0 0
    %2129 = vmatpush1.bf16.msra.mxu0 0
    %2130 = vmatprep.subr.bf16.mxu0 0
    %2131 = vmatpush1.bf16.msra.mxu0 0
    %2132 = vmatprep.subr.bf16.mxu0 0
    %2133 = vmatpush1.bf16.msra.mxu0 0
    %2134 = vmatprep.mubr.bf16.mxu0 0
    %2135 = vmatmul.mubr.bf16.gmra.mrb[0].mxu0 %v2101
    %v2136 = vpop.f32.mrb[0].mxu0
    %v2137 = vadd.f32 0.0, %v2136
    %v2138 = vpop.f32.mrb[0].mxu0
    %v2139 = vadd.f32 0.0, %v2138
    %v2140 = vpop.f32.mrb[0].mxu0
    %v2141 = vpop.f32.mrb[0].mxu0
    %2142 = vdwg.mxu0
    %2143 = vmatprep.subr.bf16.mxu0 %v192
    %2144 = vmatpush1.bf16.msra.mxu0 %v191
    %2145 = vmatprep.subr.bf16.mxu0 %v196
    %2146 = vmatpush1.bf16.msra.mxu0 %v195
    %2147 = vmatprep.subr.bf16.mxu0 %v200
    %2148 = vmatpush1.bf16.msra.mxu0 %v199
    %2149 = vmatprep.subr.bf16.mxu0 %v204
    %2150 = vmatpush1.bf16.msra.mxu0 %v203
    %2151 = vmatprep.subr.bf16.mxu0 %v208
    %2152 = vmatpush1.bf16.msra.mxu0 %v207
    %2153 = vmatprep.subr.bf16.mxu0 %v212
    %2154 = vmatpush1.bf16.msra.mxu0 %v211
    %2155 = vmatprep.subr.bf16.mxu0 %v216
    %2156 = vmatpush1.bf16.msra.mxu0 %v215
    %2157 = vmatprep.subr.bf16.mxu0 %v220
    %2158 = vmatpush1.bf16.msra.mxu0 %v219
    %2159 = vmatprep.subr.bf16.mxu0 0
    %2160 = vmatpush1.bf16.msra.mxu0 0
    %2161 = vmatprep.subr.bf16.mxu0 0
    %2162 = vmatpush1.bf16.msra.mxu0 0
    %2163 = vmatprep.subr.bf16.mxu0 0
    %2164 = vmatpush1.bf16.msra.mxu0 0
    %2165 = vmatprep.subr.bf16.mxu0 0
    %2166 = vmatpush1.bf16.msra.mxu0 0
    %2167 = vmatprep.subr.bf16.mxu0 0
    %2168 = vmatpush1.bf16.msra.mxu0 0
    %2169 = vmatprep.subr.bf16.mxu0 0
    %2170 = vmatpush1.bf16.msra.mxu0 0
    %2171 = vmatprep.subr.bf16.mxu0 0
    %2172 = vmatpush1.bf16.msra.mxu0 0
    %2173 = vmatprep.subr.bf16.mxu0 0
    %2174 = vmatpush1.bf16.msra.mxu0 0
    %2175 = vmatprep.mubr.bf16.mxu0 0
    %2176 = vmatmul.mubr.bf16.gmra.mrb[0].mxu0 %v2101
    %v2177 = vpop.f32.mrb[0].mxu0
    %v2178 = vadd.f32 0.0, %v2177
    %v2179 = vpop.f32.mrb[0].mxu0
    %v2180 = vadd.f32 0.0, %v2179
    %v2181 = vpop.f32.mrb[0].mxu0
    %v2182 = vpop.f32.mrb[0].mxu0
    %2183 = vdwg.mxu0
    %v2192 = vunpack.c.l.b16 %v2093
    %v2193 = vunpack.c.l.b16 %v2094
    %v2194 = vunpack.c.l.b16 %v2095
    %v2195 = vunpack.c.l.b16 %v2096
    %v2196 = vunpack.c.l.b16 %v2097
    %v2197 = vunpack.c.l.b16 %v2098
    %v2198 = vunpack.c.l.b16 %v2099
    %v2199 = vunpack.c.l.b16 %v2100
    %v2200 = vpack.c.b16 %v2192, %v2192
    %v2201 = vpack.c.b16 %v2193, %v2193
    %v2202 = vpack.c.b16 %v2194, %v2194
    %v2203 = vpack.c.b16 %v2195, %v2195
    %v2204 = vpack.c.b16 %v2196, %v2196
    %v2205 = vpack.c.b16 %v2197, %v2197
    %v2206 = vpack.c.b16 %v2198, %v2198
    %v2207 = vpack.c.b16 %v2199, %v2199
    %v2208 = vunpack.c.l.b16 %v2200
    %v2209 = vunpack.c.l.b16 %v2201
    %v2210 = vunpack.c.l.b16 %v2202
    %v2211 = vunpack.c.l.b16 %v2203
    %v2212 = vunpack.c.l.b16 %v2204
    %v2213 = vunpack.c.l.b16 %v2205
    %v2214 = vunpack.c.l.b16 %v2206
    %v2215 = vunpack.c.l.b16 %v2207
    %v2216 = vrot.slane %v2209, 7
    %v2217 = vsel %vm368, %v2216, %v2208
    %v2218 = vrot.slane %v2210, 6
    %v2219 = vsel %vm371, %v2218, %v2217
    %v2220 = vrot.slane %v2211, 5
    %v2221 = vsel %vm374, %v2220, %v2219
    %v2222 = vrot.slane %v2212, 4
    %v2223 = vsel %vm377, %v2222, %v2221
    %v2224 = vrot.slane %v2213, 3
    %v2225 = vsel %vm380, %v2224, %v2223
    %v2226 = vrot.slane %v2214, 2
    %v2227 = vsel %vm383, %v2226, %v2225
    %v2228 = vrot.slane %v2215, 1
    %v2229 = vsel %vm386, %v2228, %v2227
    %v2230 = vpack.c.b16 %v2229, %v2229
    %v2232 = vsel %vm409, %v2230, 0
    %2234 = vmatprep.subr.bf16.mxu0 %v402
    %2235 = vmatpush1.bf16.msra.mxu0 %v401
    %2236 = vmatprep.subr.bf16.mxu0 0
    %2237 = vmatpush1.bf16.msra.mxu0 0
    %2238 = vmatprep.subr.bf16.mxu0 0
    %2239 = vmatpush1.bf16.msra.mxu0 0
    %2240 = vmatprep.subr.bf16.mxu0 0
    %2241 = vmatpush1.bf16.msra.mxu0 0
    %2242 = vmatprep.subr.bf16.mxu0 0
    %2243 = vmatpush1.bf16.msra.mxu0 0
    %2244 = vmatprep.subr.bf16.mxu0 0
    %2245 = vmatpush1.bf16.msra.mxu0 0
    %2246 = vmatprep.subr.bf16.mxu0 0
    %2247 = vmatpush1.bf16.msra.mxu0 0
    %2248 = vmatprep.subr.bf16.mxu0 0
    %2249 = vmatpush1.bf16.msra.mxu0 0
    %2250 = vmatprep.subr.bf16.mxu0 0
    %2251 = vmatpush1.bf16.msra.mxu0 0
    %2252 = vmatprep.subr.bf16.mxu0 0
    %2253 = vmatpush1.bf16.msra.mxu0 0
    %2254 = vmatprep.subr.bf16.mxu0 0
    %2255 = vmatpush1.bf16.msra.mxu0 0
    %2256 = vmatprep.subr.bf16.mxu0 0
    %2257 = vmatpush1.bf16.msra.mxu0 0
    %2258 = vmatprep.subr.bf16.mxu0 0
    %2259 = vmatpush1.bf16.msra.mxu0 0
    %2260 = vmatprep.subr.bf16.mxu0 0
    %2261 = vmatpush1.bf16.msra.mxu0 0
    %2262 = vmatprep.subr.bf16.mxu0 0
    %2263 = vmatpush1.bf16.msra.mxu0 0
    %2264 = vmatprep.subr.bf16.mxu0 0
    %2265 = vmatpush1.bf16.msra.mxu0 0
    %2266 = vmatprep.mubr.bf16.mxu0 0
    %2267 = vmatmul.mubr.bf16.gmra.mrb[0].mxu0 %v2232
    %v2268 = vpop.f32.mrb[0].mxu0
    %v2269 = vadd.f32 %v2137, %v2268
    %v2270 = vpop.f32.mrb[0].mxu0
    %v2271 = vadd.f32 %v2139, %v2270
    %v2272 = vpop.f32.mrb[0].mxu0
    %v2273 = vpop.f32.mrb[0].mxu0
    %2274 = vdwg.mxu0
    %2275 = vmatprep.subr.bf16.mxu0 %v404
    %2276 = vmatpush1.bf16.msra.mxu0 %v403
    %2277 = vmatprep.subr.bf16.mxu0 0
    %2278 = vmatpush1.bf16.msra.mxu0 0
    %2279 = vmatprep.subr.bf16.mxu0 0
    %2280 = vmatpush1.bf16.msra.mxu0 0
    %2281 = vmatprep.subr.bf16.mxu0 0
    %2282 = vmatpush1.bf16.msra.mxu0 0
    %2283 = vmatprep.subr.bf16.mxu0 0
    %2284 = vmatpush1.bf16.msra.mxu0 0
    %2285 = vmatprep.subr.bf16.mxu0 0
    %2286 = vmatpush1.bf16.msra.mxu0 0
    %2287 = vmatprep.subr.bf16.mxu0 0
    %2288 = vmatpush1.bf16.msra.mxu0 0
    %2289 = vmatprep.subr.bf16.mxu0 0
    %2290 = vmatpush1.bf16.msra.mxu0 0
    %2291 = vmatprep.subr.bf16.mxu0 0
    %2292 = vmatpush1.bf16.msra.mxu0 0
    %2293 = vmatprep.subr.bf16.mxu0 0
    %2294 = vmatpush1.bf16.msra.mxu0 0
    %2295 = vmatprep.subr.bf16.mxu0 0
    %2296 = vmatpush1.bf16.msra.mxu0 0
    %2297 = vmatprep.subr.bf16.mxu0 0
    %2298 = vmatpush1.bf16.msra.mxu0 0
    %2299 = vmatprep.subr.bf16.mxu0 0
    %2300 = vmatpush1.bf16.msra.mxu0 0
    %2301 = vmatprep.subr.bf16.mxu0 0
    %2302 = vmatpush1.bf16.msra.mxu0 0
    %2303 = vmatprep.subr.bf16.mxu0 0
    %2304 = vmatpush1.bf16.msra.mxu0 0
    %2305 = vmatprep.subr.bf16.mxu0 0
    %2306 = vmatpush1.bf16.msra.mxu0 0
    %2307 = vmatprep.mubr.bf16.mxu0 0
    %2308 = vmatmul.mubr.bf16.gmra.mrb[0].mxu0 %v2232
    %v2309 = vpop.f32.mrb[0].mxu0
    %v2310 = vadd.f32 %v2178, %v2309
    %v2311 = vpop.f32.mrb[0].mxu0
    %v2312 = vadd.f32 %v2180, %v2311
    %v2313 = vpop.f32.mrb[0].mxu0
    %v2314 = vpop.f32.mrb[0].mxu0
    %2315 = vdwg.mxu0
    %v2316 = vadd.f32 %v2269, %v499
    %v2317 = vadd.f32 %v2271, %v503
    %v2318 = vadd.f32 %v2310, %v507
    %v2319 = vadd.f32 %v2312, %v511
    %v2320 = vmul.f32 %v2316, 0.5
    %v2321 = vtanh.pop %v2320
    %v2322 = vmul.f32 %v2321, 0.5
    %v2323 = vadd.f32 %v2322, 0.5
    %v2324 = vmul.f32 %v2317, 0.5
    %v2325 = vtanh.pop %v2324
    %v2326 = vmul.f32 %v2325, 0.5
    %v2327 = vadd.f32 %v2326, 0.5
    %v2328 = vtanh.pop %v2318
    %v2329 = vmul.f32 %v2319, 0.5
    %v2330 = vtanh.pop %v2329
    %v2331 = vmul.f32 %v2330, 0.5
    %v2332 = vadd.f32 %v2331, 0.5
    %v2333 = vmul.f32 %v2327, %v2090
    %v2334 = vmul.f32 %v2323, %v2328
    %v2335 = vadd.f32 %v2333, %v2334
    %v2336 = vtanh.pop %v2335
    %v2337 = vmul.f32 %v2332, %v2336
    %v2338 = vpack.c.bf16 %v2337, %v2337
    %2339 = vmatprep.subr.bf16.mxu0 %v190
    %2340 = vmatpush1.bf16.msra.mxu0 %v189
    %2341 = vmatprep.subr.bf16.mxu0 %v194
    %2342 = vmatpush1.bf16.msra.mxu0 %v193
    %2343 = vmatprep.subr.bf16.mxu0 %v198
    %2344 = vmatpush1.bf16.msra.mxu0 %v197
    %2345 = vmatprep.subr.bf16.mxu0 %v202
    %2346 = vmatpush1.bf16.msra.mxu0 %v201
    %2347 = vmatprep.subr.bf16.mxu0 %v206
    %2348 = vmatpush1.bf16.msra.mxu0 %v205
    %2349 = vmatprep.subr.bf16.mxu0 %v210
    %2350 = vmatpush1.bf16.msra.mxu0 %v209
    %2351 = vmatprep.subr.bf16.mxu0 %v214
    %2352 = vmatpush1.bf16.msra.mxu0 %v213
    %2353 = vmatprep.subr.bf16.mxu0 %v218
    %2354 = vmatpush1.bf16.msra.mxu0 %v217
    %2355 = vmatprep.subr.bf16.mxu0 0
    %2356 = vmatpush1.bf16.msra.mxu0 0
    %2357 = vmatprep.subr.bf16.mxu0 0
    %2358 = vmatpush1.bf16.msra.mxu0 0
    %2359 = vmatprep.subr.bf16.mxu0 0
    %2360 = vmatpush1.bf16.msra.mxu0 0
    %2361 = vmatprep.subr.bf16.mxu0 0
    %2362 = vmatpush1.bf16.msra.mxu0 0
    %2363 = vmatprep.subr.bf16.mxu0 0
    %2364 = vmatpush1.bf16.msra.mxu0 0
    %2365 = vmatprep.subr.bf16.mxu0 0
    %2366 = vmatpush1.bf16.msra.mxu0 0
    %2367 = vmatprep.subr.bf16.mxu0 0
    %2368 = vmatpush1.bf16.msra.mxu0 0
    %2369 = vmatprep.subr.bf16.mxu0 0
    %2370 = vmatpush1.bf16.msra.mxu0 0
    %2371 = vmatprep.mubr.bf16.mxu0 0
    %2372 = vmatmul.mubr.bf16.gmra.mrb[0].mxu0 %v2338
    %v2373 = vpop.f32.mrb[0].mxu0
    %v2374 = vadd.f32 0.0, %v2373
    %v2375 = vpop.f32.mrb[0].mxu0
    %v2376 = vadd.f32 0.0, %v2375
    %v2377 = vpop.f32.mrb[0].mxu0
    %v2378 = vpop.f32.mrb[0].mxu0
    %2379 = vdwg.mxu0
    %2380 = vmatprep.subr.bf16.mxu0 %v192
    %2381 = vmatpush1.bf16.msra.mxu0 %v191
    %2382 = vmatprep.subr.bf16.mxu0 %v196
    %2383 = vmatpush1.bf16.msra.mxu0 %v195
    %2384 = vmatprep.subr.bf16.mxu0 %v200
    %2385 = vmatpush1.bf16.msra.mxu0 %v199
    %2386 = vmatprep.subr.bf16.mxu0 %v204
    %2387 = vmatpush1.bf16.msra.mxu0 %v203
    %2388 = vmatprep.subr.bf16.mxu0 %v208
    %2389 = vmatpush1.bf16.msra.mxu0 %v207
    %2390 = vmatprep.subr.bf16.mxu0 %v212
    %2391 = vmatpush1.bf16.msra.mxu0 %v211
    %2392 = vmatprep.subr.bf16.mxu0 %v216
    %2393 = vmatpush1.bf16.msra.mxu0 %v215
    %2394 = vmatprep.subr.bf16.mxu0 %v220
    %2395 = vmatpush1.bf16.msra.mxu0 %v219
    %2396 = vmatprep.subr.bf16.mxu0 0
    %2397 = vmatpush1.bf16.msra.mxu0 0
    %2398 = vmatprep.subr.bf16.mxu0 0
    %2399 = vmatpush1.bf16.msra.mxu0 0
    %2400 = vmatprep.subr.bf16.mxu0 0
    %2401 = vmatpush1.bf16.msra.mxu0 0
    %2402 = vmatprep.subr.bf16.mxu0 0
    %2403 = vmatpush1.bf16.msra.mxu0 0
    %2404 = vmatprep.subr.bf16.mxu0 0
    %2405 = vmatpush1.bf16.msra.mxu0 0
    %2406 = vmatprep.subr.bf16.mxu0 0
    %2407 = vmatpush1.bf16.msra.mxu0 0
    %2408 = vmatprep.subr.bf16.mxu0 0
    %2409 = vmatpush1.bf16.msra.mxu0 0
    %2410 = vmatprep.subr.bf16.mxu0 0
    %2411 = vmatpush1.bf16.msra.mxu0 0
    %2412 = vmatprep.mubr.bf16.mxu0 0
    %2413 = vmatmul.mubr.bf16.gmra.mrb[0].mxu0 %v2338
    %v2414 = vpop.f32.mrb[0].mxu0
    %v2415 = vadd.f32 0.0, %v2414
    %v2416 = vpop.f32.mrb[0].mxu0
    %v2417 = vadd.f32 0.0, %v2416
    %v2418 = vpop.f32.mrb[0].mxu0
    %v2419 = vpop.f32.mrb[0].mxu0
    %2420 = vdwg.mxu0
    %v2421 = vrot.slane %v2208, 1
    %v2422 = vsel %vm368, %v2209, %v2421
    %v2423 = vrot.slane %v2210, 7
    %v2424 = vsel %vm371, %v2423, %v2422
    %v2425 = vrot.slane %v2211, 6
    %v2426 = vsel %vm374, %v2425, %v2424
    %v2427 = vrot.slane %v2212, 5
    %v2428 = vsel %vm377, %v2427, %v2426
    %v2429 = vrot.slane %v2213, 4
    %v2430 = vsel %vm380, %v2429, %v2428
    %v2431 = vrot.slane %v2214, 3
    %v2432 = vsel %vm383, %v2431, %v2430
    %v2433 = vrot.slane %v2215, 2
    %v2434 = vsel %vm386, %v2433, %v2432
    %v2435 = vpack.c.b16 %v2434, %v2434
    %v2437 = vsel %vm409, %v2435, 0
    %2439 = vmatprep.subr.bf16.mxu0 %v402
    %2440 = vmatpush1.bf16.msra.mxu0 %v401
    %2441 = vmatprep.subr.bf16.mxu0 0
    %2442 = vmatpush1.bf16.msra.mxu0 0
    %2443 = vmatprep.subr.bf16.mxu0 0
    %2444 = vmatpush1.bf16.msra.mxu0 0
    %2445 = vmatprep.subr.bf16.mxu0 0
    %2446 = vmatpush1.bf16.msra.mxu0 0
    %2447 = vmatprep.subr.bf16.mxu0 0
    %2448 = vmatpush1.bf16.msra.mxu0 0
    %2449 = vmatprep.subr.bf16.mxu0 0
    %2450 = vmatpush1.bf16.msra.mxu0 0
    %2451 = vmatprep.subr.bf16.mxu0 0
    %2452 = vmatpush1.bf16.msra.mxu0 0
    %2453 = vmatprep.subr.bf16.mxu0 0
    %2454 = vmatpush1.bf16.msra.mxu0 0
    %2455 = vmatprep.subr.bf16.mxu0 0
    %2456 = vmatpush1.bf16.msra.mxu0 0
    %2457 = vmatprep.subr.bf16.mxu0 0
    %2458 = vmatpush1.bf16.msra.mxu0 0
    %2459 = vmatprep.subr.bf16.mxu0 0
    %2460 = vmatpush1.bf16.msra.mxu0 0
    %2461 = vmatprep.subr.bf16.mxu0 0
    %2462 = vmatpush1.bf16.msra.mxu0 0
    %2463 = vmatprep.subr.bf16.mxu0 0
    %2464 = vmatpush1.bf16.msra.mxu0 0
    %2465 = vmatprep.subr.bf16.mxu0 0
    %2466 = vmatpush1.bf16.msra.mxu0 0
    %2467 = vmatprep.subr.bf16.mxu0 0
    %2468 = vmatpush1.bf16.msra.mxu0 0
    %2469 = vmatprep.subr.bf16.mxu0 0
    %2470 = vmatpush1.bf16.msra.mxu0 0
    %2471 = vmatprep.mubr.bf16.mxu0 0
    %2472 = vmatmul.mubr.bf16.gmra.mrb[0].mxu0 %v2437
    %v2473 = vpop.f32.mrb[0].mxu0
    %v2474 = vadd.f32 %v2374, %v2473
    %v2475 = vpop.f32.mrb[0].mxu0
    %v2476 = vadd.f32 %v2376, %v2475
    %v2477 = vpop.f32.mrb[0].mxu0
    %v2478 = vpop.f32.mrb[0].mxu0
    %2479 = vdwg.mxu0
    %2480 = vmatprep.subr.bf16.mxu0 %v404
    %2481 = vmatpush1.bf16.msra.mxu0 %v403
    %2482 = vmatprep.subr.bf16.mxu0 0
    %2483 = vmatpush1.bf16.msra.mxu0 0
    %2484 = vmatprep.subr.bf16.mxu0 0
    %2485 = vmatpush1.bf16.msra.mxu0 0
    %2486 = vmatprep.subr.bf16.mxu0 0
    %2487 = vmatpush1.bf16.msra.mxu0 0
    %2488 = vmatprep.subr.bf16.mxu0 0
    %2489 = vmatpush1.bf16.msra.mxu0 0
    %2490 = vmatprep.subr.bf16.mxu0 0
    %2491 = vmatpush1.bf16.msra.mxu0 0
    %2492 = vmatprep.subr.bf16.mxu0 0
    %2493 = vmatpush1.bf16.msra.mxu0 0
    %2494 = vmatprep.subr.bf16.mxu0 0
    %2495 = vmatpush1.bf16.msra.mxu0 0
    %2496 = vmatprep.subr.bf16.mxu0 0
    %2497 = vmatpush1.bf16.msra.mxu0 0
    %2498 = vmatprep.subr.bf16.mxu0 0
    %2499 = vmatpush1.bf16.msra.mxu0 0
    %2500 = vmatprep.subr.bf16.mxu0 0
    %2501 = vmatpush1.bf16.msra.mxu0 0
    %2502 = vmatprep.subr.bf16.mxu0 0
    %2503 = vmatpush1.bf16.msra.mxu0 0
    %2504 = vmatprep.subr.bf16.mxu0 0
    %2505 = vmatpush1.bf16.msra.mxu0 0
    %2506 = vmatprep.subr.bf16.mxu0 0
    %2507 = vmatpush1.bf16.msra.mxu0 0
    %2508 = vmatprep.subr.bf16.mxu0 0
    %2509 = vmatpush1.bf16.msra.mxu0 0
    %2510 = vmatprep.subr.bf16.mxu0 0
    %2511 = vmatpush1.bf16.msra.mxu0 0
    %2512 = vmatprep.mubr.bf16.mxu0 0
    %2513 = vmatmul.mubr.bf16.gmra.mrb[0].mxu0 %v2437
    %v2514 = vpop.f32.mrb[0].mxu0
    %v2515 = vadd.f32 %v2415, %v2514
    %v2516 = vpop.f32.mrb[0].mxu0
    %v2517 = vadd.f32 %v2417, %v2516
    %v2518 = vpop.f32.mrb[0].mxu0
    %v2519 = vpop.f32.mrb[0].mxu0
    %2520 = vdwg.mxu0
    %v2521 = vadd.f32 %v2474, %v499
    %v2522 = vadd.f32 %v2476, %v503
    %v2523 = vadd.f32 %v2515, %v507
    %v2524 = vadd.f32 %v2517, %v511
    %v2525 = vmul.f32 %v2521, 0.5
    %v2526 = vtanh.pop %v2525
    %v2527 = vmul.f32 %v2526, 0.5
    %v2528 = vadd.f32 %v2527, 0.5
    %v2529 = vmul.f32 %v2522, 0.5
    %v2530 = vtanh.pop %v2529
    %v2531 = vmul.f32 %v2530, 0.5
    %v2532 = vadd.f32 %v2531, 0.5
    %v2533 = vtanh.pop %v2523
    %v2534 = vmul.f32 %v2524, 0.5
    %v2535 = vtanh.pop %v2534
    %v2536 = vmul.f32 %v2535, 0.5
    %v2537 = vadd.f32 %v2536, 0.5
    %v2538 = vmul.f32 %v2532, %v2335
    %v2539 = vmul.f32 %v2528, %v2533
    %v2540 = vadd.f32 %v2538, %v2539
    %v2541 = vtanh.pop %v2540
    %v2542 = vmul.f32 %v2537, %v2541
    %v2543 = vld [vmem:[%s0 + $0x4] sm:$0x2]
    %v2544 = vld [vmem:[%s0 + $0xc] sm:$0x2]
    %v2545 = vld [vmem:[%s0 + $0x14] sm:$0x2]
    %v2546 = vld [vmem:[%s0 + $0x1c] sm:$0x2]
    %v2547 = vld [vmem:[%s0 + $0x24] sm:$0x2]
    %v2548 = vld [vmem:[%s0 + $0x2c] sm:$0x2]
    %v2549 = vld [vmem:[%s0 + $0x34] sm:$0x2]
    %v2550 = vld [vmem:[%s0 + $0x3c] sm:$0x2]
    %v2551 = vpack.c.bf16 %v2542, %v2542
    %2552 = vmatprep.subr.bf16.mxu0 %v190
    %2553 = vmatpush1.bf16.msra.mxu0 %v189
    %2554 = vmatprep.subr.bf16.mxu0 %v194
    %2555 = vmatpush1.bf16.msra.mxu0 %v193
    %2556 = vmatprep.subr.bf16.mxu0 %v198
    %2557 = vmatpush1.bf16.msra.mxu0 %v197
    %2558 = vmatprep.subr.bf16.mxu0 %v202
    %2559 = vmatpush1.bf16.msra.mxu0 %v201
    %2560 = vmatprep.subr.bf16.mxu0 %v206
    %2561 = vmatpush1.bf16.msra.mxu0 %v205
    %2562 = vmatprep.subr.bf16.mxu0 %v210
    %2563 = vmatpush1.bf16.msra.mxu0 %v209
    %2564 = vmatprep.subr.bf16.mxu0 %v214
    %2565 = vmatpush1.bf16.msra.mxu0 %v213
    %2566 = vmatprep.subr.bf16.mxu0 %v218
    %2567 = vmatpush1.bf16.msra.mxu0 %v217
    %2568 = vmatprep.subr.bf16.mxu0 0
    %2569 = vmatpush1.bf16.msra.mxu0 0
    %2570 = vmatprep.subr.bf16.mxu0 0
    %2571 = vmatpush1.bf16.msra.mxu0 0
    %2572 = vmatprep.subr.bf16.mxu0 0
    %2573 = vmatpush1.bf16.msra.mxu0 0
    %2574 = vmatprep.subr.bf16.mxu0 0
    %2575 = vmatpush1.bf16.msra.mxu0 0
    %2576 = vmatprep.subr.bf16.mxu0 0
    %2577 = vmatpush1.bf16.msra.mxu0 0
    %2578 = vmatprep.subr.bf16.mxu0 0
    %2579 = vmatpush1.bf16.msra.mxu0 0
    %2580 = vmatprep.subr.bf16.mxu0 0
    %2581 = vmatpush1.bf16.msra.mxu0 0
    %2582 = vmatprep.subr.bf16.mxu0 0
    %2583 = vmatpush1.bf16.msra.mxu0 0
    %2584 = vmatprep.mubr.bf16.mxu0 0
    %2585 = vmatmul.mubr.bf16.gmra.mrb[0].mxu0 %v2551
    %v2586 = vpop.f32.mrb[0].mxu0
    %v2587 = vadd.f32 0.0, %v2586
    %v2588 = vpop.f32.mrb[0].mxu0
    %v2589 = vadd.f32 0.0, %v2588
    %v2590 = vpop.f32.mrb[0].mxu0
    %v2591 = vpop.f32.mrb[0].mxu0
    %2592 = vdwg.mxu0
    %2593 = vmatprep.subr.bf16.mxu0 %v192
    %2594 = vmatpush1.bf16.msra.mxu0 %v191
    %2595 = vmatprep.subr.bf16.mxu0 %v196
    %2596 = vmatpush1.bf16.msra.mxu0 %v195
    %2597 = vmatprep.subr.bf16.mxu0 %v200
    %2598 = vmatpush1.bf16.msra.mxu0 %v199
    %2599 = vmatprep.subr.bf16.mxu0 %v204
    %2600 = vmatpush1.bf16.msra.mxu0 %v203
    %2601 = vmatprep.subr.bf16.mxu0 %v208
    %2602 = vmatpush1.bf16.msra.mxu0 %v207
    %2603 = vmatprep.subr.bf16.mxu0 %v212
    %2604 = vmatpush1.bf16.msra.mxu0 %v211
    %2605 = vmatprep.subr.bf16.mxu0 %v216
    %2606 = vmatpush1.bf16.msra.mxu0 %v215
    %2607 = vmatprep.subr.bf16.mxu0 %v220
    %2608 = vmatpush1.bf16.msra.mxu0 %v219
    %2609 = vmatprep.subr.bf16.mxu0 0
    %2610 = vmatpush1.bf16.msra.mxu0 0
    %2611 = vmatprep.subr.bf16.mxu0 0
    %2612 = vmatpush1.bf16.msra.mxu0 0
    %2613 = vmatprep.subr.bf16.mxu0 0
    %2614 = vmatpush1.bf16.msra.mxu0 0
    %2615 = vmatprep.subr.bf16.mxu0 0
    %2616 = vmatpush1.bf16.msra.mxu0 0
    %2617 = vmatprep.subr.bf16.mxu0 0
    %2618 = vmatpush1.bf16.msra.mxu0 0
    %2619 = vmatprep.subr.bf16.mxu0 0
    %2620 = vmatpush1.bf16.msra.mxu0 0
    %2621 = vmatprep.subr.bf16.mxu0 0
    %2622 = vmatpush1.bf16.msra.mxu0 0
    %2623 = vmatprep.subr.bf16.mxu0 0
    %2624 = vmatpush1.bf16.msra.mxu0 0
    %2625 = vmatprep.mubr.bf16.mxu0 0
    %2626 = vmatmul.mubr.bf16.gmra.mrb[0].mxu0 %v2551
    %v2627 = vpop.f32.mrb[0].mxu0
    %v2628 = vadd.f32 0.0, %v2627
    %v2629 = vpop.f32.mrb[0].mxu0
    %v2630 = vadd.f32 0.0, %v2629
    %v2631 = vpop.f32.mrb[0].mxu0
    %v2632 = vpop.f32.mrb[0].mxu0
    %2633 = vdwg.mxu0
    %v2642 = vunpack.c.l.b16 %v2543
    %v2643 = vunpack.c.l.b16 %v2544
    %v2644 = vunpack.c.l.b16 %v2545
    %v2645 = vunpack.c.l.b16 %v2546
    %v2646 = vunpack.c.l.b16 %v2547
    %v2647 = vunpack.c.l.b16 %v2548
    %v2648 = vunpack.c.l.b16 %v2549
    %v2649 = vunpack.c.l.b16 %v2550
    %v2650 = vpack.c.b16 %v2642, %v2642
    %v2651 = vpack.c.b16 %v2643, %v2643
    %v2652 = vpack.c.b16 %v2644, %v2644
    %v2653 = vpack.c.b16 %v2645, %v2645
    %v2654 = vpack.c.b16 %v2646, %v2646
    %v2655 = vpack.c.b16 %v2647, %v2647
    %v2656 = vpack.c.b16 %v2648, %v2648
    %v2657 = vpack.c.b16 %v2649, %v2649
    %v2658 = vunpack.c.l.b16 %v2650
    %v2659 = vunpack.c.l.b16 %v2651
    %v2660 = vunpack.c.l.b16 %v2652
    %v2661 = vunpack.c.l.b16 %v2653
    %v2662 = vunpack.c.l.b16 %v2654
    %v2663 = vunpack.c.l.b16 %v2655
    %v2664 = vunpack.c.l.b16 %v2656
    %v2665 = vunpack.c.l.b16 %v2657
    %v2666 = vrot.slane %v2658, 2
    %v2667 = vrot.slane %v2659, 1
    %v2668 = vsel %vm368, %v2667, %v2666
    %v2669 = vsel %vm371, %v2660, %v2668
    %v2670 = vrot.slane %v2661, 7
    %v2671 = vsel %vm374, %v2670, %v2669
    %v2672 = vrot.slane %v2662, 6
    %v2673 = vsel %vm377, %v2672, %v2671
    %v2674 = vrot.slane %v2663, 5
    %v2675 = vsel %vm380, %v2674, %v2673
    %v2676 = vrot.slane %v2664, 4
    %v2677 = vsel %vm383, %v2676, %v2675
    %v2678 = vrot.slane %v2665, 3
    %v2679 = vsel %vm386, %v2678, %v2677
    %v2680 = vpack.c.b16 %v2679, %v2679
    %v2682 = vsel %vm409, %v2680, 0
    %2684 = vmatprep.subr.bf16.mxu0 %v402
    %2685 = vmatpush1.bf16.msra.mxu0 %v401
    %2686 = vmatprep.subr.bf16.mxu0 0
    %2687 = vmatpush1.bf16.msra.mxu0 0
    %2688 = vmatprep.subr.bf16.mxu0 0
    %2689 = vmatpush1.bf16.msra.mxu0 0
    %2690 = vmatprep.subr.bf16.mxu0 0
    %2691 = vmatpush1.bf16.msra.mxu0 0
    %2692 = vmatprep.subr.bf16.mxu0 0
    %2693 = vmatpush1.bf16.msra.mxu0 0
    %2694 = vmatprep.subr.bf16.mxu0 0
    %2695 = vmatpush1.bf16.msra.mxu0 0
    %2696 = vmatprep.subr.bf16.mxu0 0
    %2697 = vmatpush1.bf16.msra.mxu0 0
    %2698 = vmatprep.subr.bf16.mxu0 0
    %2699 = vmatpush1.bf16.msra.mxu0 0
    %2700 = vmatprep.subr.bf16.mxu0 0
    %2701 = vmatpush1.bf16.msra.mxu0 0
    %2702 = vmatprep.subr.bf16.mxu0 0
    %2703 = vmatpush1.bf16.msra.mxu0 0
    %2704 = vmatprep.subr.bf16.mxu0 0
    %2705 = vmatpush1.bf16.msra.mxu0 0
    %2706 = vmatprep.subr.bf16.mxu0 0
    %2707 = vmatpush1.bf16.msra.mxu0 0
    %2708 = vmatprep.subr.bf16.mxu0 0
    %2709 = vmatpush1.bf16.msra.mxu0 0
    %2710 = vmatprep.subr.bf16.mxu0 0
    %2711 = vmatpush1.bf16.msra.mxu0 0
    %2712 = vmatprep.subr.bf16.mxu0 0
    %2713 = vmatpush1.bf16.msra.mxu0 0
    %2714 = vmatprep.subr.bf16.mxu0 0
    %2715 = vmatpush1.bf16.msra.mxu0 0
    %2716 = vmatprep.mubr.bf16.mxu0 0
    %2717 = vmatmul.mubr.bf16.gmra.mrb[0].mxu0 %v2682
    %v2718 = vpop.f32.mrb[0].mxu0
    %v2719 = vadd.f32 %v2587, %v2718
    %v2720 = vpop.f32.mrb[0].mxu0
    %v2721 = vadd.f32 %v2589, %v2720
    %v2722 = vpop.f32.mrb[0].mxu0
    %v2723 = vpop.f32.mrb[0].mxu0
    %2724 = vdwg.mxu0
    %2725 = vmatprep.subr.bf16.mxu0 %v404
    %2726 = vmatpush1.bf16.msra.mxu0 %v403
    %2727 = vmatprep.subr.bf16.mxu0 0
    %2728 = vmatpush1.bf16.msra.mxu0 0
    %2729 = vmatprep.subr.bf16.mxu0 0
    %2730 = vmatpush1.bf16.msra.mxu0 0
    %2731 = vmatprep.subr.bf16.mxu0 0
    %2732 = vmatpush1.bf16.msra.mxu0 0
    %2733 = vmatprep.subr.bf16.mxu0 0
    %2734 = vmatpush1.bf16.msra.mxu0 0
    %2735 = vmatprep.subr.bf16.mxu0 0
    %2736 = vmatpush1.bf16.msra.mxu0 0
    %2737 = vmatprep.subr.bf16.mxu0 0
    %2738 = vmatpush1.bf16.msra.mxu0 0
    %2739 = vmatprep.subr.bf16.mxu0 0
    %2740 = vmatpush1.bf16.msra.mxu0 0
    %2741 = vmatprep.subr.bf16.mxu0 0
    %2742 = vmatpush1.bf16.msra.mxu0 0
    %2743 = vmatprep.subr.bf16.mxu0 0
    %2744 = vmatpush1.bf16.msra.mxu0 0
    %2745 = vmatprep.subr.bf16.mxu0 0
    %2746 = vmatpush1.bf16.msra.mxu0 0
    %2747 = vmatprep.subr.bf16.mxu0 0
    %2748 = vmatpush1.bf16.msra.mxu0 0
    %2749 = vmatprep.subr.bf16.mxu0 0
    %2750 = vmatpush1.bf16.msra.mxu0 0
    %2751 = vmatprep.subr.bf16.mxu0 0
    %2752 = vmatpush1.bf16.msra.mxu0 0
    %2753 = vmatprep.subr.bf16.mxu0 0
    %2754 = vmatpush1.bf16.msra.mxu0 0
    %2755 = vmatprep.subr.bf16.mxu0 0
    %2756 = vmatpush1.bf16.msra.mxu0 0
    %2757 = vmatprep.mubr.bf16.mxu0 0
    %2758 = vmatmul.mubr.bf16.gmra.mrb[0].mxu0 %v2682
    %v2759 = vpop.f32.mrb[0].mxu0
    %v2760 = vadd.f32 %v2628, %v2759
    %v2761 = vpop.f32.mrb[0].mxu0
    %v2762 = vadd.f32 %v2630, %v2761
    %v2763 = vpop.f32.mrb[0].mxu0
    %v2764 = vpop.f32.mrb[0].mxu0
    %2765 = vdwg.mxu0
    %v2766 = vadd.f32 %v2719, %v499
    %v2767 = vadd.f32 %v2721, %v503
    %v2768 = vadd.f32 %v2760, %v507
    %v2769 = vadd.f32 %v2762, %v511
    %v2770 = vmul.f32 %v2766, 0.5
    %v2771 = vtanh.pop %v2770
    %v2772 = vmul.f32 %v2771, 0.5
    %v2773 = vadd.f32 %v2772, 0.5
    %v2774 = vmul.f32 %v2767, 0.5
    %v2775 = vtanh.pop %v2774
    %v2776 = vmul.f32 %v2775, 0.5
    %v2777 = vadd.f32 %v2776, 0.5
    %v2778 = vtanh.pop %v2768
    %v2779 = vmul.f32 %v2769, 0.5
    %v2780 = vtanh.pop %v2779
    %v2781 = vmul.f32 %v2780, 0.5
    %v2782 = vadd.f32 %v2781, 0.5
    %v2783 = vmul.f32 %v2777, %v2540
    %v2784 = vmul.f32 %v2773, %v2778
    %v2785 = vadd.f32 %v2783, %v2784
    %v2786 = vtanh.pop %v2785
    %v2787 = vmul.f32 %v2782, %v2786
    %v2788 = vpack.c.bf16 %v2787, %v2787
    %2789 = vmatprep.subr.bf16.mxu0 %v190
    %2790 = vmatpush1.bf16.msra.mxu0 %v189
    %2791 = vmatprep.subr.bf16.mxu0 %v194
    %2792 = vmatpush1.bf16.msra.mxu0 %v193
    %2793 = vmatprep.subr.bf16.mxu0 %v198
    %2794 = vmatpush1.bf16.msra.mxu0 %v197
    %2795 = vmatprep.subr.bf16.mxu0 %v202
    %2796 = vmatpush1.bf16.msra.mxu0 %v201
    %2797 = vmatprep.subr.bf16.mxu0 %v206
    %2798 = vmatpush1.bf16.msra.mxu0 %v205
    %2799 = vmatprep.subr.bf16.mxu0 %v210
    %2800 = vmatpush1.bf16.msra.mxu0 %v209
    %2801 = vmatprep.subr.bf16.mxu0 %v214
    %2802 = vmatpush1.bf16.msra.mxu0 %v213
    %2803 = vmatprep.subr.bf16.mxu0 %v218
    %2804 = vmatpush1.bf16.msra.mxu0 %v217
    %2805 = vmatprep.subr.bf16.mxu0 0
    %2806 = vmatpush1.bf16.msra.mxu0 0
    %2807 = vmatprep.subr.bf16.mxu0 0
    %2808 = vmatpush1.bf16.msra.mxu0 0
    %2809 = vmatprep.subr.bf16.mxu0 0
    %2810 = vmatpush1.bf16.msra.mxu0 0
    %2811 = vmatprep.subr.bf16.mxu0 0
    %2812 = vmatpush1.bf16.msra.mxu0 0
    %2813 = vmatprep.subr.bf16.mxu0 0
    %2814 = vmatpush1.bf16.msra.mxu0 0
    %2815 = vmatprep.subr.bf16.mxu0 0
    %2816 = vmatpush1.bf16.msra.mxu0 0
    %2817 = vmatprep.subr.bf16.mxu0 0
    %2818 = vmatpush1.bf16.msra.mxu0 0
    %2819 = vmatprep.subr.bf16.mxu0 0
    %2820 = vmatpush1.bf16.msra.mxu0 0
    %2821 = vmatprep.mubr.bf16.mxu0 0
    %2822 = vmatmul.mubr.bf16.gmra.mrb[0].mxu0 %v2788
    %v2823 = vpop.f32.mrb[0].mxu0
    %v2824 = vadd.f32 0.0, %v2823
    %v2825 = vpop.f32.mrb[0].mxu0
    %v2826 = vadd.f32 0.0, %v2825
    %v2827 = vpop.f32.mrb[0].mxu0
    %v2828 = vpop.f32.mrb[0].mxu0
    %2829 = vdwg.mxu0
    %2830 = vmatprep.subr.bf16.mxu0 %v192
    %2831 = vmatpush1.bf16.msra.mxu0 %v191
    %2832 = vmatprep.subr.bf16.mxu0 %v196
    %2833 = vmatpush1.bf16.msra.mxu0 %v195
    %2834 = vmatprep.subr.bf16.mxu0 %v200
    %2835 = vmatpush1.bf16.msra.mxu0 %v199
    %2836 = vmatprep.subr.bf16.mxu0 %v204
    %2837 = vmatpush1.bf16.msra.mxu0 %v203
    %2838 = vmatprep.subr.bf16.mxu0 %v208
    %2839 = vmatpush1.bf16.msra.mxu0 %v207
    %2840 = vmatprep.subr.bf16.mxu0 %v212
    %2841 = vmatpush1.bf16.msra.mxu0 %v211
    %2842 = vmatprep.subr.bf16.mxu0 %v216
    %2843 = vmatpush1.bf16.msra.mxu0 %v215
    %2844 = vmatprep.subr.bf16.mxu0 %v220
    %2845 = vmatpush1.bf16.msra.mxu0 %v219
    %2846 = vmatprep.subr.bf16.mxu0 0
    %2847 = vmatpush1.bf16.msra.mxu0 0
    %2848 = vmatprep.subr.bf16.mxu0 0
    %2849 = vmatpush1.bf16.msra.mxu0 0
    %2850 = vmatprep.subr.bf16.mxu0 0
    %2851 = vmatpush1.bf16.msra.mxu0 0
    %2852 = vmatprep.subr.bf16.mxu0 0
    %2853 = vmatpush1.bf16.msra.mxu0 0
    %2854 = vmatprep.subr.bf16.mxu0 0
    %2855 = vmatpush1.bf16.msra.mxu0 0
    %2856 = vmatprep.subr.bf16.mxu0 0
    %2857 = vmatpush1.bf16.msra.mxu0 0
    %2858 = vmatprep.subr.bf16.mxu0 0
    %2859 = vmatpush1.bf16.msra.mxu0 0
    %2860 = vmatprep.subr.bf16.mxu0 0
    %2861 = vmatpush1.bf16.msra.mxu0 0
    %2862 = vmatprep.mubr.bf16.mxu0 0
    %2863 = vmatmul.mubr.bf16.gmra.mrb[0].mxu0 %v2788
    %v2864 = vpop.f32.mrb[0].mxu0
    %v2865 = vadd.f32 0.0, %v2864
    %v2866 = vpop.f32.mrb[0].mxu0
    %v2867 = vadd.f32 0.0, %v2866
    %v2868 = vpop.f32.mrb[0].mxu0
    %v2869 = vpop.f32.mrb[0].mxu0
    %2870 = vdwg.mxu0
    %v2871 = vrot.slane %v2658, 3
    %v2872 = vrot.slane %v2659, 2
    %v2873 = vsel %vm368, %v2872, %v2871
    %v2874 = vrot.slane %v2660, 1
    %v2875 = vsel %vm371, %v2874, %v2873
    %v2876 = vsel %vm374, %v2661, %v2875
    %v2877 = vrot.slane %v2662, 7
    %v2878 = vsel %vm377, %v2877, %v2876
    %v2879 = vrot.slane %v2663, 6
    %v2880 = vsel %vm380, %v2879, %v2878
    %v2881 = vrot.slane %v2664, 5
    %v2882 = vsel %vm383, %v2881, %v2880
    %v2883 = vrot.slane %v2665, 4
    %v2884 = vsel %vm386, %v2883, %v2882
    %v2885 = vpack.c.b16 %v2884, %v2884
    %v2887 = vsel %vm409, %v2885, 0
    %2889 = vmatprep.subr.bf16.mxu0 %v402
    %2890 = vmatpush1.bf16.msra.mxu0 %v401
    %2891 = vmatprep.subr.bf16.mxu0 0
    %2892 = vmatpush1.bf16.msra.mxu0 0
    %2893 = vmatprep.subr.bf16.mxu0 0
    %2894 = vmatpush1.bf16.msra.mxu0 0
    %2895 = vmatprep.subr.bf16.mxu0 0
    %2896 = vmatpush1.bf16.msra.mxu0 0
    %2897 = vmatprep.subr.bf16.mxu0 0
    %2898 = vmatpush1.bf16.msra.mxu0 0
    %2899 = vmatprep.subr.bf16.mxu0 0
    %2900 = vmatpush1.bf16.msra.mxu0 0
    %2901 = vmatprep.subr.bf16.mxu0 0
    %2902 = vmatpush1.bf16.msra.mxu0 0
    %2903 = vmatprep.subr.bf16.mxu0 0
    %2904 = vmatpush1.bf16.msra.mxu0 0
    %2905 = vmatprep.subr.bf16.mxu0 0
    %2906 = vmatpush1.bf16.msra.mxu0 0
    %2907 = vmatprep.subr.bf16.mxu0 0
    %2908 = vmatpush1.bf16.msra.mxu0 0
    %2909 = vmatprep.subr.bf16.mxu0 0
    %2910 = vmatpush1.bf16.msra.mxu0 0
    %2911 = vmatprep.subr.bf16.mxu0 0
    %2912 = vmatpush1.bf16.msra.mxu0 0
    %2913 = vmatprep.subr.bf16.mxu0 0
    %2914 = vmatpush1.bf16.msra.mxu0 0
    %2915 = vmatprep.subr.bf16.mxu0 0
    %2916 = vmatpush1.bf16.msra.mxu0 0
    %2917 = vmatprep.subr.bf16.mxu0 0
    %2918 = vmatpush1.bf16.msra.mxu0 0
    %2919 = vmatprep.subr.bf16.mxu0 0
    %2920 = vmatpush1.bf16.msra.mxu0 0
    %2921 = vmatprep.mubr.bf16.mxu0 0
    %2922 = vmatmul.mubr.bf16.gmra.mrb[0].mxu0 %v2887
    %v2923 = vpop.f32.mrb[0].mxu0
    %v2924 = vadd.f32 %v2824, %v2923
    %v2925 = vpop.f32.mrb[0].mxu0
    %v2926 = vadd.f32 %v2826, %v2925
    %v2927 = vpop.f32.mrb[0].mxu0
    %v2928 = vpop.f32.mrb[0].mxu0
    %2929 = vdwg.mxu0
    %2930 = vmatprep.subr.bf16.mxu0 %v404
    %2931 = vmatpush1.bf16.msra.mxu0 %v403
    %2932 = vmatprep.subr.bf16.mxu0 0
    %2933 = vmatpush1.bf16.msra.mxu0 0
    %2934 = vmatprep.subr.bf16.mxu0 0
    %2935 = vmatpush1.bf16.msra.mxu0 0
    %2936 = vmatprep.subr.bf16.mxu0 0
    %2937 = vmatpush1.bf16.msra.mxu0 0
    %2938 = vmatprep.subr.bf16.mxu0 0
    %2939 = vmatpush1.bf16.msra.mxu0 0
    %2940 = vmatprep.subr.bf16.mxu0 0
    %2941 = vmatpush1.bf16.msra.mxu0 0
    %2942 = vmatprep.subr.bf16.mxu0 0
    %2943 = vmatpush1.bf16.msra.mxu0 0
    %2944 = vmatprep.subr.bf16.mxu0 0
    %2945 = vmatpush1.bf16.msra.mxu0 0
    %2946 = vmatprep.subr.bf16.mxu0 0
    %2947 = vmatpush1.bf16.msra.mxu0 0
    %2948 = vmatprep.subr.bf16.mxu0 0
    %2949 = vmatpush1.bf16.msra.mxu0 0
    %2950 = vmatprep.subr.bf16.mxu0 0
    %2951 = vmatpush1.bf16.msra.mxu0 0
    %2952 = vmatprep.subr.bf16.mxu0 0
    %2953 = vmatpush1.bf16.msra.mxu0 0
    %2954 = vmatprep.subr.bf16.mxu0 0
    %2955 = vmatpush1.bf16.msra.mxu0 0
    %2956 = vmatprep.subr.bf16.mxu0 0
    %2957 = vmatpush1.bf16.msra.mxu0 0
    %2958 = vmatprep.subr.bf16.mxu0 0
    %2959 = vmatpush1.bf16.msra.mxu0 0
    %2960 = vmatprep.subr.bf16.mxu0 0
    %2961 = vmatpush1.bf16.msra.mxu0 0
    %2962 = vmatprep.mubr.bf16.mxu0 0
    %2963 = vmatmul.mubr.bf16.gmra.mrb[0].mxu0 %v2887
    %v2964 = vpop.f32.mrb[0].mxu0
    %v2965 = vadd.f32 %v2865, %v2964
    %v2966 = vpop.f32.mrb[0].mxu0
    %v2967 = vadd.f32 %v2867, %v2966
    %v2968 = vpop.f32.mrb[0].mxu0
    %v2969 = vpop.f32.mrb[0].mxu0
    %2970 = vdwg.mxu0
    %v2971 = vadd.f32 %v2924, %v499
    %v2972 = vadd.f32 %v2926, %v503
    %v2973 = vadd.f32 %v2965, %v507
    %v2974 = vadd.f32 %v2967, %v511
    %v2975 = vmul.f32 %v2971, 0.5
    %v2976 = vtanh.pop %v2975
    %v2977 = vmul.f32 %v2976, 0.5
    %v2978 = vadd.f32 %v2977, 0.5
    %v2979 = vmul.f32 %v2972, 0.5
    %v2980 = vtanh.pop %v2979
    %v2981 = vmul.f32 %v2980, 0.5
    %v2982 = vadd.f32 %v2981, 0.5
    %v2983 = vtanh.pop %v2973
    %v2984 = vmul.f32 %v2974, 0.5
    %v2985 = vtanh.pop %v2984
    %v2986 = vmul.f32 %v2985, 0.5
    %v2987 = vadd.f32 %v2986, 0.5
    %v2988 = vmul.f32 %v2982, %v2785
    %v2989 = vmul.f32 %v2978, %v2983
    %v2990 = vadd.f32 %v2988, %v2989
    %v2991 = vtanh.pop %v2990
    %v2992 = vmul.f32 %v2987, %v2991
    %2993 = vst [vmem:[#allocation2] sm:$0xff] %v2992
    %2994 = vst [vmem:[#allocation3] sm:$0xff] %v2990
    // Predicated region
    $region34: #{tpu_custom_call.1} parent=1 // pred_check
      %p2995 = pneg %p39
    $region35: #{tpu_custom_call.1} parent=1 // pred_check_branch
      %2997 = sbr.rel (%p2995) target = $region37
    $region36: #{tpu_custom_call.1} parent=1 // pred_region
      %v2998 = vpack.c.bf16 %v2992, %v2992
      %v2999 = vld [vmem:[%s4] sm:$0xf]
      %v3000 = vld [vmem:[%s4 + $0x4] sm:$0xf]
      %v3001 = vld [vmem:[%s4 + $0x8] sm:$0xf]
      %v3002 = vld [vmem:[%s4 + $0xc] sm:$0xf]
      %v3003 = vld [vmem:[%s4 + $0x10] sm:$0xf]
      %v3004 = vld [vmem:[%s4 + $0x14] sm:$0xf]
      %v3005 = vld [vmem:[%s4 + $0x18] sm:$0xf]
      %v3006 = vld [vmem:[%s4 + $0x1c] sm:$0xf]
      %v3007 = vld [vmem:[%s4 + $0x20] sm:$0xf]
      %v3008 = vld [vmem:[%s4 + $0x24] sm:$0xf]
      %v3009 = vld [vmem:[%s4 + $0x28] sm:$0xf]
      %v3010 = vld [vmem:[%s4 + $0x2c] sm:$0xf]
      %v3011 = vld [vmem:[%s4 + $0x30] sm:$0xf]
      %v3012 = vld [vmem:[%s4 + $0x34] sm:$0xf]
      %v3013 = vld [vmem:[%s4 + $0x38] sm:$0xf]
      %v3014 = vld [vmem:[%s4 + $0x3c] sm:$0xf]
      %v3015 = vld [vmem:[%s5] sm:$0x1]
      %v3017 = vlaneseq
      %v3018 = vshrl.u32 %v3017, 7
      %v3019 = vsub.s32 0, %v3018
      %v3020 = vrot.slane %v3015, %v3019
      %v3038 = vunpack.c.l.b16 %v2999
      %v3039 = vunpack.c.l.b16 %v3000
      %v3040 = vunpack.c.l.b16 %v3001
      %v3041 = vunpack.c.l.b16 %v3002
      %v3042 = vunpack.c.l.b16 %v3003
      %v3043 = vunpack.c.l.b16 %v3004
      %v3044 = vunpack.c.l.b16 %v3005
      %v3045 = vunpack.c.l.b16 %v3006
      %v3046 = vunpack.c.l.b16 %v3007
      %v3047 = vunpack.c.l.b16 %v3008
      %v3048 = vunpack.c.l.b16 %v3009
      %v3049 = vunpack.c.l.b16 %v3010
      %v3050 = vunpack.c.l.b16 %v3011
      %v3051 = vunpack.c.l.b16 %v3012
      %v3052 = vunpack.c.l.b16 %v3013
      %v3053 = vunpack.c.l.b16 %v3014
      %v3054 = vpack.c.b16 %v3039, %v3038
      %v3055 = vpack.c.b16 %v3041, %v3040
      %v3056 = vpack.c.b16 %v3043, %v3042
      %v3057 = vpack.c.b16 %v3045, %v3044
      %v3058 = vpack.c.b16 %v3047, %v3046
      %v3059 = vpack.c.b16 %v3049, %v3048
      %v3060 = vpack.c.b16 %v3051, %v3050
      %v3061 = vpack.c.b16 %v3053, %v3052
      %3070 = vmatprep.subr.bf16.mxu0 0
      %3071 = vmatpush1.bf16.msra.mxu0 %v3054
      %3072 = vmatprep.subr.bf16.mxu0 0
      %3073 = vmatpush1.bf16.msra.mxu0 %v3055
      %3074 = vmatprep.subr.bf16.mxu0 0
      %3075 = vmatpush1.bf16.msra.mxu0 %v3056
      %3076 = vmatprep.subr.bf16.mxu0 0
      %3077 = vmatpush1.bf16.msra.mxu0 %v3057
      %3078 = vmatprep.subr.bf16.mxu0 0
      %3079 = vmatpush1.bf16.msra.mxu0 %v3058
      %3080 = vmatprep.subr.bf16.mxu0 0
      %3081 = vmatpush1.bf16.msra.mxu0 %v3059
      %3082 = vmatprep.subr.bf16.mxu0 0
      %3083 = vmatpush1.bf16.msra.mxu0 %v3060
      %3084 = vmatprep.subr.bf16.mxu0 0
      %3085 = vmatpush1.bf16.msra.mxu0 %v3061
      %3086 = vmatprep.subr.bf16.mxu0 0
      %3087 = vmatpush1.bf16.msra.mxu0 0
      %3088 = vmatprep.subr.bf16.mxu0 0
      %3089 = vmatpush1.bf16.msra.mxu0 0
      %3090 = vmatprep.subr.bf16.mxu0 0
      %3091 = vmatpush1.bf16.msra.mxu0 0
      %3092 = vmatprep.subr.bf16.mxu0 0
      %3093 = vmatpush1.bf16.msra.mxu0 0
      %3094 = vmatprep.subr.bf16.mxu0 0
      %3095 = vmatpush1.bf16.msra.mxu0 0
      %3096 = vmatprep.subr.bf16.mxu0 0
      %3097 = vmatpush1.bf16.msra.mxu0 0
      %3098 = vmatprep.subr.bf16.mxu0 0
      %3099 = vmatpush1.bf16.msra.mxu0 0
      %3100 = vmatprep.subr.bf16.mxu0 0
      %3101 = vmatpush1.bf16.msra.mxu0 0
      %3102 = vmatprep.mubr.bf16.mxu0 0
      %3103 = vmatmul.mubr.bf16.gmra.mrb[0].mxu0 %v2998
      %v3104 = vpop.f32.mrb[0].mxu0
      %v3105 = vadd.f32 %v3020, %v3104
      %v3106 = vpop.f32.mrb[0].mxu0
      %v3107 = vpop.f32.mrb[0].mxu0
      %v3108 = vpop.f32.mrb[0].mxu0
      %3109 = vdwg.mxu0
      %3110 = vst [vmem:[#allocation7] sm:$0xff] %v3105
    $region37: #{tpu_custom_call.1} parent=1 // pred_fallthru
      _
    // Predicated region
    $region38: #{tpu_custom_call.1} parent=1 // pred_check
      _
    $region39: #{tpu_custom_call.1} parent=1 // pred_check_branch
      %3112 = sbr.rel (0) target = $region41
    $region40: #{tpu_custom_call.1} parent=1 // pred_region
      %s3114 = ssub.s32 128, 128
      %3115 = vsyncadd [#allocation6], %s3114
      %s3117 = sshll.u32 [#allocation7], 4
      %s3118 = int_to_ptr.vmem [resolvable:$true] %s3117
      %3120 = dma.vmem_to_hbm [thread:$0]  %s3118, 128, %s6, [#allocation6]
    $region41: #{tpu_custom_call.1} parent=1 // pred_fallthru
      _
    // Predicated region
    $region42: #{tpu_custom_call.1} parent=1 // pred_check
      _
    $region43: #{tpu_custom_call.1} parent=1 // pred_check_branch
      %3122 = sbr.rel (0) target = $region45
    $region44: #{tpu_custom_call.1} parent=1 // pred_region
      %3123 = dma.done [#allocation6], 128
    $region45: #{tpu_custom_call.1} parent=1 // pred_fallthru
      _
    %3124 = vsyncpa [#allocation5], 1
    %3125 = vsyncpa [#allocation6], 1

// kernel: tpu_custom_call.1
$region0: #{tpu_custom_call.1}
  #allocation0 [shape = 'u32[]', space=smem, size = 0x4, offset = 0x4, fixed_abs, tag = 'smem constant byte address 0x4 - core index']
  #allocation1 [shape = 'u32[144,128]{1,0:T(1,128)}', space=vmem, size = 0x12000, scoped, tag = 'internal scratch']
  #allocation2 [shape = 'f32[8,128]{1,0:T(8,128)}', space=vmem, size = 0x1000, scoped, tag = 'scratch operand']
  #allocation3 [shape = 'f32[8,128]{1,0:T(8,128)}', space=vmem, size = 0x1000, scoped, tag = 'scratch operand']
  %s0 = inlined_call_operand.vmem [shape: bf16[8,12,16], index: 0, kind: input, shape index: {}]
  %s1 = inlined_call_operand.vmem [shape: bf16[16,512], index: 1, kind: input, shape index: {}]
  %s2 = inlined_call_operand.hbm [shape: bf16[128,512], index: 2, kind: input, shape index: {}]
  %s3 = inlined_call_operand.vmem [shape: f32[1,512], index: 3, kind: input, shape index: {}]
  %s4 = inlined_call_operand.vmem [shape: bf16[128,128], index: 4, kind: input, shape index: {}]
  %s5 = inlined_call_operand.vmem [shape: f32[1,128], index: 5, kind: input, shape index: {}]
  %s6 = inlined_call_operand.hbm [shape: f32[8,128], index: 6, kind: output, shape index: {}]
  %s7 = sld [smem:[#allocation0]]
  $region46: #{tpu_custom_call.1} parent=0
    _
  %s9 = ssub.s32 1, %s7
  %s10 = scalar_select 0, %s9, %s7
  $region1: #{tpu_custom_call.1} parent=0
    #allocation4 [shape = 'u8[131072]{0}', space=vmem, size = 0x20000, scoped, tag = 'input window, operand 2, single buffered']
    #allocation5 [shape = 's32[1]{0}', space=sflag, size = 0x4, scoped, tag = 'scoped memory for tpu_custom_call.1']
    #allocation6 [shape = 's32[1]{0}', space=sflag, size = 0x4, scoped, tag = 'scoped memory for tpu_custom_call.1']
    #allocation7 [shape = 'u8[4096]{0}', space=vmem, size = 0x1000, scoped, tag = 'output window, operand 0, single buffered']
    %11 = vsyncpa [#allocation5], 0
    %12 = vsyncpa [#allocation6], 0
    // Predicated region
    $region2: #{tpu_custom_call.1} parent=1 // pred_check
      _
    $region3: #{tpu_custom_call.1} parent=1 // pred_check_branch
      %14 = sbr.rel (0) target = $region5
    $region4: #{tpu_custom_call.1} parent=1 // pred_region
      _
    $region5: #{tpu_custom_call.1} parent=1 // pred_fallthru
      _
    // Predicated region
    $region6: #{tpu_custom_call.1} parent=1 // pred_check
      _
    $region7: #{tpu_custom_call.1} parent=1 // pred_check_branch
      %16 = sbr.rel (0) target = $region9
    $region8: #{tpu_custom_call.1} parent=1 // pred_region
      _
    $region9: #{tpu_custom_call.1} parent=1 // pred_fallthru
      _
    // Predicated region
    $region10: #{tpu_custom_call.1} parent=1 // pred_check
      _
    $region11: #{tpu_custom_call.1} parent=1 // pred_check_branch
      %18 = sbr.rel (0) target = $region13
    $region12: #{tpu_custom_call.1} parent=1 // pred_region
      %s20 = ssub.s32 4096, 4096
      %21 = vsyncadd [#allocation5], %s20
      %s22 = sshll.u32 [#allocation4], 4
      %s23 = int_to_ptr.vmem [resolvable:$true] %s22
      %28 = dma.hbm_to_vmem [thread:$0]  %s2, 4096, %s23, [#allocation5], 256, 256, 16
    $region13: #{tpu_custom_call.1} parent=1 // pred_fallthru
      _
    // Predicated region
    $region14: #{tpu_custom_call.1} parent=1 // pred_check
      _
    $region15: #{tpu_custom_call.1} parent=1 // pred_check_branch
      %30 = sbr.rel (0) target = $region17
    $region16: #{tpu_custom_call.1} parent=1 // pred_region
      _
    $region17: #{tpu_custom_call.1} parent=1 // pred_fallthru
      _
    // Predicated region
    $region18: #{tpu_custom_call.1} parent=1 // pred_check
      _
    $region19: #{tpu_custom_call.1} parent=1 // pred_check_branch
      %32 = sbr.rel (0) target = $region21
    $region20: #{tpu_custom_call.1} parent=1 // pred_region
      _
    $region21: #{tpu_custom_call.1} parent=1 // pred_fallthru
      _
    // Predicated region
    $region22: #{tpu_custom_call.1} parent=1 // pred_check
      _
    $region23: #{tpu_custom_call.1} parent=1 // pred_check_branch
      %34 = sbr.rel (0) target = $region25
    $region24: #{tpu_custom_call.1} parent=1 // pred_region
      _
    $region25: #{tpu_custom_call.1} parent=1 // pred_fallthru
      _
    // Predicated region
    $region26: #{tpu_custom_call.1} parent=1 // pred_check
      _
    $region27: #{tpu_custom_call.1} parent=1 // pred_check_branch
      %36 = sbr.rel (0) target = $region29
    $region28: #{tpu_custom_call.1} parent=1 // pred_region
      %37 = dma.done [#allocation5], 4096
    $region29: #{tpu_custom_call.1} parent=1 // pred_fallthru
      _
    %p39 = scmp.eq.s32.totalorder 0, 0
    // Predicated region
    $region30: #{tpu_custom_call.1} parent=1 // pred_check
      %p40 = pneg %p39
    $region31: #{tpu_custom_call.1} parent=1 // pred_check_branch
      %42 = sbr.rel (%p40) target = $region33
    $region32: #{tpu_custom_call.1} parent=1 // pred_region
      %43 = vst [vmem:[#allocation2] sm:$0xff] 0.0
      %44 = vst [vmem:[#allocation3] sm:$0xff] 0.0
    $region33: #{tpu_custom_call.1} parent=1 // pred_fallthru
      _
    %v45 = vld [vmem:[%s1] sm:$0xff]
    %v46 = vld [vmem:[%s1 + $0x8] sm:$0xff]
    %v47 = vld [vmem:[%s1 + $0x10] sm:$0xff]
    %v48 = vld [vmem:[%s1 + $0x18] sm:$0xff]
    %v49 = vld [vmem:[#allocation4] sm:$0xff]
    %v50 = vld [vmem:[#allocation4 + $0x8] sm:$0xff]
    %v51 = vld [vmem:[#allocation4 + $0x10] sm:$0xff]
    %v52 = vld [vmem:[#allocation4 + $0x18] sm:$0xff]
    %v53 = vld [vmem:[#allocation4 + $0x20] sm:$0xff]
    %v54 = vld [vmem:[#allocation4 + $0x28] sm:$0xff]
    %v55 = vld [vmem:[#allocation4 + $0x30] sm:$0xff]
    %v56 = vld [vmem:[#allocation4 + $0x38] sm:$0xff]
    %v57 = vld [vmem:[#allocation4 + $0x40] sm:$0xff]
    %v58 = vld [vmem:[#allocation4 + $0x48] sm:$0xff]
    %v59 = vld [vmem:[#allocation4 + $0x50] sm:$0xff]
    %v60 = vld [vmem:[#allocation4 + $0x58] sm:$0xff]
    %v61 = vld [vmem:[#allocation4 + $0x60] sm:$0xff]
    %v62 = vld [vmem:[#allocation4 + $0x68] sm:$0xff]
    %v63 = vld [vmem:[#allocation4 + $0x70] sm:$0xff]
    %v64 = vld [vmem:[#allocation4 + $0x78] sm:$0xff]
    %v65 = vld [vmem:[#allocation4 + $0x80] sm:$0xff]
    %v66 = vld [vmem:[#allocation4 + $0x88] sm:$0xff]
    %v67 = vld [vmem:[#allocation4 + $0x90] sm:$0xff]
    %v68 = vld [vmem:[#allocation4 + $0x98] sm:$0xff]
    %v69 = vld [vmem:[#allocation4 + $0xa0] sm:$0xff]
    %v70 = vld [vmem:[#allocation4 + $0xa8] sm:$0xff]
    %v71 = vld [vmem:[#allocation4 + $0xb0] sm:$0xff]
    %v72 = vld [vmem:[#allocation4 + $0xb8] sm:$0xff]
    %v73 = vld [vmem:[#allocation4 + $0xc0] sm:$0xff]
    %v74 = vld [vmem:[#allocation4 + $0xc8] sm:$0xff]
    %v75 = vld [vmem:[#allocation4 + $0xd0] sm:$0xff]
    %v76 = vld [vmem:[#allocation4 + $0xd8] sm:$0xff]
    %v77 = vld [vmem:[#allocation4 + $0xe0] sm:$0xff]
    %v78 = vld [vmem:[#allocation4 + $0xe8] sm:$0xff]
    %v79 = vld [vmem:[#allocation4 + $0xf0] sm:$0xff]
    %v80 = vld [vmem:[#allocation4 + $0xf8] sm:$0xff]
    %v81 = vld [vmem:[%s3] sm:$0xf]
    %v82 = vld [vmem:[#allocation2] sm:$0xff]
    %v83 = vld [vmem:[#allocation3] sm:$0xff]
    %v84 = vld [vmem:[%s0] sm:$0x1]
    %v85 = vld [vmem:[%s0 + $0x8] sm:$0x1]
    %v86 = vld [vmem:[%s0 + $0x10] sm:$0x1]
    %v87 = vld [vmem:[%s0 + $0x18] sm:$0x1]
    %v88 = vld [vmem:[%s0 + $0x20] sm:$0x1]
    %v89 = vld [vmem:[%s0 + $0x28] sm:$0x1]
    %v90 = vld [vmem:[%s0 + $0x30] sm:$0x1]
    %v91 = vld [vmem:[%s0 + $0x38] sm:$0x1]
    %v92 = vpack.c.bf16 %v82, %v82
    %v125 = vunpack.c.l.b16 %v49
    %v126 = vunpack.c.h.b16 %v49
    %v127 = vunpack.c.l.b16 %v50
    %v128 = vunpack.c.h.b16 %v50
    %v129 = vunpack.c.l.b16 %v51
    %v130 = vunpack.c.h.b16 %v51
    %v131 = vunpack.c.l.b16 %v52
    %v132 = vunpack.c.h.b16 %v52
    %v133 = vunpack.c.l.b16 %v53
    %v134 = vunpack.c.h.b16 %v53
    %v135 = vunpack.c.l.b16 %v54
    %v136 = vunpack.c.h.b16 %v54
    %v137 = vunpack.c.l.b16 %v55
    %v138 = vunpack.c.h.b16 %v55
    %v139 = vunpack.c.l.b16 %v56
    %v140 = vunpack.c.h.b16 %v56
    %v141 = vunpack.c.l.b16 %v57
    %v142 = vunpack.c.h.b16 %v57
    %v143 = vunpack.c.l.b16 %v58
    %v144 = vunpack.c.h.b16 %v58
    %v145 = vunpack.c.l.b16 %v59
    %v146 = vunpack.c.h.b16 %v59
    %v147 = vunpack.c.l.b16 %v60
    %v148 = vunpack.c.h.b16 %v60
    %v149 = vunpack.c.l.b16 %v61
    %v150 = vunpack.c.h.b16 %v61
    %v151 = vunpack.c.l.b16 %v62
    %v152 = vunpack.c.h.b16 %v62
    %v153 = vunpack.c.l.b16 %v63
    %v154 = vunpack.c.h.b16 %v63
    %v155 = vunpack.c.l.b16 %v64
    %v156 = vunpack.c.h.b16 %v64
    %v157 = vunpack.c.l.b16 %v65
    %v158 = vunpack.c.h.b16 %v65
    %v159 = vunpack.c.l.b16 %v66
    %v160 = vunpack.c.h.b16 %v66
    %v161 = vunpack.c.l.b16 %v67
    %v162 = vunpack.c.h.b16 %v67
    %v163 = vunpack.c.l.b16 %v68
    %v164 = vunpack.c.h.b16 %v68
    %v165 = vunpack.c.l.b16 %v69
    %v166 = vunpack.c.h.b16 %v69
    %v167 = vunpack.c.l.b16 %v70
    %v168 = vunpack.c.h.b16 %v70
    %v169 = vunpack.c.l.b16 %v71
    %v170 = vunpack.c.h.b16 %v71
    %v171 = vunpack.c.l.b16 %v72
    %v172 = vunpack.c.h.b16 %v72
    %v173 = vunpack.c.l.b16 %v73
    %v174 = vunpack.c.h.b16 %v73
    %v175 = vunpack.c.l.b16 %v74
    %v176 = vunpack.c.h.b16 %v74
    %v177 = vunpack.c.l.b16 %v75
    %v178 = vunpack.c.h.b16 %v75
    %v179 = vunpack.c.l.b16 %v76
    %v180 = vunpack.c.h.b16 %v76
    %v181 = vunpack.c.l.b16 %v77
    %v182 = vunpack.c.h.b16 %v77
    %v183 = vunpack.c.l.b16 %v78
    %v184 = vunpack.c.h.b16 %v78
    %v185 = vunpack.c.l.b16 %v79
    %v186 = vunpack.c.h.b16 %v79
    %v187 = vunpack.c.l.b16 %v80
    %v188 = vunpack.c.h.b16 %v80
    %v189 = vpack.c.b16 %v129, %v125
    %v190 = vpack.c.b16 %v130, %v126
    %v191 = vpack.c.b16 %v131, %v127
    %v192 = vpack.c.b16 %v132, %v128
    %v193 = vpack.c.b16 %v137, %v133
    %v194 = vpack.c.b16 %v138, %v134
    %v195 = vpack.c.b16 %v139, %v135
    %v196 = vpack.c.b16 %v140, %v136
    %v197 = vpack.c.b16 %v145, %v141
    %v198 = vpack.c.b16 %v146, %v142
    %v199 = vpack.c.b16 %v147, %v143
    %v200 = vpack.c.b16 %v148, %v144
    %v201 = vpack.c.b16 %v153, %v149
    %v202 = vpack.c.b16 %v154, %v150
    %v203 = vpack.c.b16 %v155, %v151
    %v204 = vpack.c.b16 %v156, %v152
    %v205 = vpack.c.b16 %v161, %v157
    %v206 = vpack.c.b16 %v162, %v158
    %v207 = vpack.c.b16 %v163, %v159
    %v208 = vpack.c.b16 %v164, %v160
    %v209 = vpack.c.b16 %v169, %v165
    %v210 = vpack.c.b16 %v170, %v166
    %v211 = vpack.c.b16 %v171, %v167
    %v212 = vpack.c.b16 %v172, %v168
    %v213 = vpack.c.b16 %v177, %v173
    %v214 = vpack.c.b16 %v178, %v174
    %v215 = vpack.c.b16 %v179, %v175
    %v216 = vpack.c.b16 %v180, %v176
    %v217 = vpack.c.b16 %v185, %v181
    %v218 = vpack.c.b16 %v186, %v182
    %v219 = vpack.c.b16 %v187, %v183
    %v220 = vpack.c.b16 %v188, %v184
    %253 = vmatprep.subr.bf16.mxu0 %v190
    %254 = vmatpush1.bf16.msra.mxu0 %v189
    %255 = vmatprep.subr.bf16.mxu0 %v194
    %256 = vmatpush1.bf16.msra.mxu0 %v193
    %257 = vmatprep.subr.bf16.mxu0 %v198
    %258 = vmatpush1.bf16.msra.mxu0 %v197
    %259 = vmatprep.subr.bf16.mxu0 %v202
    %260 = vmatpush1.bf16.msra.mxu0 %v201
    %261 = vmatprep.subr.bf16.mxu0 %v206
    %262 = vmatpush1.bf16.msra.mxu0 %v205
    %263 = vmatprep.subr.bf16.mxu0 %v210
    %264 = vmatpush1.bf16.msra.mxu0 %v209
    %265 = vmatprep.subr.bf16.mxu0 %v214
    %266 = vmatpush1.bf16.msra.mxu0 %v213
    %267 = vmatprep.subr.bf16.mxu0 %v218
    %268 = vmatpush1.bf16.msra.mxu0 %v217
    %269 = vmatprep.subr.bf16.mxu0 0
    %270 = vmatpush1.bf16.msra.mxu0 0
    %271 = vmatprep.subr.bf16.mxu0 0
    %272 = vmatpush1.bf16.msra.mxu0 0
    %273 = vmatprep.subr.bf16.mxu0 0
    %274 = vmatpush1.bf16.msra.mxu0 0
    %275 = vmatprep.subr.bf16.mxu0 0
    %276 = vmatpush1.bf16.msra.mxu0 0
    %277 = vmatprep.subr.bf16.mxu0 0
    %278 = vmatpush1.bf16.msra.mxu0 0
    %279 = vmatprep.subr.bf16.mxu0 0
    %280 = vmatpush1.bf16.msra.mxu0 0
    %281 = vmatprep.subr.bf16.mxu0 0
    %282 = vmatpush1.bf16.msra.mxu0 0
    %283 = vmatprep.subr.bf16.mxu0 0
    %284 = vmatpush1.bf16.msra.mxu0 0
    %285 = vmatprep.mubr.bf16.mxu0 0
    %286 = vmatmul.mubr.bf16.gmra.mrb[0].mxu0 %v92
    %v287 = vpop.f32.mrb[0].mxu0
    %v288 = vadd.f32 0.0, %v287
    %v289 = vpop.f32.mrb[0].mxu0
    %v290 = vadd.f32 0.0, %v289
    %v291 = vpop.f32.mrb[0].mxu0
    %v292 = vpop.f32.mrb[0].mxu0
    %293 = vdwg.mxu0
    %294 = vmatprep.subr.bf16.mxu0 %v192
    %295 = vmatpush1.bf16.msra.mxu0 %v191
    %296 = vmatprep.subr.bf16.mxu0 %v196
    %297 = vmatpush1.bf16.msra.mxu0 %v195
    %298 = vmatprep.subr.bf16.mxu0 %v200
    %299 = vmatpush1.bf16.msra.mxu0 %v199
    %300 = vmatprep.subr.bf16.mxu0 %v204
    %301 = vmatpush1.bf16.msra.mxu0 %v203
    %302 = vmatprep.subr.bf16.mxu0 %v208
    %303 = vmatpush1.bf16.msra.mxu0 %v207
    %304 = vmatprep.subr.bf16.mxu0 %v212
    %305 = vmatpush1.bf16.msra.mxu0 %v211
    %306 = vmatprep.subr.bf16.mxu0 %v216
    %307 = vmatpush1.bf16.msra.mxu0 %v215
    %308 = vmatprep.subr.bf16.mxu0 %v220
    %309 = vmatpush1.bf16.msra.mxu0 %v219
    %310 = vmatprep.subr.bf16.mxu0 0
    %311 = vmatpush1.bf16.msra.mxu0 0
    %312 = vmatprep.subr.bf16.mxu0 0
    %313 = vmatpush1.bf16.msra.mxu0 0
    %314 = vmatprep.subr.bf16.mxu0 0
    %315 = vmatpush1.bf16.msra.mxu0 0
    %316 = vmatprep.subr.bf16.mxu0 0
    %317 = vmatpush1.bf16.msra.mxu0 0
    %318 = vmatprep.subr.bf16.mxu0 0
    %319 = vmatpush1.bf16.msra.mxu0 0
    %320 = vmatprep.subr.bf16.mxu0 0
    %321 = vmatpush1.bf16.msra.mxu0 0
    %322 = vmatprep.subr.bf16.mxu0 0
    %323 = vmatpush1.bf16.msra.mxu0 0
    %324 = vmatprep.subr.bf16.mxu0 0
    %325 = vmatpush1.bf16.msra.mxu0 0
    %326 = vmatprep.mubr.bf16.mxu0 0
    %327 = vmatmul.mubr.bf16.gmra.mrb[0].mxu0 %v92
    %v328 = vpop.f32.mrb[0].mxu0
    %v329 = vadd.f32 0.0, %v328
    %v330 = vpop.f32.mrb[0].mxu0
    %v331 = vadd.f32 0.0, %v330
    %v332 = vpop.f32.mrb[0].mxu0
    %v333 = vpop.f32.mrb[0].mxu0
    %334 = vdwg.mxu0
    %v343 = vunpack.c.l.b16 %v84
    %v344 = vunpack.c.l.b16 %v85
    %v345 = vunpack.c.l.b16 %v86
    %v346 = vunpack.c.l.b16 %v87
    %v347 = vunpack.c.l.b16 %v88
    %v348 = vunpack.c.l.b16 %v89
    %v349 = vunpack.c.l.b16 %v90
    %v350 = vunpack.c.l.b16 %v91
    %v351 = vpack.c.b16 %v343, %v343
    %v352 = vpack.c.b16 %v344, %v344
    %v353 = vpack.c.b16 %v345, %v345
    %v354 = vpack.c.b16 %v346, %v346
    %v355 = vpack.c.b16 %v347, %v347
    %v356 = vpack.c.b16 %v348, %v348
    %v357 = vpack.c.b16 %v349, %v349
    %v358 = vpack.c.b16 %v350, %v350
    %v359 = vunpack.c.l.b16 %v351
    %v360 = vunpack.c.l.b16 %v352
    %v361 = vunpack.c.l.b16 %v353
    %v362 = vunpack.c.l.b16 %v354
    %v363 = vunpack.c.l.b16 %v355
    %v364 = vunpack.c.l.b16 %v356
    %v365 = vunpack.c.l.b16 %v357
    %v366 = vunpack.c.l.b16 %v358
    %v367 = vrot.slane %v360, 7
    %vm368 = vcmask 1041409
    %v369 = vsel %vm368, %v367, %v359
    %v370 = vrot.slane %v361, 6
    %vm371 = vcmask 1042434
    %v372 = vsel %vm371, %v370, %v369
    %v373 = vrot.slane %v362, 5
    %vm374 = vcmask 1043459
    %v375 = vsel %vm374, %v373, %v372
    %v376 = vrot.slane %v363, 4
    %vm377 = vcmask 1044484
    %v378 = vsel %vm377, %v376, %v375
    %v379 = vrot.slane %v364, 3
    %vm380 = vcmask 1045509
    %v381 = vsel %vm380, %v379, %v378
    %v382 = vrot.slane %v365, 2
    %vm383 = vcmask 1046534
    %v384 = vsel %vm383, %v382, %v381
    %v385 = vrot.slane %v366, 1
    %vm386 = vcmask 1047559
    %v387 = vsel %vm386, %v385, %v384
    %v388 = vpack.c.b16 %v387, %v387
    %v393 = vunpack.c.l.b16 %v45
    %v394 = vunpack.c.h.b16 %v45
    %v395 = vunpack.c.l.b16 %v46
    %v396 = vunpack.c.h.b16 %v46
    %v397 = vunpack.c.l.b16 %v47
    %v398 = vunpack.c.h.b16 %v47
    %v399 = vunpack.c.l.b16 %v48
    %v400 = vunpack.c.h.b16 %v48
    %v401 = vpack.c.b16 %v397, %v393
    %v402 = vpack.c.b16 %v398, %v394
    %v403 = vpack.c.b16 %v399, %v395
    %v404 = vpack.c.b16 %v400, %v396
    %vm409 = vcmask 130048
    %v411 = vsel %vm409, %v388, 0
    %413 = vmatprep.subr.bf16.mxu0 %v402
    %414 = vmatpush1.bf16.msra.mxu0 %v401
    %415 = vmatprep.subr.bf16.mxu0 0
    %416 = vmatpush1.bf16.msra.mxu0 0
    %417 = vmatprep.subr.bf16.mxu0 0
    %418 = vmatpush1.bf16.msra.mxu0 0
    %419 = vmatprep.subr.bf16.mxu0 0
    %420 = vmatpush1.bf16.msra.mxu0 0
    %421 = vmatprep.subr.bf16.mxu0 0
    %422 = vmatpush1.bf16.msra.mxu0 0
    %423 = vmatprep.subr.bf16.mxu0 0
    %424 = vmatpush1.bf16.msra.mxu0 0
    %425 = vmatprep.subr.bf16.mxu0 0
    %426 = vmatpush1.bf16.msra.mxu0 0
    %427 = vmatprep.subr.bf16.mxu0 0
    %428 = vmatpush1.bf16.msra.mxu0 0
    %429 = vmatprep.subr.bf16.mxu0 0
    %430 = vmatpush1.bf16.msra.mxu0 0
    %431 = vmatprep.subr.bf16.mxu0 0
    %432 = vmatpush1.bf16.msra.mxu0 0
    %433 = vmatprep.subr.bf16.mxu0 0
    %434 = vmatpush1.bf16.msra.mxu0 0
    %435 = vmatprep.subr.bf16.mxu0 0
    %436 = vmatpush1.bf16.msra.mxu0 0
    %437 = vmatprep.subr.bf16.mxu0 0
    %438 = vmatpush1.bf16.msra.mxu0 0
    %439 = vmatprep.subr.bf16.mxu0 0
    %440 = vmatpush1.bf16.msra.mxu0 0
    %441 = vmatprep.subr.bf16.mxu0 0
    %442 = vmatpush1.bf16.msra.mxu0 0
    %443 = vmatprep.subr.bf16.mxu0 0
    %444 = vmatpush1.bf16.msra.mxu0 0
    %445 = vmatprep.mubr.bf16.mxu0 0
    %446 = vmatmul.mubr.bf16.gmra.mrb[0].mxu0 %v411
    %v447 = vpop.f32.mrb[0].mxu0
    %v448 = vadd.f32 %v288, %v447
    %v449 = vpop.f32.mrb[0].mxu0
    %v450 = vadd.f32 %v290, %v449
    %v451 = vpop.f32.mrb[0].mxu0
    %v452 = vpop.f32.mrb[0].mxu0
    %453 = vdwg.mxu0
    %454 = vmatprep.subr.bf16.mxu0 %v404
    %455 = vmatpush1.bf16.msra.mxu0 %v403
    %456 = vmatprep.subr.bf16.mxu0 0
    %457 = vmatpush1.bf16.msra.mxu0 0
    %458 = vmatprep.subr.bf16.mxu0 0
    %459 = vmatpush1.bf16.msra.mxu0 0
    %460 = vmatprep.subr.bf16.mxu0 0
    %461 = vmatpush1.bf16.msra.mxu0 0
    %462 = vmatprep.subr.bf16.mxu0 0
    %463 = vmatpush1.bf16.msra.mxu0 0
    %464 = vmatprep.subr.bf16.mxu0 0
    %465 = vmatpush1.bf16.msra.mxu0 0
    %466 = vmatprep.subr.bf16.mxu0 0
    %467 = vmatpush1.bf16.msra.mxu0 0
    %468 = vmatprep.subr.bf16.mxu0 0
    %469 = vmatpush1.bf16.msra.mxu0 0
    %470 = vmatprep.subr.bf16.mxu0 0
    %471 = vmatpush1.bf16.msra.mxu0 0
    %472 = vmatprep.subr.bf16.mxu0 0
    %473 = vmatpush1.bf16.msra.mxu0 0
    %474 = vmatprep.subr.bf16.mxu0 0
    %475 = vmatpush1.bf16.msra.mxu0 0
    %476 = vmatprep.subr.bf16.mxu0 0
    %477 = vmatpush1.bf16.msra.mxu0 0
    %478 = vmatprep.subr.bf16.mxu0 0
    %479 = vmatpush1.bf16.msra.mxu0 0
    %480 = vmatprep.subr.bf16.mxu0 0
    %481 = vmatpush1.bf16.msra.mxu0 0
    %482 = vmatprep.subr.bf16.mxu0 0
    %483 = vmatpush1.bf16.msra.mxu0 0
    %484 = vmatprep.subr.bf16.mxu0 0
    %485 = vmatpush1.bf16.msra.mxu0 0
    %486 = vmatprep.mubr.bf16.mxu0 0
    %487 = vmatmul.mubr.bf16.gmra.mrb[0].mxu0 %v411
    %v488 = vpop.f32.mrb[0].mxu0
    %v489 = vadd.f32 %v329, %v488
    %v490 = vpop.f32.mrb[0].mxu0
    %v491 = vadd.f32 %v331, %v490
    %v492 = vpop.f32.mrb[0].mxu0
    %v493 = vpop.f32.mrb[0].mxu0
    %494 = vdwg.mxu0
    %v496 = vlaneseq
    %v497 = vshrl.u32 %v496, 7
    %v498 = vsub.s32 0, %v497
    %v499 = vrot.slane %v81, %v498
    %v500 = vlaneseq
    %v501 = vshrl.u32 %v500, 7
    %v502 = vsub.s32 1, %v501
    %v503 = vrot.slane %v81, %v502
    %v504 = vlaneseq
    %v505 = vshrl.u32 %v504, 7
    %v506 = vsub.s32 2, %v505
    %v507 = vrot.slane %v81, %v506
    %v508 = vlaneseq
    %v509 = vshrl.u32 %v508, 7
    %v510 = vsub.s32 3, %v509
    %v511 = vrot.slane %v81, %v510
    %v516 = vadd.f32 %v448, %v499
    %v517 = vadd.f32 %v450, %v503
    %v518 = vadd.f32 %v489, %v507
    %v519 = vadd.f32 %v491, %v511
    %v520 = vmul.f32 %v516, 0.5
    %v521 = vtanh.pop %v520
    %v522 = vmul.f32 %v521, 0.5
    %v523 = vadd.f32 %v522, 0.5
    %v524 = vmul.f32 %v517, 0.5
    %v525 = vtanh.pop %v524
    %v526 = vmul.f32 %v525, 0.5
    %v527 = vadd.f32 %v526, 0.5
    %v528 = vtanh.pop %v518
    %v529 = vmul.f32 %v519, 0.5
    %v530 = vtanh.pop %v529
    %v531 = vmul.f32 %v530, 0.5
    %v532 = vadd.f32 %v531, 0.5
    %v533 = vmul.f32 %v527, %v83
    %v534 = vmul.f32 %v523, %v528
    %v535 = vadd.f32 %v533, %v534
    %v536 = vtanh.pop %v535
    %v537 = vmul.f32 %v532, %v536
    %v538 = vpack.c.bf16 %v537, %v537
    %539 = vmatprep.subr.bf16.mxu0 %v190
    %540 = vmatpush1.bf16.msra.mxu0 %v189
    %541 = vmatprep.subr.bf16.mxu0 %v194
    %542 = vmatpush1.bf16.msra.mxu0 %v193
    %543 = vmatprep.subr.bf16.mxu0 %v198
    %544 = vmatpush1.bf16.msra.mxu0 %v197
    %545 = vmatprep.subr.bf16.mxu0 %v202
    %546 = vmatpush1.bf16.msra.mxu0 %v201
    %547 = vmatprep.subr.bf16.mxu0 %v206
    %548 = vmatpush1.bf16.msra.mxu0 %v205
    %549 = vmatprep.subr.bf16.mxu0 %v210
    %550 = vmatpush1.bf16.msra.mxu0 %v209
    %551 = vmatprep.subr.bf16.mxu0 %v214
    %552 = vmatpush1.bf16.msra.mxu0 %v213
    %553 = vmatprep.subr.bf16.mxu0 %v218
    %554 = vmatpush1.bf16.msra.mxu0 %v217
    %555 = vmatprep.subr.bf16.mxu0 0
    %556 = vmatpush1.bf16.msra.mxu0 0
    %557 = vmatprep.subr.bf16.mxu0 0
    %558 = vmatpush1.bf16.msra.mxu0 0
    %559 = vmatprep.subr.bf16.mxu0 0
    %560 = vmatpush1.bf16.msra.mxu0 0
    %561 = vmatprep.subr.bf16.mxu0 0
    %562 = vmatpush1.bf16.msra.mxu0 0
    %563 = vmatprep.subr.bf16.mxu0 0
    %564 = vmatpush1.bf16.msra.mxu0 0
    %565 = vmatprep.subr.bf16.mxu0 0
    %566 = vmatpush1.bf16.msra.mxu0 0
    %567 = vmatprep.subr.bf16.mxu0 0
    %568 = vmatpush1.bf16.msra.mxu0 0
    %569 = vmatprep.subr.bf16.mxu0 0
    %570 = vmatpush1.bf16.msra.mxu0 0
    %571 = vmatprep.mubr.bf16.mxu0 0
    %572 = vmatmul.mubr.bf16.gmra.mrb[0].mxu0 %v538
    %v573 = vpop.f32.mrb[0].mxu0
    %v574 = vadd.f32 0.0, %v573
    %v575 = vpop.f32.mrb[0].mxu0
    %v576 = vadd.f32 0.0, %v575
    %v577 = vpop.f32.mrb[0].mxu0
    %v578 = vpop.f32.mrb[0].mxu0
    %579 = vdwg.mxu0
    %580 = vmatprep.subr.bf16.mxu0 %v192
    %581 = vmatpush1.bf16.msra.mxu0 %v191
    %582 = vmatprep.subr.bf16.mxu0 %v196
    %583 = vmatpush1.bf16.msra.mxu0 %v195
    %584 = vmatprep.subr.bf16.mxu0 %v200
    %585 = vmatpush1.bf16.msra.mxu0 %v199
    %586 = vmatprep.subr.bf16.mxu0 %v204
    %587 = vmatpush1.bf16.msra.mxu0 %v203
    %588 = vmatprep.subr.bf16.mxu0 %v208
    %589 = vmatpush1.bf16.msra.mxu0 %v207
    %590 = vmatprep.subr.bf16.mxu0 %v212
    %591 = vmatpush1.bf16.msra.mxu0 %v211
    %592 = vmatprep.subr.bf16.mxu0 %v216
    %593 = vmatpush1.bf16.msra.mxu0 %v215
    %594 = vmatprep.subr.bf16.mxu0 %v220
    %595 = vmatpush1.bf16.msra.mxu0 %v219
    %596 = vmatprep.subr.bf16.mxu0 0
    %597 = vmatpush1.bf16.msra.mxu0 0
    %598 = vmatprep.subr.bf16.mxu0 0
    %599 = vmatpush1.bf16.msra.mxu0 0
    %600 = vmatprep.subr.bf16.mxu0 0
    %601 = vmatpush1.bf16.msra.mxu0 0
    %602 = vmatprep.subr.bf16.mxu0 0
    %603 = vmatpush1.bf16.msra.mxu0 0
    %604 = vmatprep.subr.bf16.mxu0 0
    %605 = vmatpush1.bf16.msra.mxu0 0
    %606 = vmatprep.subr.bf16.mxu0 0
    %607 = vmatpush1.bf16.msra.mxu0 0
    %608 = vmatprep.subr.bf16.mxu0 0
    %609 = vmatpush1.bf16.msra.mxu0 0
    %610 = vmatprep.subr.bf16.mxu0 0
    %611 = vmatpush1.bf16.msra.mxu0 0
    %612 = vmatprep.mubr.bf16.mxu0 0
    %613 = vmatmul.mubr.bf16.gmra.mrb[0].mxu0 %v538
    %v614 = vpop.f32.mrb[0].mxu0
    %v615 = vadd.f32 0.0, %v614
    %v616 = vpop.f32.mrb[0].mxu0
    %v617 = vadd.f32 0.0, %v616
    %v618 = vpop.f32.mrb[0].mxu0
    %v619 = vpop.f32.mrb[0].mxu0
    %620 = vdwg.mxu0
    %v621 = vrot.slane %v359, 1
    %v622 = vsel %vm368, %v360, %v621
    %v623 = vrot.slane %v361, 7
    %v624 = vsel %vm371, %v623, %v622
    %v625 = vrot.slane %v362, 6
    %v626 = vsel %vm374, %v625, %v624
    %v627 = vrot.slane %v363, 5
    %v628 = vsel %vm377, %v627, %v626
    %v629 = vrot.slane %v364, 4
    %v630 = vsel %vm380, %v629, %v628
    %v631 = vrot.slane %v365, 3
    %v632 = vsel %vm383, %v631, %v630
    %v633 = vrot.slane %v366, 2
    %v634 = vsel %vm386, %v633, %v632
    %v635 = vpack.c.b16 %v634, %v634
    %v637 = vsel %vm409, %v635, 0
    %639 = vmatprep.subr.bf16.mxu0 %v402
    %640 = vmatpush1.bf16.msra.mxu0 %v401
    %641 = vmatprep.subr.bf16.mxu0 0
    %642 = vmatpush1.bf16.msra.mxu0 0
    %643 = vmatprep.subr.bf16.mxu0 0
    %644 = vmatpush1.bf16.msra.mxu0 0
    %645 = vmatprep.subr.bf16.mxu0 0
    %646 = vmatpush1.bf16.msra.mxu0 0
    %647 = vmatprep.subr.bf16.mxu0 0
    %648 = vmatpush1.bf16.msra.mxu0 0
    %649 = vmatprep.subr.bf16.mxu0 0
    %650 = vmatpush1.bf16.msra.mxu0 0
    %651 = vmatprep.subr.bf16.mxu0 0
    %652 = vmatpush1.bf16.msra.mxu0 0
    %653 = vmatprep.subr.bf16.mxu0 0
    %654 = vmatpush1.bf16.msra.mxu0 0
    %655 = vmatprep.subr.bf16.mxu0 0
    %656 = vmatpush1.bf16.msra.mxu0 0
    %657 = vmatprep.subr.bf16.mxu0 0
    %658 = vmatpush1.bf16.msra.mxu0 0
    %659 = vmatprep.subr.bf16.mxu0 0
    %660 = vmatpush1.bf16.msra.mxu0 0
    %661 = vmatprep.subr.bf16.mxu0 0
    %662 = vmatpush1.bf16.msra.mxu0 0
    %663 = vmatprep.subr.bf16.mxu0 0
    %664 = vmatpush1.bf16.msra.mxu0 0
    %665 = vmatprep.subr.bf16.mxu0 0
    %666 = vmatpush1.bf16.msra.mxu0 0
    %667 = vmatprep.subr.bf16.mxu0 0
    %668 = vmatpush1.bf16.msra.mxu0 0
    %669 = vmatprep.subr.bf16.mxu0 0
    %670 = vmatpush1.bf16.msra.mxu0 0
    %671 = vmatprep.mubr.bf16.mxu0 0
    %672 = vmatmul.mubr.bf16.gmra.mrb[0].mxu0 %v637
    %v673 = vpop.f32.mrb[0].mxu0
    %v674 = vadd.f32 %v574, %v673
    %v675 = vpop.f32.mrb[0].mxu0
    %v676 = vadd.f32 %v576, %v675
    %v677 = vpop.f32.mrb[0].mxu0
    %v678 = vpop.f32.mrb[0].mxu0
    %679 = vdwg.mxu0
    %680 = vmatprep.subr.bf16.mxu0 %v404
    %681 = vmatpush1.bf16.msra.mxu0 %v403
    %682 = vmatprep.subr.bf16.mxu0 0
    %683 = vmatpush1.bf16.msra.mxu0 0
    %684 = vmatprep.subr.bf16.mxu0 0
    %685 = vmatpush1.bf16.msra.mxu0 0
    %686 = vmatprep.subr.bf16.mxu0 0
    %687 = vmatpush1.bf16.msra.mxu0 0
    %688 = vmatprep.subr.bf16.mxu0 0
    %689 = vmatpush1.bf16.msra.mxu0 0
    %690 = vmatprep.subr.bf16.mxu0 0
    %691 = vmatpush1.bf16.msra.mxu0 0
    %692 = vmatprep.subr.bf16.mxu0 0
    %693 = vmatpush1.bf16.msra.mxu0 0
    %694 = vmatprep.subr.bf16.mxu0 0
    %695 = vmatpush1.bf16.msra.mxu0 0
    %696 = vmatprep.subr.bf16.mxu0 0
    %697 = vmatpush1.bf16.msra.mxu0 0
    %698 = vmatprep.subr.bf16.mxu0 0
    %699 = vmatpush1.bf16.msra.mxu0 0
    %700 = vmatprep.subr.bf16.mxu0 0
    %701 = vmatpush1.bf16.msra.mxu0 0
    %702 = vmatprep.subr.bf16.mxu0 0
    %703 = vmatpush1.bf16.msra.mxu0 0
    %704 = vmatprep.subr.bf16.mxu0 0
    %705 = vmatpush1.bf16.msra.mxu0 0
    %706 = vmatprep.subr.bf16.mxu0 0
    %707 = vmatpush1.bf16.msra.mxu0 0
    %708 = vmatprep.subr.bf16.mxu0 0
    %709 = vmatpush1.bf16.msra.mxu0 0
    %710 = vmatprep.subr.bf16.mxu0 0
    %711 = vmatpush1.bf16.msra.mxu0 0
    %712 = vmatprep.mubr.bf16.mxu0 0
    %713 = vmatmul.mubr.bf16.gmra.mrb[0].mxu0 %v637
    %v714 = vpop.f32.mrb[0].mxu0
    %v715 = vadd.f32 %v615, %v714
    %v716 = vpop.f32.mrb[0].mxu0
    %v717 = vadd.f32 %v617, %v716
    %v718 = vpop.f32.mrb[0].mxu0
    %v719 = vpop.f32.mrb[0].mxu0
    %720 = vdwg.mxu0
    %v721 = vadd.f32 %v674, %v499
    %v722 = vadd.f32 %v676, %v503
    %v723 = vadd.f32 %v715, %v507
    %v724 = vadd.f32 %v717, %v511
    %v725 = vmul.f32 %v721, 0.5
    %v726 = vtanh.pop %v725
    %v727 = vmul.f32 %v726, 0.5
    %v728 = vadd.f32 %v727, 0.5
    %v729 = vmul.f32 %v722, 0.5
    %v730 = vtanh.pop %v729
    %v731 = vmul.f32 %v730, 0.5
    %v732 = vadd.f32 %v731, 0.5
    %v733 = vtanh.pop %v723
    %v734 = vmul.f32 %v724, 0.5
    %v735 = vtanh.pop %v734
    %v736 = vmul.f32 %v735, 0.5
    %v737 = vadd.f32 %v736, 0.5
    %v738 = vmul.f32 %v732, %v535
    %v739 = vmul.f32 %v728, %v733
    %v740 = vadd.f32 %v738, %v739
    %v741 = vtanh.pop %v740
    %v742 = vmul.f32 %v737, %v741
    %v743 = vld [vmem:[%s0] sm:$0x2]
    %v744 = vld [vmem:[%s0 + $0x8] sm:$0x2]
    %v745 = vld [vmem:[%s0 + $0x10] sm:$0x2]
    %v746 = vld [vmem:[%s0 + $0x18] sm:$0x2]
    %v747 = vld [vmem:[%s0 + $0x20] sm:$0x2]
    %v748 = vld [vmem:[%s0 + $0x28] sm:$0x2]
    %v749 = vld [vmem:[%s0 + $0x30] sm:$0x2]
    %v750 = vld [vmem:[%s0 + $0x38] sm:$0x2]
    %v751 = vpack.c.bf16 %v742, %v742
    %752 = vmatprep.subr.bf16.mxu0 %v190
    %753 = vmatpush1.bf16.msra.mxu0 %v189
    %754 = vmatprep.subr.bf16.mxu0 %v194
    %755 = vmatpush1.bf16.msra.mxu0 %v193
    %756 = vmatprep.subr.bf16.mxu0 %v198
    %757 = vmatpush1.bf16.msra.mxu0 %v197
    %758 = vmatprep.subr.bf16.mxu0 %v202
    %759 = vmatpush1.bf16.msra.mxu0 %v201
    %760 = vmatprep.subr.bf16.mxu0 %v206
    %761 = vmatpush1.bf16.msra.mxu0 %v205
    %762 = vmatprep.subr.bf16.mxu0 %v210
    %763 = vmatpush1.bf16.msra.mxu0 %v209
    %764 = vmatprep.subr.bf16.mxu0 %v214
    %765 = vmatpush1.bf16.msra.mxu0 %v213
    %766 = vmatprep.subr.bf16.mxu0 %v218
    %767 = vmatpush1.bf16.msra.mxu0 %v217
    %768 = vmatprep.subr.bf16.mxu0 0
    %769 = vmatpush1.bf16.msra.mxu0 0
    %770 = vmatprep.subr.bf16.mxu0 0
    %771 = vmatpush1.bf16.msra.mxu0 0
    %772 = vmatprep.subr.bf16.mxu0 0
    %773 = vmatpush1.bf16.msra.mxu0 0
    %774 = vmatprep.subr.bf16.mxu0 0
    %775 = vmatpush1.bf16.msra.mxu0 0
    %776 = vmatprep.subr.bf16.mxu0 0
    %777 = vmatpush1.bf16.msra.mxu0 0
    %778 = vmatprep.subr.bf16.mxu0 0
    %779 = vmatpush1.bf16.msra.mxu0 0
    %780 = vmatprep.subr.bf16.mxu0 0
    %781 = vmatpush1.bf16.msra.mxu0 0
    %782 = vmatprep.subr.bf16.mxu0 0
    %783 = vmatpush1.bf16.msra.mxu0 0
    %784 = vmatprep.mubr.bf16.mxu0 0
    %785 = vmatmul.mubr.bf16.gmra.mrb[0].mxu0 %v751
    %v786 = vpop.f32.mrb[0].mxu0
    %v787 = vadd.f32 0.0, %v786
    %v788 = vpop.f32.mrb[0].mxu0
    %v789 = vadd.f32 0.0, %v788
    %v790 = vpop.f32.mrb[0].mxu0
    %v791 = vpop.f32.mrb[0].mxu0
    %792 = vdwg.mxu0
    %793 = vmatprep.subr.bf16.mxu0 %v192
    %794 = vmatpush1.bf16.msra.mxu0 %v191
    %795 = vmatprep.subr.bf16.mxu0 %v196
    %796 = vmatpush1.bf16.msra.mxu0 %v195
    %797 = vmatprep.subr.bf16.mxu0 %v200
    %798 = vmatpush1.bf16.msra.mxu0 %v199
    %799 = vmatprep.subr.bf16.mxu0 %v204
    %800 = vmatpush1.bf16.msra.mxu0 %v203
    %801 = vmatprep.subr.bf16.mxu0 %v208
    %802 = vmatpush1.bf16.msra.mxu0 %v207
    %803 = vmatprep.subr.bf16.mxu0 %v212
    %804 = vmatpush1.bf16.msra.mxu0 %v211
    %805 = vmatprep.subr.bf16.mxu0 %v216
    %806 = vmatpush1.bf16.msra.mxu0 %v215
    %807 = vmatprep.subr.bf16.mxu0 %v220
    %808 = vmatpush1.bf16.msra.mxu0 %v219
    %809 = vmatprep.subr.bf16.mxu0 0
    %810 = vmatpush1.bf16.msra.mxu0 0
    %811 = vmatprep.subr.bf16.mxu0 0
    %812 = vmatpush1.bf16.msra.mxu0 0
    %813 = vmatprep.subr.bf16.mxu0 0
    %814 = vmatpush1.bf16.msra.mxu0 0
    %815 = vmatprep.subr.bf16.mxu0 0
    %816 = vmatpush1.bf16.msra.mxu0 0
    %817 = vmatprep.subr.bf16.mxu0 0
    %818 = vmatpush1.bf16.msra.mxu0 0
    %819 = vmatprep.subr.bf16.mxu0 0
    %820 = vmatpush1.bf16.msra.mxu0 0
    %821 = vmatprep.subr.bf16.mxu0 0
    %822 = vmatpush1.bf16.msra.mxu0 0
    %823 = vmatprep.subr.bf16.mxu0 0
    %824 = vmatpush1.bf16.msra.mxu0 0
    %825 = vmatprep.mubr.bf16.mxu0 0
    %826 = vmatmul.mubr.bf16.gmra.mrb[0].mxu0 %v751
    %v827 = vpop.f32.mrb[0].mxu0
    %v828 = vadd.f32 0.0, %v827
    %v829 = vpop.f32.mrb[0].mxu0
    %v830 = vadd.f32 0.0, %v829
    %v831 = vpop.f32.mrb[0].mxu0
    %v832 = vpop.f32.mrb[0].mxu0
    %833 = vdwg.mxu0
    %v842 = vunpack.c.l.b16 %v743
    %v843 = vunpack.c.l.b16 %v744
    %v844 = vunpack.c.l.b16 %v745
    %v845 = vunpack.c.l.b16 %v746
    %v846 = vunpack.c.l.b16 %v747
    %v847 = vunpack.c.l.b16 %v748
    %v848 = vunpack.c.l.b16 %v749
    %v849 = vunpack.c.l.b16 %v750
    %v850 = vpack.c.b16 %v842, %v842
    %v851 = vpack.c.b16 %v843, %v843
    %v852 = vpack.c.b16 %v844, %v844
    %v853 = vpack.c.b16 %v845, %v845
    %v854 = vpack.c.b16 %v846, %v846
    %v855 = vpack.c.b16 %v847, %v847
    %v856 = vpack.c.b16 %v848, %v848
    %v857 = vpack.c.b16 %v849, %v849
    %v858 = vunpack.c.l.b16 %v850
    %v859 = vunpack.c.l.b16 %v851
    %v860 = vunpack.c.l.b16 %v852
    %v861 = vunpack.c.l.b16 %v853
    %v862 = vunpack.c.l.b16 %v854
    %v863 = vunpack.c.l.b16 %v855
    %v864 = vunpack.c.l.b16 %v856
    %v865 = vunpack.c.l.b16 %v857
    %v866 = vrot.slane %v858, 2
    %v867 = vrot.slane %v859, 1
    %v868 = vsel %vm368, %v867, %v866
    %v869 = vsel %vm371, %v860, %v868
    %v870 = vrot.slane %v861, 7
    %v871 = vsel %vm374, %v870, %v869
    %v872 = vrot.slane %v862, 6
    %v873 = vsel %vm377, %v872, %v871
    %v874 = vrot.slane %v863, 5
    %v875 = vsel %vm380, %v874, %v873
    %v876 = vrot.slane %v864, 4
    %v877 = vsel %vm383, %v876, %v875
    %v878 = vrot.slane %v865, 3
    %v879 = vsel %vm386, %v878, %v877
    %v880 = vpack.c.b16 %v879, %v879
    %v882 = vsel %vm409, %v880, 0
    %884 = vmatprep.subr.bf16.mxu0 %v402
    %885 = vmatpush1.bf16.msra.mxu0 %v401
    %886 = vmatprep.subr.bf16.mxu0 0
    %887 = vmatpush1.bf16.msra.mxu0 0
    %888 = vmatprep.subr.bf16.mxu0 0
    %889 = vmatpush1.bf16.msra.mxu0 0
    %890 = vmatprep.subr.bf16.mxu0 0
    %891 = vmatpush1.bf16.msra.mxu0 0
    %892 = vmatprep.subr.bf16.mxu0 0
    %893 = vmatpush1.bf16.msra.mxu0 0
    %894 = vmatprep.subr.bf16.mxu0 0
    %895 = vmatpush1.bf16.msra.mxu0 0
    %896 = vmatprep.subr.bf16.mxu0 0
    %897 = vmatpush1.bf16.msra.mxu0 0
    %898 = vmatprep.subr.bf16.mxu0 0
    %899 = vmatpush1.bf16.msra.mxu0 0
    %900 = vmatprep.subr.bf16.mxu0 0
    %901 = vmatpush1.bf16.msra.mxu0 0
    %902 = vmatprep.subr.bf16.mxu0 0
    %903 = vmatpush1.bf16.msra.mxu0 0
    %904 = vmatprep.subr.bf16.mxu0 0
    %905 = vmatpush1.bf16.msra.mxu0 0
    %906 = vmatprep.subr.bf16.mxu0 0
    %907 = vmatpush1.bf16.msra.mxu0 0
    %908 = vmatprep.subr.bf16.mxu0 0
    %909 = vmatpush1.bf16.msra.mxu0 0
    %910 = vmatprep.subr.bf16.mxu0 0
    %911 = vmatpush1.bf16.msra.mxu0 0
    %912 = vmatprep.subr.bf16.mxu0 0
    %913 = vmatpush1.bf16.msra.mxu0 0
    %914 = vmatprep.subr.bf16.mxu0 0
    %915 = vmatpush1.bf16.msra.mxu0 0
    %916 = vmatprep.mubr.bf16.mxu0 0
    %917 = vmatmul.mubr.bf16.gmra.mrb[0].mxu0 %v882
    %v918 = vpop.f32.mrb[0].mxu0
    %v919 = vadd.f32 %v787, %v918
    %v920 = vpop.f32.mrb[0].mxu0
    %v921 = vadd.f32 %v789, %v920
    %v922 = vpop.f32.mrb[0].mxu0
    %v923 = vpop.f32.mrb[0].mxu0
    %924 = vdwg.mxu0
    %925 = vmatprep.subr.bf16.mxu0 %v404
    %926 = vmatpush1.bf16.msra.mxu0 %v403
    %927 = vmatprep.subr.bf16.mxu0 0
    %928 = vmatpush1.bf16.msra.mxu0 0
    %929 = vmatprep.subr.bf16.mxu0 0
    %930 = vmatpush1.bf16.msra.mxu0 0
    %931 = vmatprep.subr.bf16.mxu0 0
    %932 = vmatpush1.bf16.msra.mxu0 0
    %933 = vmatprep.subr.bf16.mxu0 0
    %934 = vmatpush1.bf16.msra.mxu0 0
    %935 = vmatprep.subr.bf16.mxu0 0
    %936 = vmatpush1.bf16.msra.mxu0 0
    %937 = vmatprep.subr.bf16.mxu0 0
    %938 = vmatpush1.bf16.msra.mxu0 0
    %939 = vmatprep.subr.bf16.mxu0 0
    %940 = vmatpush1.bf16.msra.mxu0 0
    %941 = vmatprep.subr.bf16.mxu0 0
    %942 = vmatpush1.bf16.msra.mxu0 0
    %943 = vmatprep.subr.bf16.mxu0 0
    %944 = vmatpush1.bf16.msra.mxu0 0
    %945 = vmatprep.subr.bf16.mxu0 0
    %946 = vmatpush1.bf16.msra.mxu0 0
    %947 = vmatprep.subr.bf16.mxu0 0
    %948 = vmatpush1.bf16.msra.mxu0 0
    %949 = vmatprep.subr.bf16.mxu0 0
    %950 = vmatpush1.bf16.msra.mxu0 0
    %951 = vmatprep.subr.bf16.mxu0 0
    %952 = vmatpush1.bf16.msra.mxu0 0
    %953 = vmatprep.subr.bf16.mxu0 0
    %954 = vmatpush1.bf16.msra.mxu0 0
    %955 = vmatprep.subr.bf16.mxu0 0
    %956 = vmatpush1.bf16.msra.mxu0 0
    %957 = vmatprep.mubr.bf16.mxu0 0
    %958 = vmatmul.mubr.bf16.gmra.mrb[0].mxu0 %v882
    %v959 = vpop.f32.mrb[0].mxu0
    %v960 = vadd.f32 %v828, %v959
    %v961 = vpop.f32.mrb[0].mxu0
    %v962 = vadd.f32 %v830, %v961
    %v963 = vpop.f32.mrb[0].mxu0
    %v964 = vpop.f32.mrb[0].mxu0
    %965 = vdwg.mxu0
    %v966 = vadd.f32 %v919, %v499
    %v967 = vadd.f32 %v921, %v503
    %v968 = vadd.f32 %v960, %v507
    %v969 = vadd.f32 %v962, %v511
    %v970 = vmul.f32 %v966, 0.5
    %v971 = vtanh.pop %v970
    %v972 = vmul.f32 %v971, 0.5
    %v973 = vadd.f32 %v972, 0.5
    %v974 = vmul.f32 %v967, 0.5
    %v975 = vtanh.pop %v974
    %v976 = vmul.f32 %v975, 0.5
    %v977 = vadd.f32 %v976, 0.5
    %v978 = vtanh.pop %v968
    %v979 = vmul.f32 %v969, 0.5
    %v980 = vtanh.pop %v979
    %v981 = vmul.f32 %v980, 0.5
    %v982 = vadd.f32 %v981, 0.5
    %v983 = vmul.f32 %v977, %v740
    %v984 = vmul.f32 %v973, %v978
    %v985 = vadd.f32 %v983, %v984
    %v986 = vtanh.pop %v985
    %v987 = vmul.f32 %v982, %v986
    %v988 = vpack.c.bf16 %v987, %v987
    %989 = vmatprep.subr.bf16.mxu0 %v190
    %990 = vmatpush1.bf16.msra.mxu0 %v189
    %991 = vmatprep.subr.bf16.mxu0 %v194
    %992 = vmatpush1.bf16.msra.mxu0 %v193
    %993 = vmatprep.subr.bf16.mxu0 %v198
    %994 = vmatpush1.bf16.msra.mxu0 %v197
    %995 = vmatprep.subr.bf16.mxu0 %v202
    %996 = vmatpush1.bf16.msra.mxu0 %v201
    %997 = vmatprep.subr.bf16.mxu0 %v206
    %998 = vmatpush1.bf16.msra.mxu0 %v205
    %999 = vmatprep.subr.bf16.mxu0 %v210
    %1000 = vmatpush1.bf16.msra.mxu0 %v209
    %1001 = vmatprep.subr.bf16.mxu0 %v214
    %1002 = vmatpush1.bf16.msra.mxu0 %v213
    %1003 = vmatprep.subr.bf16.mxu0 %v218
    %1004 = vmatpush1.bf16.msra.mxu0 %v217
    %1005 = vmatprep.subr.bf16.mxu0 0
    %1006 = vmatpush1.bf16.msra.mxu0 0
    %1007 = vmatprep.subr.bf16.mxu0 0
    %1008 = vmatpush1.bf16.msra.mxu0 0
    %1009 = vmatprep.subr.bf16.mxu0 0
    %1010 = vmatpush1.bf16.msra.mxu0 0
    %1011 = vmatprep.subr.bf16.mxu0 0
    %1012 = vmatpush1.bf16.msra.mxu0 0
    %1013 = vmatprep.subr.bf16.mxu0 0
    %1014 = vmatpush1.bf16.msra.mxu0 0
    %1015 = vmatprep.subr.bf16.mxu0 0
    %1016 = vmatpush1.bf16.msra.mxu0 0
    %1017 = vmatprep.subr.bf16.mxu0 0
    %1018 = vmatpush1.bf16.msra.mxu0 0
    %1019 = vmatprep.subr.bf16.mxu0 0
    %1020 = vmatpush1.bf16.msra.mxu0 0
    %1021 = vmatprep.mubr.bf16.mxu0 0
    %1022 = vmatmul.mubr.bf16.gmra.mrb[0].mxu0 %v988
    %v1023 = vpop.f32.mrb[0].mxu0
    %v1024 = vadd.f32 0.0, %v1023
    %v1025 = vpop.f32.mrb[0].mxu0
    %v1026 = vadd.f32 0.0, %v1025
    %v1027 = vpop.f32.mrb[0].mxu0
    %v1028 = vpop.f32.mrb[0].mxu0
    %1029 = vdwg.mxu0
    %1030 = vmatprep.subr.bf16.mxu0 %v192
    %1031 = vmatpush1.bf16.msra.mxu0 %v191
    %1032 = vmatprep.subr.bf16.mxu0 %v196
    %1033 = vmatpush1.bf16.msra.mxu0 %v195
    %1034 = vmatprep.subr.bf16.mxu0 %v200
    %1035 = vmatpush1.bf16.msra.mxu0 %v199
    %1036 = vmatprep.subr.bf16.mxu0 %v204
    %1037 = vmatpush1.bf16.msra.mxu0 %v203
    %1038 = vmatprep.subr.bf16.mxu0 %v208
    %1039 = vmatpush1.bf16.msra.mxu0 %v207
    %1040 = vmatprep.subr.bf16.mxu0 %v212
    %1041 = vmatpush1.bf16.msra.mxu0 %v211
    %1042 = vmatprep.subr.bf16.mxu0 %v216
    %1043 = vmatpush1.bf16.msra.mxu0 %v215
    %1044 = vmatprep.subr.bf16.mxu0 %v220
    %1045 = vmatpush1.bf16.msra.mxu0 %v219
    %1046 = vmatprep.subr.bf16.mxu0 0
    %1047 = vmatpush1.bf16.msra.mxu0 0
    %1048 = vmatprep.subr.bf16.mxu0 0
    %1049 = vmatpush1.bf16.msra.mxu0 0
    %1050 = vmatprep.subr.bf16.mxu0 0
    %1051 = vmatpush1.bf16.msra.mxu0 0
    %1052 = vmatprep.subr.bf16.mxu0 0
    %1053 = vmatpush1.bf16.msra.mxu0 0
    %1054 = vmatprep.subr.bf16.mxu0 0
    %1055 = vmatpush1.bf16.msra.mxu0 0
    %1056 = vmatprep.subr.bf16.mxu0 0
    %1057 = vmatpush1.bf16.msra.mxu0 0
    %1058 = vmatprep.subr.bf16.mxu0 0
    %1059 = vmatpush1.bf16.msra.mxu0 0
    %1060 = vmatprep.subr.bf16.mxu0 0
    %1061 = vmatpush1.bf16.msra.mxu0 0
    %1062 = vmatprep.mubr.bf16.mxu0 0
    %1063 = vmatmul.mubr.bf16.gmra.mrb[0].mxu0 %v988
    %v1064 = vpop.f32.mrb[0].mxu0
    %v1065 = vadd.f32 0.0, %v1064
    %v1066 = vpop.f32.mrb[0].mxu0
    %v1067 = vadd.f32 0.0, %v1066
    %v1068 = vpop.f32.mrb[0].mxu0
    %v1069 = vpop.f32.mrb[0].mxu0
    %1070 = vdwg.mxu0
    %v1071 = vrot.slane %v858, 3
    %v1072 = vrot.slane %v859, 2
    %v1073 = vsel %vm368, %v1072, %v1071
    %v1074 = vrot.slane %v860, 1
    %v1075 = vsel %vm371, %v1074, %v1073
    %v1076 = vsel %vm374, %v861, %v1075
    %v1077 = vrot.slane %v862, 7
    %v1078 = vsel %vm377, %v1077, %v1076
    %v1079 = vrot.slane %v863, 6
    %v1080 = vsel %vm380, %v1079, %v1078
    %v1081 = vrot.slane %v864, 5
    %v1082 = vsel %vm383, %v1081, %v1080
    %v1083 = vrot.slane %v865, 4
    %v1084 = vsel %vm386, %v1083, %v1082
    %v1085 = vpack.c.b16 %v1084, %v1084
    %v1087 = vsel %vm409, %v1085, 0
    %1089 = vmatprep.subr.bf16.mxu0 %v402
    %1090 = vmatpush1.bf16.msra.mxu0 %v401
    %1091 = vmatprep.subr.bf16.mxu0 0
    %1092 = vmatpush1.bf16.msra.mxu0 0
    %1093 = vmatprep.subr.bf16.mxu0 0
    %1094 = vmatpush1.bf16.msra.mxu0 0
    %1095 = vmatprep.subr.bf16.mxu0 0
    %1096 = vmatpush1.bf16.msra.mxu0 0
    %1097 = vmatprep.subr.bf16.mxu0 0
    %1098 = vmatpush1.bf16.msra.mxu0 0
    %1099 = vmatprep.subr.bf16.mxu0 0
    %1100 = vmatpush1.bf16.msra.mxu0 0
    %1101 = vmatprep.subr.bf16.mxu0 0
    %1102 = vmatpush1.bf16.msra.mxu0 0
    %1103 = vmatprep.subr.bf16.mxu0 0
    %1104 = vmatpush1.bf16.msra.mxu0 0
    %1105 = vmatprep.subr.bf16.mxu0 0
    %1106 = vmatpush1.bf16.msra.mxu0 0
    %1107 = vmatprep.subr.bf16.mxu0 0
    %1108 = vmatpush1.bf16.msra.mxu0 0
    %1109 = vmatprep.subr.bf16.mxu0 0
    %1110 = vmatpush1.bf16.msra.mxu0 0
    %1111 = vmatprep.subr.bf16.mxu0 0
    %1112 = vmatpush1.bf16.msra.mxu0 0
    %1113 = vmatprep.subr.bf16.mxu0 0
    %1114 = vmatpush1.bf16.msra.mxu0 0
    %1115 = vmatprep.subr.bf16.mxu0 0
    %1116 = vmatpush1.bf16.msra.mxu0 0
    %1117 = vmatprep.subr.bf16.mxu0 0
    %1118 = vmatpush1.bf16.msra.mxu0 0
    %1119 = vmatprep.subr.bf16.mxu0 0
    %1120 = vmatpush1.bf16.msra.mxu0 0
    %1121 = vmatprep.mubr.bf16.mxu0 0
    %1122 = vmatmul.mubr.bf16.gmra.mrb[0].mxu0 %v1087
    %v1123 = vpop.f32.mrb[0].mxu0
    %v1124 = vadd.f32 %v1024, %v1123
    %v1125 = vpop.f32.mrb[0].mxu0
    %v1126 = vadd.f32 %v1026, %v1125
    %v1127 = vpop.f32.mrb[0].mxu0
    %v1128 = vpop.f32.mrb[0].mxu0
    %1129 = vdwg.mxu0
    %1130 = vmatprep.subr.bf16.mxu0 %v404
    %1131 = vmatpush1.bf16.msra.mxu0 %v403
    %1132 = vmatprep.subr.bf16.mxu0 0
    %1133 = vmatpush1.bf16.msra.mxu0 0
    %1134 = vmatprep.subr.bf16.mxu0 0
    %1135 = vmatpush1.bf16.msra.mxu0 0
    %1136 = vmatprep.subr.bf16.mxu0 0
    %1137 = vmatpush1.bf16.msra.mxu0 0
    %1138 = vmatprep.subr.bf16.mxu0 0
    %1139 = vmatpush1.bf16.msra.mxu0 0
    %1140 = vmatprep.subr.bf16.mxu0 0
    %1141 = vmatpush1.bf16.msra.mxu0 0
    %1142 = vmatprep.subr.bf16.mxu0 0
    %1143 = vmatpush1.bf16.msra.mxu0 0
    %1144 = vmatprep.subr.bf16.mxu0 0
    %1145 = vmatpush1.bf16.msra.mxu0 0
    %1146 = vmatprep.subr.bf16.mxu0 0
    %1147 = vmatpush1.bf16.msra.mxu0 0
    %1148 = vmatprep.subr.bf16.mxu0 0
    %1149 = vmatpush1.bf16.msra.mxu0 0
    %1150 = vmatprep.subr.bf16.mxu0 0
    %1151 = vmatpush1.bf16.msra.mxu0 0
    %1152 = vmatprep.subr.bf16.mxu0 0
    %1153 = vmatpush1.bf16.msra.mxu0 0
    %1154 = vmatprep.subr.bf16.mxu0 0
    %1155 = vmatpush1.bf16.msra.mxu0 0
    %1156 = vmatprep.subr.bf16.mxu0 0
    %1157 = vmatpush1.bf16.msra.mxu0 0
    %1158 = vmatprep.subr.bf16.mxu0 0
    %1159 = vmatpush1.bf16.msra.mxu0 0
    %1160 = vmatprep.subr.bf16.mxu0 0
    %1161 = vmatpush1.bf16.msra.mxu0 0
    %1162 = vmatprep.mubr.bf16.mxu0 0
    %1163 = vmatmul.mubr.bf16.gmra.mrb[0].mxu0 %v1087
    %v1164 = vpop.f32.mrb[0].mxu0
    %v1165 = vadd.f32 %v1065, %v1164
    %v1166 = vpop.f32.mrb[0].mxu0
    %v1167 = vadd.f32 %v1067, %v1166
    %v1168 = vpop.f32.mrb[0].mxu0
    %v1169 = vpop.f32.mrb[0].mxu0
    %1170 = vdwg.mxu0
    %v1171 = vadd.f32 %v1124, %v499
    %v1172 = vadd.f32 %v1126, %v503
    %v1173 = vadd.f32 %v1165, %v507
    %v1174 = vadd.f32 %v1167, %v511
    %v1175 = vmul.f32 %v1171, 0.5
    %v1176 = vtanh.pop %v1175
    %v1177 = vmul.f32 %v1176, 0.5
    %v1178 = vadd.f32 %v1177, 0.5
    %v1179 = vmul.f32 %v1172, 0.5
    %v1180 = vtanh.pop %v1179
    %v1181 = vmul.f32 %v1180, 0.5
    %v1182 = vadd.f32 %v1181, 0.5
    %v1183 = vtanh.pop %v1173
    %v1184 = vmul.f32 %v1174, 0.5
    %v1185 = vtanh.pop %v1184
    %v1186 = vmul.f32 %v1185, 0.5
    %v1187 = vadd.f32 %v1186, 0.5
    %v1188 = vmul.f32 %v1182, %v985
    %v1189 = vmul.f32 %v1178, %v1183
    %v1190 = vadd.f32 %v1188, %v1189
    %v1191 = vtanh.pop %v1190
    %v1192 = vmul.f32 %v1187, %v1191
    %v1193 = vld [vmem:[%s0] sm:$0x4]
    %v1194 = vld [vmem:[%s0 + $0x8] sm:$0x4]
    %v1195 = vld [vmem:[%s0 + $0x10] sm:$0x4]
    %v1196 = vld [vmem:[%s0 + $0x18] sm:$0x4]
    %v1197 = vld [vmem:[%s0 + $0x20] sm:$0x4]
    %v1198 = vld [vmem:[%s0 + $0x28] sm:$0x4]
    %v1199 = vld [vmem:[%s0 + $0x30] sm:$0x4]
    %v1200 = vld [vmem:[%s0 + $0x38] sm:$0x4]
    %v1201 = vpack.c.bf16 %v1192, %v1192
    %1202 = vmatprep.subr.bf16.mxu0 %v190
    %1203 = vmatpush1.bf16.msra.mxu0 %v189
    %1204 = vmatprep.subr.bf16.mxu0 %v194
    %1205 = vmatpush1.bf16.msra.mxu0 %v193
    %1206 = vmatprep.subr.bf16.mxu0 %v198
    %1207 = vmatpush1.bf16.msra.mxu0 %v197
    %1208 = vmatprep.subr.bf16.mxu0 %v202
    %1209 = vmatpush1.bf16.msra.mxu0 %v201
    %1210 = vmatprep.subr.bf16.mxu0 %v206
    %1211 = vmatpush1.bf16.msra.mxu0 %v205
    %1212 = vmatprep.subr.bf16.mxu0 %v210
    %1213 = vmatpush1.bf16.msra.mxu0 %v209
    %1214 = vmatprep.subr.bf16.mxu0 %v214
    %1215 = vmatpush1.bf16.msra.mxu0 %v213
    %1216 = vmatprep.subr.bf16.mxu0 %v218
    %1217 = vmatpush1.bf16.msra.mxu0 %v217
    %1218 = vmatprep.subr.bf16.mxu0 0
    %1219 = vmatpush1.bf16.msra.mxu0 0
    %1220 = vmatprep.subr.bf16.mxu0 0
    %1221 = vmatpush1.bf16.msra.mxu0 0
    %1222 = vmatprep.subr.bf16.mxu0 0
    %1223 = vmatpush1.bf16.msra.mxu0 0
    %1224 = vmatprep.subr.bf16.mxu0 0
    %1225 = vmatpush1.bf16.msra.mxu0 0
    %1226 = vmatprep.subr.bf16.mxu0 0
    %1227 = vmatpush1.bf16.msra.mxu0 0
    %1228 = vmatprep.subr.bf16.mxu0 0
    %1229 = vmatpush1.bf16.msra.mxu0 0
    %1230 = vmatprep.subr.bf16.mxu0 0
    %1231 = vmatpush1.bf16.msra.mxu0 0
    %1232 = vmatprep.subr.bf16.mxu0 0
    %1233 = vmatpush1.bf16.msra.mxu0 0
    %1234 = vmatprep.mubr.bf16.mxu0 0
    %1235 = vmatmul.mubr.bf16.gmra.mrb[0].mxu0 %v1201
    %v1236 = vpop.f32.mrb[0].mxu0
    %v1237 = vadd.f32 0.0, %v1236
    %v1238 = vpop.f32.mrb[0].mxu0
    %v1239 = vadd.f32 0.0, %v1238
    %v1240 = vpop.f32.mrb[0].mxu0
    %v1241 = vpop.f32.mrb[0].mxu0
    %1242 = vdwg.mxu0
    %1243 = vmatprep.subr.bf16.mxu0 %v192
    %1244 = vmatpush1.bf16.msra.mxu0 %v191
    %1245 = vmatprep.subr.bf16.mxu0 %v196
    %1246 = vmatpush1.bf16.msra.mxu0 %v195
    %1247 = vmatprep.subr.bf16.mxu0 %v200
    %1248 = vmatpush1.bf16.msra.mxu0 %v199
    %1249 = vmatprep.subr.bf16.mxu0 %v204
    %1250 = vmatpush1.bf16.msra.mxu0 %v203
    %1251 = vmatprep.subr.bf16.mxu0 %v208
    %1252 = vmatpush1.bf16.msra.mxu0 %v207
    %1253 = vmatprep.subr.bf16.mxu0 %v212
    %1254 = vmatpush1.bf16.msra.mxu0 %v211
    %1255 = vmatprep.subr.bf16.mxu0 %v216
    %1256 = vmatpush1.bf16.msra.mxu0 %v215
    %1257 = vmatprep.subr.bf16.mxu0 %v220
    %1258 = vmatpush1.bf16.msra.mxu0 %v219
    %1259 = vmatprep.subr.bf16.mxu0 0
    %1260 = vmatpush1.bf16.msra.mxu0 0
    %1261 = vmatprep.subr.bf16.mxu0 0
    %1262 = vmatpush1.bf16.msra.mxu0 0
    %1263 = vmatprep.subr.bf16.mxu0 0
    %1264 = vmatpush1.bf16.msra.mxu0 0
    %1265 = vmatprep.subr.bf16.mxu0 0
    %1266 = vmatpush1.bf16.msra.mxu0 0
    %1267 = vmatprep.subr.bf16.mxu0 0
    %1268 = vmatpush1.bf16.msra.mxu0 0
    %1269 = vmatprep.subr.bf16.mxu0 0
    %1270 = vmatpush1.bf16.msra.mxu0 0
    %1271 = vmatprep.subr.bf16.mxu0 0
    %1272 = vmatpush1.bf16.msra.mxu0 0
    %1273 = vmatprep.subr.bf16.mxu0 0
    %1274 = vmatpush1.bf16.msra.mxu0 0
    %1275 = vmatprep.mubr.bf16.mxu0 0
    %1276 = vmatmul.mubr.bf16.gmra.mrb[0].mxu0 %v1201
    %v1277 = vpop.f32.mrb[0].mxu0
    %v1278 = vadd.f32 0.0, %v1277
    %v1279 = vpop.f32.mrb[0].mxu0
    %v1280 = vadd.f32 0.0, %v1279
    %v1281 = vpop.f32.mrb[0].mxu0
    %v1282 = vpop.f32.mrb[0].mxu0
    %1283 = vdwg.mxu0
    %v1292 = vunpack.c.l.b16 %v1193
    %v1293 = vunpack.c.l.b16 %v1194
    %v1294 = vunpack.c.l.b16 %v1195
    %v1295 = vunpack.c.l.b16 %v1196
    %v1296 = vunpack.c.l.b16 %v1197
    %v1297 = vunpack.c.l.b16 %v1198
    %v1298 = vunpack.c.l.b16 %v1199
    %v1299 = vunpack.c.l.b16 %v1200
    %v1300 = vpack.c.b16 %v1292, %v1292
    %v1301 = vpack.c.b16 %v1293, %v1293
    %v1302 = vpack.c.b16 %v1294, %v1294
    %v1303 = vpack.c.b16 %v1295, %v1295
    %v1304 = vpack.c.b16 %v1296, %v1296
    %v1305 = vpack.c.b16 %v1297, %v1297
    %v1306 = vpack.c.b16 %v1298, %v1298
    %v1307 = vpack.c.b16 %v1299, %v1299
    %v1308 = vunpack.c.l.b16 %v1300
    %v1309 = vunpack.c.l.b16 %v1301
    %v1310 = vunpack.c.l.b16 %v1302
    %v1311 = vunpack.c.l.b16 %v1303
    %v1312 = vunpack.c.l.b16 %v1304
    %v1313 = vunpack.c.l.b16 %v1305
    %v1314 = vunpack.c.l.b16 %v1306
    %v1315 = vunpack.c.l.b16 %v1307
    %v1316 = vrot.slane %v1308, 4
    %v1317 = vrot.slane %v1309, 3
    %v1318 = vsel %vm368, %v1317, %v1316
    %v1319 = vrot.slane %v1310, 2
    %v1320 = vsel %vm371, %v1319, %v1318
    %v1321 = vrot.slane %v1311, 1
    %v1322 = vsel %vm374, %v1321, %v1320
    %v1323 = vsel %vm377, %v1312, %v1322
    %v1324 = vrot.slane %v1313, 7
    %v1325 = vsel %vm380, %v1324, %v1323
    %v1326 = vrot.slane %v1314, 6
    %v1327 = vsel %vm383, %v1326, %v1325
    %v1328 = vrot.slane %v1315, 5
    %v1329 = vsel %vm386, %v1328, %v1327
    %v1330 = vpack.c.b16 %v1329, %v1329
    %v1332 = vsel %vm409, %v1330, 0
    %1334 = vmatprep.subr.bf16.mxu0 %v402
    %1335 = vmatpush1.bf16.msra.mxu0 %v401
    %1336 = vmatprep.subr.bf16.mxu0 0
    %1337 = vmatpush1.bf16.msra.mxu0 0
    %1338 = vmatprep.subr.bf16.mxu0 0
    %1339 = vmatpush1.bf16.msra.mxu0 0
    %1340 = vmatprep.subr.bf16.mxu0 0
    %1341 = vmatpush1.bf16.msra.mxu0 0
    %1342 = vmatprep.subr.bf16.mxu0 0
    %1343 = vmatpush1.bf16.msra.mxu0 0
    %1344 = vmatprep.subr.bf16.mxu0 0
    %1345 = vmatpush1.bf16.msra.mxu0 0
    %1346 = vmatprep.subr.bf16.mxu0 0
    %1347 = vmatpush1.bf16.msra.mxu0 0
    %1348 = vmatprep.subr.bf16.mxu0 0
    %1349 = vmatpush1.bf16.msra.mxu0 0
    %1350 = vmatprep.subr.bf16.mxu0 0
    %1351 = vmatpush1.bf16.msra.mxu0 0
    %1352 = vmatprep.subr.bf16.mxu0 0
    %1353 = vmatpush1.bf16.msra.mxu0 0
    %1354 = vmatprep.subr.bf16.mxu0 0
    %1355 = vmatpush1.bf16.msra.mxu0 0
    %1356 = vmatprep.subr.bf16.mxu0 0
    %1357 = vmatpush1.bf16.msra.mxu0 0
    %1358 = vmatprep.subr.bf16.mxu0 0
    %1359 = vmatpush1.bf16.msra.mxu0 0
    %1360 = vmatprep.subr.bf16.mxu0 0
    %1361 = vmatpush1.bf16.msra.mxu0 0
    %1362 = vmatprep.subr.bf16.mxu0 0
    %1363 = vmatpush1.bf16.msra.mxu0 0
    %1364 = vmatprep.subr.bf16.mxu0 0
    %1365 = vmatpush1.bf16.msra.mxu0 0
    %1366 = vmatprep.mubr.bf16.mxu0 0
    %1367 = vmatmul.mubr.bf16.gmra.mrb[0].mxu0 %v1332
    %v1368 = vpop.f32.mrb[0].mxu0
    %v1369 = vadd.f32 %v1237, %v1368
    %v1370 = vpop.f32.mrb[0].mxu0
    %v1371 = vadd.f32 %v1239, %v1370
    %v1372 = vpop.f32.mrb[0].mxu0
    %v1373 = vpop.f32.mrb[0].mxu0
    %1374 = vdwg.mxu0
    %1375 = vmatprep.subr.bf16.mxu0 %v404
    %1376 = vmatpush1.bf16.msra.mxu0 %v403
    %1377 = vmatprep.subr.bf16.mxu0 0
    %1378 = vmatpush1.bf16.msra.mxu0 0
    %1379 = vmatprep.subr.bf16.mxu0 0
    %1380 = vmatpush1.bf16.msra.mxu0 0
    %1381 = vmatprep.subr.bf16.mxu0 0
    %1382 = vmatpush1.bf16.msra.mxu0 0
    %1383 = vmatprep.subr.bf16.mxu0 0
    %1384 = vmatpush1.bf16.msra.mxu0 0
    %1385 = vmatprep.subr.bf16.mxu0 0
    %1386 = vmatpush1.bf16.msra.mxu0 0
    %1387 = vmatprep.subr.bf16.mxu0 0
    %1388 = vmatpush1.bf16.msra.mxu0 0
    %1389 = vmatprep.subr.bf16.mxu0 0
    %1390 = vmatpush1.bf16.msra.mxu0 0
    %1391 = vmatprep.subr.bf16.mxu0 0
    %1392 = vmatpush1.bf16.msra.mxu0 0
    %1393 = vmatprep.subr.bf16.mxu0 0
    %1394 = vmatpush1.bf16.msra.mxu0 0
    %1395 = vmatprep.subr.bf16.mxu0 0
    %1396 = vmatpush1.bf16.msra.mxu0 0
    %1397 = vmatprep.subr.bf16.mxu0 0
    %1398 = vmatpush1.bf16.msra.mxu0 0
    %1399 = vmatprep.subr.bf16.mxu0 0
    %1400 = vmatpush1.bf16.msra.mxu0 0
    %1401 = vmatprep.subr.bf16.mxu0 0
    %1402 = vmatpush1.bf16.msra.mxu0 0
    %1403 = vmatprep.subr.bf16.mxu0 0
    %1404 = vmatpush1.bf16.msra.mxu0 0
    %1405 = vmatprep.subr.bf16.mxu0 0
    %1406 = vmatpush1.bf16.msra.mxu0 0
    %1407 = vmatprep.mubr.bf16.mxu0 0
    %1408 = vmatmul.mubr.bf16.gmra.mrb[0].mxu0 %v1332
    %v1409 = vpop.f32.mrb[0].mxu0
    %v1410 = vadd.f32 %v1278, %v1409
    %v1411 = vpop.f32.mrb[0].mxu0
    %v1412 = vadd.f32 %v1280, %v1411
    %v1413 = vpop.f32.mrb[0].mxu0
    %v1414 = vpop.f32.mrb[0].mxu0
    %1415 = vdwg.mxu0
    %v1416 = vadd.f32 %v1369, %v499
    %v1417 = vadd.f32 %v1371, %v503
    %v1418 = vadd.f32 %v1410, %v507
    %v1419 = vadd.f32 %v1412, %v511
    %v1420 = vmul.f32 %v1416, 0.5
    %v1421 = vtanh.pop %v1420
    %v1422 = vmul.f32 %v1421, 0.5
    %v1423 = vadd.f32 %v1422, 0.5
    %v1424 = vmul.f32 %v1417, 0.5
    %v1425 = vtanh.pop %v1424
    %v1426 = vmul.f32 %v1425, 0.5
    %v1427 = vadd.f32 %v1426, 0.5
    %v1428 = vtanh.pop %v1418
    %v1429 = vmul.f32 %v1419, 0.5
    %v1430 = vtanh.pop %v1429
    %v1431 = vmul.f32 %v1430, 0.5
    %v1432 = vadd.f32 %v1431, 0.5
    %v1433 = vmul.f32 %v1427, %v1190
    %v1434 = vmul.f32 %v1423, %v1428
    %v1435 = vadd.f32 %v1433, %v1434
    %v1436 = vtanh.pop %v1435
    %v1437 = vmul.f32 %v1432, %v1436
    %v1438 = vpack.c.bf16 %v1437, %v1437
    %1439 = vmatprep.subr.bf16.mxu0 %v190
    %1440 = vmatpush1.bf16.msra.mxu0 %v189
    %1441 = vmatprep.subr.bf16.mxu0 %v194
    %1442 = vmatpush1.bf16.msra.mxu0 %v193
    %1443 = vmatprep.subr.bf16.mxu0 %v198
    %1444 = vmatpush1.bf16.msra.mxu0 %v197
    %1445 = vmatprep.subr.bf16.mxu0 %v202
    %1446 = vmatpush1.bf16.msra.mxu0 %v201
    %1447 = vmatprep.subr.bf16.mxu0 %v206
    %1448 = vmatpush1.bf16.msra.mxu0 %v205
    %1449 = vmatprep.subr.bf16.mxu0 %v210
    %1450 = vmatpush1.bf16.msra.mxu0 %v209
    %1451 = vmatprep.subr.bf16.mxu0 %v214
    %1452 = vmatpush1.bf16.msra.mxu0 %v213
    %1453 = vmatprep.subr.bf16.mxu0 %v218
    %1454 = vmatpush1.bf16.msra.mxu0 %v217
    %1455 = vmatprep.subr.bf16.mxu0 0
    %1456 = vmatpush1.bf16.msra.mxu0 0
    %1457 = vmatprep.subr.bf16.mxu0 0
    %1458 = vmatpush1.bf16.msra.mxu0 0
    %1459 = vmatprep.subr.bf16.mxu0 0
    %1460 = vmatpush1.bf16.msra.mxu0 0
    %1461 = vmatprep.subr.bf16.mxu0 0
    %1462 = vmatpush1.bf16.msra.mxu0 0
    %1463 = vmatprep.subr.bf16.mxu0 0
    %1464 = vmatpush1.bf16.msra.mxu0 0
    %1465 = vmatprep.subr.bf16.mxu0 0
    %1466 = vmatpush1.bf16.msra.mxu0 0
    %1467 = vmatprep.subr.bf16.mxu0 0
    %1468 = vmatpush1.bf16.msra.mxu0 0
    %1469 = vmatprep.subr.bf16.mxu0 0
    %1470 = vmatpush1.bf16.msra.mxu0 0
    %1471 = vmatprep.mubr.bf16.mxu0 0
    %1472 = vmatmul.mubr.bf16.gmra.mrb[0].mxu0 %v1438
    %v1473 = vpop.f32.mrb[0].mxu0
    %v1474 = vadd.f32 0.0, %v1473
    %v1475 = vpop.f32.mrb[0].mxu0
    %v1476 = vadd.f32 0.0, %v1475
    %v1477 = vpop.f32.mrb[0].mxu0
    %v1478 = vpop.f32.mrb[0].mxu0
    %1479 = vdwg.mxu0
    %1480 = vmatprep.subr.bf16.mxu0 %v192
    %1481 = vmatpush1.bf16.msra.mxu0 %v191
    %1482 = vmatprep.subr.bf16.mxu0 %v196
    %1483 = vmatpush1.bf16.msra.mxu0 %v195
    %1484 = vmatprep.subr.bf16.mxu0 %v200
    %1485 = vmatpush1.bf16.msra.mxu0 %v199
    %1486 = vmatprep.subr.bf16.mxu0 %v204
    %1487 = vmatpush1.bf16.msra.mxu0 %v203
    %1488 = vmatprep.subr.bf16.mxu0 %v208
    %1489 = vmatpush1.bf16.msra.mxu0 %v207
    %1490 = vmatprep.subr.bf16.mxu0 %v212
    %1491 = vmatpush1.bf16.msra.mxu0 %v211
    %1492 = vmatprep.subr.bf16.mxu0 %v216
    %1493 = vmatpush1.bf16.msra.mxu0 %v215
    %1494 = vmatprep.subr.bf16.mxu0 %v220
    %1495 = vmatpush1.bf16.msra.mxu0 %v219
    %1496 = vmatprep.subr.bf16.mxu0 0
    %1497 = vmatpush1.bf16.msra.mxu0 0
    %1498 = vmatprep.subr.bf16.mxu0 0
    %1499 = vmatpush1.bf16.msra.mxu0 0
    %1500 = vmatprep.subr.bf16.mxu0 0
    %1501 = vmatpush1.bf16.msra.mxu0 0
    %1502 = vmatprep.subr.bf16.mxu0 0
    %1503 = vmatpush1.bf16.msra.mxu0 0
    %1504 = vmatprep.subr.bf16.mxu0 0
    %1505 = vmatpush1.bf16.msra.mxu0 0
    %1506 = vmatprep.subr.bf16.mxu0 0
    %1507 = vmatpush1.bf16.msra.mxu0 0
    %1508 = vmatprep.subr.bf16.mxu0 0
    %1509 = vmatpush1.bf16.msra.mxu0 0
    %1510 = vmatprep.subr.bf16.mxu0 0
    %1511 = vmatpush1.bf16.msra.mxu0 0
    %1512 = vmatprep.mubr.bf16.mxu0 0
    %1513 = vmatmul.mubr.bf16.gmra.mrb[0].mxu0 %v1438
    %v1514 = vpop.f32.mrb[0].mxu0
    %v1515 = vadd.f32 0.0, %v1514
    %v1516 = vpop.f32.mrb[0].mxu0
    %v1517 = vadd.f32 0.0, %v1516
    %v1518 = vpop.f32.mrb[0].mxu0
    %v1519 = vpop.f32.mrb[0].mxu0
    %1520 = vdwg.mxu0
    %v1521 = vrot.slane %v1308, 5
    %v1522 = vrot.slane %v1309, 4
    %v1523 = vsel %vm368, %v1522, %v1521
    %v1524 = vrot.slane %v1310, 3
    %v1525 = vsel %vm371, %v1524, %v1523
    %v1526 = vrot.slane %v1311, 2
    %v1527 = vsel %vm374, %v1526, %v1525
    %v1528 = vrot.slane %v1312, 1
    %v1529 = vsel %vm377, %v1528, %v1527
    %v1530 = vsel %vm380, %v1313, %v1529
    %v1531 = vrot.slane %v1314, 7
    %v1532 = vsel %vm383, %v1531, %v1530
    %v1533 = vrot.slane %v1315, 6
    %v1534 = vsel %vm386, %v1533, %v1532
    %v1535 = vpack.c.b16 %v1534, %v1534
    %v1537 = vsel %vm409, %v1535, 0
    %1539 = vmatprep.subr.bf16.mxu0 %v402
    %1540 = vmatpush1.bf16.msra.mxu0 %v401
    %1541 = vmatprep.subr.bf16.mxu0 0
    %1542 = vmatpush1.bf16.msra.mxu0 0
    %1543 = vmatprep.subr.bf16.mxu0 0
    %1544 = vmatpush1.bf16.msra.mxu0 0
    %1545 = vmatprep.subr.bf16.mxu0 0
    %1546 = vmatpush1.bf16.msra.mxu0 0
    %1547 = vmatprep.subr.bf16.mxu0 0
    %1548 = vmatpush1.bf16.msra.mxu0 0
    %1549 = vmatprep.subr.bf16.mxu0 0
    %1550 = vmatpush1.bf16.msra.mxu0 0
    %1551 = vmatprep.subr.bf16.mxu0 0
    %1552 = vmatpush1.bf16.msra.mxu0 0
    %1553 = vmatprep.subr.bf16.mxu0 0
    %1554 = vmatpush1.bf16.msra.mxu0 0
    %1555 = vmatprep.subr.bf16.mxu0 0
    %1556 = vmatpush1.bf16.msra.mxu0 0
    %1557 = vmatprep.subr.bf16.mxu0 0
    %1558 = vmatpush1.bf16.msra.mxu0 0
    %1559 = vmatprep.subr.bf16.mxu0 0
    %1560 = vmatpush1.bf16.msra.mxu0 0
    %1561 = vmatprep.subr.bf16.mxu0 0
    %1562 = vmatpush1.bf16.msra.mxu0 0
    %1563 = vmatprep.subr.bf16.mxu0 0
    %1564 = vmatpush1.bf16.msra.mxu0 0
    %1565 = vmatprep.subr.bf16.mxu0 0
    %1566 = vmatpush1.bf16.msra.mxu0 0
    %1567 = vmatprep.subr.bf16.mxu0 0
    %1568 = vmatpush1.bf16.msra.mxu0 0
    %1569 = vmatprep.subr.bf16.mxu0 0
    %1570 = vmatpush1.bf16.msra.mxu0 0
    %1571 = vmatprep.mubr.bf16.mxu0 0
    %1572 = vmatmul.mubr.bf16.gmra.mrb[0].mxu0 %v1537
    %v1573 = vpop.f32.mrb[0].mxu0
    %v1574 = vadd.f32 %v1474, %v1573
    %v1575 = vpop.f32.mrb[0].mxu0
    %v1576 = vadd.f32 %v1476, %v1575
    %v1577 = vpop.f32.mrb[0].mxu0
    %v1578 = vpop.f32.mrb[0].mxu0
    %1579 = vdwg.mxu0
    %1580 = vmatprep.subr.bf16.mxu0 %v404
    %1581 = vmatpush1.bf16.msra.mxu0 %v403
    %1582 = vmatprep.subr.bf16.mxu0 0
    %1583 = vmatpush1.bf16.msra.mxu0 0
    %1584 = vmatprep.subr.bf16.mxu0 0
    %1585 = vmatpush1.bf16.msra.mxu0 0
    %1586 = vmatprep.subr.bf16.mxu0 0
    %1587 = vmatpush1.bf16.msra.mxu0 0
    %1588 = vmatprep.subr.bf16.mxu0 0
    %1589 = vmatpush1.bf16.msra.mxu0 0
    %1590 = vmatprep.subr.bf16.mxu0 0
    %1591 = vmatpush1.bf16.msra.mxu0 0
    %1592 = vmatprep.subr.bf16.mxu0 0
    %1593 = vmatpush1.bf16.msra.mxu0 0
    %1594 = vmatprep.subr.bf16.mxu0 0
    %1595 = vmatpush1.bf16.msra.mxu0 0
    %1596 = vmatprep.subr.bf16.mxu0 0
    %1597 = vmatpush1.bf16.msra.mxu0 0
    %1598 = vmatprep.subr.bf16.mxu0 0
    %1599 = vmatpush1.bf16.msra.mxu0 0
    %1600 = vmatprep.subr.bf16.mxu0 0
    %1601 = vmatpush1.bf16.msra.mxu0 0
    %1602 = vmatprep.subr.bf16.mxu0 0
    %1603 = vmatpush1.bf16.msra.mxu0 0
    %1604 = vmatprep.subr.bf16.mxu0 0
    %1605 = vmatpush1.bf16.msra.mxu0 0
    %1606 = vmatprep.subr.bf16.mxu0 0
    %1607 = vmatpush1.bf16.msra.mxu0 0
    %1608 = vmatprep.subr.bf16.mxu0 0
    %1609 = vmatpush1.bf16.msra.mxu0 0
    %1610 = vmatprep.subr.bf16.mxu0 0
    %1611 = vmatpush1.bf16.msra.mxu0 0
    %1612 = vmatprep.mubr.bf16.mxu0 0
    %1613 = vmatmul.mubr.bf16.gmra.mrb[0].mxu0 %v1537
    %v1614 = vpop.f32.mrb[0].mxu0
    %v1615 = vadd.f32 %v1515, %v1614
    %v1616 = vpop.f32.mrb[0].mxu0
    %v1617 = vadd.f32 %v1517, %v1616
    %v1618 = vpop.f32.mrb[0].mxu0
    %v1619 = vpop.f32.mrb[0].mxu0
    %1620 = vdwg.mxu0
    %v1621 = vadd.f32 %v1574, %v499
    %v1622 = vadd.f32 %v1576, %v503
    %v1623 = vadd.f32 %v1615, %v507
    %v1624 = vadd.f32 %v1617, %v511
    %v1625 = vmul.f32 %v1621, 0.5
    %v1626 = vtanh.pop %v1625
    %v1627 = vmul.f32 %v1626, 0.5
    %v1628 = vadd.f32 %v1627, 0.5
    %v1629 = vmul.f32 %v1622, 0.5
    %v1630 = vtanh.pop %v1629
    %v1631 = vmul.f32 %v1630, 0.5
    %v1632 = vadd.f32 %v1631, 0.5
    %v1633 = vtanh.pop %v1623
    %v1634 = vmul.f32 %v1624, 0.5
    %v1635 = vtanh.pop %v1634
    %v1636 = vmul.f32 %v1635, 0.5
    %v1637 = vadd.f32 %v1636, 0.5
    %v1638 = vmul.f32 %v1632, %v1435
    %v1639 = vmul.f32 %v1628, %v1633
    %v1640 = vadd.f32 %v1638, %v1639
    %v1641 = vtanh.pop %v1640
    %v1642 = vmul.f32 %v1637, %v1641
    %v1643 = vld [vmem:[%s0] sm:$0x8]
    %v1644 = vld [vmem:[%s0 + $0x8] sm:$0x8]
    %v1645 = vld [vmem:[%s0 + $0x10] sm:$0x8]
    %v1646 = vld [vmem:[%s0 + $0x18] sm:$0x8]
    %v1647 = vld [vmem:[%s0 + $0x20] sm:$0x8]
    %v1648 = vld [vmem:[%s0 + $0x28] sm:$0x8]
    %v1649 = vld [vmem:[%s0 + $0x30] sm:$0x8]
    %v1650 = vld [vmem:[%s0 + $0x38] sm:$0x8]
    %v1651 = vpack.c.bf16 %v1642, %v1642
    %1652 = vmatprep.subr.bf16.mxu0 %v190
    %1653 = vmatpush1.bf16.msra.mxu0 %v189
    %1654 = vmatprep.subr.bf16.mxu0 %v194
    %1655 = vmatpush1.bf16.msra.mxu0 %v193
    %1656 = vmatprep.subr.bf16.mxu0 %v198
    %1657 = vmatpush1.bf16.msra.mxu0 %v197
    %1658 = vmatprep.subr.bf16.mxu0 %v202
    %1659 = vmatpush1.bf16.msra.mxu0 %v201
    %1660 = vmatprep.subr.bf16.mxu0 %v206
    %1661 = vmatpush1.bf16.msra.mxu0 %v205
    %1662 = vmatprep.subr.bf16.mxu0 %v210
    %1663 = vmatpush1.bf16.msra.mxu0 %v209
    %1664 = vmatprep.subr.bf16.mxu0 %v214
    %1665 = vmatpush1.bf16.msra.mxu0 %v213
    %1666 = vmatprep.subr.bf16.mxu0 %v218
    %1667 = vmatpush1.bf16.msra.mxu0 %v217
    %1668 = vmatprep.subr.bf16.mxu0 0
    %1669 = vmatpush1.bf16.msra.mxu0 0
    %1670 = vmatprep.subr.bf16.mxu0 0
    %1671 = vmatpush1.bf16.msra.mxu0 0
    %1672 = vmatprep.subr.bf16.mxu0 0
    %1673 = vmatpush1.bf16.msra.mxu0 0
    %1674 = vmatprep.subr.bf16.mxu0 0
    %1675 = vmatpush1.bf16.msra.mxu0 0
    %1676 = vmatprep.subr.bf16.mxu0 0
    %1677 = vmatpush1.bf16.msra.mxu0 0
    %1678 = vmatprep.subr.bf16.mxu0 0
    %1679 = vmatpush1.bf16.msra.mxu0 0
    %1680 = vmatprep.subr.bf16.mxu0 0
    %1681 = vmatpush1.bf16.msra.mxu0 0
    %1682 = vmatprep.subr.bf16.mxu0 0
    %1683 = vmatpush1.bf16.msra.mxu0 0
    %1684 = vmatprep.mubr.bf16.mxu0 0
    %1685 = vmatmul.mubr.bf16.gmra.mrb[0].mxu0 %v1651
    %v1686 = vpop.f32.mrb[0].mxu0
    %v1687 = vadd.f32 0.0, %v1686
    %v1688 = vpop.f32.mrb[0].mxu0
    %v1689 = vadd.f32 0.0, %v1688
    %v1690 = vpop.f32.mrb[0].mxu0
    %v1691 = vpop.f32.mrb[0].mxu0
    %1692 = vdwg.mxu0
    %1693 = vmatprep.subr.bf16.mxu0 %v192
    %1694 = vmatpush1.bf16.msra.mxu0 %v191
    %1695 = vmatprep.subr.bf16.mxu0 %v196
    %1696 = vmatpush1.bf16.msra.mxu0 %v195
    %1697 = vmatprep.subr.bf16.mxu0 %v200
    %1698 = vmatpush1.bf16.msra.mxu0 %v199
    %1699 = vmatprep.subr.bf16.mxu0 %v204
    %1700 = vmatpush1.bf16.msra.mxu0 %v203
    %1701 = vmatprep.subr.bf16.mxu0 %v208
    %1702 = vmatpush1.bf16.msra.mxu0 %v207
    %1703 = vmatprep.subr.bf16.mxu0 %v212
    %1704 = vmatpush1.bf16.msra.mxu0 %v211
    %1705 = vmatprep.subr.bf16.mxu0 %v216
    %1706 = vmatpush1.bf16.msra.mxu0 %v215
    %1707 = vmatprep.subr.bf16.mxu0 %v220
    %1708 = vmatpush1.bf16.msra.mxu0 %v219
    %1709 = vmatprep.subr.bf16.mxu0 0
    %1710 = vmatpush1.bf16.msra.mxu0 0
    %1711 = vmatprep.subr.bf16.mxu0 0
    %1712 = vmatpush1.bf16.msra.mxu0 0
    %1713 = vmatprep.subr.bf16.mxu0 0
    %1714 = vmatpush1.bf16.msra.mxu0 0
    %1715 = vmatprep.subr.bf16.mxu0 0
    %1716 = vmatpush1.bf16.msra.mxu0 0
    %1717 = vmatprep.subr.bf16.mxu0 0
    %1718 = vmatpush1.bf16.msra.mxu0 0
    %1719 = vmatprep.subr.bf16.mxu0 0
    %1720 = vmatpush1.bf16.msra.mxu0 0
    %1721 = vmatprep.subr.bf16.mxu0 0
    %1722 = vmatpush1.bf16.msra.mxu0 0
    %1723 = vmatprep.subr.bf16.mxu0 0
    %1724 = vmatpush1.bf16.msra.mxu0 0
    %1725 = vmatprep.mubr.bf16.mxu0 0
    %1726 = vmatmul.mubr.bf16.gmra.mrb[0].mxu0 %v1651
    %v1727 = vpop.f32.mrb[0].mxu0
    %v1728 = vadd.f32 0.0, %v1727
    %v1729 = vpop.f32.mrb[0].mxu0
    %v1730 = vadd.f32 0.0, %v1729
    %v1731 = vpop.f32.mrb[0].mxu0
    %v1732 = vpop.f32.mrb[0].mxu0
    %1733 = vdwg.mxu0
    %v1742 = vunpack.c.l.b16 %v1643
    %v1743 = vunpack.c.l.b16 %v1644
    %v1744 = vunpack.c.l.b16 %v1645
    %v1745 = vunpack.c.l.b16 %v1646
    %v1746 = vunpack.c.l.b16 %v1647
    %v1747 = vunpack.c.l.b16 %v1648
    %v1748 = vunpack.c.l.b16 %v1649
    %v1749 = vunpack.c.l.b16 %v1650
    %v1750 = vpack.c.b16 %v1742, %v1742
    %v1751 = vpack.c.b16 %v1743, %v1743
    %v1752 = vpack.c.b16 %v1744, %v1744
    %v1753 = vpack.c.b16 %v1745, %v1745
    %v1754 = vpack.c.b16 %v1746, %v1746
    %v1755 = vpack.c.b16 %v1747, %v1747
    %v1756 = vpack.c.b16 %v1748, %v1748
    %v1757 = vpack.c.b16 %v1749, %v1749
    %v1758 = vunpack.c.l.b16 %v1750
    %v1759 = vunpack.c.l.b16 %v1751
    %v1760 = vunpack.c.l.b16 %v1752
    %v1761 = vunpack.c.l.b16 %v1753
    %v1762 = vunpack.c.l.b16 %v1754
    %v1763 = vunpack.c.l.b16 %v1755
    %v1764 = vunpack.c.l.b16 %v1756
    %v1765 = vunpack.c.l.b16 %v1757
    %v1766 = vrot.slane %v1758, 6
    %v1767 = vrot.slane %v1759, 5
    %v1768 = vsel %vm368, %v1767, %v1766
    %v1769 = vrot.slane %v1760, 4
    %v1770 = vsel %vm371, %v1769, %v1768
    %v1771 = vrot.slane %v1761, 3
    %v1772 = vsel %vm374, %v1771, %v1770
    %v1773 = vrot.slane %v1762, 2
    %v1774 = vsel %vm377, %v1773, %v1772
    %v1775 = vrot.slane %v1763, 1
    %v1776 = vsel %vm380, %v1775, %v1774
    %v1777 = vsel %vm383, %v1764, %v1776
    %v1778 = vrot.slane %v1765, 7
    %v1779 = vsel %vm386, %v1778, %v1777
    %v1780 = vpack.c.b16 %v1779, %v1779
    %v1782 = vsel %vm409, %v1780, 0
    %1784 = vmatprep.subr.bf16.mxu0 %v402
    %1785 = vmatpush1.bf16.msra.mxu0 %v401
    %1786 = vmatprep.subr.bf16.mxu0 0
    %1787 = vmatpush1.bf16.msra.mxu0 0
    %1788 = vmatprep.subr.bf16.mxu0 0
    %1789 = vmatpush1.bf16.msra.mxu0 0
    %1790 = vmatprep.subr.bf16.mxu0 0
    %1791 = vmatpush1.bf16.msra.mxu0 0
    %1792 = vmatprep.subr.bf16.mxu0 0
    %1793 = vmatpush1.bf16.msra.mxu0 0
    %1794 = vmatprep.subr.bf16.mxu0 0
    %1795 = vmatpush1.bf16.msra.mxu0 0
    %1796 = vmatprep.subr.bf16.mxu0 0
    %1797 = vmatpush1.bf16.msra.mxu0 0
    %1798 = vmatprep.subr.bf16.mxu0 0
    %1799 = vmatpush1.bf16.msra.mxu0 0
    %1800 = vmatprep.subr.bf16.mxu0 0
    %1801 = vmatpush1.bf16.msra.mxu0 0
    %1802 = vmatprep.subr.bf16.mxu0 0
    %1803 = vmatpush1.bf16.msra.mxu0 0
    %1804 = vmatprep.subr.bf16.mxu0 0
    %1805 = vmatpush1.bf16.msra.mxu0 0
    %1806 = vmatprep.subr.bf16.mxu0 0
    %1807 = vmatpush1.bf16.msra.mxu0 0
    %1808 = vmatprep.subr.bf16.mxu0 0
    %1809 = vmatpush1.bf16.msra.mxu0 0
    %1810 = vmatprep.subr.bf16.mxu0 0
    %1811 = vmatpush1.bf16.msra.mxu0 0
    %1812 = vmatprep.subr.bf16.mxu0 0
    %1813 = vmatpush1.bf16.msra.mxu0 0
    %1814 = vmatprep.subr.bf16.mxu0 0
    %1815 = vmatpush1.bf16.msra.mxu0 0
    %1816 = vmatprep.mubr.bf16.mxu0 0
    %1817 = vmatmul.mubr.bf16.gmra.mrb[0].mxu0 %v1782
    %v1818 = vpop.f32.mrb[0].mxu0
    %v1819 = vadd.f32 %v1687, %v1818
    %v1820 = vpop.f32.mrb[0].mxu0
    %v1821 = vadd.f32 %v1689, %v1820
    %v1822 = vpop.f32.mrb[0].mxu0
    %v1823 = vpop.f32.mrb[0].mxu0
    %1824 = vdwg.mxu0
    %1825 = vmatprep.subr.bf16.mxu0 %v404
    %1826 = vmatpush1.bf16.msra.mxu0 %v403
    %1827 = vmatprep.subr.bf16.mxu0 0
    %1828 = vmatpush1.bf16.msra.mxu0 0
    %1829 = vmatprep.subr.bf16.mxu0 0
    %1830 = vmatpush1.bf16.msra.mxu0 0
    %1831 = vmatprep.subr.bf16.mxu0 0
    %1832 = vmatpush1.bf16.msra.mxu0 0
    %1833 = vmatprep.subr.bf16.mxu0 0
    %1834 = vmatpush1.bf16.msra.mxu0 0
    %1835 = vmatprep.subr.bf16.mxu0 0
    %1836 = vmatpush1.bf16.msra.mxu0 0
    %1837 = vmatprep.subr.bf16.mxu0 0
    %1838 = vmatpush1.bf16.msra.mxu0 0
    %1839 = vmatprep.subr.bf16.mxu0 0
    %1840 = vmatpush1.bf16.msra.mxu0 0
    %1841 = vmatprep.subr.bf16.mxu0 0
    %1842 = vmatpush1.bf16.msra.mxu0 0
    %1843 = vmatprep.subr.bf16.mxu0 0
    %1844 = vmatpush1.bf16.msra.mxu0 0
    %1845 = vmatprep.subr.bf16.mxu0 0
    %1846 = vmatpush1.bf16.msra.mxu0 0
    %1847 = vmatprep.subr.bf16.mxu0 0
    %1848 = vmatpush1.bf16.msra.mxu0 0
    %1849 = vmatprep.subr.bf16.mxu0 0
    %1850 = vmatpush1.bf16.msra.mxu0 0
    %1851 = vmatprep.subr.bf16.mxu0 0
    %1852 = vmatpush1.bf16.msra.mxu0 0
    %1853 = vmatprep.subr.bf16.mxu0 0
    %1854 = vmatpush1.bf16.msra.mxu0 0
    %1855 = vmatprep.subr.bf16.mxu0 0
    %1856 = vmatpush1.bf16.msra.mxu0 0
    %1857 = vmatprep.mubr.bf16.mxu0 0
    %1858 = vmatmul.mubr.bf16.gmra.mrb[0].mxu0 %v1782
    %v1859 = vpop.f32.mrb[0].mxu0
    %v1860 = vadd.f32 %v1728, %v1859
    %v1861 = vpop.f32.mrb[0].mxu0
    %v1862 = vadd.f32 %v1730, %v1861
    %v1863 = vpop.f32.mrb[0].mxu0
    %v1864 = vpop.f32.mrb[0].mxu0
    %1865 = vdwg.mxu0
    %v1866 = vadd.f32 %v1819, %v499
    %v1867 = vadd.f32 %v1821, %v503
    %v1868 = vadd.f32 %v1860, %v507
    %v1869 = vadd.f32 %v1862, %v511
    %v1870 = vmul.f32 %v1866, 0.5
    %v1871 = vtanh.pop %v1870
    %v1872 = vmul.f32 %v1871, 0.5
    %v1873 = vadd.f32 %v1872, 0.5
    %v1874 = vmul.f32 %v1867, 0.5
    %v1875 = vtanh.pop %v1874
    %v1876 = vmul.f32 %v1875, 0.5
    %v1877 = vadd.f32 %v1876, 0.5
    %v1878 = vtanh.pop %v1868
    %v1879 = vmul.f32 %v1869, 0.5
    %v1880 = vtanh.pop %v1879
    %v1881 = vmul.f32 %v1880, 0.5
    %v1882 = vadd.f32 %v1881, 0.5
    %v1883 = vmul.f32 %v1877, %v1640
    %v1884 = vmul.f32 %v1873, %v1878
    %v1885 = vadd.f32 %v1883, %v1884
    %v1886 = vtanh.pop %v1885
    %v1887 = vmul.f32 %v1882, %v1886
    %v1888 = vpack.c.bf16 %v1887, %v1887
    %1889 = vmatprep.subr.bf16.mxu0 %v190
    %1890 = vmatpush1.bf16.msra.mxu0 %v189
    %1891 = vmatprep.subr.bf16.mxu0 %v194
    %1892 = vmatpush1.bf16.msra.mxu0 %v193
    %1893 = vmatprep.subr.bf16.mxu0 %v198
    %1894 = vmatpush1.bf16.msra.mxu0 %v197
    %1895 = vmatprep.subr.bf16.mxu0 %v202
    %1896 = vmatpush1.bf16.msra.mxu0 %v201
    %1897 = vmatprep.subr.bf16.mxu0 %v206
    %1898 = vmatpush1.bf16.msra.mxu0 %v205
    %1899 = vmatprep.subr.bf16.mxu0 %v210
    %1900 = vmatpush1.bf16.msra.mxu0 %v209
    %1901 = vmatprep.subr.bf16.mxu0 %v214
    %1902 = vmatpush1.bf16.msra.mxu0 %v213
    %1903 = vmatprep.subr.bf16.mxu0 %v218
    %1904 = vmatpush1.bf16.msra.mxu0 %v217
    %1905 = vmatprep.subr.bf16.mxu0 0
    %1906 = vmatpush1.bf16.msra.mxu0 0
    %1907 = vmatprep.subr.bf16.mxu0 0
    %1908 = vmatpush1.bf16.msra.mxu0 0
    %1909 = vmatprep.subr.bf16.mxu0 0
    %1910 = vmatpush1.bf16.msra.mxu0 0
    %1911 = vmatprep.subr.bf16.mxu0 0
    %1912 = vmatpush1.bf16.msra.mxu0 0
    %1913 = vmatprep.subr.bf16.mxu0 0
    %1914 = vmatpush1.bf16.msra.mxu0 0
    %1915 = vmatprep.subr.bf16.mxu0 0
    %1916 = vmatpush1.bf16.msra.mxu0 0
    %1917 = vmatprep.subr.bf16.mxu0 0
    %1918 = vmatpush1.bf16.msra.mxu0 0
    %1919 = vmatprep.subr.bf16.mxu0 0
    %1920 = vmatpush1.bf16.msra.mxu0 0
    %1921 = vmatprep.mubr.bf16.mxu0 0
    %1922 = vmatmul.mubr.bf16.gmra.mrb[0].mxu0 %v1888
    %v1923 = vpop.f32.mrb[0].mxu0
    %v1924 = vadd.f32 0.0, %v1923
    %v1925 = vpop.f32.mrb[0].mxu0
    %v1926 = vadd.f32 0.0, %v1925
    %v1927 = vpop.f32.mrb[0].mxu0
    %v1928 = vpop.f32.mrb[0].mxu0
    %1929 = vdwg.mxu0
    %1930 = vmatprep.subr.bf16.mxu0 %v192
    %1931 = vmatpush1.bf16.msra.mxu0 %v191
    %1932 = vmatprep.subr.bf16.mxu0 %v196
    %1933 = vmatpush1.bf16.msra.mxu0 %v195
    %1934 = vmatprep.subr.bf16.mxu0 %v200
    %1935 = vmatpush1.bf16.msra.mxu0 %v199
    %1936 = vmatprep.subr.bf16.mxu0 %v204
    %1937 = vmatpush1.bf16.msra.mxu0 %v203
    %1938 = vmatprep.subr.bf16.mxu0 %v208
    %1939 = vmatpush1.bf16.msra.mxu0 %v207
    %1940 = vmatprep.subr.bf16.mxu0 %v212
    %1941 = vmatpush1.bf16.msra.mxu0 %v211
    %1942 = vmatprep.subr.bf16.mxu0 %v216
    %1943 = vmatpush1.bf16.msra.mxu0 %v215
    %1944 = vmatprep.subr.bf16.mxu0 %v220
    %1945 = vmatpush1.bf16.msra.mxu0 %v219
    %1946 = vmatprep.subr.bf16.mxu0 0
    %1947 = vmatpush1.bf16.msra.mxu0 0
    %1948 = vmatprep.subr.bf16.mxu0 0
    %1949 = vmatpush1.bf16.msra.mxu0 0
    %1950 = vmatprep.subr.bf16.mxu0 0
    %1951 = vmatpush1.bf16.msra.mxu0 0
    %1952 = vmatprep.subr.bf16.mxu0 0
    %1953 = vmatpush1.bf16.msra.mxu0 0
    %1954 = vmatprep.subr.bf16.mxu0 0
    %1955 = vmatpush1.bf16.msra.mxu0 0
    %1956 = vmatprep.subr.bf16.mxu0 0
    %1957 = vmatpush1.bf16.msra.mxu0 0
    %1958 = vmatprep.subr.bf16.mxu0 0
    %1959 = vmatpush1.bf16.msra.mxu0 0
    %1960 = vmatprep.subr.bf16.mxu0 0
    %1961 = vmatpush1.bf16.msra.mxu0 0
    %1962 = vmatprep.mubr.bf16.mxu0 0
    %1963 = vmatmul.mubr.bf16.gmra.mrb[0].mxu0 %v1888
    %v1964 = vpop.f32.mrb[0].mxu0
    %v1965 = vadd.f32 0.0, %v1964
    %v1966 = vpop.f32.mrb[0].mxu0
    %v1967 = vadd.f32 0.0, %v1966
    %v1968 = vpop.f32.mrb[0].mxu0
    %v1969 = vpop.f32.mrb[0].mxu0
    %1970 = vdwg.mxu0
    %v1971 = vrot.slane %v1758, 7
    %v1972 = vrot.slane %v1759, 6
    %v1973 = vsel %vm368, %v1972, %v1971
    %v1974 = vrot.slane %v1760, 5
    %v1975 = vsel %vm371, %v1974, %v1973
    %v1976 = vrot.slane %v1761, 4
    %v1977 = vsel %vm374, %v1976, %v1975
    %v1978 = vrot.slane %v1762, 3
    %v1979 = vsel %vm377, %v1978, %v1977
    %v1980 = vrot.slane %v1763, 2
    %v1981 = vsel %vm380, %v1980, %v1979
    %v1982 = vrot.slane %v1764, 1
    %v1983 = vsel %vm383, %v1982, %v1981
    %v1984 = vsel %vm386, %v1765, %v1983
    %v1985 = vpack.c.b16 %v1984, %v1984
    %v1987 = vsel %vm409, %v1985, 0
    %1989 = vmatprep.subr.bf16.mxu0 %v402
    %1990 = vmatpush1.bf16.msra.mxu0 %v401
    %1991 = vmatprep.subr.bf16.mxu0 0
    %1992 = vmatpush1.bf16.msra.mxu0 0
    %1993 = vmatprep.subr.bf16.mxu0 0
    %1994 = vmatpush1.bf16.msra.mxu0 0
    %1995 = vmatprep.subr.bf16.mxu0 0
    %1996 = vmatpush1.bf16.msra.mxu0 0
    %1997 = vmatprep.subr.bf16.mxu0 0
    %1998 = vmatpush1.bf16.msra.mxu0 0
    %1999 = vmatprep.subr.bf16.mxu0 0
    %2000 = vmatpush1.bf16.msra.mxu0 0
    %2001 = vmatprep.subr.bf16.mxu0 0
    %2002 = vmatpush1.bf16.msra.mxu0 0
    %2003 = vmatprep.subr.bf16.mxu0 0
    %2004 = vmatpush1.bf16.msra.mxu0 0
    %2005 = vmatprep.subr.bf16.mxu0 0
    %2006 = vmatpush1.bf16.msra.mxu0 0
    %2007 = vmatprep.subr.bf16.mxu0 0
    %2008 = vmatpush1.bf16.msra.mxu0 0
    %2009 = vmatprep.subr.bf16.mxu0 0
    %2010 = vmatpush1.bf16.msra.mxu0 0
    %2011 = vmatprep.subr.bf16.mxu0 0
    %2012 = vmatpush1.bf16.msra.mxu0 0
    %2013 = vmatprep.subr.bf16.mxu0 0
    %2014 = vmatpush1.bf16.msra.mxu0 0
    %2015 = vmatprep.subr.bf16.mxu0 0
    %2016 = vmatpush1.bf16.msra.mxu0 0
    %2017 = vmatprep.subr.bf16.mxu0 0
    %2018 = vmatpush1.bf16.msra.mxu0 0
    %2019 = vmatprep.subr.bf16.mxu0 0
    %2020 = vmatpush1.bf16.msra.mxu0 0
    %2021 = vmatprep.mubr.bf16.mxu0 0
    %2022 = vmatmul.mubr.bf16.gmra.mrb[0].mxu0 %v1987
    %v2023 = vpop.f32.mrb[0].mxu0
    %v2024 = vadd.f32 %v1924, %v2023
    %v2025 = vpop.f32.mrb[0].mxu0
    %v2026 = vadd.f32 %v1926, %v2025
    %v2027 = vpop.f32.mrb[0].mxu0
    %v2028 = vpop.f32.mrb[0].mxu0
    %2029 = vdwg.mxu0
    %2030 = vmatprep.subr.bf16.mxu0 %v404
    %2031 = vmatpush1.bf16.msra.mxu0 %v403
    %2032 = vmatprep.subr.bf16.mxu0 0
    %2033 = vmatpush1.bf16.msra.mxu0 0
    %2034 = vmatprep.subr.bf16.mxu0 0
    %2035 = vmatpush1.bf16.msra.mxu0 0
    %2036 = vmatprep.subr.bf16.mxu0 0
    %2037 = vmatpush1.bf16.msra.mxu0 0
    %2038 = vmatprep.subr.bf16.mxu0 0
    %2039 = vmatpush1.bf16.msra.mxu0 0
    %2040 = vmatprep.subr.bf16.mxu0 0
    %2041 = vmatpush1.bf16.msra.mxu0 0
    %2042 = vmatprep.subr.bf16.mxu0 0
    %2043 = vmatpush1.bf16.msra.mxu0 0
    %2044 = vmatprep.subr.bf16.mxu0 0
    %2045 = vmatpush1.bf16.msra.mxu0 0
    %2046 = vmatprep.subr.bf16.mxu0 0
    %2047 = vmatpush1.bf16.msra.mxu0 0
    %2048 = vmatprep.subr.bf16.mxu0 0
    %2049 = vmatpush1.bf16.msra.mxu0 0
    %2050 = vmatprep.subr.bf16.mxu0 0
    %2051 = vmatpush1.bf16.msra.mxu0 0
    %2052 = vmatprep.subr.bf16.mxu0 0
    %2053 = vmatpush1.bf16.msra.mxu0 0
    %2054 = vmatprep.subr.bf16.mxu0 0
    %2055 = vmatpush1.bf16.msra.mxu0 0
    %2056 = vmatprep.subr.bf16.mxu0 0
    %2057 = vmatpush1.bf16.msra.mxu0 0
    %2058 = vmatprep.subr.bf16.mxu0 0
    %2059 = vmatpush1.bf16.msra.mxu0 0
    %2060 = vmatprep.subr.bf16.mxu0 0
    %2061 = vmatpush1.bf16.msra.mxu0 0
    %2062 = vmatprep.mubr.bf16.mxu0 0
    %2063 = vmatmul.mubr.bf16.gmra.mrb[0].mxu0 %v1987
    %v2064 = vpop.f32.mrb[0].mxu0
    %v2065 = vadd.f32 %v1965, %v2064
    %v2066 = vpop.f32.mrb[0].mxu0
    %v2067 = vadd.f32 %v1967, %v2066
    %v2068 = vpop.f32.mrb[0].mxu0
    %v2069 = vpop.f32.mrb[0].mxu0
    %2070 = vdwg.mxu0
    %v2071 = vadd.f32 %v2024, %v499
    %v2072 = vadd.f32 %v2026, %v503
    %v2073 = vadd.f32 %v2065, %v507
    %v2074 = vadd.f32 %v2067, %v511
    %v2075 = vmul.f32 %v2071, 0.5
    %v2076 = vtanh.pop %v2075
    %v2077 = vmul.f32 %v2076, 0.5
    %v2078 = vadd.f32 %v2077, 0.5
    %v2079 = vmul.f32 %v2072, 0.5
    %v2080 = vtanh.pop %v2079
    %v2081 = vmul.f32 %v2080, 0.5
    %v2082 = vadd.f32 %v2081, 0.5
    %v2083 = vtanh.pop %v2073
    %v2084 = vmul.f32 %v2074, 0.5
    %v2085 = vtanh.pop %v2084
    %v2086 = vmul.f32 %v2085, 0.5
    %v2087 = vadd.f32 %v2086, 0.5
    %v2088 = vmul.f32 %v2082, %v1885
    %v2089 = vmul.f32 %v2078, %v2083
    %v2090 = vadd.f32 %v2088, %v2089
    %v2091 = vtanh.pop %v2090
    %v2092 = vmul.f32 %v2087, %v2091
    %v2093 = vld [vmem:[%s0 + $0x4] sm:$0x1]
    %v2094 = vld [vmem:[%s0 + $0xc] sm:$0x1]
    %v2095 = vld [vmem:[%s0 + $0x14] sm:$0x1]
    %v2096 = vld [vmem:[%s0 + $0x1c] sm:$0x1]
    %v2097 = vld [vmem:[%s0 + $0x24] sm:$0x1]
    %v2098 = vld [vmem:[%s0 + $0x2c] sm:$0x1]
    %v2099 = vld [vmem:[%s0 + $0x34] sm:$0x1]
    %v2100 = vld [vmem:[%s0 + $0x3c] sm:$0x1]
    %v2101 = vpack.c.bf16 %v2092, %v2092
    %2102 = vmatprep.subr.bf16.mxu0 %v190
    %2103 = vmatpush1.bf16.msra.mxu0 %v189
    %2104 = vmatprep.subr.bf16.mxu0 %v194
    %2105 = vmatpush1.bf16.msra.mxu0 %v193
    %2106 = vmatprep.subr.bf16.mxu0 %v198
    %2107 = vmatpush1.bf16.msra.mxu0 %v197
    %2108 = vmatprep.subr.bf16.mxu0 %v202
    %2109 = vmatpush1.bf16.msra.mxu0 %v201
    %2110 = vmatprep.subr.bf16.mxu0 %v206
    %2111 = vmatpush1.bf16.msra.mxu0 %v205
    %2112 = vmatprep.subr.bf16.mxu0 %v210
    %2113 = vmatpush1.bf16.msra.mxu0 %v209
    %2114 = vmatprep.subr.bf16.mxu0 %v214
    %2115 = vmatpush1.bf16.msra.mxu0 %v213
    %2116 = vmatprep.subr.bf16.mxu0 %v218
    %2117 = vmatpush1.bf16.msra.mxu0 %v217
    %2118 = vmatprep.subr.bf16.mxu0 0
    %2119 = vmatpush1.bf16.msra.mxu0 0
    %2120 = vmatprep.subr.bf16.mxu0 0
    %2121 = vmatpush1.bf16.msra.mxu0 0
    %2122 = vmatprep.subr.bf16.mxu0 0
    %2123 = vmatpush1.bf16.msra.mxu0 0
    %2124 = vmatprep.subr.bf16.mxu0 0
    %2125 = vmatpush1.bf16.msra.mxu0 0
    %2126 = vmatprep.subr.bf16.mxu0 0
    %2127 = vmatpush1.bf16.msra.mxu0 0
    %2128 = vmatprep.subr.bf16.mxu0 0
    %2129 = vmatpush1.bf16.msra.mxu0 0
    %2130 = vmatprep.subr.bf16.mxu0 0
    %2131 = vmatpush1.bf16.msra.mxu0 0
    %2132 = vmatprep.subr.bf16.mxu0 0
    %2133 = vmatpush1.bf16.msra.mxu0 0
    %2134 = vmatprep.mubr.bf16.mxu0 0
    %2135 = vmatmul.mubr.bf16.gmra.mrb[0].mxu0 %v2101
    %v2136 = vpop.f32.mrb[0].mxu0
    %v2137 = vadd.f32 0.0, %v2136
    %v2138 = vpop.f32.mrb[0].mxu0
    %v2139 = vadd.f32 0.0, %v2138
    %v2140 = vpop.f32.mrb[0].mxu0
    %v2141 = vpop.f32.mrb[0].mxu0
    %2142 = vdwg.mxu0
    %2143 = vmatprep.subr.bf16.mxu0 %v192
    %2144 = vmatpush1.bf16.msra.mxu0 %v191
    %2145 = vmatprep.subr.bf16.mxu0 %v196
    %2146 = vmatpush1.bf16.msra.mxu0 %v195
    %2147 = vmatprep.subr.bf16.mxu0 %v200
    %2148 = vmatpush1.bf16.msra.mxu0 %v199
    %2149 = vmatprep.subr.bf16.mxu0 %v204
    %2150 = vmatpush1.bf16.msra.mxu0 %v203
    %2151 = vmatprep.subr.bf16.mxu0 %v208
    %2152 = vmatpush1.bf16.msra.mxu0 %v207
    %2153 = vmatprep.subr.bf16.mxu0 %v212
    %2154 = vmatpush1.bf16.msra.mxu0 %v211
    %2155 = vmatprep.subr.bf16.mxu0 %v216
    %2156 = vmatpush1.bf16.msra.mxu0 %v215
    %2157 = vmatprep.subr.bf16.mxu0 %v220
    %2158 = vmatpush1.bf16.msra.mxu0 %v219
    %2159 = vmatprep.subr.bf16.mxu0 0
    %2160 = vmatpush1.bf16.msra.mxu0 0
    %2161 = vmatprep.subr.bf16.mxu0 0
    %2162 = vmatpush1.bf16.msra.mxu0 0
    %2163 = vmatprep.subr.bf16.mxu0 0
    %2164 = vmatpush1.bf16.msra.mxu0 0
    %2165 = vmatprep.subr.bf16.mxu0 0
    %2166 = vmatpush1.bf16.msra.mxu0 0
    %2167 = vmatprep.subr.bf16.mxu0 0
    %2168 = vmatpush1.bf16.msra.mxu0 0
    %2169 = vmatprep.subr.bf16.mxu0 0
    %2170 = vmatpush1.bf16.msra.mxu0 0
    %2171 = vmatprep.subr.bf16.mxu0 0
    %2172 = vmatpush1.bf16.msra.mxu0 0
    %2173 = vmatprep.subr.bf16.mxu0 0
    %2174 = vmatpush1.bf16.msra.mxu0 0
    %2175 = vmatprep.mubr.bf16.mxu0 0
    %2176 = vmatmul.mubr.bf16.gmra.mrb[0].mxu0 %v2101
    %v2177 = vpop.f32.mrb[0].mxu0
    %v2178 = vadd.f32 0.0, %v2177
    %v2179 = vpop.f32.mrb[0].mxu0
    %v2180 = vadd.f32 0.0, %v2179
    %v2181 = vpop.f32.mrb[0].mxu0
    %v2182 = vpop.f32.mrb[0].mxu0
    %2183 = vdwg.mxu0
    %v2192 = vunpack.c.l.b16 %v2093
    %v2193 = vunpack.c.l.b16 %v2094
    %v2194 = vunpack.c.l.b16 %v2095
    %v2195 = vunpack.c.l.b16 %v2096
    %v2196 = vunpack.c.l.b16 %v2097
    %v2197 = vunpack.c.l.b16 %v2098
    %v2198 = vunpack.c.l.b16 %v2099
    %v2199 = vunpack.c.l.b16 %v2100
    %v2200 = vpack.c.b16 %v2192, %v2192
    %v2201 = vpack.c.b16 %v2193, %v2193
    %v2202 = vpack.c.b16 %v2194, %v2194
    %v2203 = vpack.c.b16 %v2195, %v2195
    %v2204 = vpack.c.b16 %v2196, %v2196
    %v2205 = vpack.c.b16 %v2197, %v2197
    %v2206 = vpack.c.b16 %v2198, %v2198
    %v2207 = vpack.c.b16 %v2199, %v2199
    %v2208 = vunpack.c.l.b16 %v2200
    %v2209 = vunpack.c.l.b16 %v2201
    %v2210 = vunpack.c.l.b16 %v2202
    %v2211 = vunpack.c.l.b16 %v2203
    %v2212 = vunpack.c.l.b16 %v2204
    %v2213 = vunpack.c.l.b16 %v2205
    %v2214 = vunpack.c.l.b16 %v2206
    %v2215 = vunpack.c.l.b16 %v2207
    %v2216 = vrot.slane %v2209, 7
    %v2217 = vsel %vm368, %v2216, %v2208
    %v2218 = vrot.slane %v2210, 6
    %v2219 = vsel %vm371, %v2218, %v2217
    %v2220 = vrot.slane %v2211, 5
    %v2221 = vsel %vm374, %v2220, %v2219
    %v2222 = vrot.slane %v2212, 4
    %v2223 = vsel %vm377, %v2222, %v2221
    %v2224 = vrot.slane %v2213, 3
    %v2225 = vsel %vm380, %v2224, %v2223
    %v2226 = vrot.slane %v2214, 2
    %v2227 = vsel %vm383, %v2226, %v2225
    %v2228 = vrot.slane %v2215, 1
    %v2229 = vsel %vm386, %v2228, %v2227
    %v2230 = vpack.c.b16 %v2229, %v2229
    %v2232 = vsel %vm409, %v2230, 0
    %2234 = vmatprep.subr.bf16.mxu0 %v402
    %2235 = vmatpush1.bf16.msra.mxu0 %v401
    %2236 = vmatprep.subr.bf16.mxu0 0
    %2237 = vmatpush1.bf16.msra.mxu0 0
    %2238 = vmatprep.subr.bf16.mxu0 0
    %2239 = vmatpush1.bf16.msra.mxu0 0
    %2240 = vmatprep.subr.bf16.mxu0 0
    %2241 = vmatpush1.bf16.msra.mxu0 0
    %2242 = vmatprep.subr.bf16.mxu0 0
    %2243 = vmatpush1.bf16.msra.mxu0 0
    %2244 = vmatprep.subr.bf16.mxu0 0
    %2245 = vmatpush1.bf16.msra.mxu0 0
    %2246 = vmatprep.subr.bf16.mxu0 0
    %2247 = vmatpush1.bf16.msra.mxu0 0
    %2248 = vmatprep.subr.bf16.mxu0 0
    %2249 = vmatpush1.bf16.msra.mxu0 0
    %2250 = vmatprep.subr.bf16.mxu0 0
    %2251 = vmatpush1.bf16.msra.mxu0 0
    %2252 = vmatprep.subr.bf16.mxu0 0
    %2253 = vmatpush1.bf16.msra.mxu0 0
    %2254 = vmatprep.subr.bf16.mxu0 0
    %2255 = vmatpush1.bf16.msra.mxu0 0
    %2256 = vmatprep.subr.bf16.mxu0 0
    %2257 = vmatpush1.bf16.msra.mxu0 0
    %2258 = vmatprep.subr.bf16.mxu0 0
    %2259 = vmatpush1.bf16.msra.mxu0 0
    %2260 = vmatprep.subr.bf16.mxu0 0
    %2261 = vmatpush1.bf16.msra.mxu0 0
    %2262 = vmatprep.subr.bf16.mxu0 0
    %2263 = vmatpush1.bf16.msra.mxu0 0
    %2264 = vmatprep.subr.bf16.mxu0 0
    %2265 = vmatpush1.bf16.msra.mxu0 0
    %2266 = vmatprep.mubr.bf16.mxu0 0
    %2267 = vmatmul.mubr.bf16.gmra.mrb[0].mxu0 %v2232
    %v2268 = vpop.f32.mrb[0].mxu0
    %v2269 = vadd.f32 %v2137, %v2268
    %v2270 = vpop.f32.mrb[0].mxu0
    %v2271 = vadd.f32 %v2139, %v2270
    %v2272 = vpop.f32.mrb[0].mxu0
    %v2273 = vpop.f32.mrb[0].mxu0
    %2274 = vdwg.mxu0
    %2275 = vmatprep.subr.bf16.mxu0 %v404
    %2276 = vmatpush1.bf16.msra.mxu0 %v403
    %2277 = vmatprep.subr.bf16.mxu0 0
    %2278 = vmatpush1.bf16.msra.mxu0 0
    %2279 = vmatprep.subr.bf16.mxu0 0
    %2280 = vmatpush1.bf16.msra.mxu0 0
    %2281 = vmatprep.subr.bf16.mxu0 0
    %2282 = vmatpush1.bf16.msra.mxu0 0
    %2283 = vmatprep.subr.bf16.mxu0 0
    %2284 = vmatpush1.bf16.msra.mxu0 0
    %2285 = vmatprep.subr.bf16.mxu0 0
    %2286 = vmatpush1.bf16.msra.mxu0 0
    %2287 = vmatprep.subr.bf16.mxu0 0
    %2288 = vmatpush1.bf16.msra.mxu0 0
    %2289 = vmatprep.subr.bf16.mxu0 0
    %2290 = vmatpush1.bf16.msra.mxu0 0
    %2291 = vmatprep.subr.bf16.mxu0 0
    %2292 = vmatpush1.bf16.msra.mxu0 0
    %2293 = vmatprep.subr.bf16.mxu0 0
    %2294 = vmatpush1.bf16.msra.mxu0 0
    %2295 = vmatprep.subr.bf16.mxu0 0
    %2296 = vmatpush1.bf16.msra.mxu0 0
    %2297 = vmatprep.subr.bf16.mxu0 0
    %2298 = vmatpush1.bf16.msra.mxu0 0
    %2299 = vmatprep.subr.bf16.mxu0 0
    %2300 = vmatpush1.bf16.msra.mxu0 0
    %2301 = vmatprep.subr.bf16.mxu0 0
    %2302 = vmatpush1.bf16.msra.mxu0 0
    %2303 = vmatprep.subr.bf16.mxu0 0
    %2304 = vmatpush1.bf16.msra.mxu0 0
    %2305 = vmatprep.subr.bf16.mxu0 0
    %2306 = vmatpush1.bf16.msra.mxu0 0
    %2307 = vmatprep.mubr.bf16.mxu0 0
    %2308 = vmatmul.mubr.bf16.gmra.mrb[0].mxu0 %v2232
    %v2309 = vpop.f32.mrb[0].mxu0
    %v2310 = vadd.f32 %v2178, %v2309
    %v2311 = vpop.f32.mrb[0].mxu0
    %v2312 = vadd.f32 %v2180, %v2311
    %v2313 = vpop.f32.mrb[0].mxu0
    %v2314 = vpop.f32.mrb[0].mxu0
    %2315 = vdwg.mxu0
    %v2316 = vadd.f32 %v2269, %v499
    %v2317 = vadd.f32 %v2271, %v503
    %v2318 = vadd.f32 %v2310, %v507
    %v2319 = vadd.f32 %v2312, %v511
    %v2320 = vmul.f32 %v2316, 0.5
    %v2321 = vtanh.pop %v2320
    %v2322 = vmul.f32 %v2321, 0.5
    %v2323 = vadd.f32 %v2322, 0.5
    %v2324 = vmul.f32 %v2317, 0.5
    %v2325 = vtanh.pop %v2324
    %v2326 = vmul.f32 %v2325, 0.5
    %v2327 = vadd.f32 %v2326, 0.5
    %v2328 = vtanh.pop %v2318
    %v2329 = vmul.f32 %v2319, 0.5
    %v2330 = vtanh.pop %v2329
    %v2331 = vmul.f32 %v2330, 0.5
    %v2332 = vadd.f32 %v2331, 0.5
    %v2333 = vmul.f32 %v2327, %v2090
    %v2334 = vmul.f32 %v2323, %v2328
    %v2335 = vadd.f32 %v2333, %v2334
    %v2336 = vtanh.pop %v2335
    %v2337 = vmul.f32 %v2332, %v2336
    %v2338 = vpack.c.bf16 %v2337, %v2337
    %2339 = vmatprep.subr.bf16.mxu0 %v190
    %2340 = vmatpush1.bf16.msra.mxu0 %v189
    %2341 = vmatprep.subr.bf16.mxu0 %v194
    %2342 = vmatpush1.bf16.msra.mxu0 %v193
    %2343 = vmatprep.subr.bf16.mxu0 %v198
    %2344 = vmatpush1.bf16.msra.mxu0 %v197
    %2345 = vmatprep.subr.bf16.mxu0 %v202
    %2346 = vmatpush1.bf16.msra.mxu0 %v201
    %2347 = vmatprep.subr.bf16.mxu0 %v206
    %2348 = vmatpush1.bf16.msra.mxu0 %v205
    %2349 = vmatprep.subr.bf16.mxu0 %v210
    %2350 = vmatpush1.bf16.msra.mxu0 %v209
    %2351 = vmatprep.subr.bf16.mxu0 %v214
    %2352 = vmatpush1.bf16.msra.mxu0 %v213
    %2353 = vmatprep.subr.bf16.mxu0 %v218
    %2354 = vmatpush1.bf16.msra.mxu0 %v217
    %2355 = vmatprep.subr.bf16.mxu0 0
    %2356 = vmatpush1.bf16.msra.mxu0 0
    %2357 = vmatprep.subr.bf16.mxu0 0
    %2358 = vmatpush1.bf16.msra.mxu0 0
    %2359 = vmatprep.subr.bf16.mxu0 0
    %2360 = vmatpush1.bf16.msra.mxu0 0
    %2361 = vmatprep.subr.bf16.mxu0 0
    %2362 = vmatpush1.bf16.msra.mxu0 0
    %2363 = vmatprep.subr.bf16.mxu0 0
    %2364 = vmatpush1.bf16.msra.mxu0 0
    %2365 = vmatprep.subr.bf16.mxu0 0
    %2366 = vmatpush1.bf16.msra.mxu0 0
    %2367 = vmatprep.subr.bf16.mxu0 0
    %2368 = vmatpush1.bf16.msra.mxu0 0
    %2369 = vmatprep.subr.bf16.mxu0 0
    %2370 = vmatpush1.bf16.msra.mxu0 0
    %2371 = vmatprep.mubr.bf16.mxu0 0
    %2372 = vmatmul.mubr.bf16.gmra.mrb[0].mxu0 %v2338
    %v2373 = vpop.f32.mrb[0].mxu0
    %v2374 = vadd.f32 0.0, %v2373
    %v2375 = vpop.f32.mrb[0].mxu0
    %v2376 = vadd.f32 0.0, %v2375
    %v2377 = vpop.f32.mrb[0].mxu0
    %v2378 = vpop.f32.mrb[0].mxu0
    %2379 = vdwg.mxu0
    %2380 = vmatprep.subr.bf16.mxu0 %v192
    %2381 = vmatpush1.bf16.msra.mxu0 %v191
    %2382 = vmatprep.subr.bf16.mxu0 %v196
    %2383 = vmatpush1.bf16.msra.mxu0 %v195
    %2384 = vmatprep.subr.bf16.mxu0 %v200
    %2385 = vmatpush1.bf16.msra.mxu0 %v199
    %2386 = vmatprep.subr.bf16.mxu0 %v204
    %2387 = vmatpush1.bf16.msra.mxu0 %v203
    %2388 = vmatprep.subr.bf16.mxu0 %v208
    %2389 = vmatpush1.bf16.msra.mxu0 %v207
    %2390 = vmatprep.subr.bf16.mxu0 %v212
    %2391 = vmatpush1.bf16.msra.mxu0 %v211
    %2392 = vmatprep.subr.bf16.mxu0 %v216
    %2393 = vmatpush1.bf16.msra.mxu0 %v215
    %2394 = vmatprep.subr.bf16.mxu0 %v220
    %2395 = vmatpush1.bf16.msra.mxu0 %v219
    %2396 = vmatprep.subr.bf16.mxu0 0
    %2397 = vmatpush1.bf16.msra.mxu0 0
    %2398 = vmatprep.subr.bf16.mxu0 0
    %2399 = vmatpush1.bf16.msra.mxu0 0
    %2400 = vmatprep.subr.bf16.mxu0 0
    %2401 = vmatpush1.bf16.msra.mxu0 0
    %2402 = vmatprep.subr.bf16.mxu0 0
    %2403 = vmatpush1.bf16.msra.mxu0 0
    %2404 = vmatprep.subr.bf16.mxu0 0
    %2405 = vmatpush1.bf16.msra.mxu0 0
    %2406 = vmatprep.subr.bf16.mxu0 0
    %2407 = vmatpush1.bf16.msra.mxu0 0
    %2408 = vmatprep.subr.bf16.mxu0 0
    %2409 = vmatpush1.bf16.msra.mxu0 0
    %2410 = vmatprep.subr.bf16.mxu0 0
    %2411 = vmatpush1.bf16.msra.mxu0 0
    %2412 = vmatprep.mubr.bf16.mxu0 0
    %2413 = vmatmul.mubr.bf16.gmra.mrb[0].mxu0 %v2338
    %v2414 = vpop.f32.mrb[0].mxu0
    %v2415 = vadd.f32 0.0, %v2414
    %v2416 = vpop.f32.mrb[0].mxu0
    %v2417 = vadd.f32 0.0, %v2416
    %v2418 = vpop.f32.mrb[0].mxu0
    %v2419 = vpop.f32.mrb[0].mxu0
    %2420 = vdwg.mxu0
    %v2421 = vrot.slane %v2208, 1
    %v2422 = vsel %vm368, %v2209, %v2421
    %v2423 = vrot.slane %v2210, 7
    %v2424 = vsel %vm371, %v2423, %v2422
    %v2425 = vrot.slane %v2211, 6
    %v2426 = vsel %vm374, %v2425, %v2424
    %v2427 = vrot.slane %v2212, 5
    %v2428 = vsel %vm377, %v2427, %v2426
    %v2429 = vrot.slane %v2213, 4
    %v2430 = vsel %vm380, %v2429, %v2428
    %v2431 = vrot.slane %v2214, 3
    %v2432 = vsel %vm383, %v2431, %v2430
    %v2433 = vrot.slane %v2215, 2
    %v2434 = vsel %vm386, %v2433, %v2432
    %v2435 = vpack.c.b16 %v2434, %v2434
    %v2437 = vsel %vm409, %v2435, 0
    %2439 = vmatprep.subr.bf16.mxu0 %v402
    %2440 = vmatpush1.bf16.msra.mxu0 %v401
    %2441 = vmatprep.subr.bf16.mxu0 0
    %2442 = vmatpush1.bf16.msra.mxu0 0
    %2443 = vmatprep.subr.bf16.mxu0 0
    %2444 = vmatpush1.bf16.msra.mxu0 0
    %2445 = vmatprep.subr.bf16.mxu0 0
    %2446 = vmatpush1.bf16.msra.mxu0 0
    %2447 = vmatprep.subr.bf16.mxu0 0
    %2448 = vmatpush1.bf16.msra.mxu0 0
    %2449 = vmatprep.subr.bf16.mxu0 0
    %2450 = vmatpush1.bf16.msra.mxu0 0
    %2451 = vmatprep.subr.bf16.mxu0 0
    %2452 = vmatpush1.bf16.msra.mxu0 0
    %2453 = vmatprep.subr.bf16.mxu0 0
    %2454 = vmatpush1.bf16.msra.mxu0 0
    %2455 = vmatprep.subr.bf16.mxu0 0
    %2456 = vmatpush1.bf16.msra.mxu0 0
    %2457 = vmatprep.subr.bf16.mxu0 0
    %2458 = vmatpush1.bf16.msra.mxu0 0
    %2459 = vmatprep.subr.bf16.mxu0 0
    %2460 = vmatpush1.bf16.msra.mxu0 0
    %2461 = vmatprep.subr.bf16.mxu0 0
    %2462 = vmatpush1.bf16.msra.mxu0 0
    %2463 = vmatprep.subr.bf16.mxu0 0
    %2464 = vmatpush1.bf16.msra.mxu0 0
    %2465 = vmatprep.subr.bf16.mxu0 0
    %2466 = vmatpush1.bf16.msra.mxu0 0
    %2467 = vmatprep.subr.bf16.mxu0 0
    %2468 = vmatpush1.bf16.msra.mxu0 0
    %2469 = vmatprep.subr.bf16.mxu0 0
    %2470 = vmatpush1.bf16.msra.mxu0 0
    %2471 = vmatprep.mubr.bf16.mxu0 0
    %2472 = vmatmul.mubr.bf16.gmra.mrb[0].mxu0 %v2437
    %v2473 = vpop.f32.mrb[0].mxu0
    %v2474 = vadd.f32 %v2374, %v2473
    %v2475 = vpop.f32.mrb[0].mxu0
    %v2476 = vadd.f32 %v2376, %v2475
    %v2477 = vpop.f32.mrb[0].mxu0
    %v2478 = vpop.f32.mrb[0].mxu0
    %2479 = vdwg.mxu0
    %2480 = vmatprep.subr.bf16.mxu0 %v404
    %2481 = vmatpush1.bf16.msra.mxu0 %v403
    %2482 = vmatprep.subr.bf16.mxu0 0
    %2483 = vmatpush1.bf16.msra.mxu0 0
    %2484 = vmatprep.subr.bf16.mxu0 0
    %2485 = vmatpush1.bf16.msra.mxu0 0
    %2486 = vmatprep.subr.bf16.mxu0 0
    %2487 = vmatpush1.bf16.msra.mxu0 0
    %2488 = vmatprep.subr.bf16.mxu0 0
    %2489 = vmatpush1.bf16.msra.mxu0 0
    %2490 = vmatprep.subr.bf16.mxu0 0
    %2491 = vmatpush1.bf16.msra.mxu0 0
    %2492 = vmatprep.subr.bf16.mxu0 0
    %2493 = vmatpush1.bf16.msra.mxu0 0
    %2494 = vmatprep.subr.bf16.mxu0 0
    %2495 = vmatpush1.bf16.msra.mxu0 0
    %2496 = vmatprep.subr.bf16.mxu0 0
    %2497 = vmatpush1.bf16.msra.mxu0 0
    %2498 = vmatprep.subr.bf16.mxu0 0
    %2499 = vmatpush1.bf16.msra.mxu0 0
    %2500 = vmatprep.subr.bf16.mxu0 0
    %2501 = vmatpush1.bf16.msra.mxu0 0
    %2502 = vmatprep.subr.bf16.mxu0 0
    %2503 = vmatpush1.bf16.msra.mxu0 0
    %2504 = vmatprep.subr.bf16.mxu0 0
    %2505 = vmatpush1.bf16.msra.mxu0 0
    %2506 = vmatprep.subr.bf16.mxu0 0
    %2507 = vmatpush1.bf16.msra.mxu0 0
    %2508 = vmatprep.subr.bf16.mxu0 0
    %2509 = vmatpush1.bf16.msra.mxu0 0
    %2510 = vmatprep.subr.bf16.mxu0 0
    %2511 = vmatpush1.bf16.msra.mxu0 0
    %2512 = vmatprep.mubr.bf16.mxu0 0
    %2513 = vmatmul.mubr.bf16.gmra.mrb[0].mxu0 %v2437
    %v2514 = vpop.f32.mrb[0].mxu0
    %v2515 = vadd.f32 %v2415, %v2514
    %v2516 = vpop.f32.mrb[0].mxu0
    %v2517 = vadd.f32 %v2417, %v2516
    %v2518 = vpop.f32.mrb[0].mxu0
    %v2519 = vpop.f32.mrb[0].mxu0
    %2520 = vdwg.mxu0
    %v2521 = vadd.f32 %v2474, %v499
    %v2522 = vadd.f32 %v2476, %v503
    %v2523 = vadd.f32 %v2515, %v507
    %v2524 = vadd.f32 %v2517, %v511
    %v2525 = vmul.f32 %v2521, 0.5
    %v2526 = vtanh.pop %v2525
    %v2527 = vmul.f32 %v2526, 0.5
    %v2528 = vadd.f32 %v2527, 0.5
    %v2529 = vmul.f32 %v2522, 0.5
    %v2530 = vtanh.pop %v2529
    %v2531 = vmul.f32 %v2530, 0.5
    %v2532 = vadd.f32 %v2531, 0.5
    %v2533 = vtanh.pop %v2523
    %v2534 = vmul.f32 %v2524, 0.5
    %v2535 = vtanh.pop %v2534
    %v2536 = vmul.f32 %v2535, 0.5
    %v2537 = vadd.f32 %v2536, 0.5
    %v2538 = vmul.f32 %v2532, %v2335
    %v2539 = vmul.f32 %v2528, %v2533
    %v2540 = vadd.f32 %v2538, %v2539
    %v2541 = vtanh.pop %v2540
    %v2542 = vmul.f32 %v2537, %v2541
    %v2543 = vld [vmem:[%s0 + $0x4] sm:$0x2]
    %v2544 = vld [vmem:[%s0 + $0xc] sm:$0x2]
    %v2545 = vld [vmem:[%s0 + $0x14] sm:$0x2]
    %v2546 = vld [vmem:[%s0 + $0x1c] sm:$0x2]
    %v2547 = vld [vmem:[%s0 + $0x24] sm:$0x2]
    %v2548 = vld [vmem:[%s0 + $0x2c] sm:$0x2]
    %v2549 = vld [vmem:[%s0 + $0x34] sm:$0x2]
    %v2550 = vld [vmem:[%s0 + $0x3c] sm:$0x2]
    %v2551 = vpack.c.bf16 %v2542, %v2542
    %2552 = vmatprep.subr.bf16.mxu0 %v190
    %2553 = vmatpush1.bf16.msra.mxu0 %v189
    %2554 = vmatprep.subr.bf16.mxu0 %v194
    %2555 = vmatpush1.bf16.msra.mxu0 %v193
    %2556 = vmatprep.subr.bf16.mxu0 %v198
    %2557 = vmatpush1.bf16.msra.mxu0 %v197
    %2558 = vmatprep.subr.bf16.mxu0 %v202
    %2559 = vmatpush1.bf16.msra.mxu0 %v201
    %2560 = vmatprep.subr.bf16.mxu0 %v206
    %2561 = vmatpush1.bf16.msra.mxu0 %v205
    %2562 = vmatprep.subr.bf16.mxu0 %v210
    %2563 = vmatpush1.bf16.msra.mxu0 %v209
    %2564 = vmatprep.subr.bf16.mxu0 %v214
    %2565 = vmatpush1.bf16.msra.mxu0 %v213
    %2566 = vmatprep.subr.bf16.mxu0 %v218
    %2567 = vmatpush1.bf16.msra.mxu0 %v217
    %2568 = vmatprep.subr.bf16.mxu0 0
    %2569 = vmatpush1.bf16.msra.mxu0 0
    %2570 = vmatprep.subr.bf16.mxu0 0
    %2571 = vmatpush1.bf16.msra.mxu0 0
    %2572 = vmatprep.subr.bf16.mxu0 0
    %2573 = vmatpush1.bf16.msra.mxu0 0
    %2574 = vmatprep.subr.bf16.mxu0 0
    %2575 = vmatpush1.bf16.msra.mxu0 0
    %2576 = vmatprep.subr.bf16.mxu0 0
    %2577 = vmatpush1.bf16.msra.mxu0 0
    %2578 = vmatprep.subr.bf16.mxu0 0
    %2579 = vmatpush1.bf16.msra.mxu0 0
    %2580 = vmatprep.subr.bf16.mxu0 0
    %2581 = vmatpush1.bf16.msra.mxu0 0
    %2582 = vmatprep.subr.bf16.mxu0 0
    %2583 = vmatpush1.bf16.msra.mxu0 0
    %2584 = vmatprep.mubr.bf16.mxu0 0
    %2585 = vmatmul.mubr.bf16.gmra.mrb[0].mxu0 %v2551
    %v2586 = vpop.f32.mrb[0].mxu0
    %v2587 = vadd.f32 0.0, %v2586
    %v2588 = vpop.f32.mrb[0].mxu0
    %v2589 = vadd.f32 0.0, %v2588
    %v2590 = vpop.f32.mrb[0].mxu0
    %v2591 = vpop.f32.mrb[0].mxu0
    %2592 = vdwg.mxu0
    %2593 = vmatprep.subr.bf16.mxu0 %v192
    %2594 = vmatpush1.bf16.msra.mxu0 %v191
    %2595 = vmatprep.subr.bf16.mxu0 %v196
    %2596 = vmatpush1.bf16.msra.mxu0 %v195
    %2597 = vmatprep.subr.bf16.mxu0 %v200
    %2598 = vmatpush1.bf16.msra.mxu0 %v199
    %2599 = vmatprep.subr.bf16.mxu0 %v204
    %2600 = vmatpush1.bf16.msra.mxu0 %v203
    %2601 = vmatprep.subr.bf16.mxu0 %v208
    %2602 = vmatpush1.bf16.msra.mxu0 %v207
    %2603 = vmatprep.subr.bf16.mxu0 %v212
    %2604 = vmatpush1.bf16.msra.mxu0 %v211
    %2605 = vmatprep.subr.bf16.mxu0 %v216
    %2606 = vmatpush1.bf16.msra.mxu0 %v215
    %2607 = vmatprep.subr.bf16.mxu0 %v220
    %2608 = vmatpush1.bf16.msra.mxu0 %v219
    %2609 = vmatprep.subr.bf16.mxu0 0
    %2610 = vmatpush1.bf16.msra.mxu0 0
    %2611 = vmatprep.subr.bf16.mxu0 0
    %2612 = vmatpush1.bf16.msra.mxu0 0
    %2613 = vmatprep.subr.bf16.mxu0 0
    %2614 = vmatpush1.bf16.msra.mxu0 0
    %2615 = vmatprep.subr.bf16.mxu0 0
    %2616 = vmatpush1.bf16.msra.mxu0 0
    %2617 = vmatprep.subr.bf16.mxu0 0
    %2618 = vmatpush1.bf16.msra.mxu0 0
    %2619 = vmatprep.subr.bf16.mxu0 0
    %2620 = vmatpush1.bf16.msra.mxu0 0
    %2621 = vmatprep.subr.bf16.mxu0 0
    %2622 = vmatpush1.bf16.msra.mxu0 0
    %2623 = vmatprep.subr.bf16.mxu0 0
    %2624 = vmatpush1.bf16.msra.mxu0 0
    %2625 = vmatprep.mubr.bf16.mxu0 0
    %2626 = vmatmul.mubr.bf16.gmra.mrb[0].mxu0 %v2551
    %v2627 = vpop.f32.mrb[0].mxu0
    %v2628 = vadd.f32 0.0, %v2627
    %v2629 = vpop.f32.mrb[0].mxu0
    %v2630 = vadd.f32 0.0, %v2629
    %v2631 = vpop.f32.mrb[0].mxu0
    %v2632 = vpop.f32.mrb[0].mxu0
    %2633 = vdwg.mxu0
    %v2642 = vunpack.c.l.b16 %v2543
    %v2643 = vunpack.c.l.b16 %v2544
    %v2644 = vunpack.c.l.b16 %v2545
    %v2645 = vunpack.c.l.b16 %v2546
    %v2646 = vunpack.c.l.b16 %v2547
    %v2647 = vunpack.c.l.b16 %v2548
    %v2648 = vunpack.c.l.b16 %v2549
    %v2649 = vunpack.c.l.b16 %v2550
    %v2650 = vpack.c.b16 %v2642, %v2642
    %v2651 = vpack.c.b16 %v2643, %v2643
    %v2652 = vpack.c.b16 %v2644, %v2644
    %v2653 = vpack.c.b16 %v2645, %v2645
    %v2654 = vpack.c.b16 %v2646, %v2646
    %v2655 = vpack.c.b16 %v2647, %v2647
    %v2656 = vpack.c.b16 %v2648, %v2648
    %v2657 = vpack.c.b16 %v2649, %v2649
    %v2658 = vunpack.c.l.b16 %v2650
    %v2659 = vunpack.c.l.b16 %v2651
    %v2660 = vunpack.c.l.b16 %v2652
    %v2661 = vunpack.c.l.b16 %v2653
    %v2662 = vunpack.c.l.b16 %v2654
    %v2663 = vunpack.c.l.b16 %v2655
    %v2664 = vunpack.c.l.b16 %v2656
    %v2665 = vunpack.c.l.b16 %v2657
    %v2666 = vrot.slane %v2658, 2
    %v2667 = vrot.slane %v2659, 1
    %v2668 = vsel %vm368, %v2667, %v2666
    %v2669 = vsel %vm371, %v2660, %v2668
    %v2670 = vrot.slane %v2661, 7
    %v2671 = vsel %vm374, %v2670, %v2669
    %v2672 = vrot.slane %v2662, 6
    %v2673 = vsel %vm377, %v2672, %v2671
    %v2674 = vrot.slane %v2663, 5
    %v2675 = vsel %vm380, %v2674, %v2673
    %v2676 = vrot.slane %v2664, 4
    %v2677 = vsel %vm383, %v2676, %v2675
    %v2678 = vrot.slane %v2665, 3
    %v2679 = vsel %vm386, %v2678, %v2677
    %v2680 = vpack.c.b16 %v2679, %v2679
    %v2682 = vsel %vm409, %v2680, 0
    %2684 = vmatprep.subr.bf16.mxu0 %v402
    %2685 = vmatpush1.bf16.msra.mxu0 %v401
    %2686 = vmatprep.subr.bf16.mxu0 0
    %2687 = vmatpush1.bf16.msra.mxu0 0
    %2688 = vmatprep.subr.bf16.mxu0 0
    %2689 = vmatpush1.bf16.msra.mxu0 0
    %2690 = vmatprep.subr.bf16.mxu0 0
    %2691 = vmatpush1.bf16.msra.mxu0 0
    %2692 = vmatprep.subr.bf16.mxu0 0
    %2693 = vmatpush1.bf16.msra.mxu0 0
    %2694 = vmatprep.subr.bf16.mxu0 0
    %2695 = vmatpush1.bf16.msra.mxu0 0
    %2696 = vmatprep.subr.bf16.mxu0 0
    %2697 = vmatpush1.bf16.msra.mxu0 0
    %2698 = vmatprep.subr.bf16.mxu0 0
    %2699 = vmatpush1.bf16.msra.mxu0 0
    %2700 = vmatprep.subr.bf16.mxu0 0
    %2701 = vmatpush1.bf16.msra.mxu0 0
    %2702 = vmatprep.subr.bf16.mxu0 0
    %2703 = vmatpush1.bf16.msra.mxu0 0
    %2704 = vmatprep.subr.bf16.mxu0 0
    %2705 = vmatpush1.bf16.msra.mxu0 0
    %2706 = vmatprep.subr.bf16.mxu0 0
    %2707 = vmatpush1.bf16.msra.mxu0 0
    %2708 = vmatprep.subr.bf16.mxu0 0
    %2709 = vmatpush1.bf16.msra.mxu0 0
    %2710 = vmatprep.subr.bf16.mxu0 0
    %2711 = vmatpush1.bf16.msra.mxu0 0
    %2712 = vmatprep.subr.bf16.mxu0 0
    %2713 = vmatpush1.bf16.msra.mxu0 0
    %2714 = vmatprep.subr.bf16.mxu0 0
    %2715 = vmatpush1.bf16.msra.mxu0 0
    %2716 = vmatprep.mubr.bf16.mxu0 0
    %2717 = vmatmul.mubr.bf16.gmra.mrb[0].mxu0 %v2682
    %v2718 = vpop.f32.mrb[0].mxu0
    %v2719 = vadd.f32 %v2587, %v2718
    %v2720 = vpop.f32.mrb[0].mxu0
    %v2721 = vadd.f32 %v2589, %v2720
    %v2722 = vpop.f32.mrb[0].mxu0
    %v2723 = vpop.f32.mrb[0].mxu0
    %2724 = vdwg.mxu0
    %2725 = vmatprep.subr.bf16.mxu0 %v404
    %2726 = vmatpush1.bf16.msra.mxu0 %v403
    %2727 = vmatprep.subr.bf16.mxu0 0
    %2728 = vmatpush1.bf16.msra.mxu0 0
    %2729 = vmatprep.subr.bf16.mxu0 0
    %2730 = vmatpush1.bf16.msra.mxu0 0
    %2731 = vmatprep.subr.bf16.mxu0 0
    %2732 = vmatpush1.bf16.msra.mxu0 0
    %2733 = vmatprep.subr.bf16.mxu0 0
    %2734 = vmatpush1.bf16.msra.mxu0 0
    %2735 = vmatprep.subr.bf16.mxu0 0
    %2736 = vmatpush1.bf16.msra.mxu0 0
    %2737 = vmatprep.subr.bf16.mxu0 0
    %2738 = vmatpush1.bf16.msra.mxu0 0
    %2739 = vmatprep.subr.bf16.mxu0 0
    %2740 = vmatpush1.bf16.msra.mxu0 0
    %2741 = vmatprep.subr.bf16.mxu0 0
    %2742 = vmatpush1.bf16.msra.mxu0 0
    %2743 = vmatprep.subr.bf16.mxu0 0
    %2744 = vmatpush1.bf16.msra.mxu0 0
    %2745 = vmatprep.subr.bf16.mxu0 0
    %2746 = vmatpush1.bf16.msra.mxu0 0
    %2747 = vmatprep.subr.bf16.mxu0 0
    %2748 = vmatpush1.bf16.msra.mxu0 0
    %2749 = vmatprep.subr.bf16.mxu0 0
    %2750 = vmatpush1.bf16.msra.mxu0 0
    %2751 = vmatprep.subr.bf16.mxu0 0
    %2752 = vmatpush1.bf16.msra.mxu0 0
    %2753 = vmatprep.subr.bf16.mxu0 0
    %2754 = vmatpush1.bf16.msra.mxu0 0
    %2755 = vmatprep.subr.bf16.mxu0 0
    %2756 = vmatpush1.bf16.msra.mxu0 0
    %2757 = vmatprep.mubr.bf16.mxu0 0
    %2758 = vmatmul.mubr.bf16.gmra.mrb[0].mxu0 %v2682
    %v2759 = vpop.f32.mrb[0].mxu0
    %v2760 = vadd.f32 %v2628, %v2759
    %v2761 = vpop.f32.mrb[0].mxu0
    %v2762 = vadd.f32 %v2630, %v2761
    %v2763 = vpop.f32.mrb[0].mxu0
    %v2764 = vpop.f32.mrb[0].mxu0
    %2765 = vdwg.mxu0
    %v2766 = vadd.f32 %v2719, %v499
    %v2767 = vadd.f32 %v2721, %v503
    %v2768 = vadd.f32 %v2760, %v507
    %v2769 = vadd.f32 %v2762, %v511
    %v2770 = vmul.f32 %v2766, 0.5
    %v2771 = vtanh.pop %v2770
    %v2772 = vmul.f32 %v2771, 0.5
    %v2773 = vadd.f32 %v2772, 0.5
    %v2774 = vmul.f32 %v2767, 0.5
    %v2775 = vtanh.pop %v2774
    %v2776 = vmul.f32 %v2775, 0.5
    %v2777 = vadd.f32 %v2776, 0.5
    %v2778 = vtanh.pop %v2768
    %v2779 = vmul.f32 %v2769, 0.5
    %v2780 = vtanh.pop %v2779
    %v2781 = vmul.f32 %v2780, 0.5
    %v2782 = vadd.f32 %v2781, 0.5
    %v2783 = vmul.f32 %v2777, %v2540
    %v2784 = vmul.f32 %v2773, %v2778
    %v2785 = vadd.f32 %v2783, %v2784
    %v2786 = vtanh.pop %v2785
    %v2787 = vmul.f32 %v2782, %v2786
    %v2788 = vpack.c.bf16 %v2787, %v2787
    %2789 = vmatprep.subr.bf16.mxu0 %v190
    %2790 = vmatpush1.bf16.msra.mxu0 %v189
    %2791 = vmatprep.subr.bf16.mxu0 %v194
    %2792 = vmatpush1.bf16.msra.mxu0 %v193
    %2793 = vmatprep.subr.bf16.mxu0 %v198
    %2794 = vmatpush1.bf16.msra.mxu0 %v197
    %2795 = vmatprep.subr.bf16.mxu0 %v202
    %2796 = vmatpush1.bf16.msra.mxu0 %v201
    %2797 = vmatprep.subr.bf16.mxu0 %v206
    %2798 = vmatpush1.bf16.msra.mxu0 %v205
    %2799 = vmatprep.subr.bf16.mxu0 %v210
    %2800 = vmatpush1.bf16.msra.mxu0 %v209
    %2801 = vmatprep.subr.bf16.mxu0 %v214
    %2802 = vmatpush1.bf16.msra.mxu0 %v213
    %2803 = vmatprep.subr.bf16.mxu0 %v218
    %2804 = vmatpush1.bf16.msra.mxu0 %v217
    %2805 = vmatprep.subr.bf16.mxu0 0
    %2806 = vmatpush1.bf16.msra.mxu0 0
    %2807 = vmatprep.subr.bf16.mxu0 0
    %2808 = vmatpush1.bf16.msra.mxu0 0
    %2809 = vmatprep.subr.bf16.mxu0 0
    %2810 = vmatpush1.bf16.msra.mxu0 0
    %2811 = vmatprep.subr.bf16.mxu0 0
    %2812 = vmatpush1.bf16.msra.mxu0 0
    %2813 = vmatprep.subr.bf16.mxu0 0
    %2814 = vmatpush1.bf16.msra.mxu0 0
    %2815 = vmatprep.subr.bf16.mxu0 0
    %2816 = vmatpush1.bf16.msra.mxu0 0
    %2817 = vmatprep.subr.bf16.mxu0 0
    %2818 = vmatpush1.bf16.msra.mxu0 0
    %2819 = vmatprep.subr.bf16.mxu0 0
    %2820 = vmatpush1.bf16.msra.mxu0 0
    %2821 = vmatprep.mubr.bf16.mxu0 0
    %2822 = vmatmul.mubr.bf16.gmra.mrb[0].mxu0 %v2788
    %v2823 = vpop.f32.mrb[0].mxu0
    %v2824 = vadd.f32 0.0, %v2823
    %v2825 = vpop.f32.mrb[0].mxu0
    %v2826 = vadd.f32 0.0, %v2825
    %v2827 = vpop.f32.mrb[0].mxu0
    %v2828 = vpop.f32.mrb[0].mxu0
    %2829 = vdwg.mxu0
    %2830 = vmatprep.subr.bf16.mxu0 %v192
    %2831 = vmatpush1.bf16.msra.mxu0 %v191
    %2832 = vmatprep.subr.bf16.mxu0 %v196
    %2833 = vmatpush1.bf16.msra.mxu0 %v195
    %2834 = vmatprep.subr.bf16.mxu0 %v200
    %2835 = vmatpush1.bf16.msra.mxu0 %v199
    %2836 = vmatprep.subr.bf16.mxu0 %v204
    %2837 = vmatpush1.bf16.msra.mxu0 %v203
    %2838 = vmatprep.subr.bf16.mxu0 %v208
    %2839 = vmatpush1.bf16.msra.mxu0 %v207
    %2840 = vmatprep.subr.bf16.mxu0 %v212
    %2841 = vmatpush1.bf16.msra.mxu0 %v211
    %2842 = vmatprep.subr.bf16.mxu0 %v216
    %2843 = vmatpush1.bf16.msra.mxu0 %v215
    %2844 = vmatprep.subr.bf16.mxu0 %v220
    %2845 = vmatpush1.bf16.msra.mxu0 %v219
    %2846 = vmatprep.subr.bf16.mxu0 0
    %2847 = vmatpush1.bf16.msra.mxu0 0
    %2848 = vmatprep.subr.bf16.mxu0 0
    %2849 = vmatpush1.bf16.msra.mxu0 0
    %2850 = vmatprep.subr.bf16.mxu0 0
    %2851 = vmatpush1.bf16.msra.mxu0 0
    %2852 = vmatprep.subr.bf16.mxu0 0
    %2853 = vmatpush1.bf16.msra.mxu0 0
    %2854 = vmatprep.subr.bf16.mxu0 0
    %2855 = vmatpush1.bf16.msra.mxu0 0
    %2856 = vmatprep.subr.bf16.mxu0 0
    %2857 = vmatpush1.bf16.msra.mxu0 0
    %2858 = vmatprep.subr.bf16.mxu0 0
    %2859 = vmatpush1.bf16.msra.mxu0 0
    %2860 = vmatprep.subr.bf16.mxu0 0
    %2861 = vmatpush1.bf16.msra.mxu0 0
    %2862 = vmatprep.mubr.bf16.mxu0 0
    %2863 = vmatmul.mubr.bf16.gmra.mrb[0].mxu0 %v2788
    %v2864 = vpop.f32.mrb[0].mxu0
    %v2865 = vadd.f32 0.0, %v2864
    %v2866 = vpop.f32.mrb[0].mxu0
    %v2867 = vadd.f32 0.0, %v2866
    %v2868 = vpop.f32.mrb[0].mxu0
    %v2869 = vpop.f32.mrb[0].mxu0
    %2870 = vdwg.mxu0
    %v2871 = vrot.slane %v2658, 3
    %v2872 = vrot.slane %v2659, 2
    %v2873 = vsel %vm368, %v2872, %v2871
    %v2874 = vrot.slane %v2660, 1
    %v2875 = vsel %vm371, %v2874, %v2873
    %v2876 = vsel %vm374, %v2661, %v2875
    %v2877 = vrot.slane %v2662, 7
    %v2878 = vsel %vm377, %v2877, %v2876
    %v2879 = vrot.slane %v2663, 6
    %v2880 = vsel %vm380, %v2879, %v2878
    %v2881 = vrot.slane %v2664, 5
    %v2882 = vsel %vm383, %v2881, %v2880
    %v2883 = vrot.slane %v2665, 4
    %v2884 = vsel %vm386, %v2883, %v2882
    %v2885 = vpack.c.b16 %v2884, %v2884
    %v2887 = vsel %vm409, %v2885, 0
    %2889 = vmatprep.subr.bf16.mxu0 %v402
    %2890 = vmatpush1.bf16.msra.mxu0 %v401
    %2891 = vmatprep.subr.bf16.mxu0 0
    %2892 = vmatpush1.bf16.msra.mxu0 0
    %2893 = vmatprep.subr.bf16.mxu0 0
    %2894 = vmatpush1.bf16.msra.mxu0 0
    %2895 = vmatprep.subr.bf16.mxu0 0
    %2896 = vmatpush1.bf16.msra.mxu0 0
    %2897 = vmatprep.subr.bf16.mxu0 0
    %2898 = vmatpush1.bf16.msra.mxu0 0
    %2899 = vmatprep.subr.bf16.mxu0 0
    %2900 = vmatpush1.bf16.msra.mxu0 0
    %2901 = vmatprep.subr.bf16.mxu0 0
    %2902 = vmatpush1.bf16.msra.mxu0 0
    %2903 = vmatprep.subr.bf16.mxu0 0
    %2904 = vmatpush1.bf16.msra.mxu0 0
    %2905 = vmatprep.subr.bf16.mxu0 0
    %2906 = vmatpush1.bf16.msra.mxu0 0
    %2907 = vmatprep.subr.bf16.mxu0 0
    %2908 = vmatpush1.bf16.msra.mxu0 0
    %2909 = vmatprep.subr.bf16.mxu0 0
    %2910 = vmatpush1.bf16.msra.mxu0 0
    %2911 = vmatprep.subr.bf16.mxu0 0
    %2912 = vmatpush1.bf16.msra.mxu0 0
    %2913 = vmatprep.subr.bf16.mxu0 0
    %2914 = vmatpush1.bf16.msra.mxu0 0
    %2915 = vmatprep.subr.bf16.mxu0 0
    %2916 = vmatpush1.bf16.msra.mxu0 0
    %2917 = vmatprep.subr.bf16.mxu0 0
    %2918 = vmatpush1.bf16.msra.mxu0 0
    %2919 = vmatprep.subr.bf16.mxu0 0
    %2920 = vmatpush1.bf16.msra.mxu0 0
    %2921 = vmatprep.mubr.bf16.mxu0 0
    %2922 = vmatmul.mubr.bf16.gmra.mrb[0].mxu0 %v2887
    %v2923 = vpop.f32.mrb[0].mxu0
    %v2924 = vadd.f32 %v2824, %v2923
    %v2925 = vpop.f32.mrb[0].mxu0
    %v2926 = vadd.f32 %v2826, %v2925
    %v2927 = vpop.f32.mrb[0].mxu0
    %v2928 = vpop.f32.mrb[0].mxu0
    %2929 = vdwg.mxu0
    %2930 = vmatprep.subr.bf16.mxu0 %v404
    %2931 = vmatpush1.bf16.msra.mxu0 %v403
    %2932 = vmatprep.subr.bf16.mxu0 0
    %2933 = vmatpush1.bf16.msra.mxu0 0
    %2934 = vmatprep.subr.bf16.mxu0 0
    %2935 = vmatpush1.bf16.msra.mxu0 0
    %2936 = vmatprep.subr.bf16.mxu0 0
    %2937 = vmatpush1.bf16.msra.mxu0 0
    %2938 = vmatprep.subr.bf16.mxu0 0
    %2939 = vmatpush1.bf16.msra.mxu0 0
    %2940 = vmatprep.subr.bf16.mxu0 0
    %2941 = vmatpush1.bf16.msra.mxu0 0
    %2942 = vmatprep.subr.bf16.mxu0 0
    %2943 = vmatpush1.bf16.msra.mxu0 0
    %2944 = vmatprep.subr.bf16.mxu0 0
    %2945 = vmatpush1.bf16.msra.mxu0 0
    %2946 = vmatprep.subr.bf16.mxu0 0
    %2947 = vmatpush1.bf16.msra.mxu0 0
    %2948 = vmatprep.subr.bf16.mxu0 0
    %2949 = vmatpush1.bf16.msra.mxu0 0
    %2950 = vmatprep.subr.bf16.mxu0 0
    %2951 = vmatpush1.bf16.msra.mxu0 0
    %2952 = vmatprep.subr.bf16.mxu0 0
    %2953 = vmatpush1.bf16.msra.mxu0 0
    %2954 = vmatprep.subr.bf16.mxu0 0
    %2955 = vmatpush1.bf16.msra.mxu0 0
    %2956 = vmatprep.subr.bf16.mxu0 0
    %2957 = vmatpush1.bf16.msra.mxu0 0
    %2958 = vmatprep.subr.bf16.mxu0 0
    %2959 = vmatpush1.bf16.msra.mxu0 0
    %2960 = vmatprep.subr.bf16.mxu0 0
    %2961 = vmatpush1.bf16.msra.mxu0 0
    %2962 = vmatprep.mubr.bf16.mxu0 0
    %2963 = vmatmul.mubr.bf16.gmra.mrb[0].mxu0 %v2887
    %v2964 = vpop.f32.mrb[0].mxu0
    %v2965 = vadd.f32 %v2865, %v2964
    %v2966 = vpop.f32.mrb[0].mxu0
    %v2967 = vadd.f32 %v2867, %v2966
    %v2968 = vpop.f32.mrb[0].mxu0
    %v2969 = vpop.f32.mrb[0].mxu0
    %2970 = vdwg.mxu0
    %v2971 = vadd.f32 %v2924, %v499
    %v2972 = vadd.f32 %v2926, %v503
    %v2973 = vadd.f32 %v2965, %v507
    %v2974 = vadd.f32 %v2967, %v511
    %v2975 = vmul.f32 %v2971, 0.5
    %v2976 = vtanh.pop %v2975
    %v2977 = vmul.f32 %v2976, 0.5
    %v2978 = vadd.f32 %v2977, 0.5
    %v2979 = vmul.f32 %v2972, 0.5
    %v2980 = vtanh.pop %v2979
    %v2981 = vmul.f32 %v2980, 0.5
    %v2982 = vadd.f32 %v2981, 0.5
    %v2983 = vtanh.pop %v2973
    %v2984 = vmul.f32 %v2974, 0.5
    %v2985 = vtanh.pop %v2984
    %v2986 = vmul.f32 %v2985, 0.5
    %v2987 = vadd.f32 %v2986, 0.5
    %v2988 = vmul.f32 %v2982, %v2785
    %v2989 = vmul.f32 %v2978, %v2983
    %v2990 = vadd.f32 %v2988, %v2989
    %v2991 = vtanh.pop %v2990
    %v2992 = vmul.f32 %v2987, %v2991
    %2993 = vst [vmem:[#allocation2] sm:$0xff] %v2992
    %2994 = vst [vmem:[#allocation3] sm:$0xff] %v2990
    // Predicated region
    $region34: #{tpu_custom_call.1} parent=1 // pred_check
      %p2995 = pneg %p39
    $region35: #{tpu_custom_call.1} parent=1 // pred_check_branch
      %2997 = sbr.rel (%p2995) target = $region37
    $region36: #{tpu_custom_call.1} parent=1 // pred_region
      %v2998 = vpack.c.bf16 %v2992, %v2992
      %v2999 = vld [vmem:[%s4] sm:$0xf]
      %v3000 = vld [vmem:[%s4 + $0x4] sm:$0xf]
      %v3001 = vld [vmem:[%s4 + $0x8] sm:$0xf]
      %v3002 = vld [vmem:[%s4 + $0xc] sm:$0xf]
      %v3003 = vld [vmem:[%s4 + $0x10] sm:$0xf]
      %v3004 = vld [vmem:[%s4 + $0x14] sm:$0xf]
      %v3005 = vld [vmem:[%s4 + $0x18] sm:$0xf]
      %v3006 = vld [vmem:[%s4 + $0x1c] sm:$0xf]
      %v3007 = vld [vmem:[%s4 + $0x20] sm:$0xf]
      %v3008 = vld [vmem:[%s4 + $0x24] sm:$0xf]
      %v3009 = vld [vmem:[%s4 + $0x28] sm:$0xf]
      %v3010 = vld [vmem:[%s4 + $0x2c] sm:$0xf]
      %v3011 = vld [vmem:[%s4 + $0x30] sm:$0xf]
      %v3012 = vld [vmem:[%s4 + $0x34] sm:$0xf]
      %v3013 = vld [vmem:[%s4 + $0x38] sm:$0xf]
      %v3014 = vld [vmem:[%s4 + $0x3c] sm:$0xf]
      %v3015 = vld [vmem:[%s5] sm:$0x1]
      %v3017 = vlaneseq
      %v3018 = vshrl.u32 %v3017, 7
      %v3019 = vsub.s32 0, %v3018
      %v3020 = vrot.slane %v3015, %v3019
      %v3038 = vunpack.c.l.b16 %v2999
      %v3039 = vunpack.c.l.b16 %v3000
      %v3040 = vunpack.c.l.b16 %v3001
      %v3041 = vunpack.c.l.b16 %v3002
      %v3042 = vunpack.c.l.b16 %v3003
      %v3043 = vunpack.c.l.b16 %v3004
      %v3044 = vunpack.c.l.b16 %v3005
      %v3045 = vunpack.c.l.b16 %v3006
      %v3046 = vunpack.c.l.b16 %v3007
      %v3047 = vunpack.c.l.b16 %v3008
      %v3048 = vunpack.c.l.b16 %v3009
      %v3049 = vunpack.c.l.b16 %v3010
      %v3050 = vunpack.c.l.b16 %v3011
      %v3051 = vunpack.c.l.b16 %v3012
      %v3052 = vunpack.c.l.b16 %v3013
      %v3053 = vunpack.c.l.b16 %v3014
      %v3054 = vpack.c.b16 %v3039, %v3038
      %v3055 = vpack.c.b16 %v3041, %v3040
      %v3056 = vpack.c.b16 %v3043, %v3042
      %v3057 = vpack.c.b16 %v3045, %v3044
      %v3058 = vpack.c.b16 %v3047, %v3046
      %v3059 = vpack.c.b16 %v3049, %v3048
      %v3060 = vpack.c.b16 %v3051, %v3050
      %v3061 = vpack.c.b16 %v3053, %v3052
      %3070 = vmatprep.subr.bf16.mxu0 0
      %3071 = vmatpush1.bf16.msra.mxu0 %v3054
      %3072 = vmatprep.subr.bf16.mxu0 0
      %3073 = vmatpush1.bf16.msra.mxu0 %v3055
      %3074 = vmatprep.subr.bf16.mxu0 0
      %3075 = vmatpush1.bf16.msra.mxu0 %v3056
      %3076 = vmatprep.subr.bf16.mxu0 0
      %3077 = vmatpush1.bf16.msra.mxu0 %v3057
      %3078 = vmatprep.subr.bf16.mxu0 0
      %3079 = vmatpush1.bf16.msra.mxu0 %v3058
      %3080 = vmatprep.subr.bf16.mxu0 0
      %3081 = vmatpush1.bf16.msra.mxu0 %v3059
      %3082 = vmatprep.subr.bf16.mxu0 0
      %3083 = vmatpush1.bf16.msra.mxu0 %v3060
      %3084 = vmatprep.subr.bf16.mxu0 0
      %3085 = vmatpush1.bf16.msra.mxu0 %v3061
      %3086 = vmatprep.subr.bf16.mxu0 0
      %3087 = vmatpush1.bf16.msra.mxu0 0
      %3088 = vmatprep.subr.bf16.mxu0 0
      %3089 = vmatpush1.bf16.msra.mxu0 0
      %3090 = vmatprep.subr.bf16.mxu0 0
      %3091 = vmatpush1.bf16.msra.mxu0 0
      %3092 = vmatprep.subr.bf16.mxu0 0
      %3093 = vmatpush1.bf16.msra.mxu0 0
      %3094 = vmatprep.subr.bf16.mxu0 0
      %3095 = vmatpush1.bf16.msra.mxu0 0
      %3096 = vmatprep.subr.bf16.mxu0 0
      %3097 = vmatpush1.bf16.msra.mxu0 0
      %3098 = vmatprep.subr.bf16.mxu0 0
      %3099 = vmatpush1.bf16.msra.mxu0 0
      %3100 = vmatprep.subr.bf16.mxu0 0
      %3101 = vmatpush1.bf16.msra.mxu0 0
      %3102 = vmatprep.mubr.bf16.mxu0 0
      %3103 = vmatmul.mubr.bf16.gmra.mrb[0].mxu0 %v2998
      %v3104 = vpop.f32.mrb[0].mxu0
      %v3105 = vadd.f32 %v3020, %v3104
      %v3106 = vpop.f32.mrb[0].mxu0
      %v3107 = vpop.f32.mrb[0].mxu0
      %v3108 = vpop.f32.mrb[0].mxu0
      %3109 = vdwg.mxu0
      %3110 = vst [vmem:[#allocation7] sm:$0xff] %v3105
    $region37: #{tpu_custom_call.1} parent=1 // pred_fallthru
      _
    // Predicated region
    $region38: #{tpu_custom_call.1} parent=1 // pred_check
      _
    $region39: #{tpu_custom_call.1} parent=1 // pred_check_branch
      %3112 = sbr.rel (0) target = $region41
    $region40: #{tpu_custom_call.1} parent=1 // pred_region
      %s3114 = ssub.s32 128, 128
      %3115 = vsyncadd [#allocation6], %s3114
      %s3117 = sshll.u32 [#allocation7], 4
      %s3118 = int_to_ptr.vmem [resolvable:$true] %s3117
      %3120 = dma.vmem_to_hbm [thread:$0]  %s3118, 128, %s6, [#allocation6]
    $region41: #{tpu_custom_call.1} parent=1 // pred_fallthru
      _
    // Predicated region
    $region42: #{tpu_custom_call.1} parent=1 // pred_check
      _
    $region43: #{tpu_custom_call.1} parent=1 // pred_check_branch
      %3122 = sbr.rel (0) target = $region45
    $region44: #{tpu_custom_call.1} parent=1 // pred_region
      %3123 = dma.done [#allocation6], 128
    $region45: #{tpu_custom_call.1} parent=1 // pred_fallthru
      _
    %3124 = vsyncpa [#allocation5], 1
    %3125 = vsyncpa [#allocation6], 1

</llo_original>
